<compile_context>
chip_gen: v7x
topology: tpu7x:2x2x1
jax: 0.10.0
libtpu: 0.0.40
codegen_flags: <defaults>
</compile_context>

<pallas_src>
import functools

import jax
import jax.numpy as jnp
from jax.experimental import pallas as pl
from jax.experimental.pallas import tpu as pltpu


# ------------------------------ fused kernel -------------------------------


def _fused_block_kernel(patches_ref, w_comb_ref, gb_ref, wqkv_ref, wproj_ref,
                        o_ref, attn_in_ref, *, num_heads, n_batch, hw, eps):
    # patches_ref: (Kp, N*HW) f32   im2col, batch packed into lanes
    # w_comb_ref:  (2C, Kp)  f32    rows [0,C)=conv3x3, rows [C,2C)=shortcut
    #                               (shortcut lives at the center-tap columns)
    # gb_ref:      (2C, 2)   f32    [:,0]=gamma, [:,1]=beta (conv BN then sc BN)
    # wqkv_ref:    (3C, C)   bf16   softmax scale pre-folded into the q rows
    # wproj_ref:   (C, C)    bf16
    # o_ref:       (N, C, HW) f32
    # attn_in_ref: (C, N*HW) f32    VMEM scratch for per-head outputs

    # ---- conv3x3 + shortcut 1x1 in ONE matmul (f32: feeds BN statistics) ----
    conv_sc = jnp.dot(w_comb_ref[...], patches_ref[...],
                      preferred_element_type=jnp.float32)        # (2C, N*HW)
    two_c = conv_sc.shape[0]
    C = two_c // 2

    # ---- BatchNorm (training-mode batch stats) for both branches at once ----
    # two-pass, mean-centered variance (avoids E[x^2] - mean^2 cancellation)
    mean = jnp.mean(conv_sc, axis=-1, keepdims=True)             # (2C, 1)
    centered = conv_sc - mean
    var = jnp.mean(centered * centered, axis=-1, keepdims=True)  # biased, like torch
    scale = gb_ref[:, 0:1] * jax.lax.rsqrt(var + eps)            # gamma/sqrt(var+eps)
    normed = centered * scale + gb_ref[:, 1:2]                   # (2C, N*HW)

    out = jnp.maximum(normed[:C], 0.0)       # ReLU(BN(conv))     (C, N*HW)
    identity = normed[C:]                    # BN(shortcut)       (C, N*HW)

    # ---- fused qkv 1x1 conv (bf16 operands, f32 accumulate) -----------------
    qkv = jnp.dot(wqkv_ref[...], out.astype(jnp.bfloat16),
                  preferred_element_type=jnp.float32)            # (3C, N*HW)
    q = qkv[:C].astype(jnp.bfloat16)
    k = qkv[C:2 * C].astype(jnp.bfloat16)
    v = qkv[2 * C:].astype(jnp.bfloat16)

    hd = C // num_heads
    for n in range(n_batch):                                     # static unroll
        lo = n * hw
        for h in range(num_heads):
            qh = q[h * hd:(h + 1) * hd, lo:lo + hw]              # (hd, HW)
            kh = k[h * hd:(h + 1) * hd, lo:lo + hw]
            vh = v[h * hd:(h + 1) * hd, lo:lo + hw]
            # scores (HWq, HWk); softmax scale already folded into wq rows
            s = jax.lax.dot_general(qh, kh, (((0,), (0,)), ((), ())),
                                    preferred_element_type=jnp.float32)
            s = s - jnp.max(s, axis=-1, keepdims=True)           # f32 max-sub
            e = jnp.exp(s.astype(jnp.bfloat16))                  # bf16 EUP exp
            denom = jnp.sum(e.astype(jnp.float32), axis=-1, keepdims=True)
            pr = e * pl.reciprocal(denom, approx=True).astype(jnp.bfloat16)
            # per-head output, channels-first: (hd, HWq) = vh @ pr^T
            oh = jax.lax.dot_general(vh, pr, (((1,), (1,)), ((), ())),
                                     preferred_element_type=jnp.float32)
            # write head rows directly into scratch (no concatenate relayout)
            attn_in_ref[h * hd:(h + 1) * hd, lo:lo + hw] = oh

    # single projection matmul over all heads and all batch elements
    attn = jnp.dot(wproj_ref[...], attn_in_ref[...].astype(jnp.bfloat16),
                   preferred_element_type=jnp.float32)           # (C, N*HW)

    # residuals: out + attn(out) + BN(shortcut(x)); write lane-dense per batch
    y = out + attn + identity
    for n in range(n_batch):
        o_ref[n] = y[:, n * hw:(n + 1) * hw]


def fused_conv_attn(patches, w_comb, gb, w_qkv, w_proj, *, n_batch, hw,
                    num_heads, eps):
    Kp, NHW = patches.shape
    two_c = w_comb.shape[0]
    C = two_c // 2
    kernel = functools.partial(_fused_block_kernel, num_heads=num_heads,
                               n_batch=n_batch, hw=hw, eps=eps)
    return pl.pallas_call(
        kernel,
        out_shape=jax.ShapeDtypeStruct((n_batch, C, hw), jnp.float32),
        grid=(1,),
        in_specs=[
            pl.BlockSpec((Kp, NHW), lambda i: (0, 0)),
            pl.BlockSpec((two_c, Kp), lambda i: (0, 0)),
            pl.BlockSpec((two_c, 2), lambda i: (0, 0)),
            pl.BlockSpec((3 * C, C), lambda i: (0, 0)),
            pl.BlockSpec((C, C), lambda i: (0, 0)),
        ],
        out_specs=pl.BlockSpec((n_batch, C, hw), lambda i: (0, 0, 0)),
        scratch_shapes=[pltpu.VMEM((C, NHW), jnp.float32)],
        compiler_params=pltpu.CompilerParams(
            dimension_semantics=("arbitrary",)),
    )(patches, w_comb, gb, w_qkv, w_proj)


# ------------------------------ block wrapper ------------------------------


def conv_attn_block(x_nchw, p, *, num_heads=4, eps=1e-5):
    N, Cin, H, W = x_nchw.shape
    Cout = p["w_conv"].shape[0]
    assert Cout % num_heads == 0, "in_channels must be divisible by num_heads"
    HW = H * W
    NHW = N * HW

    # --- im2col, channels-first, batch packed into lanes: (9*Cin, N*HW) ---
    x_pad = jnp.pad(x_nchw, ((0, 0), (0, 0), (1, 1), (1, 1)))
    taps = [jnp.transpose(x_pad[:, :, ky:ky + H, kx:kx + W],
                          (1, 0, 2, 3)).reshape(Cin, NHW)
            for ky in range(3) for kx in range(3)]
    patches = jnp.concatenate(taps, axis=0)                      # (9*Cin, N*HW)
    K = 9 * Cin
    Kp = ((K + 7) // 8) * 8
    if Kp != K:
        patches = jnp.pad(patches, ((0, Kp - K), (0, 0)))

    # --- combined conv3x3 + shortcut-1x1 weight; shortcut at the center tap ---
    w_conv_mat = jnp.transpose(p["w_conv"], (0, 2, 3, 1)).reshape(Cout, K)
    center = 4 * Cin                                             # tap (ky=1,kx=1)
    w_sc_mat = jnp.zeros((Cout, K), jnp.float32).at[:, center:center + Cin].set(
        p["w_sc"])
    w_comb = jnp.concatenate([w_conv_mat, w_sc_mat], axis=0)     # (2*Cout, K)
    if Kp != K:
        w_comb = jnp.pad(w_comb, ((0, 0), (0, Kp - K)))

    # --- BN gamma/beta packed into one (2*Cout, 2) tile -----------------------
    gb = jnp.stack([jnp.concatenate([p["bn_gamma"], p["sc_gamma"]]),
                    jnp.concatenate([p["bn_beta"], p["sc_beta"]])], axis=1)

    # --- attention weights: fold softmax scale into q rows, fuse qkv, bf16 ---
    attn_scale = float((Cout // num_heads) ** -0.5)
    w_qkv = jnp.concatenate(
        [p["w_qkv"][:Cout] * attn_scale, p["w_qkv"][Cout:]], axis=0
    ).astype(jnp.bfloat16)                                       # (3C, C)
    w_proj = p["w_proj"].astype(jnp.bfloat16)                    # (C, C)

    out = fused_conv_attn(patches, w_comb, gb, w_qkv, w_proj,
                          n_batch=N, hw=HW, num_heads=num_heads, eps=eps)
    return out.reshape(N, Cout, H, W)                            # already NCHW


# ------------------------- pure-JAX reference (NCHW) ------------------------


def reference_forward(x, p, *, num_heads=4, eps=1e-5):
    N, Cin, H, W = x.shape
    conv = jax.lax.conv_general_dilated(
        x, p["w_conv"], window_strides=(1, 1), padding=((1, 1), (1, 1)),
        dimension_numbers=("NCHW", "OIHW", "NCHW"))
    mean = jnp.mean(conv, axis=(0, 2, 3))
    var = jnp.var(conv, axis=(0, 2, 3))
    out = (conv - mean[None, :, None, None]) / jnp.sqrt(var[None, :, None, None] + eps)
    out = out * p["bn_gamma"][None, :, None, None] + p["bn_beta"][None, :, None, None]
    out = jnp.maximum(out, 0.0)

    C = out.shape[1]
    hd = C // num_heads
    qkv = jnp.einsum("oc,nchw->nohw", p["w_qkv"], out)
    q, k, v = qkv[:, :C], qkv[:, C:2 * C], qkv[:, 2 * C:]
    q = q.reshape(N, num_heads, hd, H * W)
    k = k.reshape(N, num_heads, hd, H * W)
    v = v.reshape(N, num_heads, hd, H * W)
    scores = jnp.einsum("nhdi,nhdj->nhij", q, k) * (hd ** -0.5)
    probs = jax.nn.softmax(scores, axis=-1)
    o = jnp.einsum("nhij,nhdj->nhid", probs, v)
    o = jnp.transpose(o, (0, 1, 3, 2)).reshape(N, C, H, W)
    attn = jnp.einsum("oc,nchw->nohw", p["w_proj"], o)
    out = out + attn

    sc = jnp.einsum("oc,nchw->nohw", p["w_sc"], x)
    sm = jnp.mean(sc, axis=(0, 2, 3))
    sv = jnp.var(sc, axis=(0, 2, 3))
    identity = (sc - sm[None, :, None, None]) / jnp.sqrt(sv[None, :, None, None] + eps)
    identity = identity * p["sc_gamma"][None, :, None, None] + p["sc_beta"][None, :, None, None]
    return out + identity


# ----------------------------------- main -----------------------------------


if __name__ == "__main__":
    key = jax.random.PRNGKey(0)
    N, Cin, H, W = 2, 4, 16, 16
    Cout, num_heads = 16, 4

    ks = jax.random.split(key, 8)
    x = jax.random.normal(ks[0], (N, Cin, H, W), jnp.float32)
    params = dict(
        w_conv=0.3 * jax.random.normal(ks[1], (Cout, Cin, 3, 3), jnp.float32),
        bn_gamma=1.0 + 0.1 * jax.random.normal(ks[2], (Cout,), jnp.float32),
        bn_beta=0.1 * jax.random.normal(ks[3], (Cout,), jnp.float32),
        w_qkv=(Cout ** -0.5) * jax.random.normal(ks[4], (3 * Cout, Cout), jnp.float32),
        w_proj=(Cout ** -0.5) * jax.random.normal(ks[5], (Cout, Cout), jnp.float32),
        w_sc=(Cin ** -0.5) * jax.random.normal(ks[6], (Cout, Cin), jnp.float32),
        sc_gamma=1.0 + 0.1 * jax.random.normal(ks[7], (Cout,), jnp.float32),
        sc_beta=jnp.zeros((Cout,), jnp.float32),
    )

    fwd = jax.jit(functools.partial(conv_attn_block, num_heads=num_heads))
    out = jax.block_until_ready(fwd(x, params))
    ref = jax.block_until_ready(reference_forward(x, params, num_heads=num_heads))

    assert out.shape == (N, Cout, H, W), out.shape
    max_err = float(jnp.max(jnp.abs(out - ref)))
    assert jnp.allclose(out, ref, rtol=2e-2, atol=2e-2), f"max abs err {max_err}"
    print("KERNEL_OK")
</pallas_src>

<mosaic_0001>
module attributes {stable_mosaic.version = 11 : i64} {
  func.func @_fused_block_kernel(%arg0: i32, %arg1: memref<40x512xf32, #tpu.memory_space<vmem>>, %arg2: memref<32x40xf32, #tpu.memory_space<vmem>>, %arg3: memref<32x2xf32, #tpu.memory_space<vmem>>, %arg4: memref<48x16xbf16, #tpu.memory_space<vmem>>, %arg5: memref<16x16xbf16, #tpu.memory_space<vmem>>, %arg6: memref<2x16x256xf32, #tpu.memory_space<vmem>>, %arg7: memref<16x512xf32, #tpu.memory_space<vmem>>) attributes {dimension_semantics = [#tpu.dimension_semantics<arbitrary>], iteration_bounds = array<i64: 1>, scalar_prefetch = 0 : i64, scratch_operands = 1 : i64, tpu.core_type = #tpu.core_type<tc>, window_params = [{pipeline_mode = #tpu.pipeline_mode<synchronous>, transform_indices = @transform_0, window_bounds = array<i64: 40, 512>}, {pipeline_mode = #tpu.pipeline_mode<synchronous>, transform_indices = @transform_1, window_bounds = array<i64: 32, 40>}, {pipeline_mode = #tpu.pipeline_mode<synchronous>, transform_indices = @transform_2, window_bounds = array<i64: 32, 2>}, {pipeline_mode = #tpu.pipeline_mode<synchronous>, transform_indices = @transform_3, window_bounds = array<i64: 48, 16>}, {pipeline_mode = #tpu.pipeline_mode<synchronous>, transform_indices = @transform_4, window_bounds = array<i64: 16, 16>}, {pipeline_mode = #tpu.pipeline_mode<synchronous>, transform_indices = @transform_5, window_bounds = array<i64: 2, 16, 256>}]} {
    %c0 = arith.constant 0 : index
    %c0_0 = arith.constant 0 : index
    %0 = vector.load %arg2[%c0, %c0_0] : memref<32x40xf32, #tpu.memory_space<vmem>>, vector<32x40xf32>
    %c0_1 = arith.constant 0 : index
    %c0_2 = arith.constant 0 : index
    %1 = vector.load %arg1[%c0_1, %c0_2] : memref<40x512xf32, #tpu.memory_space<vmem>>, vector<40x512xf32>
    %cst = arith.constant dense<0.000000e+00> : vector<32x512xf32>
    %2 = tpu.matmul %0, %1, %cst {dimension_numbers = #tpu.dot_dimension_numbers<[1], [0], [0], [1], [0, 0, 1, 1], [], []>} : vector<32x40xf32>, vector<40x512xf32>, vector<32x512xf32> -> vector<32x512xf32>
    %cst_3 = arith.constant dense<0.000000e+00> : vector<32xf32>
    %3 = vector.multi_reduction <add>, %2, %cst_3 [1] : vector<32x512xf32> to vector<32xf32>
    %4 = vector.shape_cast %3 : vector<32xf32> to vector<32x1xf32>
    %cst_4 = arith.constant 5.120000e+02 : f32
    %5 = vector.broadcast %cst_4 : f32 to vector<32x1xf32>
    %6 = arith.divf %4, %5 : vector<32x1xf32>
    %7 = vector.broadcast %6 : vector<32x1xf32> to vector<32x512xf32>
    %8 = arith.subf %2, %7 : vector<32x512xf32>
    %9 = arith.mulf %8, %8 : vector<32x512xf32>
    %cst_5 = arith.constant dense<0.000000e+00> : vector<32xf32>
    %10 = vector.multi_reduction <add>, %9, %cst_5 [1] : vector<32x512xf32> to vector<32xf32>
    %11 = vector.shape_cast %10 : vector<32xf32> to vector<32x1xf32>
    %cst_6 = arith.constant 5.120000e+02 : f32
    %12 = vector.broadcast %cst_6 : f32 to vector<32x1xf32>
    %13 = arith.divf %11, %12 : vector<32x1xf32>
    %c0_7 = arith.constant 0 : index
    %c0_8 = arith.constant 0 : index
    %14 = vector.load %arg3[%c0_7, %c0_8] : memref<32x2xf32, #tpu.memory_space<vmem>>, vector<32x1xf32>
    %cst_9 = arith.constant 9.99999974E-6 : f32
    %15 = vector.broadcast %cst_9 : f32 to vector<32x1xf32>
    %16 = arith.addf %13, %15 : vector<32x1xf32>
    %17 = math.rsqrt %16 : vector<32x1xf32>
    %18 = arith.mulf %14, %17 : vector<32x1xf32>
    %19 = vector.broadcast %18 : vector<32x1xf32> to vector<32x512xf32>
    %20 = arith.mulf %8, %19 : vector<32x512xf32>
    %c0_10 = arith.constant 0 : index
    %c1 = arith.constant 1 : index
    %21 = vector.load %arg3[%c0_10, %c1] : memref<32x2xf32, #tpu.memory_space<vmem>>, vector<32x1xf32>
    %22 = vector.broadcast %21 : vector<32x1xf32> to vector<32x512xf32>
    %23 = arith.addf %20, %22 : vector<32x512xf32>
    %24 = vector.extract_strided_slice %23 {offsets = [0, 0], sizes = [16, 512], strides = [1, 1]} : vector<32x512xf32> to vector<16x512xf32>
    %cst_11 = arith.constant 0.000000e+00 : f32
    %25 = vector.broadcast %cst_11 : f32 to vector<16x512xf32>
    %26 = arith.maximumf %24, %25 : vector<16x512xf32>
    %27 = vector.extract_strided_slice %23 {offsets = [16, 0], sizes = [16, 512], strides = [1, 1]} : vector<32x512xf32> to vector<16x512xf32>
    %c0_12 = arith.constant 0 : index
    %c0_13 = arith.constant 0 : index
    %28 = vector.load %arg4[%c0_12, %c0_13] : memref<48x16xbf16, #tpu.memory_space<vmem>>, vector<48x16xbf16>
    %29 = arith.truncf %26 : vector<16x512xf32> to vector<16x512xbf16>
    %cst_14 = arith.constant dense<0.000000e+00> : vector<48x512xf32>
    %30 = tpu.matmul %28, %29, %cst_14 {dimension_numbers = #tpu.dot_dimension_numbers<[1], [0], [0], [1], [0, 0, 1, 1], [], []>} : vector<48x16xbf16>, vector<16x512xbf16>, vector<48x512xf32> -> vector<48x512xf32>
    %31 = vector.extract_strided_slice %30 {offsets = [0, 0], sizes = [16, 512], strides = [1, 1]} : vector<48x512xf32> to vector<16x512xf32>
    %32 = arith.truncf %31 : vector<16x512xf32> to vector<16x512xbf16>
    %33 = vector.extract_strided_slice %30 {offsets = [16, 0], sizes = [16, 512], strides = [1, 1]} : vector<48x512xf32> to vector<16x512xf32>
    %34 = arith.truncf %33 : vector<16x512xf32> to vector<16x512xbf16>
    %35 = vector.extract_strided_slice %30 {offsets = [32, 0], sizes = [16, 512], strides = [1, 1]} : vector<48x512xf32> to vector<16x512xf32>
    %36 = arith.truncf %35 : vector<16x512xf32> to vector<16x512xbf16>
    %37 = vector.extract_strided_slice %32 {offsets = [0, 0], sizes = [4, 256], strides = [1, 1]} : vector<16x512xbf16> to vector<4x256xbf16>
    %38 = vector.extract_strided_slice %34 {offsets = [0, 0], sizes = [4, 256], strides = [1, 1]} : vector<16x512xbf16> to vector<4x256xbf16>
    %39 = vector.extract_strided_slice %36 {offsets = [0, 0], sizes = [4, 256], strides = [1, 1]} : vector<16x512xbf16> to vector<4x256xbf16>
    %cst_15 = arith.constant dense<0.000000e+00> : vector<256x256xf32>
    %40 = tpu.matmul %37, %38, %cst_15 {dimension_numbers = #tpu.dot_dimension_numbers<[0], [0], [1], [1], [0, 1, 1, 1], [], []>} : vector<4x256xbf16>, vector<4x256xbf16>, vector<256x256xf32> -> vector<256x256xf32>
    %cst_16 = arith.constant dense<0xFF800000> : vector<256xf32>
    %41 = vector.multi_reduction <maximumf>, %40, %cst_16 [1] : vector<256x256xf32> to vector<256xf32>
    %42 = vector.shape_cast %41 : vector<256xf32> to vector<256x1xf32>
    %43 = vector.broadcast %42 : vector<256x1xf32> to vector<256x256xf32>
    %44 = arith.subf %40, %43 : vector<256x256xf32>
    %45 = arith.truncf %44 : vector<256x256xf32> to vector<256x256xbf16>
    %46 = math.exp %45 : vector<256x256xbf16>
    %47 = arith.extf %46 : vector<256x256xbf16> to vector<256x256xf32>
    %cst_17 = arith.constant dense<0.000000e+00> : vector<256xf32>
    %48 = vector.multi_reduction <add>, %47, %cst_17 [1] : vector<256x256xf32> to vector<256xf32>
    %49 = vector.shape_cast %48 : vector<256xf32> to vector<256x1xf32>
    %50 = tpu.reciprocal %49 {approx = true} : vector<256x1xf32> -> vector<256x1xf32>
    %51 = arith.truncf %50 : vector<256x1xf32> to vector<256x1xbf16>
    %52 = vector.broadcast %51 : vector<256x1xbf16> to vector<256x256xbf16>
    %53 = arith.mulf %46, %52 : vector<256x256xbf16>
    %cst_18 = arith.constant dense<0.000000e+00> : vector<4x256xf32>
    %54 = tpu.matmul %39, %53, %cst_18 {dimension_numbers = #tpu.dot_dimension_numbers<[1], [1], [0], [0], [0, 0, 1, 0], [], []>} : vector<4x256xbf16>, vector<256x256xbf16>, vector<4x256xf32> -> vector<4x256xf32>
    %c0_19 = arith.constant 0 : index
    %c0_20 = arith.constant 0 : index
    %55 = vector.load %arg7[%c0_19, %c0_20] : memref<16x512xf32, #tpu.memory_space<vmem>>, vector<4x256xf32>
    tpu.vector_store %arg7[%c0_19, %c0_20], %54 {strides = array<i32>} : memref<16x512xf32, #tpu.memory_space<vmem>>, vector<4x256xf32>,
    %56 = vector.extract_strided_slice %32 {offsets = [4, 0], sizes = [4, 256], strides = [1, 1]} : vector<16x512xbf16> to vector<4x256xbf16>
    %57 = vector.extract_strided_slice %34 {offsets = [4, 0], sizes = [4, 256], strides = [1, 1]} : vector<16x512xbf16> to vector<4x256xbf16>
    %58 = vector.extract_strided_slice %36 {offsets = [4, 0], sizes = [4, 256], strides = [1, 1]} : vector<16x512xbf16> to vector<4x256xbf16>
    %cst_21 = arith.constant dense<0.000000e+00> : vector<256x256xf32>
    %59 = tpu.matmul %56, %57, %cst_21 {dimension_numbers = #tpu.dot_dimension_numbers<[0], [0], [1], [1], [0, 1, 1, 1], [], []>} : vector<4x256xbf16>, vector<4x256xbf16>, vector<256x256xf32> -> vector<256x256xf32>
    %cst_22 = arith.constant dense<0xFF800000> : vector<256xf32>
    %60 = vector.multi_reduction <maximumf>, %59, %cst_22 [1] : vector<256x256xf32> to vector<256xf32>
    %61 = vector.shape_cast %60 : vector<256xf32> to vector<256x1xf32>
    %62 = vector.broadcast %61 : vector<256x1xf32> to vector<256x256xf32>
    %63 = arith.subf %59, %62 : vector<256x256xf32>
    %64 = arith.truncf %63 : vector<256x256xf32> to vector<256x256xbf16>
    %65 = math.exp %64 : vector<256x256xbf16>
    %66 = arith.extf %65 : vector<256x256xbf16> to vector<256x256xf32>
    %cst_23 = arith.constant dense<0.000000e+00> : vector<256xf32>
    %67 = vector.multi_reduction <add>, %66, %cst_23 [1] : vector<256x256xf32> to vector<256xf32>
    %68 = vector.shape_cast %67 : vector<256xf32> to vector<256x1xf32>
    %69 = tpu.reciprocal %68 {approx = true} : vector<256x1xf32> -> vector<256x1xf32>
    %70 = arith.truncf %69 : vector<256x1xf32> to vector<256x1xbf16>
    %71 = vector.broadcast %70 : vector<256x1xbf16> to vector<256x256xbf16>
    %72 = arith.mulf %65, %71 : vector<256x256xbf16>
    %cst_24 = arith.constant dense<0.000000e+00> : vector<4x256xf32>
    %73 = tpu.matmul %58, %72, %cst_24 {dimension_numbers = #tpu.dot_dimension_numbers<[1], [1], [0], [0], [0, 0, 1, 0], [], []>} : vector<4x256xbf16>, vector<256x256xbf16>, vector<4x256xf32> -> vector<4x256xf32>
    %c4 = arith.constant 4 : index
    %c0_25 = arith.constant 0 : index
    %74 = vector.load %arg7[%c4, %c0_25] : memref<16x512xf32, #tpu.memory_space<vmem>>, vector<4x256xf32>
    tpu.vector_store %arg7[%c4, %c0_25], %73 {strides = array<i32>} : memref<16x512xf32, #tpu.memory_space<vmem>>, vector<4x256xf32>,
    %75 = vector.extract_strided_slice %32 {offsets = [8, 0], sizes = [4, 256], strides = [1, 1]} : vector<16x512xbf16> to vector<4x256xbf16>
    %76 = vector.extract_strided_slice %34 {offsets = [8, 0], sizes = [4, 256], strides = [1, 1]} : vector<16x512xbf16> to vector<4x256xbf16>
    %77 = vector.extract_strided_slice %36 {offsets = [8, 0], sizes = [4, 256], strides = [1, 1]} : vector<16x512xbf16> to vector<4x256xbf16>
    %cst_26 = arith.constant dense<0.000000e+00> : vector<256x256xf32>
    %78 = tpu.matmul %75, %76, %cst_26 {dimension_numbers = #tpu.dot_dimension_numbers<[0], [0], [1], [1], [0, 1, 1, 1], [], []>} : vector<4x256xbf16>, vector<4x256xbf16>, vector<256x256xf32> -> vector<256x256xf32>
    %cst_27 = arith.constant dense<0xFF800000> : vector<256xf32>
    %79 = vector.multi_reduction <maximumf>, %78, %cst_27 [1] : vector<256x256xf32> to vector<256xf32>
    %80 = vector.shape_cast %79 : vector<256xf32> to vector<256x1xf32>
    %81 = vector.broadcast %80 : vector<256x1xf32> to vector<256x256xf32>
    %82 = arith.subf %78, %81 : vector<256x256xf32>
    %83 = arith.truncf %82 : vector<256x256xf32> to vector<256x256xbf16>
    %84 = math.exp %83 : vector<256x256xbf16>
    %85 = arith.extf %84 : vector<256x256xbf16> to vector<256x256xf32>
    %cst_28 = arith.constant dense<0.000000e+00> : vector<256xf32>
    %86 = vector.multi_reduction <add>, %85, %cst_28 [1] : vector<256x256xf32> to vector<256xf32>
    %87 = vector.shape_cast %86 : vector<256xf32> to vector<256x1xf32>
    %88 = tpu.reciprocal %87 {approx = true} : vector<256x1xf32> -> vector<256x1xf32>
    %89 = arith.truncf %88 : vector<256x1xf32> to vector<256x1xbf16>
    %90 = vector.broadcast %89 : vector<256x1xbf16> to vector<256x256xbf16>
    %91 = arith.mulf %84, %90 : vector<256x256xbf16>
    %cst_29 = arith.constant dense<0.000000e+00> : vector<4x256xf32>
    %92 = tpu.matmul %77, %91, %cst_29 {dimension_numbers = #tpu.dot_dimension_numbers<[1], [1], [0], [0], [0, 0, 1, 0], [], []>} : vector<4x256xbf16>, vector<256x256xbf16>, vector<4x256xf32> -> vector<4x256xf32>
    %c8 = arith.constant 8 : index
    %c0_30 = arith.constant 0 : index
    %93 = vector.load %arg7[%c8, %c0_30] : memref<16x512xf32, #tpu.memory_space<vmem>>, vector<4x256xf32>
    tpu.vector_store %arg7[%c8, %c0_30], %92 {strides = array<i32>} : memref<16x512xf32, #tpu.memory_space<vmem>>, vector<4x256xf32>,
    %94 = vector.extract_strided_slice %32 {offsets = [12, 0], sizes = [4, 256], strides = [1, 1]} : vector<16x512xbf16> to vector<4x256xbf16>
    %95 = vector.extract_strided_slice %34 {offsets = [12, 0], sizes = [4, 256], strides = [1, 1]} : vector<16x512xbf16> to vector<4x256xbf16>
    %96 = vector.extract_strided_slice %36 {offsets = [12, 0], sizes = [4, 256], strides = [1, 1]} : vector<16x512xbf16> to vector<4x256xbf16>
    %cst_31 = arith.constant dense<0.000000e+00> : vector<256x256xf32>
    %97 = tpu.matmul %94, %95, %cst_31 {dimension_numbers = #tpu.dot_dimension_numbers<[0], [0], [1], [1], [0, 1, 1, 1], [], []>} : vector<4x256xbf16>, vector<4x256xbf16>, vector<256x256xf32> -> vector<256x256xf32>
    %cst_32 = arith.constant dense<0xFF800000> : vector<256xf32>
    %98 = vector.multi_reduction <maximumf>, %97, %cst_32 [1] : vector<256x256xf32> to vector<256xf32>
    %99 = vector.shape_cast %98 : vector<256xf32> to vector<256x1xf32>
    %100 = vector.broadcast %99 : vector<256x1xf32> to vector<256x256xf32>
    %101 = arith.subf %97, %100 : vector<256x256xf32>
    %102 = arith.truncf %101 : vector<256x256xf32> to vector<256x256xbf16>
    %103 = math.exp %102 : vector<256x256xbf16>
    %104 = arith.extf %103 : vector<256x256xbf16> to vector<256x256xf32>
    %cst_33 = arith.constant dense<0.000000e+00> : vector<256xf32>
    %105 = vector.multi_reduction <add>, %104, %cst_33 [1] : vector<256x256xf32> to vector<256xf32>
    %106 = vector.shape_cast %105 : vector<256xf32> to vector<256x1xf32>
    %107 = tpu.reciprocal %106 {approx = true} : vector<256x1xf32> -> vector<256x1xf32>
    %108 = arith.truncf %107 : vector<256x1xf32> to vector<256x1xbf16>
    %109 = vector.broadcast %108 : vector<256x1xbf16> to vector<256x256xbf16>
    %110 = arith.mulf %103, %109 : vector<256x256xbf16>
    %cst_34 = arith.constant dense<0.000000e+00> : vector<4x256xf32>
    %111 = tpu.matmul %96, %110, %cst_34 {dimension_numbers = #tpu.dot_dimension_numbers<[1], [1], [0], [0], [0, 0, 1, 0], [], []>} : vector<4x256xbf16>, vector<256x256xbf16>, vector<4x256xf32> -> vector<4x256xf32>
    %c12 = arith.constant 12 : index
    %c0_35 = arith.constant 0 : index
    %112 = vector.load %arg7[%c12, %c0_35] : memref<16x512xf32, #tpu.memory_space<vmem>>, vector<4x256xf32>
    tpu.vector_store %arg7[%c12, %c0_35], %111 {strides = array<i32>} : memref<16x512xf32, #tpu.memory_space<vmem>>, vector<4x256xf32>,
    %113 = vector.extract_strided_slice %32 {offsets = [0, 256], sizes = [4, 256], strides = [1, 1]} : vector<16x512xbf16> to vector<4x256xbf16>
    %114 = vector.extract_strided_slice %34 {offsets = [0, 256], sizes = [4, 256], strides = [1, 1]} : vector<16x512xbf16> to vector<4x256xbf16>
    %115 = vector.extract_strided_slice %36 {offsets = [0, 256], sizes = [4, 256], strides = [1, 1]} : vector<16x512xbf16> to vector<4x256xbf16>
    %cst_36 = arith.constant dense<0.000000e+00> : vector<256x256xf32>
    %116 = tpu.matmul %113, %114, %cst_36 {dimension_numbers = #tpu.dot_dimension_numbers<[0], [0], [1], [1], [0, 1, 1, 1], [], []>} : vector<4x256xbf16>, vector<4x256xbf16>, vector<256x256xf32> -> vector<256x256xf32>
    %cst_37 = arith.constant dense<0xFF800000> : vector<256xf32>
    %117 = vector.multi_reduction <maximumf>, %116, %cst_37 [1] : vector<256x256xf32> to vector<256xf32>
    %118 = vector.shape_cast %117 : vector<256xf32> to vector<256x1xf32>
    %119 = vector.broadcast %118 : vector<256x1xf32> to vector<256x256xf32>
    %120 = arith.subf %116, %119 : vector<256x256xf32>
    %121 = arith.truncf %120 : vector<256x256xf32> to vector<256x256xbf16>
    %122 = math.exp %121 : vector<256x256xbf16>
    %123 = arith.extf %122 : vector<256x256xbf16> to vector<256x256xf32>
    %cst_38 = arith.constant dense<0.000000e+00> : vector<256xf32>
    %124 = vector.multi_reduction <add>, %123, %cst_38 [1] : vector<256x256xf32> to vector<256xf32>
    %125 = vector.shape_cast %124 : vector<256xf32> to vector<256x1xf32>
    %126 = tpu.reciprocal %125 {approx = true} : vector<256x1xf32> -> vector<256x1xf32>
    %127 = arith.truncf %126 : vector<256x1xf32> to vector<256x1xbf16>
    %128 = vector.broadcast %127 : vector<256x1xbf16> to vector<256x256xbf16>
    %129 = arith.mulf %122, %128 : vector<256x256xbf16>
    %cst_39 = arith.constant dense<0.000000e+00> : vector<4x256xf32>
    %130 = tpu.matmul %115, %129, %cst_39 {dimension_numbers = #tpu.dot_dimension_numbers<[1], [1], [0], [0], [0, 0, 1, 0], [], []>} : vector<4x256xbf16>, vector<256x256xbf16>, vector<4x256xf32> -> vector<4x256xf32>
    %c0_40 = arith.constant 0 : index
    %c256 = arith.constant 256 : index
    %131 = vector.load %arg7[%c0_40, %c256] : memref<16x512xf32, #tpu.memory_space<vmem>>, vector<4x256xf32>
    tpu.vector_store %arg7[%c0_40, %c256], %130 {strides = array<i32>} : memref<16x512xf32, #tpu.memory_space<vmem>>, vector<4x256xf32>,
    %132 = vector.extract_strided_slice %32 {offsets = [4, 256], sizes = [4, 256], strides = [1, 1]} : vector<16x512xbf16> to vector<4x256xbf16>
    %133 = vector.extract_strided_slice %34 {offsets = [4, 256], sizes = [4, 256], strides = [1, 1]} : vector<16x512xbf16> to vector<4x256xbf16>
    %134 = vector.extract_strided_slice %36 {offsets = [4, 256], sizes = [4, 256], strides = [1, 1]} : vector<16x512xbf16> to vector<4x256xbf16>
    %cst_41 = arith.constant dense<0.000000e+00> : vector<256x256xf32>
    %135 = tpu.matmul %132, %133, %cst_41 {dimension_numbers = #tpu.dot_dimension_numbers<[0], [0], [1], [1], [0, 1, 1, 1], [], []>} : vector<4x256xbf16>, vector<4x256xbf16>, vector<256x256xf32> -> vector<256x256xf32>
    %cst_42 = arith.constant dense<0xFF800000> : vector<256xf32>
    %136 = vector.multi_reduction <maximumf>, %135, %cst_42 [1] : vector<256x256xf32> to vector<256xf32>
    %137 = vector.shape_cast %136 : vector<256xf32> to vector<256x1xf32>
    %138 = vector.broadcast %137 : vector<256x1xf32> to vector<256x256xf32>
    %139 = arith.subf %135, %138 : vector<256x256xf32>
    %140 = arith.truncf %139 : vector<256x256xf32> to vector<256x256xbf16>
    %141 = math.exp %140 : vector<256x256xbf16>
    %142 = arith.extf %141 : vector<256x256xbf16> to vector<256x256xf32>
    %cst_43 = arith.constant dense<0.000000e+00> : vector<256xf32>
    %143 = vector.multi_reduction <add>, %142, %cst_43 [1] : vector<256x256xf32> to vector<256xf32>
    %144 = vector.shape_cast %143 : vector<256xf32> to vector<256x1xf32>
    %145 = tpu.reciprocal %144 {approx = true} : vector<256x1xf32> -> vector<256x1xf32>
    %146 = arith.truncf %145 : vector<256x1xf32> to vector<256x1xbf16>
    %147 = vector.broadcast %146 : vector<256x1xbf16> to vector<256x256xbf16>
    %148 = arith.mulf %141, %147 : vector<256x256xbf16>
    %cst_44 = arith.constant dense<0.000000e+00> : vector<4x256xf32>
    %149 = tpu.matmul %134, %148, %cst_44 {dimension_numbers = #tpu.dot_dimension_numbers<[1], [1], [0], [0], [0, 0, 1, 0], [], []>} : vector<4x256xbf16>, vector<256x256xbf16>, vector<4x256xf32> -> vector<4x256xf32>
    %c4_45 = arith.constant 4 : index
    %c256_46 = arith.constant 256 : index
    %150 = vector.load %arg7[%c4_45, %c256_46] : memref<16x512xf32, #tpu.memory_space<vmem>>, vector<4x256xf32>
    tpu.vector_store %arg7[%c4_45, %c256_46], %149 {strides = array<i32>} : memref<16x512xf32, #tpu.memory_space<vmem>>, vector<4x256xf32>,
    %151 = vector.extract_strided_slice %32 {offsets = [8, 256], sizes = [4, 256], strides = [1, 1]} : vector<16x512xbf16> to vector<4x256xbf16>
    %152 = vector.extract_strided_slice %34 {offsets = [8, 256], sizes = [4, 256], strides = [1, 1]} : vector<16x512xbf16> to vector<4x256xbf16>
    %153 = vector.extract_strided_slice %36 {offsets = [8, 256], sizes = [4, 256], strides = [1, 1]} : vector<16x512xbf16> to vector<4x256xbf16>
    %cst_47 = arith.constant dense<0.000000e+00> : vector<256x256xf32>
    %154 = tpu.matmul %151, %152, %cst_47 {dimension_numbers = #tpu.dot_dimension_numbers<[0], [0], [1], [1], [0, 1, 1, 1], [], []>} : vector<4x256xbf16>, vector<4x256xbf16>, vector<256x256xf32> -> vector<256x256xf32>
    %cst_48 = arith.constant dense<0xFF800000> : vector<256xf32>
    %155 = vector.multi_reduction <maximumf>, %154, %cst_48 [1] : vector<256x256xf32> to vector<256xf32>
    %156 = vector.shape_cast %155 : vector<256xf32> to vector<256x1xf32>
    %157 = vector.broadcast %156 : vector<256x1xf32> to vector<256x256xf32>
    %158 = arith.subf %154, %157 : vector<256x256xf32>
    %159 = arith.truncf %158 : vector<256x256xf32> to vector<256x256xbf16>
    %160 = math.exp %159 : vector<256x256xbf16>
    %161 = arith.extf %160 : vector<256x256xbf16> to vector<256x256xf32>
    %cst_49 = arith.constant dense<0.000000e+00> : vector<256xf32>
    %162 = vector.multi_reduction <add>, %161, %cst_49 [1] : vector<256x256xf32> to vector<256xf32>
    %163 = vector.shape_cast %162 : vector<256xf32> to vector<256x1xf32>
    %164 = tpu.reciprocal %163 {approx = true} : vector<256x1xf32> -> vector<256x1xf32>
    %165 = arith.truncf %164 : vector<256x1xf32> to vector<256x1xbf16>
    %166 = vector.broadcast %165 : vector<256x1xbf16> to vector<256x256xbf16>
    %167 = arith.mulf %160, %166 : vector<256x256xbf16>
    %cst_50 = arith.constant dense<0.000000e+00> : vector<4x256xf32>
    %168 = tpu.matmul %153, %167, %cst_50 {dimension_numbers = #tpu.dot_dimension_numbers<[1], [1], [0], [0], [0, 0, 1, 0], [], []>} : vector<4x256xbf16>, vector<256x256xbf16>, vector<4x256xf32> -> vector<4x256xf32>
    %c8_51 = arith.constant 8 : index
    %c256_52 = arith.constant 256 : index
    %169 = vector.load %arg7[%c8_51, %c256_52] : memref<16x512xf32, #tpu.memory_space<vmem>>, vector<4x256xf32>
    tpu.vector_store %arg7[%c8_51, %c256_52], %168 {strides = array<i32>} : memref<16x512xf32, #tpu.memory_space<vmem>>, vector<4x256xf32>,
    %170 = vector.extract_strided_slice %32 {offsets = [12, 256], sizes = [4, 256], strides = [1, 1]} : vector<16x512xbf16> to vector<4x256xbf16>
    %171 = vector.extract_strided_slice %34 {offsets = [12, 256], sizes = [4, 256], strides = [1, 1]} : vector<16x512xbf16> to vector<4x256xbf16>
    %172 = vector.extract_strided_slice %36 {offsets = [12, 256], sizes = [4, 256], strides = [1, 1]} : vector<16x512xbf16> to vector<4x256xbf16>
    %cst_53 = arith.constant dense<0.000000e+00> : vector<256x256xf32>
    %173 = tpu.matmul %170, %171, %cst_53 {dimension_numbers = #tpu.dot_dimension_numbers<[0], [0], [1], [1], [0, 1, 1, 1], [], []>} : vector<4x256xbf16>, vector<4x256xbf16>, vector<256x256xf32> -> vector<256x256xf32>
    %cst_54 = arith.constant dense<0xFF800000> : vector<256xf32>
    %174 = vector.multi_reduction <maximumf>, %173, %cst_54 [1] : vector<256x256xf32> to vector<256xf32>
    %175 = vector.shape_cast %174 : vector<256xf32> to vector<256x1xf32>
    %176 = vector.broadcast %175 : vector<256x1xf32> to vector<256x256xf32>
    %177 = arith.subf %173, %176 : vector<256x256xf32>
    %178 = arith.truncf %177 : vector<256x256xf32> to vector<256x256xbf16>
    %179 = math.exp %178 : vector<256x256xbf16>
    %180 = arith.extf %179 : vector<256x256xbf16> to vector<256x256xf32>
    %cst_55 = arith.constant dense<0.000000e+00> : vector<256xf32>
    %181 = vector.multi_reduction <add>, %180, %cst_55 [1] : vector<256x256xf32> to vector<256xf32>
    %182 = vector.shape_cast %181 : vector<256xf32> to vector<256x1xf32>
    %183 = tpu.reciprocal %182 {approx = true} : vector<256x1xf32> -> vector<256x1xf32>
    %184 = arith.truncf %183 : vector<256x1xf32> to vector<256x1xbf16>
    %185 = vector.broadcast %184 : vector<256x1xbf16> to vector<256x256xbf16>
    %186 = arith.mulf %179, %185 : vector<256x256xbf16>
    %cst_56 = arith.constant dense<0.000000e+00> : vector<4x256xf32>
    %187 = tpu.matmul %172, %186, %cst_56 {dimension_numbers = #tpu.dot_dimension_numbers<[1], [1], [0], [0], [0, 0, 1, 0], [], []>} : vector<4x256xbf16>, vector<256x256xbf16>, vector<4x256xf32> -> vector<4x256xf32>
    %c12_57 = arith.constant 12 : index
    %c256_58 = arith.constant 256 : index
    %188 = vector.load %arg7[%c12_57, %c256_58] : memref<16x512xf32, #tpu.memory_space<vmem>>, vector<4x256xf32>
    tpu.vector_store %arg7[%c12_57, %c256_58], %187 {strides = array<i32>} : memref<16x512xf32, #tpu.memory_space<vmem>>, vector<4x256xf32>,
    %c0_59 = arith.constant 0 : index
    %c0_60 = arith.constant 0 : index
    %189 = vector.load %arg5[%c0_59, %c0_60] : memref<16x16xbf16, #tpu.memory_space<vmem>>, vector<16x16xbf16>
    %c0_61 = arith.constant 0 : index
    %c0_62 = arith.constant 0 : index
    %190 = vector.load %arg7[%c0_61, %c0_62] : memref<16x512xf32, #tpu.memory_space<vmem>>, vector<16x512xf32>
    %191 = arith.truncf %190 : vector<16x512xf32> to vector<16x512xbf16>
    %cst_63 = arith.constant dense<0.000000e+00> : vector<16x512xf32>
    %192 = tpu.matmul %189, %191, %cst_63 {dimension_numbers = #tpu.dot_dimension_numbers<[1], [0], [0], [1], [0, 0, 1, 1], [], []>} : vector<16x16xbf16>, vector<16x512xbf16>, vector<16x512xf32> -> vector<16x512xf32>
    %193 = arith.addf %26, %192 : vector<16x512xf32>
    %194 = arith.addf %193, %27 : vector<16x512xf32>
    %195 = vector.extract_strided_slice %194 {offsets = [0, 0], sizes = [16, 256], strides = [1, 1]} : vector<16x512xf32> to vector<16x256xf32>
    %c0_64 = arith.constant 0 : index
    %c0_65 = arith.constant 0 : index
    %c0_66 = arith.constant 0 : index
    %196 = vector.load %arg6[%c0_64, %c0_65, %c0_66] : memref<2x16x256xf32, #tpu.memory_space<vmem>>, vector<1x16x256xf32>
    %197 = vector.shape_cast %196 : vector<1x16x256xf32> to vector<16x256xf32>
    %198 = vector.shape_cast %195 : vector<16x256xf32> to vector<1x16x256xf32>
    tpu.vector_store %arg6[%c0_64, %c0_65, %c0_66], %198 {strides = array<i32>} : memref<2x16x256xf32, #tpu.memory_space<vmem>>, vector<1x16x256xf32>,
    %199 = vector.extract_strided_slice %194 {offsets = [0, 256], sizes = [16, 256], strides = [1, 1]} : vector<16x512xf32> to vector<16x256xf32>
    %c1_67 = arith.constant 1 : index
    %c0_68 = arith.constant 0 : index
    %c0_69 = arith.constant 0 : index
    %200 = vector.load %arg6[%c1_67, %c0_68, %c0_69] : memref<2x16x256xf32, #tpu.memory_space<vmem>>, vector<1x16x256xf32>
    %201 = vector.shape_cast %200 : vector<1x16x256xf32> to vector<16x256xf32>
    %202 = vector.shape_cast %199 : vector<16x256xf32> to vector<1x16x256xf32>
    tpu.vector_store %arg6[%c1_67, %c0_68, %c0_69], %202 {strides = array<i32>} : memref<2x16x256xf32, #tpu.memory_space<vmem>>, vector<1x16x256xf32>,
    return
  }
  func.func @transform_0(%arg0: i32) -> (i32, i32) {
    %c0_i32 = arith.constant 0 : i32
    %c0_i32_0 = arith.constant 0 : i32
    %c0_i32_1 = arith.constant 0 : i32
    return %c0_i32, %c0_i32_0 : i32, i32
  }
  func.func @transform_1(%arg0: i32) -> (i32, i32) {
    %c0_i32 = arith.constant 0 : i32
    %c0_i32_0 = arith.constant 0 : i32
    %c0_i32_1 = arith.constant 0 : i32
    return %c0_i32, %c0_i32_0 : i32, i32
  }
  func.func @transform_2(%arg0: i32) -> (i32, i32) {
    %c0_i32 = arith.constant 0 : i32
    %c0_i32_0 = arith.constant 0 : i32
    %c0_i32_1 = arith.constant 0 : i32
    return %c0_i32, %c0_i32_0 : i32, i32
  }
  func.func @transform_3(%arg0: i32) -> (i32, i32) {
    %c0_i32 = arith.constant 0 : i32
    %c0_i32_0 = arith.constant 0 : i32
    %c0_i32_1 = arith.constant 0 : i32
    return %c0_i32, %c0_i32_0 : i32, i32
  }
  func.func @transform_4(%arg0: i32) -> (i32, i32) {
    %c0_i32 = arith.constant 0 : i32
    %c0_i32_0 = arith.constant 0 : i32
    %c0_i32_1 = arith.constant 0 : i32
    return %c0_i32, %c0_i32_0 : i32, i32
  }
  func.func @transform_5(%arg0: i32) -> (i32, i32, i32) {
    %c0_i32 = arith.constant 0 : i32
    %c0_i32_0 = arith.constant 0 : i32
    %c0_i32_1 = arith.constant 0 : i32
    %c0_i32_2 = arith.constant 0 : i32
    return %c0_i32, %c0_i32_0, %c0_i32_1 : i32, i32, i32
  }
}

</mosaic_0001>

<llo_original>
// kernel: conv_attn_block.1
$region0: #{conv_attn_block.1}
  #allocation0 [shape = 'u32[]', space=smem, size = 0x4, offset = 0x4, fixed_abs, tag = 'smem constant byte address 0x4 - core index']
  #allocation1 [shape = 'u32[144,128]{1,0:T(1,128)}', space=vmem, size = 0x12000, scoped, tag = 'internal scratch']
  #allocation2 [shape = 'f32[16,512]{1,0:T(8,128)}', space=vmem, size = 0x8000, scoped, tag = 'scratch operand']
  %s0 = inlined_call_operand.vmem [shape: f32[40,512], index: 0, kind: input, shape index: {}]
  %s1 = inlined_call_operand.vmem [shape: f32[32,40], index: 1, kind: input, shape index: {}]
  %s2 = inlined_call_operand.vmem [shape: f32[32,2], index: 2, kind: input, shape index: {}]
  %s3 = inlined_call_operand.vmem [shape: bf16[48,16], index: 3, kind: input, shape index: {}]
  %s4 = inlined_call_operand.vmem [shape: bf16[16,16], index: 4, kind: input, shape index: {}]
  %s5 = inlined_call_operand.vmem [shape: f32[2,16,256], index: 5, kind: output, shape index: {}]
  %s6 = sld [smem:[#allocation0]]
  $region30: #{conv_attn_block.1} parent=0
    _
  %s8 = ssub.s32 1, %s6
  %s9 = scalar_select 0, %s8, %s6
  // Predicated region
  $region2: #{conv_attn_block.1} parent=0 // pred_check
    _
  $region3: #{conv_attn_block.1} parent=0 // pred_check_branch
    %11 = sbr.rel (0) target = $region5
  $region4: #{conv_attn_block.1} parent=0 // pred_region
    _
  $region5: #{conv_attn_block.1} parent=0 // pred_fallthru
    _
  // Predicated region
  $region6: #{conv_attn_block.1} parent=0 // pred_check
    _
  $region7: #{conv_attn_block.1} parent=0 // pred_check_branch
    %13 = sbr.rel (0) target = $region9
  $region8: #{conv_attn_block.1} parent=0 // pred_region
    _
  $region9: #{conv_attn_block.1} parent=0 // pred_fallthru
    _
  // Predicated region
  $region10: #{conv_attn_block.1} parent=0 // pred_check
    _
  $region11: #{conv_attn_block.1} parent=0 // pred_check_branch
    %15 = sbr.rel (0) target = $region13
  $region12: #{conv_attn_block.1} parent=0 // pred_region
    _
  $region13: #{conv_attn_block.1} parent=0 // pred_fallthru
    _
  // Predicated region
  $region14: #{conv_attn_block.1} parent=0 // pred_check
    _
  $region15: #{conv_attn_block.1} parent=0 // pred_check_branch
    %17 = sbr.rel (0) target = $region17
  $region16: #{conv_attn_block.1} parent=0 // pred_region
    _
  $region17: #{conv_attn_block.1} parent=0 // pred_fallthru
    _
  // Predicated region
  $region18: #{conv_attn_block.1} parent=0 // pred_check
    _
  $region19: #{conv_attn_block.1} parent=0 // pred_check_branch
    %19 = sbr.rel (0) target = $region21
  $region20: #{conv_attn_block.1} parent=0 // pred_region
    _
  $region21: #{conv_attn_block.1} parent=0 // pred_fallthru
    _
  %v21 = vld [vmem:[%s1] sm:$0xff]
  %v22 = vld [vmem:[%s1 + $0x8] sm:$0xff]
  %v23 = vld [vmem:[%s1 + $0x10] sm:$0xff]
  %v24 = vld [vmem:[%s1 + $0x18] sm:$0xff]
  %v25 = vld [vmem:[%s0] sm:$0xff]
  %v26 = vld [vmem:[%s0 + $0x8] sm:$0xff]
  %v27 = vld [vmem:[%s0 + $0x10] sm:$0xff]
  %v28 = vld [vmem:[%s0 + $0x18] sm:$0xff]
  %v29 = vld [vmem:[%s0 + $0x20] sm:$0xff]
  %v30 = vld [vmem:[%s0 + $0x28] sm:$0xff]
  %v31 = vld [vmem:[%s0 + $0x30] sm:$0xff]
  %v32 = vld [vmem:[%s0 + $0x38] sm:$0xff]
  %v33 = vld [vmem:[%s0 + $0x40] sm:$0xff]
  %v34 = vld [vmem:[%s0 + $0x48] sm:$0xff]
  %v35 = vld [vmem:[%s0 + $0x50] sm:$0xff]
  %v36 = vld [vmem:[%s0 + $0x58] sm:$0xff]
  %v37 = vld [vmem:[%s0 + $0x60] sm:$0xff]
  %v38 = vld [vmem:[%s0 + $0x68] sm:$0xff]
  %v39 = vld [vmem:[%s0 + $0x70] sm:$0xff]
  %v40 = vld [vmem:[%s0 + $0x78] sm:$0xff]
  %v41 = vld [vmem:[%s0 + $0x80] sm:$0xff]
  %v42 = vld [vmem:[%s0 + $0x88] sm:$0xff]
  %v43 = vld [vmem:[%s0 + $0x90] sm:$0xff]
  %v44 = vld [vmem:[%s0 + $0x98] sm:$0xff]
  %vm45 = vcmask 326656
  %v47 = vsel %vm45, %v21, 0
  %v50 = vsel %vm45, %v22, 0
  %v53 = vsel %vm45, %v23, 0
  %v56 = vsel %vm45, %v24, 0
  %58 = vmatprep.subr.mxu0 %v26
  %59 = vmatpush1.msra.mxu0 %v25
  %60 = vmatprep.subr.mxu0 %v30
  %61 = vmatpush1.msra.mxu0 %v29
  %62 = vmatprep.subr.mxu0 %v34
  %63 = vmatpush1.msra.mxu0 %v33
  %64 = vmatprep.subr.mxu0 %v38
  %65 = vmatpush1.msra.mxu0 %v37
  %66 = vmatprep.subr.mxu0 %v42
  %67 = vmatpush1.msra.mxu0 %v41
  %68 = vmatprep.subr.mxu0 0.0
  %69 = vmatpush1.msra.mxu0 0.0
  %70 = vmatprep.subr.mxu0 0.0
  %71 = vmatpush1.msra.mxu0 0.0
  %72 = vmatprep.subr.mxu0 0.0
  %73 = vmatpush1.msra.mxu0 0.0
  %74 = vmatprep.subr.mxu0 0.0
  %75 = vmatpush1.msra.mxu0 0.0
  %76 = vmatprep.subr.mxu0 0.0
  %77 = vmatpush1.msra.mxu0 0.0
  %78 = vmatprep.subr.mxu0 0.0
  %79 = vmatpush1.msra.mxu0 0.0
  %80 = vmatprep.subr.mxu0 0.0
  %81 = vmatpush1.msra.mxu0 0.0
  %82 = vmatprep.subr.mxu0 0.0
  %83 = vmatpush1.msra.mxu0 0.0
  %84 = vmatprep.subr.mxu0 0.0
  %85 = vmatpush1.msra.mxu0 0.0
  %86 = vmatprep.subr.mxu0 0.0
  %87 = vmatpush1.msra.mxu0 0.0
  %88 = vmatprep.subr.mxu0 0.0
  %89 = vmatpush1.msra.mxu0 0.0
  %90 = vmatprep.subr.mxu0 0.0
  %91 = vmatpush1.msra.mxu0 0.0
  %92 = vmatprep.subr.mxu0 0.0
  %93 = vmatpush1.msra.mxu0 0.0
  %94 = vmatprep.subr.mxu0 0.0
  %95 = vmatpush1.msra.mxu0 0.0
  %96 = vmatprep.subr.mxu0 0.0
  %97 = vmatpush1.msra.mxu0 0.0
  %98 = vmatprep.subr.mxu0 0.0
  %99 = vmatpush1.msra.mxu0 0.0
  %100 = vmatprep.subr.mxu0 0.0
  %101 = vmatpush1.msra.mxu0 0.0
  %102 = vmatprep.subr.mxu0 0.0
  %103 = vmatpush1.msra.mxu0 0.0
  %104 = vmatprep.subr.mxu0 0.0
  %105 = vmatpush1.msra.mxu0 0.0
  %106 = vmatprep.subr.mxu0 0.0
  %107 = vmatpush1.msra.mxu0 0.0
  %108 = vmatprep.subr.mxu0 0.0
  %109 = vmatpush1.msra.mxu0 0.0
  %110 = vmatprep.subr.mxu0 0.0
  %111 = vmatpush1.msra.mxu0 0.0
  %112 = vmatprep.subr.mxu0 0.0
  %113 = vmatpush1.msra.mxu0 0.0
  %114 = vmatprep.subr.mxu0 0.0
  %115 = vmatpush1.msra.mxu0 0.0
  %116 = vmatprep.subr.mxu0 0.0
  %117 = vmatpush1.msra.mxu0 0.0
  %118 = vmatprep.subr.mxu0 0.0
  %119 = vmatpush1.msra.mxu0 0.0
  %120 = vmatprep.subr.mxu0 0.0
  %121 = vmatpush1.msra.mxu0 0.0
  %122 = vmatprep.mubr.f32.mxu0 0.0
  %123 = vmatmul.mubr.f32.gmra.mrb[0].mxu0 %v47
  %v124 = vpop.f32.mrb[0].mxu0
  %v125 = vadd.f32 0.0, %v124
  %v126 = vpop.f32.mrb[0].mxu0
  %v127 = vadd.f32 0.0, %v126
  %128 = vmatprep.mubr.f32.mxu0 0.0
  %129 = vmatmul.mubr.f32.gmra.mrb[0].mxu0 %v50
  %v130 = vpop.f32.mrb[0].mxu0
  %v131 = vadd.f32 0.0, %v130
  %v132 = vpop.f32.mrb[0].mxu0
  %v133 = vadd.f32 0.0, %v132
  %134 = vmatprep.mubr.f32.mxu0 0.0
  %135 = vmatmul.mubr.f32.gmra.mrb[0].mxu0 %v53
  %v136 = vpop.f32.mrb[0].mxu0
  %v137 = vadd.f32 0.0, %v136
  %v138 = vpop.f32.mrb[0].mxu0
  %v139 = vadd.f32 0.0, %v138
  %140 = vmatprep.mubr.f32.mxu0 0.0
  %141 = vmatmul.mubr.f32.gmra.mrb[0].mxu0 %v56
  %v142 = vpop.f32.mrb[0].mxu0
  %v143 = vadd.f32 0.0, %v142
  %v144 = vpop.f32.mrb[0].mxu0
  %v145 = vadd.f32 0.0, %v144
  %146 = vdwg.mxu0
  %147 = vmatprep.subr.mxu0 %v28
  %148 = vmatpush1.msra.mxu0 %v27
  %149 = vmatprep.subr.mxu0 %v32
  %150 = vmatpush1.msra.mxu0 %v31
  %151 = vmatprep.subr.mxu0 %v36
  %152 = vmatpush1.msra.mxu0 %v35
  %153 = vmatprep.subr.mxu0 %v40
  %154 = vmatpush1.msra.mxu0 %v39
  %155 = vmatprep.subr.mxu0 %v44
  %156 = vmatpush1.msra.mxu0 %v43
  %157 = vmatprep.subr.mxu0 0.0
  %158 = vmatpush1.msra.mxu0 0.0
  %159 = vmatprep.subr.mxu0 0.0
  %160 = vmatpush1.msra.mxu0 0.0
  %161 = vmatprep.subr.mxu0 0.0
  %162 = vmatpush1.msra.mxu0 0.0
  %163 = vmatprep.subr.mxu0 0.0
  %164 = vmatpush1.msra.mxu0 0.0
  %165 = vmatprep.subr.mxu0 0.0
  %166 = vmatpush1.msra.mxu0 0.0
  %167 = vmatprep.subr.mxu0 0.0
  %168 = vmatpush1.msra.mxu0 0.0
  %169 = vmatprep.subr.mxu0 0.0
  %170 = vmatpush1.msra.mxu0 0.0
  %171 = vmatprep.subr.mxu0 0.0
  %172 = vmatpush1.msra.mxu0 0.0
  %173 = vmatprep.subr.mxu0 0.0
  %174 = vmatpush1.msra.mxu0 0.0
  %175 = vmatprep.subr.mxu0 0.0
  %176 = vmatpush1.msra.mxu0 0.0
  %177 = vmatprep.subr.mxu0 0.0
  %178 = vmatpush1.msra.mxu0 0.0
  %179 = vmatprep.subr.mxu0 0.0
  %180 = vmatpush1.msra.mxu0 0.0
  %181 = vmatprep.subr.mxu0 0.0
  %182 = vmatpush1.msra.mxu0 0.0
  %183 = vmatprep.subr.mxu0 0.0
  %184 = vmatpush1.msra.mxu0 0.0
  %185 = vmatprep.subr.mxu0 0.0
  %186 = vmatpush1.msra.mxu0 0.0
  %187 = vmatprep.subr.mxu0 0.0
  %188 = vmatpush1.msra.mxu0 0.0
  %189 = vmatprep.subr.mxu0 0.0
  %190 = vmatpush1.msra.mxu0 0.0
  %191 = vmatprep.subr.mxu0 0.0
  %192 = vmatpush1.msra.mxu0 0.0
  %193 = vmatprep.subr.mxu0 0.0
  %194 = vmatpush1.msra.mxu0 0.0
  %195 = vmatprep.subr.mxu0 0.0
  %196 = vmatpush1.msra.mxu0 0.0
  %197 = vmatprep.subr.mxu0 0.0
  %198 = vmatpush1.msra.mxu0 0.0
  %199 = vmatprep.subr.mxu0 0.0
  %200 = vmatpush1.msra.mxu0 0.0
  %201 = vmatprep.subr.mxu0 0.0
  %202 = vmatpush1.msra.mxu0 0.0
  %203 = vmatprep.subr.mxu0 0.0
  %204 = vmatpush1.msra.mxu0 0.0
  %205 = vmatprep.subr.mxu0 0.0
  %206 = vmatpush1.msra.mxu0 0.0
  %207 = vmatprep.subr.mxu0 0.0
  %208 = vmatpush1.msra.mxu0 0.0
  %209 = vmatprep.subr.mxu0 0.0
  %210 = vmatpush1.msra.mxu0 0.0
  %211 = vmatprep.mubr.f32.mxu0 0.0
  %212 = vmatmul.mubr.f32.gmra.mrb[0].mxu0 %v47
  %v213 = vpop.f32.mrb[0].mxu0
  %v214 = vadd.f32 0.0, %v213
  %v215 = vpop.f32.mrb[0].mxu0
  %v216 = vadd.f32 0.0, %v215
  %217 = vmatprep.mubr.f32.mxu0 0.0
  %218 = vmatmul.mubr.f32.gmra.mrb[0].mxu0 %v50
  %v219 = vpop.f32.mrb[0].mxu0
  %v220 = vadd.f32 0.0, %v219
  %v221 = vpop.f32.mrb[0].mxu0
  %v222 = vadd.f32 0.0, %v221
  %223 = vmatprep.mubr.f32.mxu0 0.0
  %224 = vmatmul.mubr.f32.gmra.mrb[0].mxu0 %v53
  %v225 = vpop.f32.mrb[0].mxu0
  %v226 = vadd.f32 0.0, %v225
  %v227 = vpop.f32.mrb[0].mxu0
  %v228 = vadd.f32 0.0, %v227
  %229 = vmatprep.mubr.f32.mxu0 0.0
  %230 = vmatmul.mubr.f32.gmra.mrb[0].mxu0 %v56
  %v231 = vpop.f32.mrb[0].mxu0
  %v232 = vadd.f32 0.0, %v231
  %v233 = vpop.f32.mrb[0].mxu0
  %v234 = vadd.f32 0.0, %v233
  %235 = vdwg.mxu0
  %v236 = vadd.f32 %v125, %v127
  %v237 = vadd.f32 %v236, %v214
  %v238 = vadd.f32 %v237, %v216
  %239 = vadd.xlane.f32.xlu0 %v238
  %v240 = vpop.xlane.xlu0 %239
  %v241 = vadd.f32 %v131, %v133
  %v242 = vadd.f32 %v241, %v220
  %v243 = vadd.f32 %v242, %v222
  %244 = vadd.xlane.f32.xlu0 %v243
  %v245 = vpop.xlane.xlu0 %244
  %v246 = vadd.f32 %v137, %v139
  %v247 = vadd.f32 %v246, %v226
  %v248 = vadd.f32 %v247, %v228
  %249 = vadd.xlane.f32.xlu0 %v248
  %v250 = vpop.xlane.xlu0 %249
  %v251 = vadd.f32 %v143, %v145
  %v252 = vadd.f32 %v251, %v232
  %v253 = vadd.f32 %v252, %v234
  %254 = vadd.xlane.f32.xlu0 %v253
  %v255 = vpop.xlane.xlu0 %254
  %v256 = vrcp.pop 512.0
  %v257 = vmul.f32 %v240, %v256
  %v258 = vmul.f32 %v245, %v256
  %v259 = vmul.f32 %v250, %v256
  %v260 = vmul.f32 %v255, %v256
  %v261 = vsub.f32 %v125, %v257
  %v262 = vsub.f32 %v127, %v257
  %v263 = vsub.f32 %v214, %v257
  %v264 = vsub.f32 %v216, %v257
  %v265 = vsub.f32 %v131, %v258
  %v266 = vsub.f32 %v133, %v258
  %v267 = vsub.f32 %v220, %v258
  %v268 = vsub.f32 %v222, %v258
  %v269 = vsub.f32 %v137, %v259
  %v270 = vsub.f32 %v139, %v259
  %v271 = vsub.f32 %v226, %v259
  %v272 = vsub.f32 %v228, %v259
  %v273 = vsub.f32 %v143, %v260
  %v274 = vsub.f32 %v145, %v260
  %v275 = vsub.f32 %v232, %v260
  %v276 = vsub.f32 %v234, %v260
  %v277 = vmul.f32 %v261, %v261
  %v278 = vmul.f32 %v262, %v262
  %v279 = vmul.f32 %v263, %v263
  %v280 = vmul.f32 %v264, %v264
  %v281 = vmul.f32 %v265, %v265
  %v282 = vmul.f32 %v266, %v266
  %v283 = vmul.f32 %v267, %v267
  %v284 = vmul.f32 %v268, %v268
  %v285 = vmul.f32 %v269, %v269
  %v286 = vmul.f32 %v270, %v270
  %v287 = vmul.f32 %v271, %v271
  %v288 = vmul.f32 %v272, %v272
  %v289 = vmul.f32 %v273, %v273
  %v290 = vmul.f32 %v274, %v274
  %v291 = vmul.f32 %v275, %v275
  %v292 = vmul.f32 %v276, %v276
  %v293 = vadd.f32 %v277, %v278
  %v294 = vadd.f32 %v293, %v279
  %v295 = vadd.f32 %v294, %v280
  %296 = vadd.xlane.f32.xlu0 %v295
  %v297 = vpop.xlane.xlu0 %296
  %v298 = vadd.f32 %v281, %v282
  %v299 = vadd.f32 %v298, %v283
  %v300 = vadd.f32 %v299, %v284
  %301 = vadd.xlane.f32.xlu0 %v300
  %v302 = vpop.xlane.xlu0 %301
  %v303 = vadd.f32 %v285, %v286
  %v304 = vadd.f32 %v303, %v287
  %v305 = vadd.f32 %v304, %v288
  %306 = vadd.xlane.f32.xlu0 %v305
  %v307 = vpop.xlane.xlu0 %306
  %v308 = vadd.f32 %v289, %v290
  %v309 = vadd.f32 %v308, %v291
  %v310 = vadd.f32 %v309, %v292
  %311 = vadd.xlane.f32.xlu0 %v310
  %v312 = vpop.xlane.xlu0 %311
  %v313 = vmul.f32 %v297, %v256
  %v314 = vmul.f32 %v302, %v256
  %v315 = vmul.f32 %v307, %v256
  %v316 = vmul.f32 %v312, %v256
  %v317 = vld [vmem:[%s2] sm:$0xff]
  %v318 = vld [vmem:[%s2 + $0x8] sm:$0xff]
  %v319 = vld [vmem:[%s2 + $0x10] sm:$0xff]
  %v320 = vld [vmem:[%s2 + $0x18] sm:$0xff]
  %v321 = vadd.f32 %v313, 1e-05
  %v322 = vadd.f32 %v314, 1e-05
  %v323 = vadd.f32 %v315, 1e-05
  %v324 = vadd.f32 %v316, 1e-05
  %v325 = vrsqrt.pop %v321
  %v326 = vrsqrt.pop %v322
  %v327 = vrsqrt.pop %v323
  %v328 = vrsqrt.pop %v324
  %v329 = vmul.f32 %v317, %v325
  %v330 = vmul.f32 %v318, %v326
  %v331 = vmul.f32 %v319, %v327
  %v332 = vmul.f32 %v320, %v328
  %334 = vset.pattern.permute.xlu0 0
  %335 = vperm.xlu0 %334, %v329
  %v336 = vpop.permute.xlu0 %335
  %339 = vset.pattern.permute.xlu0 0
  %340 = vperm.xlu0 %339, %v330
  %v341 = vpop.permute.xlu0 %340
  %344 = vset.pattern.permute.xlu0 0
  %345 = vperm.xlu0 %344, %v331
  %v346 = vpop.permute.xlu0 %345
  %349 = vset.pattern.permute.xlu0 0
  %350 = vperm.xlu0 %349, %v332
  %v351 = vpop.permute.xlu0 %350
  %v353 = vmul.f32 %v261, %v336
  %v354 = vmul.f32 %v262, %v336
  %v355 = vmul.f32 %v263, %v336
  %v356 = vmul.f32 %v264, %v336
  %v357 = vmul.f32 %v265, %v341
  %v358 = vmul.f32 %v266, %v341
  %v359 = vmul.f32 %v267, %v341
  %v360 = vmul.f32 %v268, %v341
  %v361 = vmul.f32 %v269, %v346
  %v362 = vmul.f32 %v270, %v346
  %v363 = vmul.f32 %v271, %v346
  %v364 = vmul.f32 %v272, %v346
  %v365 = vmul.f32 %v273, %v351
  %v366 = vmul.f32 %v274, %v351
  %v367 = vmul.f32 %v275, %v351
  %v368 = vmul.f32 %v276, %v351
  %370 = vset.pattern.permute.xlu0 1
  %371 = vperm.xlu0 %370, %v317
  %v372 = vpop.permute.xlu0 %371
  %375 = vset.pattern.permute.xlu0 1
  %376 = vperm.xlu0 %375, %v318
  %v377 = vpop.permute.xlu0 %376
  %380 = vset.pattern.permute.xlu0 1
  %381 = vperm.xlu0 %380, %v319
  %v382 = vpop.permute.xlu0 %381
  %385 = vset.pattern.permute.xlu0 1
  %386 = vperm.xlu0 %385, %v320
  %v387 = vpop.permute.xlu0 %386
  %v389 = vadd.f32 %v353, %v372
  %v390 = vadd.f32 %v354, %v372
  %v391 = vadd.f32 %v355, %v372
  %v392 = vadd.f32 %v356, %v372
  %v393 = vadd.f32 %v357, %v377
  %v394 = vadd.f32 %v358, %v377
  %v395 = vadd.f32 %v359, %v377
  %v396 = vadd.f32 %v360, %v377
  %v397 = vadd.f32 %v361, %v382
  %v398 = vadd.f32 %v362, %v382
  %v399 = vadd.f32 %v363, %v382
  %v400 = vadd.f32 %v364, %v382
  %v401 = vadd.f32 %v365, %v387
  %v402 = vadd.f32 %v366, %v387
  %v403 = vadd.f32 %v367, %v387
  %v404 = vadd.f32 %v368, %v387
  %v405 = vmax.f32 %v389, 0.0
  %v406 = vmax.f32 %v390, 0.0
  %v407 = vmax.f32 %v391, 0.0
  %v408 = vmax.f32 %v392, 0.0
  %v409 = vmax.f32 %v393, 0.0
  %v410 = vmax.f32 %v394, 0.0
  %v411 = vmax.f32 %v395, 0.0
  %v412 = vmax.f32 %v396, 0.0
  %v413 = vld [vmem:[%s3] sm:$0xf]
  %v414 = vld [vmem:[%s3 + $0x4] sm:$0xf]
  %v415 = vld [vmem:[%s3 + $0x8] sm:$0xf]
  %v416 = vld [vmem:[%s3 + $0xc] sm:$0xf]
  %v417 = vld [vmem:[%s3 + $0x10] sm:$0xf]
  %v418 = vld [vmem:[%s3 + $0x14] sm:$0xf]
  %v419 = vpack.c.bf16 %v409, %v405
  %v420 = vpack.c.bf16 %v410, %v406
  %v421 = vpack.c.bf16 %v411, %v407
  %v422 = vpack.c.bf16 %v412, %v408
  %v429 = vunpack.c.l.b16 %v413
  %v430 = vunpack.c.l.b16 %v414
  %v431 = vunpack.c.l.b16 %v415
  %v432 = vunpack.c.l.b16 %v416
  %v433 = vunpack.c.l.b16 %v417
  %v434 = vunpack.c.l.b16 %v418
  %v435 = vpack.c.b16 %v430, %v429
  %v436 = vpack.c.b16 %v432, %v431
  %v437 = vpack.c.b16 %v434, %v433
  %vm438 = vcmask 130048
  %v440 = vsel %vm438, %v435, 0
  %v443 = vsel %vm438, %v436, 0
  %v446 = vsel %vm438, %v437, 0
  %448 = vmatprep.subr.bf16.mxu0 %v420
  %449 = vmatpush1.bf16.msra.mxu0 %v419
  %450 = vmatprep.subr.bf16.mxu0 0
  %451 = vmatpush1.bf16.msra.mxu0 0
  %452 = vmatprep.subr.bf16.mxu0 0
  %453 = vmatpush1.bf16.msra.mxu0 0
  %454 = vmatprep.subr.bf16.mxu0 0
  %455 = vmatpush1.bf16.msra.mxu0 0
  %456 = vmatprep.subr.bf16.mxu0 0
  %457 = vmatpush1.bf16.msra.mxu0 0
  %458 = vmatprep.subr.bf16.mxu0 0
  %459 = vmatpush1.bf16.msra.mxu0 0
  %460 = vmatprep.subr.bf16.mxu0 0
  %461 = vmatpush1.bf16.msra.mxu0 0
  %462 = vmatprep.subr.bf16.mxu0 0
  %463 = vmatpush1.bf16.msra.mxu0 0
  %464 = vmatprep.subr.bf16.mxu0 0
  %465 = vmatpush1.bf16.msra.mxu0 0
  %466 = vmatprep.subr.bf16.mxu0 0
  %467 = vmatpush1.bf16.msra.mxu0 0
  %468 = vmatprep.subr.bf16.mxu0 0
  %469 = vmatpush1.bf16.msra.mxu0 0
  %470 = vmatprep.subr.bf16.mxu0 0
  %471 = vmatpush1.bf16.msra.mxu0 0
  %472 = vmatprep.subr.bf16.mxu0 0
  %473 = vmatpush1.bf16.msra.mxu0 0
  %474 = vmatprep.subr.bf16.mxu0 0
  %475 = vmatpush1.bf16.msra.mxu0 0
  %476 = vmatprep.subr.bf16.mxu0 0
  %477 = vmatpush1.bf16.msra.mxu0 0
  %478 = vmatprep.subr.bf16.mxu0 0
  %479 = vmatpush1.bf16.msra.mxu0 0
  %480 = vmatprep.mubr.bf16.mxu0 0
  %481 = vmatmul.mubr.bf16.gmra.mrb[0].mxu0 %v440
  %v482 = vpop.f32.mrb[0].mxu0
  %v483 = vadd.f32 0.0, %v482
  %v484 = vpop.f32.mrb[0].mxu0
  %v485 = vadd.f32 0.0, %v484
  %v486 = vpop.f32.mrb[0].mxu0
  %v487 = vadd.f32 0.0, %v486
  %v488 = vpop.f32.mrb[0].mxu0
  %v489 = vadd.f32 0.0, %v488
  %490 = vmatprep.mubr.bf16.mxu0 0
  %491 = vmatmul.mubr.bf16.gmra.mrb[0].mxu0 %v443
  %v492 = vpop.f32.mrb[0].mxu0
  %v493 = vadd.f32 0.0, %v492
  %v494 = vpop.f32.mrb[0].mxu0
  %v495 = vadd.f32 0.0, %v494
  %v496 = vpop.f32.mrb[0].mxu0
  %v497 = vadd.f32 0.0, %v496
  %v498 = vpop.f32.mrb[0].mxu0
  %v499 = vadd.f32 0.0, %v498
  %500 = vmatprep.mubr.bf16.mxu0 0
  %501 = vmatmul.mubr.bf16.gmra.mrb[0].mxu0 %v446
  %v502 = vpop.f32.mrb[0].mxu0
  %v503 = vadd.f32 0.0, %v502
  %v504 = vpop.f32.mrb[0].mxu0
  %v505 = vadd.f32 0.0, %v504
  %v506 = vpop.f32.mrb[0].mxu0
  %v507 = vadd.f32 0.0, %v506
  %v508 = vpop.f32.mrb[0].mxu0
  %v509 = vadd.f32 0.0, %v508
  %510 = vdwg.mxu0
  %511 = vmatprep.subr.bf16.mxu0 %v422
  %512 = vmatpush1.bf16.msra.mxu0 %v421
  %513 = vmatprep.subr.bf16.mxu0 0
  %514 = vmatpush1.bf16.msra.mxu0 0
  %515 = vmatprep.subr.bf16.mxu0 0
  %516 = vmatpush1.bf16.msra.mxu0 0
  %517 = vmatprep.subr.bf16.mxu0 0
  %518 = vmatpush1.bf16.msra.mxu0 0
  %519 = vmatprep.subr.bf16.mxu0 0
  %520 = vmatpush1.bf16.msra.mxu0 0
  %521 = vmatprep.subr.bf16.mxu0 0
  %522 = vmatpush1.bf16.msra.mxu0 0
  %523 = vmatprep.subr.bf16.mxu0 0
  %524 = vmatpush1.bf16.msra.mxu0 0
  %525 = vmatprep.subr.bf16.mxu0 0
  %526 = vmatpush1.bf16.msra.mxu0 0
  %527 = vmatprep.subr.bf16.mxu0 0
  %528 = vmatpush1.bf16.msra.mxu0 0
  %529 = vmatprep.subr.bf16.mxu0 0
  %530 = vmatpush1.bf16.msra.mxu0 0
  %531 = vmatprep.subr.bf16.mxu0 0
  %532 = vmatpush1.bf16.msra.mxu0 0
  %533 = vmatprep.subr.bf16.mxu0 0
  %534 = vmatpush1.bf16.msra.mxu0 0
  %535 = vmatprep.subr.bf16.mxu0 0
  %536 = vmatpush1.bf16.msra.mxu0 0
  %537 = vmatprep.subr.bf16.mxu0 0
  %538 = vmatpush1.bf16.msra.mxu0 0
  %539 = vmatprep.subr.bf16.mxu0 0
  %540 = vmatpush1.bf16.msra.mxu0 0
  %541 = vmatprep.subr.bf16.mxu0 0
  %542 = vmatpush1.bf16.msra.mxu0 0
  %543 = vmatprep.mubr.bf16.mxu0 0
  %544 = vmatmul.mubr.bf16.gmra.mrb[0].mxu0 %v440
  %v545 = vpop.f32.mrb[0].mxu0
  %v546 = vadd.f32 0.0, %v545
  %v547 = vpop.f32.mrb[0].mxu0
  %v548 = vadd.f32 0.0, %v547
  %v549 = vpop.f32.mrb[0].mxu0
  %v550 = vadd.f32 0.0, %v549
  %v551 = vpop.f32.mrb[0].mxu0
  %v552 = vadd.f32 0.0, %v551
  %553 = vmatprep.mubr.bf16.mxu0 0
  %554 = vmatmul.mubr.bf16.gmra.mrb[0].mxu0 %v443
  %v555 = vpop.f32.mrb[0].mxu0
  %v556 = vadd.f32 0.0, %v555
  %v557 = vpop.f32.mrb[0].mxu0
  %v558 = vadd.f32 0.0, %v557
  %v559 = vpop.f32.mrb[0].mxu0
  %v560 = vadd.f32 0.0, %v559
  %v561 = vpop.f32.mrb[0].mxu0
  %v562 = vadd.f32 0.0, %v561
  %563 = vmatprep.mubr.bf16.mxu0 0
  %564 = vmatmul.mubr.bf16.gmra.mrb[0].mxu0 %v446
  %v565 = vpop.f32.mrb[0].mxu0
  %v566 = vadd.f32 0.0, %v565
  %v567 = vpop.f32.mrb[0].mxu0
  %v568 = vadd.f32 0.0, %v567
  %v569 = vpop.f32.mrb[0].mxu0
  %v570 = vadd.f32 0.0, %v569
  %v571 = vpop.f32.mrb[0].mxu0
  %v572 = vadd.f32 0.0, %v571
  %573 = vdwg.mxu0
  %v574 = vpack.c.bf16 %v487, %v483
  %v575 = vpack.c.bf16 %v489, %v485
  %v576 = vpack.c.bf16 %v550, %v546
  %v577 = vpack.c.bf16 %v552, %v548
  %v578 = vpack.c.bf16 %v497, %v493
  %v579 = vpack.c.bf16 %v499, %v495
  %v580 = vpack.c.bf16 %v560, %v556
  %v581 = vpack.c.bf16 %v562, %v558
  %v582 = vpack.c.bf16 %v507, %v503
  %v583 = vpack.c.bf16 %v509, %v505
  %v584 = vpack.c.bf16 %v570, %v566
  %v585 = vpack.c.bf16 %v572, %v568
  %586 = vxpose.xlu0.c.b16.start [1/8] %v574, 128
  %587 = vxpose.xlu0.c.b16.cont [2/8] 0, 128
  %588 = vxpose.xlu0.c.b16.cont [3/8] 0, 128
  %589 = vxpose.xlu0.c.b16.cont [4/8] 0, 128
  %590 = vxpose.xlu0.c.b16.cont [5/8] 0, 128
  %591 = vxpose.xlu0.c.b16.cont [6/8] 0, 128
  %592 = vxpose.xlu0.c.b16.cont [7/8] 0, 128
  %593 = vxpose.xlu0.c.b16.end [8/8] 0, 128
  %v594 = vpop.trf.xlu0
  %v595 = vpop.trf.xlu0
  %v596 = vpop.trf.xlu0
  %v597 = vpop.trf.xlu0
  %v598 = vpop.trf.xlu0
  %v599 = vpop.trf.xlu0
  %v600 = vpop.trf.xlu0
  %v601 = vpop.trf.xlu0
  %602 = vxpose.xlu0.c.b16.start [1/8] %v575, 128
  %603 = vxpose.xlu0.c.b16.cont [2/8] 0, 128
  %604 = vxpose.xlu0.c.b16.cont [3/8] 0, 128
  %605 = vxpose.xlu0.c.b16.cont [4/8] 0, 128
  %606 = vxpose.xlu0.c.b16.cont [5/8] 0, 128
  %607 = vxpose.xlu0.c.b16.cont [6/8] 0, 128
  %608 = vxpose.xlu0.c.b16.cont [7/8] 0, 128
  %609 = vxpose.xlu0.c.b16.end [8/8] 0, 128
  %v610 = vpop.trf.xlu0
  %v611 = vpop.trf.xlu0
  %v612 = vpop.trf.xlu0
  %v613 = vpop.trf.xlu0
  %v614 = vpop.trf.xlu0
  %v615 = vpop.trf.xlu0
  %v616 = vpop.trf.xlu0
  %v617 = vpop.trf.xlu0
  %vm618 = vcmask 31744
  %v620 = vsel %vm618, %v594, 0
  %v623 = vsel %vm618, %v595, 0
  %v626 = vsel %vm618, %v596, 0
  %v629 = vsel %vm618, %v597, 0
  %v632 = vsel %vm618, %v598, 0
  %v635 = vsel %vm618, %v599, 0
  %v638 = vsel %vm618, %v600, 0
  %v641 = vsel %vm618, %v601, 0
  %v644 = vsel %vm618, %v610, 0
  %v647 = vsel %vm618, %v611, 0
  %v650 = vsel %vm618, %v612, 0
  %v653 = vsel %vm618, %v613, 0
  %v656 = vsel %vm618, %v614, 0
  %v659 = vsel %vm618, %v615, 0
  %v662 = vsel %vm618, %v616, 0
  %v665 = vsel %vm618, %v617, 0
  %vm667 = vcmask 1041408
  %v669 = vsel %vm667, %v578, 0
  %v672 = vsel %vm667, %v579, 0
  %674 = vmatprep.subr.bf16.mxu0 %v672
  %675 = vmatpush1.bf16.msra.mxu0 %v669
  %676 = vmatprep.subr.bf16.mxu0 0
  %677 = vmatpush1.bf16.msra.mxu0 0
  %678 = vmatprep.subr.bf16.mxu0 0
  %679 = vmatpush1.bf16.msra.mxu0 0
  %680 = vmatprep.subr.bf16.mxu0 0
  %681 = vmatpush1.bf16.msra.mxu0 0
  %682 = vmatprep.subr.bf16.mxu0 0
  %683 = vmatpush1.bf16.msra.mxu0 0
  %684 = vmatprep.subr.bf16.mxu0 0
  %685 = vmatpush1.bf16.msra.mxu0 0
  %686 = vmatprep.subr.bf16.mxu0 0
  %687 = vmatpush1.bf16.msra.mxu0 0
  %688 = vmatprep.subr.bf16.mxu0 0
  %689 = vmatpush1.bf16.msra.mxu0 0
  %690 = vmatprep.subr.bf16.mxu0 0
  %691 = vmatpush1.bf16.msra.mxu0 0
  %692 = vmatprep.subr.bf16.mxu0 0
  %693 = vmatpush1.bf16.msra.mxu0 0
  %694 = vmatprep.subr.bf16.mxu0 0
  %695 = vmatpush1.bf16.msra.mxu0 0
  %696 = vmatprep.subr.bf16.mxu0 0
  %697 = vmatpush1.bf16.msra.mxu0 0
  %698 = vmatprep.subr.bf16.mxu0 0
  %699 = vmatpush1.bf16.msra.mxu0 0
  %700 = vmatprep.subr.bf16.mxu0 0
  %701 = vmatpush1.bf16.msra.mxu0 0
  %702 = vmatprep.subr.bf16.mxu0 0
  %703 = vmatpush1.bf16.msra.mxu0 0
  %704 = vmatprep.subr.bf16.mxu0 0
  %705 = vmatpush1.bf16.msra.mxu0 0
  %706 = vmatprep.mubr.bf16.mxu0 0
  %707 = vmatmul.mubr.bf16.gmra.mrb[0].mxu0 %v620
  %v708 = vpop.f32.mrb[0].mxu0
  %v709 = vadd.f32 0.0, %v708
  %v710 = vpop.f32.mrb[0].mxu0
  %v711 = vadd.f32 0.0, %v710
  %v712 = vpop.f32.mrb[0].mxu0
  %v713 = vadd.f32 0.0, %v712
  %v714 = vpop.f32.mrb[0].mxu0
  %v715 = vadd.f32 0.0, %v714
  %716 = vmatprep.mubr.bf16.mxu0 0
  %717 = vmatmul.mubr.bf16.gmra.mrb[0].mxu0 %v623
  %v718 = vpop.f32.mrb[0].mxu0
  %v719 = vadd.f32 0.0, %v718
  %v720 = vpop.f32.mrb[0].mxu0
  %v721 = vadd.f32 0.0, %v720
  %v722 = vpop.f32.mrb[0].mxu0
  %v723 = vadd.f32 0.0, %v722
  %v724 = vpop.f32.mrb[0].mxu0
  %v725 = vadd.f32 0.0, %v724
  %726 = vmatprep.mubr.bf16.mxu0 0
  %727 = vmatmul.mubr.bf16.gmra.mrb[0].mxu0 %v626
  %v728 = vpop.f32.mrb[0].mxu0
  %v729 = vadd.f32 0.0, %v728
  %v730 = vpop.f32.mrb[0].mxu0
  %v731 = vadd.f32 0.0, %v730
  %v732 = vpop.f32.mrb[0].mxu0
  %v733 = vadd.f32 0.0, %v732
  %v734 = vpop.f32.mrb[0].mxu0
  %v735 = vadd.f32 0.0, %v734
  %736 = vmatprep.mubr.bf16.mxu0 0
  %737 = vmatmul.mubr.bf16.gmra.mrb[0].mxu0 %v629
  %v738 = vpop.f32.mrb[0].mxu0
  %v739 = vadd.f32 0.0, %v738
  %v740 = vpop.f32.mrb[0].mxu0
  %v741 = vadd.f32 0.0, %v740
  %v742 = vpop.f32.mrb[0].mxu0
  %v743 = vadd.f32 0.0, %v742
  %v744 = vpop.f32.mrb[0].mxu0
  %v745 = vadd.f32 0.0, %v744
  %746 = vmatprep.mubr.bf16.mxu0 0
  %747 = vmatmul.mubr.bf16.gmra.mrb[0].mxu0 %v632
  %v748 = vpop.f32.mrb[0].mxu0
  %v749 = vadd.f32 0.0, %v748
  %v750 = vpop.f32.mrb[0].mxu0
  %v751 = vadd.f32 0.0, %v750
  %v752 = vpop.f32.mrb[0].mxu0
  %v753 = vadd.f32 0.0, %v752
  %v754 = vpop.f32.mrb[0].mxu0
  %v755 = vadd.f32 0.0, %v754
  %756 = vmatprep.mubr.bf16.mxu0 0
  %757 = vmatmul.mubr.bf16.gmra.mrb[0].mxu0 %v635
  %v758 = vpop.f32.mrb[0].mxu0
  %v759 = vadd.f32 0.0, %v758
  %v760 = vpop.f32.mrb[0].mxu0
  %v761 = vadd.f32 0.0, %v760
  %v762 = vpop.f32.mrb[0].mxu0
  %v763 = vadd.f32 0.0, %v762
  %v764 = vpop.f32.mrb[0].mxu0
  %v765 = vadd.f32 0.0, %v764
  %766 = vmatprep.mubr.bf16.mxu0 0
  %767 = vmatmul.mubr.bf16.gmra.mrb[0].mxu0 %v638
  %v768 = vpop.f32.mrb[0].mxu0
  %v769 = vadd.f32 0.0, %v768
  %v770 = vpop.f32.mrb[0].mxu0
  %v771 = vadd.f32 0.0, %v770
  %v772 = vpop.f32.mrb[0].mxu0
  %v773 = vadd.f32 0.0, %v772
  %v774 = vpop.f32.mrb[0].mxu0
  %v775 = vadd.f32 0.0, %v774
  %776 = vmatprep.mubr.bf16.mxu0 0
  %777 = vmatmul.mubr.bf16.gmra.mrb[0].mxu0 %v641
  %v778 = vpop.f32.mrb[0].mxu0
  %v779 = vadd.f32 0.0, %v778
  %v780 = vpop.f32.mrb[0].mxu0
  %v781 = vadd.f32 0.0, %v780
  %v782 = vpop.f32.mrb[0].mxu0
  %v783 = vadd.f32 0.0, %v782
  %v784 = vpop.f32.mrb[0].mxu0
  %v785 = vadd.f32 0.0, %v784
  %786 = vmatprep.mubr.bf16.mxu0 0
  %787 = vmatmul.mubr.bf16.gmra.mrb[0].mxu0 %v644
  %v788 = vpop.f32.mrb[0].mxu0
  %v789 = vadd.f32 0.0, %v788
  %v790 = vpop.f32.mrb[0].mxu0
  %v791 = vadd.f32 0.0, %v790
  %v792 = vpop.f32.mrb[0].mxu0
  %v793 = vadd.f32 0.0, %v792
  %v794 = vpop.f32.mrb[0].mxu0
  %v795 = vadd.f32 0.0, %v794
  %796 = vmatprep.mubr.bf16.mxu0 0
  %797 = vmatmul.mubr.bf16.gmra.mrb[0].mxu0 %v647
  %v798 = vpop.f32.mrb[0].mxu0
  %v799 = vadd.f32 0.0, %v798
  %v800 = vpop.f32.mrb[0].mxu0
  %v801 = vadd.f32 0.0, %v800
  %v802 = vpop.f32.mrb[0].mxu0
  %v803 = vadd.f32 0.0, %v802
  %v804 = vpop.f32.mrb[0].mxu0
  %v805 = vadd.f32 0.0, %v804
  %806 = vmatprep.mubr.bf16.mxu0 0
  %807 = vmatmul.mubr.bf16.gmra.mrb[0].mxu0 %v650
  %v808 = vpop.f32.mrb[0].mxu0
  %v809 = vadd.f32 0.0, %v808
  %v810 = vpop.f32.mrb[0].mxu0
  %v811 = vadd.f32 0.0, %v810
  %v812 = vpop.f32.mrb[0].mxu0
  %v813 = vadd.f32 0.0, %v812
  %v814 = vpop.f32.mrb[0].mxu0
  %v815 = vadd.f32 0.0, %v814
  %816 = vmatprep.mubr.bf16.mxu0 0
  %817 = vmatmul.mubr.bf16.gmra.mrb[0].mxu0 %v653
  %v818 = vpop.f32.mrb[0].mxu0
  %v819 = vadd.f32 0.0, %v818
  %v820 = vpop.f32.mrb[0].mxu0
  %v821 = vadd.f32 0.0, %v820
  %v822 = vpop.f32.mrb[0].mxu0
  %v823 = vadd.f32 0.0, %v822
  %v824 = vpop.f32.mrb[0].mxu0
  %v825 = vadd.f32 0.0, %v824
  %826 = vmatprep.mubr.bf16.mxu0 0
  %827 = vmatmul.mubr.bf16.gmra.mrb[0].mxu0 %v656
  %v828 = vpop.f32.mrb[0].mxu0
  %v829 = vadd.f32 0.0, %v828
  %v830 = vpop.f32.mrb[0].mxu0
  %v831 = vadd.f32 0.0, %v830
  %v832 = vpop.f32.mrb[0].mxu0
  %v833 = vadd.f32 0.0, %v832
  %v834 = vpop.f32.mrb[0].mxu0
  %v835 = vadd.f32 0.0, %v834
  %836 = vmatprep.mubr.bf16.mxu0 0
  %837 = vmatmul.mubr.bf16.gmra.mrb[0].mxu0 %v659
  %v838 = vpop.f32.mrb[0].mxu0
  %v839 = vadd.f32 0.0, %v838
  %v840 = vpop.f32.mrb[0].mxu0
  %v841 = vadd.f32 0.0, %v840
  %v842 = vpop.f32.mrb[0].mxu0
  %v843 = vadd.f32 0.0, %v842
  %v844 = vpop.f32.mrb[0].mxu0
  %v845 = vadd.f32 0.0, %v844
  %846 = vmatprep.mubr.bf16.mxu0 0
  %847 = vmatmul.mubr.bf16.gmra.mrb[0].mxu0 %v662
  %v848 = vpop.f32.mrb[0].mxu0
  %v849 = vadd.f32 0.0, %v848
  %v850 = vpop.f32.mrb[0].mxu0
  %v851 = vadd.f32 0.0, %v850
  %v852 = vpop.f32.mrb[0].mxu0
  %v853 = vadd.f32 0.0, %v852
  %v854 = vpop.f32.mrb[0].mxu0
  %v855 = vadd.f32 0.0, %v854
  %856 = vmatprep.mubr.bf16.mxu0 0
  %857 = vmatmul.mubr.bf16.gmra.mrb[0].mxu0 %v665
  %v858 = vpop.f32.mrb[0].mxu0
  %v859 = vadd.f32 0.0, %v858
  %v860 = vpop.f32.mrb[0].mxu0
  %v861 = vadd.f32 0.0, %v860
  %v862 = vpop.f32.mrb[0].mxu0
  %v863 = vadd.f32 0.0, %v862
  %v864 = vpop.f32.mrb[0].mxu0
  %v865 = vadd.f32 0.0, %v864
  %866 = vdwg.mxu0
  %v867 = vmax.f32 %v709, %v711
  %868 = vmax.xlane.f32.xlu0 %v867
  %v869 = vpop.xlane.xlu0 %868
  %v870 = vmax.f32 %v713, %v715
  %871 = vmax.xlane.f32.xlu0 %v870
  %v872 = vpop.xlane.xlu0 %871
  %v873 = vmax.f32 %v719, %v721
  %874 = vmax.xlane.f32.xlu0 %v873
  %v875 = vpop.xlane.xlu0 %874
  %v876 = vmax.f32 %v723, %v725
  %877 = vmax.xlane.f32.xlu0 %v876
  %v878 = vpop.xlane.xlu0 %877
  %v879 = vmax.f32 %v729, %v731
  %880 = vmax.xlane.f32.xlu0 %v879
  %v881 = vpop.xlane.xlu0 %880
  %v882 = vmax.f32 %v733, %v735
  %883 = vmax.xlane.f32.xlu0 %v882
  %v884 = vpop.xlane.xlu0 %883
  %v885 = vmax.f32 %v739, %v741
  %886 = vmax.xlane.f32.xlu0 %v885
  %v887 = vpop.xlane.xlu0 %886
  %v888 = vmax.f32 %v743, %v745
  %889 = vmax.xlane.f32.xlu0 %v888
  %v890 = vpop.xlane.xlu0 %889
  %v891 = vmax.f32 %v749, %v751
  %892 = vmax.xlane.f32.xlu0 %v891
  %v893 = vpop.xlane.xlu0 %892
  %v894 = vmax.f32 %v753, %v755
  %895 = vmax.xlane.f32.xlu0 %v894
  %v896 = vpop.xlane.xlu0 %895
  %v897 = vmax.f32 %v759, %v761
  %898 = vmax.xlane.f32.xlu0 %v897
  %v899 = vpop.xlane.xlu0 %898
  %v900 = vmax.f32 %v763, %v765
  %901 = vmax.xlane.f32.xlu0 %v900
  %v902 = vpop.xlane.xlu0 %901
  %v903 = vmax.f32 %v769, %v771
  %904 = vmax.xlane.f32.xlu0 %v903
  %v905 = vpop.xlane.xlu0 %904
  %v906 = vmax.f32 %v773, %v775
  %907 = vmax.xlane.f32.xlu0 %v906
  %v908 = vpop.xlane.xlu0 %907
  %v909 = vmax.f32 %v779, %v781
  %910 = vmax.xlane.f32.xlu0 %v909
  %v911 = vpop.xlane.xlu0 %910
  %v912 = vmax.f32 %v783, %v785
  %913 = vmax.xlane.f32.xlu0 %v912
  %v914 = vpop.xlane.xlu0 %913
  %v915 = vmax.f32 %v789, %v791
  %916 = vmax.xlane.f32.xlu0 %v915
  %v917 = vpop.xlane.xlu0 %916
  %v918 = vmax.f32 %v793, %v795
  %919 = vmax.xlane.f32.xlu0 %v918
  %v920 = vpop.xlane.xlu0 %919
  %v921 = vmax.f32 %v799, %v801
  %922 = vmax.xlane.f32.xlu0 %v921
  %v923 = vpop.xlane.xlu0 %922
  %v924 = vmax.f32 %v803, %v805
  %925 = vmax.xlane.f32.xlu0 %v924
  %v926 = vpop.xlane.xlu0 %925
  %v927 = vmax.f32 %v809, %v811
  %928 = vmax.xlane.f32.xlu0 %v927
  %v929 = vpop.xlane.xlu0 %928
  %v930 = vmax.f32 %v813, %v815
  %931 = vmax.xlane.f32.xlu0 %v930
  %v932 = vpop.xlane.xlu0 %931
  %v933 = vmax.f32 %v819, %v821
  %934 = vmax.xlane.f32.xlu0 %v933
  %v935 = vpop.xlane.xlu0 %934
  %v936 = vmax.f32 %v823, %v825
  %937 = vmax.xlane.f32.xlu0 %v936
  %v938 = vpop.xlane.xlu0 %937
  %v939 = vmax.f32 %v829, %v831
  %940 = vmax.xlane.f32.xlu0 %v939
  %v941 = vpop.xlane.xlu0 %940
  %v942 = vmax.f32 %v833, %v835
  %943 = vmax.xlane.f32.xlu0 %v942
  %v944 = vpop.xlane.xlu0 %943
  %v945 = vmax.f32 %v839, %v841
  %946 = vmax.xlane.f32.xlu0 %v945
  %v947 = vpop.xlane.xlu0 %946
  %v948 = vmax.f32 %v843, %v845
  %949 = vmax.xlane.f32.xlu0 %v948
  %v950 = vpop.xlane.xlu0 %949
  %v951 = vmax.f32 %v849, %v851
  %952 = vmax.xlane.f32.xlu0 %v951
  %v953 = vpop.xlane.xlu0 %952
  %v954 = vmax.f32 %v853, %v855
  %955 = vmax.xlane.f32.xlu0 %v954
  %v956 = vpop.xlane.xlu0 %955
  %v957 = vmax.f32 %v859, %v861
  %958 = vmax.xlane.f32.xlu0 %v957
  %v959 = vpop.xlane.xlu0 %958
  %v960 = vmax.f32 %v863, %v865
  %961 = vmax.xlane.f32.xlu0 %v960
  %v962 = vpop.xlane.xlu0 %961
  %v963 = vsub.f32 %v709, %v869
  %v964 = vsub.f32 %v711, %v869
  %v965 = vsub.f32 %v713, %v872
  %v966 = vsub.f32 %v715, %v872
  %v967 = vsub.f32 %v719, %v875
  %v968 = vsub.f32 %v721, %v875
  %v969 = vsub.f32 %v723, %v878
  %v970 = vsub.f32 %v725, %v878
  %v971 = vsub.f32 %v729, %v881
  %v972 = vsub.f32 %v731, %v881
  %v973 = vsub.f32 %v733, %v884
  %v974 = vsub.f32 %v735, %v884
  %v975 = vsub.f32 %v739, %v887
  %v976 = vsub.f32 %v741, %v887
  %v977 = vsub.f32 %v743, %v890
  %v978 = vsub.f32 %v745, %v890
  %v979 = vsub.f32 %v749, %v893
  %v980 = vsub.f32 %v751, %v893
  %v981 = vsub.f32 %v753, %v896
  %v982 = vsub.f32 %v755, %v896
  %v983 = vsub.f32 %v759, %v899
  %v984 = vsub.f32 %v761, %v899
  %v985 = vsub.f32 %v763, %v902
  %v986 = vsub.f32 %v765, %v902
  %v987 = vsub.f32 %v769, %v905
  %v988 = vsub.f32 %v771, %v905
  %v989 = vsub.f32 %v773, %v908
  %v990 = vsub.f32 %v775, %v908
  %v991 = vsub.f32 %v779, %v911
  %v992 = vsub.f32 %v781, %v911
  %v993 = vsub.f32 %v783, %v914
  %v994 = vsub.f32 %v785, %v914
  %v995 = vsub.f32 %v789, %v917
  %v996 = vsub.f32 %v791, %v917
  %v997 = vsub.f32 %v793, %v920
  %v998 = vsub.f32 %v795, %v920
  %v999 = vsub.f32 %v799, %v923
  %v1000 = vsub.f32 %v801, %v923
  %v1001 = vsub.f32 %v803, %v926
  %v1002 = vsub.f32 %v805, %v926
  %v1003 = vsub.f32 %v809, %v929
  %v1004 = vsub.f32 %v811, %v929
  %v1005 = vsub.f32 %v813, %v932
  %v1006 = vsub.f32 %v815, %v932
  %v1007 = vsub.f32 %v819, %v935
  %v1008 = vsub.f32 %v821, %v935
  %v1009 = vsub.f32 %v823, %v938
  %v1010 = vsub.f32 %v825, %v938
  %v1011 = vsub.f32 %v829, %v941
  %v1012 = vsub.f32 %v831, %v941
  %v1013 = vsub.f32 %v833, %v944
  %v1014 = vsub.f32 %v835, %v944
  %v1015 = vsub.f32 %v839, %v947
  %v1016 = vsub.f32 %v841, %v947
  %v1017 = vsub.f32 %v843, %v950
  %v1018 = vsub.f32 %v845, %v950
  %v1019 = vsub.f32 %v849, %v953
  %v1020 = vsub.f32 %v851, %v953
  %v1021 = vsub.f32 %v853, %v956
  %v1022 = vsub.f32 %v855, %v956
  %v1023 = vsub.f32 %v859, %v959
  %v1024 = vsub.f32 %v861, %v959
  %v1025 = vsub.f32 %v863, %v962
  %v1026 = vsub.f32 %v865, %v962
  %v1027 = vpack.c.bf16 %v965, %v963
  %v1028 = vpack.c.bf16 %v966, %v964
  %v1029 = vpack.c.bf16 %v969, %v967
  %v1030 = vpack.c.bf16 %v970, %v968
  %v1031 = vpack.c.bf16 %v973, %v971
  %v1032 = vpack.c.bf16 %v974, %v972
  %v1033 = vpack.c.bf16 %v977, %v975
  %v1034 = vpack.c.bf16 %v978, %v976
  %v1035 = vpack.c.bf16 %v981, %v979
  %v1036 = vpack.c.bf16 %v982, %v980
  %v1037 = vpack.c.bf16 %v985, %v983
  %v1038 = vpack.c.bf16 %v986, %v984
  %v1039 = vpack.c.bf16 %v989, %v987
  %v1040 = vpack.c.bf16 %v990, %v988
  %v1041 = vpack.c.bf16 %v993, %v991
  %v1042 = vpack.c.bf16 %v994, %v992
  %v1043 = vpack.c.bf16 %v997, %v995
  %v1044 = vpack.c.bf16 %v998, %v996
  %v1045 = vpack.c.bf16 %v1001, %v999
  %v1046 = vpack.c.bf16 %v1002, %v1000
  %v1047 = vpack.c.bf16 %v1005, %v1003
  %v1048 = vpack.c.bf16 %v1006, %v1004
  %v1049 = vpack.c.bf16 %v1009, %v1007
  %v1050 = vpack.c.bf16 %v1010, %v1008
  %v1051 = vpack.c.bf16 %v1013, %v1011
  %v1052 = vpack.c.bf16 %v1014, %v1012
  %v1053 = vpack.c.bf16 %v1017, %v1015
  %v1054 = vpack.c.bf16 %v1018, %v1016
  %v1055 = vpack.c.bf16 %v1021, %v1019
  %v1056 = vpack.c.bf16 %v1022, %v1020
  %v1057 = vpack.c.bf16 %v1025, %v1023
  %v1058 = vpack.c.bf16 %v1026, %v1024
  %v1060 = vmul.bf16 %v1027, 1069105081
  %v1061 = vpow.bf16.pop %v1060
  %v1063 = vmul.bf16 %v1028, 1069105081
  %v1064 = vpow.bf16.pop %v1063
  %v1066 = vmul.bf16 %v1029, 1069105081
  %v1067 = vpow.bf16.pop %v1066
  %v1069 = vmul.bf16 %v1030, 1069105081
  %v1070 = vpow.bf16.pop %v1069
  %v1072 = vmul.bf16 %v1031, 1069105081
  %v1073 = vpow.bf16.pop %v1072
  %v1075 = vmul.bf16 %v1032, 1069105081
  %v1076 = vpow.bf16.pop %v1075
  %v1078 = vmul.bf16 %v1033, 1069105081
  %v1079 = vpow.bf16.pop %v1078
  %v1081 = vmul.bf16 %v1034, 1069105081
  %v1082 = vpow.bf16.pop %v1081
  %v1084 = vmul.bf16 %v1035, 1069105081
  %v1085 = vpow.bf16.pop %v1084
  %v1087 = vmul.bf16 %v1036, 1069105081
  %v1088 = vpow.bf16.pop %v1087
  %v1090 = vmul.bf16 %v1037, 1069105081
  %v1091 = vpow.bf16.pop %v1090
  %v1093 = vmul.bf16 %v1038, 1069105081
  %v1094 = vpow.bf16.pop %v1093
  %v1096 = vmul.bf16 %v1039, 1069105081
  %v1097 = vpow.bf16.pop %v1096
  %v1099 = vmul.bf16 %v1040, 1069105081
  %v1100 = vpow.bf16.pop %v1099
  %v1102 = vmul.bf16 %v1041, 1069105081
  %v1103 = vpow.bf16.pop %v1102
  %v1105 = vmul.bf16 %v1042, 1069105081
  %v1106 = vpow.bf16.pop %v1105
  %v1108 = vmul.bf16 %v1043, 1069105081
  %v1109 = vpow.bf16.pop %v1108
  %v1111 = vmul.bf16 %v1044, 1069105081
  %v1112 = vpow.bf16.pop %v1111
  %v1114 = vmul.bf16 %v1045, 1069105081
  %v1115 = vpow.bf16.pop %v1114
  %v1117 = vmul.bf16 %v1046, 1069105081
  %v1118 = vpow.bf16.pop %v1117
  %v1120 = vmul.bf16 %v1047, 1069105081
  %v1121 = vpow.bf16.pop %v1120
  %v1123 = vmul.bf16 %v1048, 1069105081
  %v1124 = vpow.bf16.pop %v1123
  %v1126 = vmul.bf16 %v1049, 1069105081
  %v1127 = vpow.bf16.pop %v1126
  %v1129 = vmul.bf16 %v1050, 1069105081
  %v1130 = vpow.bf16.pop %v1129
  %v1132 = vmul.bf16 %v1051, 1069105081
  %v1133 = vpow.bf16.pop %v1132
  %v1135 = vmul.bf16 %v1052, 1069105081
  %v1136 = vpow.bf16.pop %v1135
  %v1138 = vmul.bf16 %v1053, 1069105081
  %v1139 = vpow.bf16.pop %v1138
  %v1141 = vmul.bf16 %v1054, 1069105081
  %v1142 = vpow.bf16.pop %v1141
  %v1144 = vmul.bf16 %v1055, 1069105081
  %v1145 = vpow.bf16.pop %v1144
  %v1147 = vmul.bf16 %v1056, 1069105081
  %v1148 = vpow.bf16.pop %v1147
  %v1150 = vmul.bf16 %v1057, 1069105081
  %v1151 = vpow.bf16.pop %v1150
  %v1153 = vmul.bf16 %v1058, 1069105081
  %v1154 = vpow.bf16.pop %v1153
  %v1155 = vunpack.c.l.bf16 %v1061
  %v1156 = vunpack.c.l.bf16 %v1064
  %v1157 = vunpack.c.h.bf16 %v1061
  %v1158 = vunpack.c.h.bf16 %v1064
  %v1159 = vunpack.c.l.bf16 %v1067
  %v1160 = vunpack.c.l.bf16 %v1070
  %v1161 = vunpack.c.h.bf16 %v1067
  %v1162 = vunpack.c.h.bf16 %v1070
  %v1163 = vunpack.c.l.bf16 %v1073
  %v1164 = vunpack.c.l.bf16 %v1076
  %v1165 = vunpack.c.h.bf16 %v1073
  %v1166 = vunpack.c.h.bf16 %v1076
  %v1167 = vunpack.c.l.bf16 %v1079
  %v1168 = vunpack.c.l.bf16 %v1082
  %v1169 = vunpack.c.h.bf16 %v1079
  %v1170 = vunpack.c.h.bf16 %v1082
  %v1171 = vunpack.c.l.bf16 %v1085
  %v1172 = vunpack.c.l.bf16 %v1088
  %v1173 = vunpack.c.h.bf16 %v1085
  %v1174 = vunpack.c.h.bf16 %v1088
  %v1175 = vunpack.c.l.bf16 %v1091
  %v1176 = vunpack.c.l.bf16 %v1094
  %v1177 = vunpack.c.h.bf16 %v1091
  %v1178 = vunpack.c.h.bf16 %v1094
  %v1179 = vunpack.c.l.bf16 %v1097
  %v1180 = vunpack.c.l.bf16 %v1100
  %v1181 = vunpack.c.h.bf16 %v1097
  %v1182 = vunpack.c.h.bf16 %v1100
  %v1183 = vunpack.c.l.bf16 %v1103
  %v1184 = vunpack.c.l.bf16 %v1106
  %v1185 = vunpack.c.h.bf16 %v1103
  %v1186 = vunpack.c.h.bf16 %v1106
  %v1187 = vunpack.c.l.bf16 %v1109
  %v1188 = vunpack.c.l.bf16 %v1112
  %v1189 = vunpack.c.h.bf16 %v1109
  %v1190 = vunpack.c.h.bf16 %v1112
  %v1191 = vunpack.c.l.bf16 %v1115
  %v1192 = vunpack.c.l.bf16 %v1118
  %v1193 = vunpack.c.h.bf16 %v1115
  %v1194 = vunpack.c.h.bf16 %v1118
  %v1195 = vunpack.c.l.bf16 %v1121
  %v1196 = vunpack.c.l.bf16 %v1124
  %v1197 = vunpack.c.h.bf16 %v1121
  %v1198 = vunpack.c.h.bf16 %v1124
  %v1199 = vunpack.c.l.bf16 %v1127
  %v1200 = vunpack.c.l.bf16 %v1130
  %v1201 = vunpack.c.h.bf16 %v1127
  %v1202 = vunpack.c.h.bf16 %v1130
  %v1203 = vunpack.c.l.bf16 %v1133
  %v1204 = vunpack.c.l.bf16 %v1136
  %v1205 = vunpack.c.h.bf16 %v1133
  %v1206 = vunpack.c.h.bf16 %v1136
  %v1207 = vunpack.c.l.bf16 %v1139
  %v1208 = vunpack.c.l.bf16 %v1142
  %v1209 = vunpack.c.h.bf16 %v1139
  %v1210 = vunpack.c.h.bf16 %v1142
  %v1211 = vunpack.c.l.bf16 %v1145
  %v1212 = vunpack.c.l.bf16 %v1148
  %v1213 = vunpack.c.h.bf16 %v1145
  %v1214 = vunpack.c.h.bf16 %v1148
  %v1215 = vunpack.c.l.bf16 %v1151
  %v1216 = vunpack.c.l.bf16 %v1154
  %v1217 = vunpack.c.h.bf16 %v1151
  %v1218 = vunpack.c.h.bf16 %v1154
  %v1219 = vadd.f32 %v1155, %v1156
  %1220 = vadd.xlane.f32.xlu0 %v1219
  %v1221 = vpop.xlane.xlu0 %1220
  %v1222 = vadd.f32 %v1157, %v1158
  %1223 = vadd.xlane.f32.xlu0 %v1222
  %v1224 = vpop.xlane.xlu0 %1223
  %v1225 = vadd.f32 %v1159, %v1160
  %1226 = vadd.xlane.f32.xlu0 %v1225
  %v1227 = vpop.xlane.xlu0 %1226
  %v1228 = vadd.f32 %v1161, %v1162
  %1229 = vadd.xlane.f32.xlu0 %v1228
  %v1230 = vpop.xlane.xlu0 %1229
  %v1231 = vadd.f32 %v1163, %v1164
  %1232 = vadd.xlane.f32.xlu0 %v1231
  %v1233 = vpop.xlane.xlu0 %1232
  %v1234 = vadd.f32 %v1165, %v1166
  %1235 = vadd.xlane.f32.xlu0 %v1234
  %v1236 = vpop.xlane.xlu0 %1235
  %v1237 = vadd.f32 %v1167, %v1168
  %1238 = vadd.xlane.f32.xlu0 %v1237
  %v1239 = vpop.xlane.xlu0 %1238
  %v1240 = vadd.f32 %v1169, %v1170
  %1241 = vadd.xlane.f32.xlu0 %v1240
  %v1242 = vpop.xlane.xlu0 %1241
  %v1243 = vadd.f32 %v1171, %v1172
  %1244 = vadd.xlane.f32.xlu0 %v1243
  %v1245 = vpop.xlane.xlu0 %1244
  %v1246 = vadd.f32 %v1173, %v1174
  %1247 = vadd.xlane.f32.xlu0 %v1246
  %v1248 = vpop.xlane.xlu0 %1247
  %v1249 = vadd.f32 %v1175, %v1176
  %1250 = vadd.xlane.f32.xlu0 %v1249
  %v1251 = vpop.xlane.xlu0 %1250
  %v1252 = vadd.f32 %v1177, %v1178
  %1253 = vadd.xlane.f32.xlu0 %v1252
  %v1254 = vpop.xlane.xlu0 %1253
  %v1255 = vadd.f32 %v1179, %v1180
  %1256 = vadd.xlane.f32.xlu0 %v1255
  %v1257 = vpop.xlane.xlu0 %1256
  %v1258 = vadd.f32 %v1181, %v1182
  %1259 = vadd.xlane.f32.xlu0 %v1258
  %v1260 = vpop.xlane.xlu0 %1259
  %v1261 = vadd.f32 %v1183, %v1184
  %1262 = vadd.xlane.f32.xlu0 %v1261
  %v1263 = vpop.xlane.xlu0 %1262
  %v1264 = vadd.f32 %v1185, %v1186
  %1265 = vadd.xlane.f32.xlu0 %v1264
  %v1266 = vpop.xlane.xlu0 %1265
  %v1267 = vadd.f32 %v1187, %v1188
  %1268 = vadd.xlane.f32.xlu0 %v1267
  %v1269 = vpop.xlane.xlu0 %1268
  %v1270 = vadd.f32 %v1189, %v1190
  %1271 = vadd.xlane.f32.xlu0 %v1270
  %v1272 = vpop.xlane.xlu0 %1271
  %v1273 = vadd.f32 %v1191, %v1192
  %1274 = vadd.xlane.f32.xlu0 %v1273
  %v1275 = vpop.xlane.xlu0 %1274
  %v1276 = vadd.f32 %v1193, %v1194
  %1277 = vadd.xlane.f32.xlu0 %v1276
  %v1278 = vpop.xlane.xlu0 %1277
  %v1279 = vadd.f32 %v1195, %v1196
  %1280 = vadd.xlane.f32.xlu0 %v1279
  %v1281 = vpop.xlane.xlu0 %1280
  %v1282 = vadd.f32 %v1197, %v1198
  %1283 = vadd.xlane.f32.xlu0 %v1282
  %v1284 = vpop.xlane.xlu0 %1283
  %v1285 = vadd.f32 %v1199, %v1200
  %1286 = vadd.xlane.f32.xlu0 %v1285
  %v1287 = vpop.xlane.xlu0 %1286
  %v1288 = vadd.f32 %v1201, %v1202
  %1289 = vadd.xlane.f32.xlu0 %v1288
  %v1290 = vpop.xlane.xlu0 %1289
  %v1291 = vadd.f32 %v1203, %v1204
  %1292 = vadd.xlane.f32.xlu0 %v1291
  %v1293 = vpop.xlane.xlu0 %1292
  %v1294 = vadd.f32 %v1205, %v1206
  %1295 = vadd.xlane.f32.xlu0 %v1294
  %v1296 = vpop.xlane.xlu0 %1295
  %v1297 = vadd.f32 %v1207, %v1208
  %1298 = vadd.xlane.f32.xlu0 %v1297
  %v1299 = vpop.xlane.xlu0 %1298
  %v1300 = vadd.f32 %v1209, %v1210
  %1301 = vadd.xlane.f32.xlu0 %v1300
  %v1302 = vpop.xlane.xlu0 %1301
  %v1303 = vadd.f32 %v1211, %v1212
  %1304 = vadd.xlane.f32.xlu0 %v1303
  %v1305 = vpop.xlane.xlu0 %1304
  %v1306 = vadd.f32 %v1213, %v1214
  %1307 = vadd.xlane.f32.xlu0 %v1306
  %v1308 = vpop.xlane.xlu0 %1307
  %v1309 = vadd.f32 %v1215, %v1216
  %1310 = vadd.xlane.f32.xlu0 %v1309
  %v1311 = vpop.xlane.xlu0 %1310
  %v1312 = vadd.f32 %v1217, %v1218
  %1313 = vadd.xlane.f32.xlu0 %v1312
  %v1314 = vpop.xlane.xlu0 %1313
  %v1315 = vrcp.pop %v1221
  %v1316 = vrcp.pop %v1224
  %v1317 = vrcp.pop %v1227
  %v1318 = vrcp.pop %v1230
  %v1319 = vrcp.pop %v1233
  %v1320 = vrcp.pop %v1236
  %v1321 = vrcp.pop %v1239
  %v1322 = vrcp.pop %v1242
  %v1323 = vrcp.pop %v1245
  %v1324 = vrcp.pop %v1248
  %v1325 = vrcp.pop %v1251
  %v1326 = vrcp.pop %v1254
  %v1327 = vrcp.pop %v1257
  %v1328 = vrcp.pop %v1260
  %v1329 = vrcp.pop %v1263
  %v1330 = vrcp.pop %v1266
  %v1331 = vrcp.pop %v1269
  %v1332 = vrcp.pop %v1272
  %v1333 = vrcp.pop %v1275
  %v1334 = vrcp.pop %v1278
  %v1335 = vrcp.pop %v1281
  %v1336 = vrcp.pop %v1284
  %v1337 = vrcp.pop %v1287
  %v1338 = vrcp.pop %v1290
  %v1339 = vrcp.pop %v1293
  %v1340 = vrcp.pop %v1296
  %v1341 = vrcp.pop %v1299
  %v1342 = vrcp.pop %v1302
  %v1343 = vrcp.pop %v1305
  %v1344 = vrcp.pop %v1308
  %v1345 = vrcp.pop %v1311
  %v1346 = vrcp.pop %v1314
  %v1347 = vpack.c.bf16 %v1316, %v1315
  %v1348 = vpack.c.bf16 %v1318, %v1317
  %v1349 = vpack.c.bf16 %v1320, %v1319
  %v1350 = vpack.c.bf16 %v1322, %v1321
  %v1351 = vpack.c.bf16 %v1324, %v1323
  %v1352 = vpack.c.bf16 %v1326, %v1325
  %v1353 = vpack.c.bf16 %v1328, %v1327
  %v1354 = vpack.c.bf16 %v1330, %v1329
  %v1355 = vpack.c.bf16 %v1332, %v1331
  %v1356 = vpack.c.bf16 %v1334, %v1333
  %v1357 = vpack.c.bf16 %v1336, %v1335
  %v1358 = vpack.c.bf16 %v1338, %v1337
  %v1359 = vpack.c.bf16 %v1340, %v1339
  %v1360 = vpack.c.bf16 %v1342, %v1341
  %v1361 = vpack.c.bf16 %v1344, %v1343
  %v1362 = vpack.c.bf16 %v1346, %v1345
  %v1363 = vmul.bf16 %v1061, %v1347
  %v1364 = vmul.bf16 %v1064, %v1347
  %v1365 = vmul.bf16 %v1067, %v1348
  %v1366 = vmul.bf16 %v1070, %v1348
  %v1367 = vmul.bf16 %v1073, %v1349
  %v1368 = vmul.bf16 %v1076, %v1349
  %v1369 = vmul.bf16 %v1079, %v1350
  %v1370 = vmul.bf16 %v1082, %v1350
  %v1371 = vmul.bf16 %v1085, %v1351
  %v1372 = vmul.bf16 %v1088, %v1351
  %v1373 = vmul.bf16 %v1091, %v1352
  %v1374 = vmul.bf16 %v1094, %v1352
  %v1375 = vmul.bf16 %v1097, %v1353
  %v1376 = vmul.bf16 %v1100, %v1353
  %v1377 = vmul.bf16 %v1103, %v1354
  %v1378 = vmul.bf16 %v1106, %v1354
  %v1379 = vmul.bf16 %v1109, %v1355
  %v1380 = vmul.bf16 %v1112, %v1355
  %v1381 = vmul.bf16 %v1115, %v1356
  %v1382 = vmul.bf16 %v1118, %v1356
  %v1383 = vmul.bf16 %v1121, %v1357
  %v1384 = vmul.bf16 %v1124, %v1357
  %v1385 = vmul.bf16 %v1127, %v1358
  %v1386 = vmul.bf16 %v1130, %v1358
  %v1387 = vmul.bf16 %v1133, %v1359
  %v1388 = vmul.bf16 %v1136, %v1359
  %v1389 = vmul.bf16 %v1139, %v1360
  %v1390 = vmul.bf16 %v1142, %v1360
  %v1391 = vmul.bf16 %v1145, %v1361
  %v1392 = vmul.bf16 %v1148, %v1361
  %v1393 = vmul.bf16 %v1151, %v1362
  %v1394 = vmul.bf16 %v1154, %v1362
  %1395 = vmatprep.subr.bf16.mxu0 %v1364
  %1396 = vmatpush1.bf16.xpose.msra.mxu0 %v1363
  %1397 = vmatprep.subr.bf16.mxu0 %v1366
  %1398 = vmatpush1.bf16.xpose.msra.mxu0 %v1365
  %1399 = vmatprep.subr.bf16.mxu0 %v1368
  %1400 = vmatpush1.bf16.xpose.msra.mxu0 %v1367
  %1401 = vmatprep.subr.bf16.mxu0 %v1370
  %1402 = vmatpush1.bf16.xpose.msra.mxu0 %v1369
  %1403 = vmatprep.subr.bf16.mxu0 %v1372
  %1404 = vmatpush1.bf16.xpose.msra.mxu0 %v1371
  %1405 = vmatprep.subr.bf16.mxu0 %v1374
  %1406 = vmatpush1.bf16.xpose.msra.mxu0 %v1373
  %1407 = vmatprep.subr.bf16.mxu0 %v1376
  %1408 = vmatpush1.bf16.xpose.msra.mxu0 %v1375
  %1409 = vmatprep.subr.bf16.mxu0 %v1378
  %1410 = vmatpush1.bf16.xpose.msra.mxu0 %v1377
  %1411 = vmatprep.subr.bf16.mxu0 %v1380
  %1412 = vmatpush1.bf16.xpose.msra.mxu0 %v1379
  %1413 = vmatprep.subr.bf16.mxu0 %v1382
  %1414 = vmatpush1.bf16.xpose.msra.mxu0 %v1381
  %1415 = vmatprep.subr.bf16.mxu0 %v1384
  %1416 = vmatpush1.bf16.xpose.msra.mxu0 %v1383
  %1417 = vmatprep.subr.bf16.mxu0 %v1386
  %1418 = vmatpush1.bf16.xpose.msra.mxu0 %v1385
  %1419 = vmatprep.subr.bf16.mxu0 %v1388
  %1420 = vmatpush1.bf16.xpose.msra.mxu0 %v1387
  %1421 = vmatprep.subr.bf16.mxu0 %v1390
  %1422 = vmatpush1.bf16.xpose.msra.mxu0 %v1389
  %1423 = vmatprep.subr.bf16.mxu0 %v1392
  %1424 = vmatpush1.bf16.xpose.msra.mxu0 %v1391
  %1425 = vmatprep.subr.bf16.mxu0 %v1394
  %1426 = vmatpush1.bf16.xpose.msra.mxu0 %v1393
  %1427 = vmatprep.mubr.bf16.mxu0 %v583
  %1428 = vmatmul.mubr.bf16.gmra.mrb[0].mxu0 %v582
  %v1429 = vpop.f32.mrb[0].mxu0
  %v1430 = vadd.f32 0.0, %v1429
  %v1431 = vpop.f32.mrb[0].mxu0
  %v1432 = vadd.f32 0.0, %v1431
  %v1433 = vpop.f32.mrb[0].mxu0
  %v1434 = vpop.f32.mrb[0].mxu0
  %1435 = vdwg.mxu0
  %1436 = vst [vmem:[#allocation2] sm:$0xf] %v1430
  %1437 = vst [vmem:[#allocation2 + $0x8] sm:$0xf] %v1432
  %v1440 = vrot.slane %v574, 2
  %v1441 = vrot.slane %v575, 2
  %1444 = vxpose.xlu0.c.b16.start [1/8] %v1440, 128
  %1445 = vxpose.xlu0.c.b16.cont [2/8] 0, 128
  %1446 = vxpose.xlu0.c.b16.cont [3/8] 0, 128
  %1447 = vxpose.xlu0.c.b16.cont [4/8] 0, 128
  %1448 = vxpose.xlu0.c.b16.cont [5/8] 0, 128
  %1449 = vxpose.xlu0.c.b16.cont [6/8] 0, 128
  %1450 = vxpose.xlu0.c.b16.cont [7/8] 0, 128
  %1451 = vxpose.xlu0.c.b16.end [8/8] 0, 128
  %v1452 = vpop.trf.xlu0
  %v1453 = vpop.trf.xlu0
  %v1454 = vpop.trf.xlu0
  %v1455 = vpop.trf.xlu0
  %v1456 = vpop.trf.xlu0
  %v1457 = vpop.trf.xlu0
  %v1458 = vpop.trf.xlu0
  %v1459 = vpop.trf.xlu0
  %1460 = vxpose.xlu0.c.b16.start [1/8] %v1441, 128
  %1461 = vxpose.xlu0.c.b16.cont [2/8] 0, 128
  %1462 = vxpose.xlu0.c.b16.cont [3/8] 0, 128
  %1463 = vxpose.xlu0.c.b16.cont [4/8] 0, 128
  %1464 = vxpose.xlu0.c.b16.cont [5/8] 0, 128
  %1465 = vxpose.xlu0.c.b16.cont [6/8] 0, 128
  %1466 = vxpose.xlu0.c.b16.cont [7/8] 0, 128
  %1467 = vxpose.xlu0.c.b16.end [8/8] 0, 128
  %v1468 = vpop.trf.xlu0
  %v1469 = vpop.trf.xlu0
  %v1470 = vpop.trf.xlu0
  %v1471 = vpop.trf.xlu0
  %v1472 = vpop.trf.xlu0
  %v1473 = vpop.trf.xlu0
  %v1474 = vpop.trf.xlu0
  %v1475 = vpop.trf.xlu0
  %v1478 = vrot.slane %v578, 2
  %v1479 = vrot.slane %v579, 2
  %v1481 = vsel %vm618, %v1452, 0
  %v1484 = vsel %vm618, %v1453, 0
  %v1487 = vsel %vm618, %v1454, 0
  %v1490 = vsel %vm618, %v1455, 0
  %v1493 = vsel %vm618, %v1456, 0
  %v1496 = vsel %vm618, %v1457, 0
  %v1499 = vsel %vm618, %v1458, 0
  %v1502 = vsel %vm618, %v1459, 0
  %v1505 = vsel %vm618, %v1468, 0
  %v1508 = vsel %vm618, %v1469, 0
  %v1511 = vsel %vm618, %v1470, 0
  %v1514 = vsel %vm618, %v1471, 0
  %v1517 = vsel %vm618, %v1472, 0
  %v1520 = vsel %vm618, %v1473, 0
  %v1523 = vsel %vm618, %v1474, 0
  %v1526 = vsel %vm618, %v1475, 0
  %v1529 = vsel %vm667, %v1478, 0
  %v1532 = vsel %vm667, %v1479, 0
  %1534 = vmatprep.subr.bf16.mxu0 %v1532
  %1535 = vmatpush1.bf16.msra.mxu0 %v1529
  %1536 = vmatprep.subr.bf16.mxu0 0
  %1537 = vmatpush1.bf16.msra.mxu0 0
  %1538 = vmatprep.subr.bf16.mxu0 0
  %1539 = vmatpush1.bf16.msra.mxu0 0
  %1540 = vmatprep.subr.bf16.mxu0 0
  %1541 = vmatpush1.bf16.msra.mxu0 0
  %1542 = vmatprep.subr.bf16.mxu0 0
  %1543 = vmatpush1.bf16.msra.mxu0 0
  %1544 = vmatprep.subr.bf16.mxu0 0
  %1545 = vmatpush1.bf16.msra.mxu0 0
  %1546 = vmatprep.subr.bf16.mxu0 0
  %1547 = vmatpush1.bf16.msra.mxu0 0
  %1548 = vmatprep.subr.bf16.mxu0 0
  %1549 = vmatpush1.bf16.msra.mxu0 0
  %1550 = vmatprep.subr.bf16.mxu0 0
  %1551 = vmatpush1.bf16.msra.mxu0 0
  %1552 = vmatprep.subr.bf16.mxu0 0
  %1553 = vmatpush1.bf16.msra.mxu0 0
  %1554 = vmatprep.subr.bf16.mxu0 0
  %1555 = vmatpush1.bf16.msra.mxu0 0
  %1556 = vmatprep.subr.bf16.mxu0 0
  %1557 = vmatpush1.bf16.msra.mxu0 0
  %1558 = vmatprep.subr.bf16.mxu0 0
  %1559 = vmatpush1.bf16.msra.mxu0 0
  %1560 = vmatprep.subr.bf16.mxu0 0
  %1561 = vmatpush1.bf16.msra.mxu0 0
  %1562 = vmatprep.subr.bf16.mxu0 0
  %1563 = vmatpush1.bf16.msra.mxu0 0
  %1564 = vmatprep.subr.bf16.mxu0 0
  %1565 = vmatpush1.bf16.msra.mxu0 0
  %1566 = vmatprep.mubr.bf16.mxu0 0
  %1567 = vmatmul.mubr.bf16.gmra.mrb[0].mxu0 %v1481
  %v1568 = vpop.f32.mrb[0].mxu0
  %v1569 = vadd.f32 0.0, %v1568
  %v1570 = vpop.f32.mrb[0].mxu0
  %v1571 = vadd.f32 0.0, %v1570
  %v1572 = vpop.f32.mrb[0].mxu0
  %v1573 = vadd.f32 0.0, %v1572
  %v1574 = vpop.f32.mrb[0].mxu0
  %v1575 = vadd.f32 0.0, %v1574
  %1576 = vmatprep.mubr.bf16.mxu0 0
  %1577 = vmatmul.mubr.bf16.gmra.mrb[0].mxu0 %v1484
  %v1578 = vpop.f32.mrb[0].mxu0
  %v1579 = vadd.f32 0.0, %v1578
  %v1580 = vpop.f32.mrb[0].mxu0
  %v1581 = vadd.f32 0.0, %v1580
  %v1582 = vpop.f32.mrb[0].mxu0
  %v1583 = vadd.f32 0.0, %v1582
  %v1584 = vpop.f32.mrb[0].mxu0
  %v1585 = vadd.f32 0.0, %v1584
  %1586 = vmatprep.mubr.bf16.mxu0 0
  %1587 = vmatmul.mubr.bf16.gmra.mrb[0].mxu0 %v1487
  %v1588 = vpop.f32.mrb[0].mxu0
  %v1589 = vadd.f32 0.0, %v1588
  %v1590 = vpop.f32.mrb[0].mxu0
  %v1591 = vadd.f32 0.0, %v1590
  %v1592 = vpop.f32.mrb[0].mxu0
  %v1593 = vadd.f32 0.0, %v1592
  %v1594 = vpop.f32.mrb[0].mxu0
  %v1595 = vadd.f32 0.0, %v1594
  %1596 = vmatprep.mubr.bf16.mxu0 0
  %1597 = vmatmul.mubr.bf16.gmra.mrb[0].mxu0 %v1490
  %v1598 = vpop.f32.mrb[0].mxu0
  %v1599 = vadd.f32 0.0, %v1598
  %v1600 = vpop.f32.mrb[0].mxu0
  %v1601 = vadd.f32 0.0, %v1600
  %v1602 = vpop.f32.mrb[0].mxu0
  %v1603 = vadd.f32 0.0, %v1602
  %v1604 = vpop.f32.mrb[0].mxu0
  %v1605 = vadd.f32 0.0, %v1604
  %1606 = vmatprep.mubr.bf16.mxu0 0
  %1607 = vmatmul.mubr.bf16.gmra.mrb[0].mxu0 %v1493
  %v1608 = vpop.f32.mrb[0].mxu0
  %v1609 = vadd.f32 0.0, %v1608
  %v1610 = vpop.f32.mrb[0].mxu0
  %v1611 = vadd.f32 0.0, %v1610
  %v1612 = vpop.f32.mrb[0].mxu0
  %v1613 = vadd.f32 0.0, %v1612
  %v1614 = vpop.f32.mrb[0].mxu0
  %v1615 = vadd.f32 0.0, %v1614
  %1616 = vmatprep.mubr.bf16.mxu0 0
  %1617 = vmatmul.mubr.bf16.gmra.mrb[0].mxu0 %v1496
  %v1618 = vpop.f32.mrb[0].mxu0
  %v1619 = vadd.f32 0.0, %v1618
  %v1620 = vpop.f32.mrb[0].mxu0
  %v1621 = vadd.f32 0.0, %v1620
  %v1622 = vpop.f32.mrb[0].mxu0
  %v1623 = vadd.f32 0.0, %v1622
  %v1624 = vpop.f32.mrb[0].mxu0
  %v1625 = vadd.f32 0.0, %v1624
  %1626 = vmatprep.mubr.bf16.mxu0 0
  %1627 = vmatmul.mubr.bf16.gmra.mrb[0].mxu0 %v1499
  %v1628 = vpop.f32.mrb[0].mxu0
  %v1629 = vadd.f32 0.0, %v1628
  %v1630 = vpop.f32.mrb[0].mxu0
  %v1631 = vadd.f32 0.0, %v1630
  %v1632 = vpop.f32.mrb[0].mxu0
  %v1633 = vadd.f32 0.0, %v1632
  %v1634 = vpop.f32.mrb[0].mxu0
  %v1635 = vadd.f32 0.0, %v1634
  %1636 = vmatprep.mubr.bf16.mxu0 0
  %1637 = vmatmul.mubr.bf16.gmra.mrb[0].mxu0 %v1502
  %v1638 = vpop.f32.mrb[0].mxu0
  %v1639 = vadd.f32 0.0, %v1638
  %v1640 = vpop.f32.mrb[0].mxu0
  %v1641 = vadd.f32 0.0, %v1640
  %v1642 = vpop.f32.mrb[0].mxu0
  %v1643 = vadd.f32 0.0, %v1642
  %v1644 = vpop.f32.mrb[0].mxu0
  %v1645 = vadd.f32 0.0, %v1644
  %1646 = vmatprep.mubr.bf16.mxu0 0
  %1647 = vmatmul.mubr.bf16.gmra.mrb[0].mxu0 %v1505
  %v1648 = vpop.f32.mrb[0].mxu0
  %v1649 = vadd.f32 0.0, %v1648
  %v1650 = vpop.f32.mrb[0].mxu0
  %v1651 = vadd.f32 0.0, %v1650
  %v1652 = vpop.f32.mrb[0].mxu0
  %v1653 = vadd.f32 0.0, %v1652
  %v1654 = vpop.f32.mrb[0].mxu0
  %v1655 = vadd.f32 0.0, %v1654
  %1656 = vmatprep.mubr.bf16.mxu0 0
  %1657 = vmatmul.mubr.bf16.gmra.mrb[0].mxu0 %v1508
  %v1658 = vpop.f32.mrb[0].mxu0
  %v1659 = vadd.f32 0.0, %v1658
  %v1660 = vpop.f32.mrb[0].mxu0
  %v1661 = vadd.f32 0.0, %v1660
  %v1662 = vpop.f32.mrb[0].mxu0
  %v1663 = vadd.f32 0.0, %v1662
  %v1664 = vpop.f32.mrb[0].mxu0
  %v1665 = vadd.f32 0.0, %v1664
  %1666 = vmatprep.mubr.bf16.mxu0 0
  %1667 = vmatmul.mubr.bf16.gmra.mrb[0].mxu0 %v1511
  %v1668 = vpop.f32.mrb[0].mxu0
  %v1669 = vadd.f32 0.0, %v1668
  %v1670 = vpop.f32.mrb[0].mxu0
  %v1671 = vadd.f32 0.0, %v1670
  %v1672 = vpop.f32.mrb[0].mxu0
  %v1673 = vadd.f32 0.0, %v1672
  %v1674 = vpop.f32.mrb[0].mxu0
  %v1675 = vadd.f32 0.0, %v1674
  %1676 = vmatprep.mubr.bf16.mxu0 0
  %1677 = vmatmul.mubr.bf16.gmra.mrb[0].mxu0 %v1514
  %v1678 = vpop.f32.mrb[0].mxu0
  %v1679 = vadd.f32 0.0, %v1678
  %v1680 = vpop.f32.mrb[0].mxu0
  %v1681 = vadd.f32 0.0, %v1680
  %v1682 = vpop.f32.mrb[0].mxu0
  %v1683 = vadd.f32 0.0, %v1682
  %v1684 = vpop.f32.mrb[0].mxu0
  %v1685 = vadd.f32 0.0, %v1684
  %1686 = vmatprep.mubr.bf16.mxu0 0
  %1687 = vmatmul.mubr.bf16.gmra.mrb[0].mxu0 %v1517
  %v1688 = vpop.f32.mrb[0].mxu0
  %v1689 = vadd.f32 0.0, %v1688
  %v1690 = vpop.f32.mrb[0].mxu0
  %v1691 = vadd.f32 0.0, %v1690
  %v1692 = vpop.f32.mrb[0].mxu0
  %v1693 = vadd.f32 0.0, %v1692
  %v1694 = vpop.f32.mrb[0].mxu0
  %v1695 = vadd.f32 0.0, %v1694
  %1696 = vmatprep.mubr.bf16.mxu0 0
  %1697 = vmatmul.mubr.bf16.gmra.mrb[0].mxu0 %v1520
  %v1698 = vpop.f32.mrb[0].mxu0
  %v1699 = vadd.f32 0.0, %v1698
  %v1700 = vpop.f32.mrb[0].mxu0
  %v1701 = vadd.f32 0.0, %v1700
  %v1702 = vpop.f32.mrb[0].mxu0
  %v1703 = vadd.f32 0.0, %v1702
  %v1704 = vpop.f32.mrb[0].mxu0
  %v1705 = vadd.f32 0.0, %v1704
  %1706 = vmatprep.mubr.bf16.mxu0 0
  %1707 = vmatmul.mubr.bf16.gmra.mrb[0].mxu0 %v1523
  %v1708 = vpop.f32.mrb[0].mxu0
  %v1709 = vadd.f32 0.0, %v1708
  %v1710 = vpop.f32.mrb[0].mxu0
  %v1711 = vadd.f32 0.0, %v1710
  %v1712 = vpop.f32.mrb[0].mxu0
  %v1713 = vadd.f32 0.0, %v1712
  %v1714 = vpop.f32.mrb[0].mxu0
  %v1715 = vadd.f32 0.0, %v1714
  %1716 = vmatprep.mubr.bf16.mxu0 0
  %1717 = vmatmul.mubr.bf16.gmra.mrb[0].mxu0 %v1526
  %v1718 = vpop.f32.mrb[0].mxu0
  %v1719 = vadd.f32 0.0, %v1718
  %v1720 = vpop.f32.mrb[0].mxu0
  %v1721 = vadd.f32 0.0, %v1720
  %v1722 = vpop.f32.mrb[0].mxu0
  %v1723 = vadd.f32 0.0, %v1722
  %v1724 = vpop.f32.mrb[0].mxu0
  %v1725 = vadd.f32 0.0, %v1724
  %1726 = vdwg.mxu0
  %v1727 = vmax.f32 %v1569, %v1571
  %1728 = vmax.xlane.f32.xlu0 %v1727
  %v1729 = vpop.xlane.xlu0 %1728
  %v1730 = vmax.f32 %v1573, %v1575
  %1731 = vmax.xlane.f32.xlu0 %v1730
  %v1732 = vpop.xlane.xlu0 %1731
  %v1733 = vmax.f32 %v1579, %v1581
  %1734 = vmax.xlane.f32.xlu0 %v1733
  %v1735 = vpop.xlane.xlu0 %1734
  %v1736 = vmax.f32 %v1583, %v1585
  %1737 = vmax.xlane.f32.xlu0 %v1736
  %v1738 = vpop.xlane.xlu0 %1737
  %v1739 = vmax.f32 %v1589, %v1591
  %1740 = vmax.xlane.f32.xlu0 %v1739
  %v1741 = vpop.xlane.xlu0 %1740
  %v1742 = vmax.f32 %v1593, %v1595
  %1743 = vmax.xlane.f32.xlu0 %v1742
  %v1744 = vpop.xlane.xlu0 %1743
  %v1745 = vmax.f32 %v1599, %v1601
  %1746 = vmax.xlane.f32.xlu0 %v1745
  %v1747 = vpop.xlane.xlu0 %1746
  %v1748 = vmax.f32 %v1603, %v1605
  %1749 = vmax.xlane.f32.xlu0 %v1748
  %v1750 = vpop.xlane.xlu0 %1749
  %v1751 = vmax.f32 %v1609, %v1611
  %1752 = vmax.xlane.f32.xlu0 %v1751
  %v1753 = vpop.xlane.xlu0 %1752
  %v1754 = vmax.f32 %v1613, %v1615
  %1755 = vmax.xlane.f32.xlu0 %v1754
  %v1756 = vpop.xlane.xlu0 %1755
  %v1757 = vmax.f32 %v1619, %v1621
  %1758 = vmax.xlane.f32.xlu0 %v1757
  %v1759 = vpop.xlane.xlu0 %1758
  %v1760 = vmax.f32 %v1623, %v1625
  %1761 = vmax.xlane.f32.xlu0 %v1760
  %v1762 = vpop.xlane.xlu0 %1761
  %v1763 = vmax.f32 %v1629, %v1631
  %1764 = vmax.xlane.f32.xlu0 %v1763
  %v1765 = vpop.xlane.xlu0 %1764
  %v1766 = vmax.f32 %v1633, %v1635
  %1767 = vmax.xlane.f32.xlu0 %v1766
  %v1768 = vpop.xlane.xlu0 %1767
  %v1769 = vmax.f32 %v1639, %v1641
  %1770 = vmax.xlane.f32.xlu0 %v1769
  %v1771 = vpop.xlane.xlu0 %1770
  %v1772 = vmax.f32 %v1643, %v1645
  %1773 = vmax.xlane.f32.xlu0 %v1772
  %v1774 = vpop.xlane.xlu0 %1773
  %v1775 = vmax.f32 %v1649, %v1651
  %1776 = vmax.xlane.f32.xlu0 %v1775
  %v1777 = vpop.xlane.xlu0 %1776
  %v1778 = vmax.f32 %v1653, %v1655
  %1779 = vmax.xlane.f32.xlu0 %v1778
  %v1780 = vpop.xlane.xlu0 %1779
  %v1781 = vmax.f32 %v1659, %v1661
  %1782 = vmax.xlane.f32.xlu0 %v1781
  %v1783 = vpop.xlane.xlu0 %1782
  %v1784 = vmax.f32 %v1663, %v1665
  %1785 = vmax.xlane.f32.xlu0 %v1784
  %v1786 = vpop.xlane.xlu0 %1785
  %v1787 = vmax.f32 %v1669, %v1671
  %1788 = vmax.xlane.f32.xlu0 %v1787
  %v1789 = vpop.xlane.xlu0 %1788
  %v1790 = vmax.f32 %v1673, %v1675
  %1791 = vmax.xlane.f32.xlu0 %v1790
  %v1792 = vpop.xlane.xlu0 %1791
  %v1793 = vmax.f32 %v1679, %v1681
  %1794 = vmax.xlane.f32.xlu0 %v1793
  %v1795 = vpop.xlane.xlu0 %1794
  %v1796 = vmax.f32 %v1683, %v1685
  %1797 = vmax.xlane.f32.xlu0 %v1796
  %v1798 = vpop.xlane.xlu0 %1797
  %v1799 = vmax.f32 %v1689, %v1691
  %1800 = vmax.xlane.f32.xlu0 %v1799
  %v1801 = vpop.xlane.xlu0 %1800
  %v1802 = vmax.f32 %v1693, %v1695
  %1803 = vmax.xlane.f32.xlu0 %v1802
  %v1804 = vpop.xlane.xlu0 %1803
  %v1805 = vmax.f32 %v1699, %v1701
  %1806 = vmax.xlane.f32.xlu0 %v1805
  %v1807 = vpop.xlane.xlu0 %1806
  %v1808 = vmax.f32 %v1703, %v1705
  %1809 = vmax.xlane.f32.xlu0 %v1808
  %v1810 = vpop.xlane.xlu0 %1809
  %v1811 = vmax.f32 %v1709, %v1711
  %1812 = vmax.xlane.f32.xlu0 %v1811
  %v1813 = vpop.xlane.xlu0 %1812
  %v1814 = vmax.f32 %v1713, %v1715
  %1815 = vmax.xlane.f32.xlu0 %v1814
  %v1816 = vpop.xlane.xlu0 %1815
  %v1817 = vmax.f32 %v1719, %v1721
  %1818 = vmax.xlane.f32.xlu0 %v1817
  %v1819 = vpop.xlane.xlu0 %1818
  %v1820 = vmax.f32 %v1723, %v1725
  %1821 = vmax.xlane.f32.xlu0 %v1820
  %v1822 = vpop.xlane.xlu0 %1821
  %v1823 = vsub.f32 %v1569, %v1729
  %v1824 = vsub.f32 %v1571, %v1729
  %v1825 = vsub.f32 %v1573, %v1732
  %v1826 = vsub.f32 %v1575, %v1732
  %v1827 = vsub.f32 %v1579, %v1735
  %v1828 = vsub.f32 %v1581, %v1735
  %v1829 = vsub.f32 %v1583, %v1738
  %v1830 = vsub.f32 %v1585, %v1738
  %v1831 = vsub.f32 %v1589, %v1741
  %v1832 = vsub.f32 %v1591, %v1741
  %v1833 = vsub.f32 %v1593, %v1744
  %v1834 = vsub.f32 %v1595, %v1744
  %v1835 = vsub.f32 %v1599, %v1747
  %v1836 = vsub.f32 %v1601, %v1747
  %v1837 = vsub.f32 %v1603, %v1750
  %v1838 = vsub.f32 %v1605, %v1750
  %v1839 = vsub.f32 %v1609, %v1753
  %v1840 = vsub.f32 %v1611, %v1753
  %v1841 = vsub.f32 %v1613, %v1756
  %v1842 = vsub.f32 %v1615, %v1756
  %v1843 = vsub.f32 %v1619, %v1759
  %v1844 = vsub.f32 %v1621, %v1759
  %v1845 = vsub.f32 %v1623, %v1762
  %v1846 = vsub.f32 %v1625, %v1762
  %v1847 = vsub.f32 %v1629, %v1765
  %v1848 = vsub.f32 %v1631, %v1765
  %v1849 = vsub.f32 %v1633, %v1768
  %v1850 = vsub.f32 %v1635, %v1768
  %v1851 = vsub.f32 %v1639, %v1771
  %v1852 = vsub.f32 %v1641, %v1771
  %v1853 = vsub.f32 %v1643, %v1774
  %v1854 = vsub.f32 %v1645, %v1774
  %v1855 = vsub.f32 %v1649, %v1777
  %v1856 = vsub.f32 %v1651, %v1777
  %v1857 = vsub.f32 %v1653, %v1780
  %v1858 = vsub.f32 %v1655, %v1780
  %v1859 = vsub.f32 %v1659, %v1783
  %v1860 = vsub.f32 %v1661, %v1783
  %v1861 = vsub.f32 %v1663, %v1786
  %v1862 = vsub.f32 %v1665, %v1786
  %v1863 = vsub.f32 %v1669, %v1789
  %v1864 = vsub.f32 %v1671, %v1789
  %v1865 = vsub.f32 %v1673, %v1792
  %v1866 = vsub.f32 %v1675, %v1792
  %v1867 = vsub.f32 %v1679, %v1795
  %v1868 = vsub.f32 %v1681, %v1795
  %v1869 = vsub.f32 %v1683, %v1798
  %v1870 = vsub.f32 %v1685, %v1798
  %v1871 = vsub.f32 %v1689, %v1801
  %v1872 = vsub.f32 %v1691, %v1801
  %v1873 = vsub.f32 %v1693, %v1804
  %v1874 = vsub.f32 %v1695, %v1804
  %v1875 = vsub.f32 %v1699, %v1807
  %v1876 = vsub.f32 %v1701, %v1807
  %v1877 = vsub.f32 %v1703, %v1810
  %v1878 = vsub.f32 %v1705, %v1810
  %v1879 = vsub.f32 %v1709, %v1813
  %v1880 = vsub.f32 %v1711, %v1813
  %v1881 = vsub.f32 %v1713, %v1816
  %v1882 = vsub.f32 %v1715, %v1816
  %v1883 = vsub.f32 %v1719, %v1819
  %v1884 = vsub.f32 %v1721, %v1819
  %v1885 = vsub.f32 %v1723, %v1822
  %v1886 = vsub.f32 %v1725, %v1822
  %v1887 = vpack.c.bf16 %v1825, %v1823
  %v1888 = vpack.c.bf16 %v1826, %v1824
  %v1889 = vpack.c.bf16 %v1829, %v1827
  %v1890 = vpack.c.bf16 %v1830, %v1828
  %v1891 = vpack.c.bf16 %v1833, %v1831
  %v1892 = vpack.c.bf16 %v1834, %v1832
  %v1893 = vpack.c.bf16 %v1837, %v1835
  %v1894 = vpack.c.bf16 %v1838, %v1836
  %v1895 = vpack.c.bf16 %v1841, %v1839
  %v1896 = vpack.c.bf16 %v1842, %v1840
  %v1897 = vpack.c.bf16 %v1845, %v1843
  %v1898 = vpack.c.bf16 %v1846, %v1844
  %v1899 = vpack.c.bf16 %v1849, %v1847
  %v1900 = vpack.c.bf16 %v1850, %v1848
  %v1901 = vpack.c.bf16 %v1853, %v1851
  %v1902 = vpack.c.bf16 %v1854, %v1852
  %v1903 = vpack.c.bf16 %v1857, %v1855
  %v1904 = vpack.c.bf16 %v1858, %v1856
  %v1905 = vpack.c.bf16 %v1861, %v1859
  %v1906 = vpack.c.bf16 %v1862, %v1860
  %v1907 = vpack.c.bf16 %v1865, %v1863
  %v1908 = vpack.c.bf16 %v1866, %v1864
  %v1909 = vpack.c.bf16 %v1869, %v1867
  %v1910 = vpack.c.bf16 %v1870, %v1868
  %v1911 = vpack.c.bf16 %v1873, %v1871
  %v1912 = vpack.c.bf16 %v1874, %v1872
  %v1913 = vpack.c.bf16 %v1877, %v1875
  %v1914 = vpack.c.bf16 %v1878, %v1876
  %v1915 = vpack.c.bf16 %v1881, %v1879
  %v1916 = vpack.c.bf16 %v1882, %v1880
  %v1917 = vpack.c.bf16 %v1885, %v1883
  %v1918 = vpack.c.bf16 %v1886, %v1884
  %v1920 = vmul.bf16 %v1887, 1069105081
  %v1921 = vpow.bf16.pop %v1920
  %v1923 = vmul.bf16 %v1888, 1069105081
  %v1924 = vpow.bf16.pop %v1923
  %v1926 = vmul.bf16 %v1889, 1069105081
  %v1927 = vpow.bf16.pop %v1926
  %v1929 = vmul.bf16 %v1890, 1069105081
  %v1930 = vpow.bf16.pop %v1929
  %v1932 = vmul.bf16 %v1891, 1069105081
  %v1933 = vpow.bf16.pop %v1932
  %v1935 = vmul.bf16 %v1892, 1069105081
  %v1936 = vpow.bf16.pop %v1935
  %v1938 = vmul.bf16 %v1893, 1069105081
  %v1939 = vpow.bf16.pop %v1938
  %v1941 = vmul.bf16 %v1894, 1069105081
  %v1942 = vpow.bf16.pop %v1941
  %v1944 = vmul.bf16 %v1895, 1069105081
  %v1945 = vpow.bf16.pop %v1944
  %v1947 = vmul.bf16 %v1896, 1069105081
  %v1948 = vpow.bf16.pop %v1947
  %v1950 = vmul.bf16 %v1897, 1069105081
  %v1951 = vpow.bf16.pop %v1950
  %v1953 = vmul.bf16 %v1898, 1069105081
  %v1954 = vpow.bf16.pop %v1953
  %v1956 = vmul.bf16 %v1899, 1069105081
  %v1957 = vpow.bf16.pop %v1956
  %v1959 = vmul.bf16 %v1900, 1069105081
  %v1960 = vpow.bf16.pop %v1959
  %v1962 = vmul.bf16 %v1901, 1069105081
  %v1963 = vpow.bf16.pop %v1962
  %v1965 = vmul.bf16 %v1902, 1069105081
  %v1966 = vpow.bf16.pop %v1965
  %v1968 = vmul.bf16 %v1903, 1069105081
  %v1969 = vpow.bf16.pop %v1968
  %v1971 = vmul.bf16 %v1904, 1069105081
  %v1972 = vpow.bf16.pop %v1971
  %v1974 = vmul.bf16 %v1905, 1069105081
  %v1975 = vpow.bf16.pop %v1974
  %v1977 = vmul.bf16 %v1906, 1069105081
  %v1978 = vpow.bf16.pop %v1977
  %v1980 = vmul.bf16 %v1907, 1069105081
  %v1981 = vpow.bf16.pop %v1980
  %v1983 = vmul.bf16 %v1908, 1069105081
  %v1984 = vpow.bf16.pop %v1983
  %v1986 = vmul.bf16 %v1909, 1069105081
  %v1987 = vpow.bf16.pop %v1986
  %v1989 = vmul.bf16 %v1910, 1069105081
  %v1990 = vpow.bf16.pop %v1989
  %v1992 = vmul.bf16 %v1911, 1069105081
  %v1993 = vpow.bf16.pop %v1992
  %v1995 = vmul.bf16 %v1912, 1069105081
  %v1996 = vpow.bf16.pop %v1995
  %v1998 = vmul.bf16 %v1913, 1069105081
  %v1999 = vpow.bf16.pop %v1998
  %v2001 = vmul.bf16 %v1914, 1069105081
  %v2002 = vpow.bf16.pop %v2001
  %v2004 = vmul.bf16 %v1915, 1069105081
  %v2005 = vpow.bf16.pop %v2004
  %v2007 = vmul.bf16 %v1916, 1069105081
  %v2008 = vpow.bf16.pop %v2007
  %v2010 = vmul.bf16 %v1917, 1069105081
  %v2011 = vpow.bf16.pop %v2010
  %v2013 = vmul.bf16 %v1918, 1069105081
  %v2014 = vpow.bf16.pop %v2013
  %v2015 = vunpack.c.l.bf16 %v1921
  %v2016 = vunpack.c.l.bf16 %v1924
  %v2017 = vunpack.c.h.bf16 %v1921
  %v2018 = vunpack.c.h.bf16 %v1924
  %v2019 = vunpack.c.l.bf16 %v1927
  %v2020 = vunpack.c.l.bf16 %v1930
  %v2021 = vunpack.c.h.bf16 %v1927
  %v2022 = vunpack.c.h.bf16 %v1930
  %v2023 = vunpack.c.l.bf16 %v1933
  %v2024 = vunpack.c.l.bf16 %v1936
  %v2025 = vunpack.c.h.bf16 %v1933
  %v2026 = vunpack.c.h.bf16 %v1936
  %v2027 = vunpack.c.l.bf16 %v1939
  %v2028 = vunpack.c.l.bf16 %v1942
  %v2029 = vunpack.c.h.bf16 %v1939
  %v2030 = vunpack.c.h.bf16 %v1942
  %v2031 = vunpack.c.l.bf16 %v1945
  %v2032 = vunpack.c.l.bf16 %v1948
  %v2033 = vunpack.c.h.bf16 %v1945
  %v2034 = vunpack.c.h.bf16 %v1948
  %v2035 = vunpack.c.l.bf16 %v1951
  %v2036 = vunpack.c.l.bf16 %v1954
  %v2037 = vunpack.c.h.bf16 %v1951
  %v2038 = vunpack.c.h.bf16 %v1954
  %v2039 = vunpack.c.l.bf16 %v1957
  %v2040 = vunpack.c.l.bf16 %v1960
  %v2041 = vunpack.c.h.bf16 %v1957
  %v2042 = vunpack.c.h.bf16 %v1960
  %v2043 = vunpack.c.l.bf16 %v1963
  %v2044 = vunpack.c.l.bf16 %v1966
  %v2045 = vunpack.c.h.bf16 %v1963
  %v2046 = vunpack.c.h.bf16 %v1966
  %v2047 = vunpack.c.l.bf16 %v1969
  %v2048 = vunpack.c.l.bf16 %v1972
  %v2049 = vunpack.c.h.bf16 %v1969
  %v2050 = vunpack.c.h.bf16 %v1972
  %v2051 = vunpack.c.l.bf16 %v1975
  %v2052 = vunpack.c.l.bf16 %v1978
  %v2053 = vunpack.c.h.bf16 %v1975
  %v2054 = vunpack.c.h.bf16 %v1978
  %v2055 = vunpack.c.l.bf16 %v1981
  %v2056 = vunpack.c.l.bf16 %v1984
  %v2057 = vunpack.c.h.bf16 %v1981
  %v2058 = vunpack.c.h.bf16 %v1984
  %v2059 = vunpack.c.l.bf16 %v1987
  %v2060 = vunpack.c.l.bf16 %v1990
  %v2061 = vunpack.c.h.bf16 %v1987
  %v2062 = vunpack.c.h.bf16 %v1990
  %v2063 = vunpack.c.l.bf16 %v1993
  %v2064 = vunpack.c.l.bf16 %v1996
  %v2065 = vunpack.c.h.bf16 %v1993
  %v2066 = vunpack.c.h.bf16 %v1996
  %v2067 = vunpack.c.l.bf16 %v1999
  %v2068 = vunpack.c.l.bf16 %v2002
  %v2069 = vunpack.c.h.bf16 %v1999
  %v2070 = vunpack.c.h.bf16 %v2002
  %v2071 = vunpack.c.l.bf16 %v2005
  %v2072 = vunpack.c.l.bf16 %v2008
  %v2073 = vunpack.c.h.bf16 %v2005
  %v2074 = vunpack.c.h.bf16 %v2008
  %v2075 = vunpack.c.l.bf16 %v2011
  %v2076 = vunpack.c.l.bf16 %v2014
  %v2077 = vunpack.c.h.bf16 %v2011
  %v2078 = vunpack.c.h.bf16 %v2014
  %v2079 = vadd.f32 %v2015, %v2016
  %2080 = vadd.xlane.f32.xlu0 %v2079
  %v2081 = vpop.xlane.xlu0 %2080
  %v2082 = vadd.f32 %v2017, %v2018
  %2083 = vadd.xlane.f32.xlu0 %v2082
  %v2084 = vpop.xlane.xlu0 %2083
  %v2085 = vadd.f32 %v2019, %v2020
  %2086 = vadd.xlane.f32.xlu0 %v2085
  %v2087 = vpop.xlane.xlu0 %2086
  %v2088 = vadd.f32 %v2021, %v2022
  %2089 = vadd.xlane.f32.xlu0 %v2088
  %v2090 = vpop.xlane.xlu0 %2089
  %v2091 = vadd.f32 %v2023, %v2024
  %2092 = vadd.xlane.f32.xlu0 %v2091
  %v2093 = vpop.xlane.xlu0 %2092
  %v2094 = vadd.f32 %v2025, %v2026
  %2095 = vadd.xlane.f32.xlu0 %v2094
  %v2096 = vpop.xlane.xlu0 %2095
  %v2097 = vadd.f32 %v2027, %v2028
  %2098 = vadd.xlane.f32.xlu0 %v2097
  %v2099 = vpop.xlane.xlu0 %2098
  %v2100 = vadd.f32 %v2029, %v2030
  %2101 = vadd.xlane.f32.xlu0 %v2100
  %v2102 = vpop.xlane.xlu0 %2101
  %v2103 = vadd.f32 %v2031, %v2032
  %2104 = vadd.xlane.f32.xlu0 %v2103
  %v2105 = vpop.xlane.xlu0 %2104
  %v2106 = vadd.f32 %v2033, %v2034
  %2107 = vadd.xlane.f32.xlu0 %v2106
  %v2108 = vpop.xlane.xlu0 %2107
  %v2109 = vadd.f32 %v2035, %v2036
  %2110 = vadd.xlane.f32.xlu0 %v2109
  %v2111 = vpop.xlane.xlu0 %2110
  %v2112 = vadd.f32 %v2037, %v2038
  %2113 = vadd.xlane.f32.xlu0 %v2112
  %v2114 = vpop.xlane.xlu0 %2113
  %v2115 = vadd.f32 %v2039, %v2040
  %2116 = vadd.xlane.f32.xlu0 %v2115
  %v2117 = vpop.xlane.xlu0 %2116
  %v2118 = vadd.f32 %v2041, %v2042
  %2119 = vadd.xlane.f32.xlu0 %v2118
  %v2120 = vpop.xlane.xlu0 %2119
  %v2121 = vadd.f32 %v2043, %v2044
  %2122 = vadd.xlane.f32.xlu0 %v2121
  %v2123 = vpop.xlane.xlu0 %2122
  %v2124 = vadd.f32 %v2045, %v2046
  %2125 = vadd.xlane.f32.xlu0 %v2124
  %v2126 = vpop.xlane.xlu0 %2125
  %v2127 = vadd.f32 %v2047, %v2048
  %2128 = vadd.xlane.f32.xlu0 %v2127
  %v2129 = vpop.xlane.xlu0 %2128
  %v2130 = vadd.f32 %v2049, %v2050
  %2131 = vadd.xlane.f32.xlu0 %v2130
  %v2132 = vpop.xlane.xlu0 %2131
  %v2133 = vadd.f32 %v2051, %v2052
  %2134 = vadd.xlane.f32.xlu0 %v2133
  %v2135 = vpop.xlane.xlu0 %2134
  %v2136 = vadd.f32 %v2053, %v2054
  %2137 = vadd.xlane.f32.xlu0 %v2136
  %v2138 = vpop.xlane.xlu0 %2137
  %v2139 = vadd.f32 %v2055, %v2056
  %2140 = vadd.xlane.f32.xlu0 %v2139
  %v2141 = vpop.xlane.xlu0 %2140
  %v2142 = vadd.f32 %v2057, %v2058
  %2143 = vadd.xlane.f32.xlu0 %v2142
  %v2144 = vpop.xlane.xlu0 %2143
  %v2145 = vadd.f32 %v2059, %v2060
  %2146 = vadd.xlane.f32.xlu0 %v2145
  %v2147 = vpop.xlane.xlu0 %2146
  %v2148 = vadd.f32 %v2061, %v2062
  %2149 = vadd.xlane.f32.xlu0 %v2148
  %v2150 = vpop.xlane.xlu0 %2149
  %v2151 = vadd.f32 %v2063, %v2064
  %2152 = vadd.xlane.f32.xlu0 %v2151
  %v2153 = vpop.xlane.xlu0 %2152
  %v2154 = vadd.f32 %v2065, %v2066
  %2155 = vadd.xlane.f32.xlu0 %v2154
  %v2156 = vpop.xlane.xlu0 %2155
  %v2157 = vadd.f32 %v2067, %v2068
  %2158 = vadd.xlane.f32.xlu0 %v2157
  %v2159 = vpop.xlane.xlu0 %2158
  %v2160 = vadd.f32 %v2069, %v2070
  %2161 = vadd.xlane.f32.xlu0 %v2160
  %v2162 = vpop.xlane.xlu0 %2161
  %v2163 = vadd.f32 %v2071, %v2072
  %2164 = vadd.xlane.f32.xlu0 %v2163
  %v2165 = vpop.xlane.xlu0 %2164
  %v2166 = vadd.f32 %v2073, %v2074
  %2167 = vadd.xlane.f32.xlu0 %v2166
  %v2168 = vpop.xlane.xlu0 %2167
  %v2169 = vadd.f32 %v2075, %v2076
  %2170 = vadd.xlane.f32.xlu0 %v2169
  %v2171 = vpop.xlane.xlu0 %2170
  %v2172 = vadd.f32 %v2077, %v2078
  %2173 = vadd.xlane.f32.xlu0 %v2172
  %v2174 = vpop.xlane.xlu0 %2173
  %v2175 = vrcp.pop %v2081
  %v2176 = vrcp.pop %v2084
  %v2177 = vrcp.pop %v2087
  %v2178 = vrcp.pop %v2090
  %v2179 = vrcp.pop %v2093
  %v2180 = vrcp.pop %v2096
  %v2181 = vrcp.pop %v2099
  %v2182 = vrcp.pop %v2102
  %v2183 = vrcp.pop %v2105
  %v2184 = vrcp.pop %v2108
  %v2185 = vrcp.pop %v2111
  %v2186 = vrcp.pop %v2114
  %v2187 = vrcp.pop %v2117
  %v2188 = vrcp.pop %v2120
  %v2189 = vrcp.pop %v2123
  %v2190 = vrcp.pop %v2126
  %v2191 = vrcp.pop %v2129
  %v2192 = vrcp.pop %v2132
  %v2193 = vrcp.pop %v2135
  %v2194 = vrcp.pop %v2138
  %v2195 = vrcp.pop %v2141
  %v2196 = vrcp.pop %v2144
  %v2197 = vrcp.pop %v2147
  %v2198 = vrcp.pop %v2150
  %v2199 = vrcp.pop %v2153
  %v2200 = vrcp.pop %v2156
  %v2201 = vrcp.pop %v2159
  %v2202 = vrcp.pop %v2162
  %v2203 = vrcp.pop %v2165
  %v2204 = vrcp.pop %v2168
  %v2205 = vrcp.pop %v2171
  %v2206 = vrcp.pop %v2174
  %v2207 = vpack.c.bf16 %v2176, %v2175
  %v2208 = vpack.c.bf16 %v2178, %v2177
  %v2209 = vpack.c.bf16 %v2180, %v2179
  %v2210 = vpack.c.bf16 %v2182, %v2181
  %v2211 = vpack.c.bf16 %v2184, %v2183
  %v2212 = vpack.c.bf16 %v2186, %v2185
  %v2213 = vpack.c.bf16 %v2188, %v2187
  %v2214 = vpack.c.bf16 %v2190, %v2189
  %v2215 = vpack.c.bf16 %v2192, %v2191
  %v2216 = vpack.c.bf16 %v2194, %v2193
  %v2217 = vpack.c.bf16 %v2196, %v2195
  %v2218 = vpack.c.bf16 %v2198, %v2197
  %v2219 = vpack.c.bf16 %v2200, %v2199
  %v2220 = vpack.c.bf16 %v2202, %v2201
  %v2221 = vpack.c.bf16 %v2204, %v2203
  %v2222 = vpack.c.bf16 %v2206, %v2205
  %v2223 = vmul.bf16 %v1921, %v2207
  %v2224 = vmul.bf16 %v1924, %v2207
  %v2225 = vmul.bf16 %v1927, %v2208
  %v2226 = vmul.bf16 %v1930, %v2208
  %v2227 = vmul.bf16 %v1933, %v2209
  %v2228 = vmul.bf16 %v1936, %v2209
  %v2229 = vmul.bf16 %v1939, %v2210
  %v2230 = vmul.bf16 %v1942, %v2210
  %v2231 = vmul.bf16 %v1945, %v2211
  %v2232 = vmul.bf16 %v1948, %v2211
  %v2233 = vmul.bf16 %v1951, %v2212
  %v2234 = vmul.bf16 %v1954, %v2212
  %v2235 = vmul.bf16 %v1957, %v2213
  %v2236 = vmul.bf16 %v1960, %v2213
  %v2237 = vmul.bf16 %v1963, %v2214
  %v2238 = vmul.bf16 %v1966, %v2214
  %v2239 = vmul.bf16 %v1969, %v2215
  %v2240 = vmul.bf16 %v1972, %v2215
  %v2241 = vmul.bf16 %v1975, %v2216
  %v2242 = vmul.bf16 %v1978, %v2216
  %v2243 = vmul.bf16 %v1981, %v2217
  %v2244 = vmul.bf16 %v1984, %v2217
  %v2245 = vmul.bf16 %v1987, %v2218
  %v2246 = vmul.bf16 %v1990, %v2218
  %v2247 = vmul.bf16 %v1993, %v2219
  %v2248 = vmul.bf16 %v1996, %v2219
  %v2249 = vmul.bf16 %v1999, %v2220
  %v2250 = vmul.bf16 %v2002, %v2220
  %v2251 = vmul.bf16 %v2005, %v2221
  %v2252 = vmul.bf16 %v2008, %v2221
  %v2253 = vmul.bf16 %v2011, %v2222
  %v2254 = vmul.bf16 %v2014, %v2222
  %v2257 = vrot.slane %v582, 2
  %v2258 = vrot.slane %v583, 2
  %2261 = vmatprep.subr.bf16.mxu0 %v2224
  %2262 = vmatpush1.bf16.xpose.msra.mxu0 %v2223
  %2263 = vmatprep.subr.bf16.mxu0 %v2226
  %2264 = vmatpush1.bf16.xpose.msra.mxu0 %v2225
  %2265 = vmatprep.subr.bf16.mxu0 %v2228
  %2266 = vmatpush1.bf16.xpose.msra.mxu0 %v2227
  %2267 = vmatprep.subr.bf16.mxu0 %v2230
  %2268 = vmatpush1.bf16.xpose.msra.mxu0 %v2229
  %2269 = vmatprep.subr.bf16.mxu0 %v2232
  %2270 = vmatpush1.bf16.xpose.msra.mxu0 %v2231
  %2271 = vmatprep.subr.bf16.mxu0 %v2234
  %2272 = vmatpush1.bf16.xpose.msra.mxu0 %v2233
  %2273 = vmatprep.subr.bf16.mxu0 %v2236
  %2274 = vmatpush1.bf16.xpose.msra.mxu0 %v2235
  %2275 = vmatprep.subr.bf16.mxu0 %v2238
  %2276 = vmatpush1.bf16.xpose.msra.mxu0 %v2237
  %2277 = vmatprep.subr.bf16.mxu0 %v2240
  %2278 = vmatpush1.bf16.xpose.msra.mxu0 %v2239
  %2279 = vmatprep.subr.bf16.mxu0 %v2242
  %2280 = vmatpush1.bf16.xpose.msra.mxu0 %v2241
  %2281 = vmatprep.subr.bf16.mxu0 %v2244
  %2282 = vmatpush1.bf16.xpose.msra.mxu0 %v2243
  %2283 = vmatprep.subr.bf16.mxu0 %v2246
  %2284 = vmatpush1.bf16.xpose.msra.mxu0 %v2245
  %2285 = vmatprep.subr.bf16.mxu0 %v2248
  %2286 = vmatpush1.bf16.xpose.msra.mxu0 %v2247
  %2287 = vmatprep.subr.bf16.mxu0 %v2250
  %2288 = vmatpush1.bf16.xpose.msra.mxu0 %v2249
  %2289 = vmatprep.subr.bf16.mxu0 %v2252
  %2290 = vmatpush1.bf16.xpose.msra.mxu0 %v2251
  %2291 = vmatprep.subr.bf16.mxu0 %v2254
  %2292 = vmatpush1.bf16.xpose.msra.mxu0 %v2253
  %2293 = vmatprep.mubr.bf16.mxu0 %v2258
  %2294 = vmatmul.mubr.bf16.gmra.mrb[0].mxu0 %v2257
  %v2295 = vpop.f32.mrb[0].mxu0
  %v2296 = vadd.f32 0.0, %v2295
  %v2297 = vpop.f32.mrb[0].mxu0
  %v2298 = vadd.f32 0.0, %v2297
  %v2299 = vpop.f32.mrb[0].mxu0
  %v2300 = vpop.f32.mrb[0].mxu0
  %2301 = vdwg.mxu0
  %v2304 = vrot.slane %v2296, 4
  %v2305 = vrot.slane %v2298, 4
  %2308 = vst [vmem:[#allocation2] sm:$0xf0] %v2304
  %2309 = vst [vmem:[#allocation2 + $0x8] sm:$0xf0] %v2305
  %v2310 = vrot.slane %v574, 4
  %v2311 = vrot.slane %v575, 4
  %2314 = vxpose.xlu0.c.b16.start [1/8] %v2310, 128
  %2315 = vxpose.xlu0.c.b16.cont [2/8] 0, 128
  %2316 = vxpose.xlu0.c.b16.cont [3/8] 0, 128
  %2317 = vxpose.xlu0.c.b16.cont [4/8] 0, 128
  %2318 = vxpose.xlu0.c.b16.cont [5/8] 0, 128
  %2319 = vxpose.xlu0.c.b16.cont [6/8] 0, 128
  %2320 = vxpose.xlu0.c.b16.cont [7/8] 0, 128
  %2321 = vxpose.xlu0.c.b16.end [8/8] 0, 128
  %v2322 = vpop.trf.xlu0
  %v2323 = vpop.trf.xlu0
  %v2324 = vpop.trf.xlu0
  %v2325 = vpop.trf.xlu0
  %v2326 = vpop.trf.xlu0
  %v2327 = vpop.trf.xlu0
  %v2328 = vpop.trf.xlu0
  %v2329 = vpop.trf.xlu0
  %2330 = vxpose.xlu0.c.b16.start [1/8] %v2311, 128
  %2331 = vxpose.xlu0.c.b16.cont [2/8] 0, 128
  %2332 = vxpose.xlu0.c.b16.cont [3/8] 0, 128
  %2333 = vxpose.xlu0.c.b16.cont [4/8] 0, 128
  %2334 = vxpose.xlu0.c.b16.cont [5/8] 0, 128
  %2335 = vxpose.xlu0.c.b16.cont [6/8] 0, 128
  %2336 = vxpose.xlu0.c.b16.cont [7/8] 0, 128
  %2337 = vxpose.xlu0.c.b16.end [8/8] 0, 128
  %v2338 = vpop.trf.xlu0
  %v2339 = vpop.trf.xlu0
  %v2340 = vpop.trf.xlu0
  %v2341 = vpop.trf.xlu0
  %v2342 = vpop.trf.xlu0
  %v2343 = vpop.trf.xlu0
  %v2344 = vpop.trf.xlu0
  %v2345 = vpop.trf.xlu0
  %v2346 = vrot.slane %v578, 4
  %v2347 = vrot.slane %v579, 4
  %v2349 = vsel %vm618, %v2322, 0
  %v2352 = vsel %vm618, %v2323, 0
  %v2355 = vsel %vm618, %v2324, 0
  %v2358 = vsel %vm618, %v2325, 0
  %v2361 = vsel %vm618, %v2326, 0
  %v2364 = vsel %vm618, %v2327, 0
  %v2367 = vsel %vm618, %v2328, 0
  %v2370 = vsel %vm618, %v2329, 0
  %v2373 = vsel %vm618, %v2338, 0
  %v2376 = vsel %vm618, %v2339, 0
  %v2379 = vsel %vm618, %v2340, 0
  %v2382 = vsel %vm618, %v2341, 0
  %v2385 = vsel %vm618, %v2342, 0
  %v2388 = vsel %vm618, %v2343, 0
  %v2391 = vsel %vm618, %v2344, 0
  %v2394 = vsel %vm618, %v2345, 0
  %v2397 = vsel %vm667, %v2346, 0
  %v2400 = vsel %vm667, %v2347, 0
  %2402 = vmatprep.subr.bf16.mxu0 %v2400
  %2403 = vmatpush1.bf16.msra.mxu0 %v2397
  %2404 = vmatprep.subr.bf16.mxu0 0
  %2405 = vmatpush1.bf16.msra.mxu0 0
  %2406 = vmatprep.subr.bf16.mxu0 0
  %2407 = vmatpush1.bf16.msra.mxu0 0
  %2408 = vmatprep.subr.bf16.mxu0 0
  %2409 = vmatpush1.bf16.msra.mxu0 0
  %2410 = vmatprep.subr.bf16.mxu0 0
  %2411 = vmatpush1.bf16.msra.mxu0 0
  %2412 = vmatprep.subr.bf16.mxu0 0
  %2413 = vmatpush1.bf16.msra.mxu0 0
  %2414 = vmatprep.subr.bf16.mxu0 0
  %2415 = vmatpush1.bf16.msra.mxu0 0
  %2416 = vmatprep.subr.bf16.mxu0 0
  %2417 = vmatpush1.bf16.msra.mxu0 0
  %2418 = vmatprep.subr.bf16.mxu0 0
  %2419 = vmatpush1.bf16.msra.mxu0 0
  %2420 = vmatprep.subr.bf16.mxu0 0
  %2421 = vmatpush1.bf16.msra.mxu0 0
  %2422 = vmatprep.subr.bf16.mxu0 0
  %2423 = vmatpush1.bf16.msra.mxu0 0
  %2424 = vmatprep.subr.bf16.mxu0 0
  %2425 = vmatpush1.bf16.msra.mxu0 0
  %2426 = vmatprep.subr.bf16.mxu0 0
  %2427 = vmatpush1.bf16.msra.mxu0 0
  %2428 = vmatprep.subr.bf16.mxu0 0
  %2429 = vmatpush1.bf16.msra.mxu0 0
  %2430 = vmatprep.subr.bf16.mxu0 0
  %2431 = vmatpush1.bf16.msra.mxu0 0
  %2432 = vmatprep.subr.bf16.mxu0 0
  %2433 = vmatpush1.bf16.msra.mxu0 0
  %2434 = vmatprep.mubr.bf16.mxu0 0
  %2435 = vmatmul.mubr.bf16.gmra.mrb[0].mxu0 %v2349
  %v2436 = vpop.f32.mrb[0].mxu0
  %v2437 = vadd.f32 0.0, %v2436
  %v2438 = vpop.f32.mrb[0].mxu0
  %v2439 = vadd.f32 0.0, %v2438
  %v2440 = vpop.f32.mrb[0].mxu0
  %v2441 = vadd.f32 0.0, %v2440
  %v2442 = vpop.f32.mrb[0].mxu0
  %v2443 = vadd.f32 0.0, %v2442
  %2444 = vmatprep.mubr.bf16.mxu0 0
  %2445 = vmatmul.mubr.bf16.gmra.mrb[0].mxu0 %v2352
  %v2446 = vpop.f32.mrb[0].mxu0
  %v2447 = vadd.f32 0.0, %v2446
  %v2448 = vpop.f32.mrb[0].mxu0
  %v2449 = vadd.f32 0.0, %v2448
  %v2450 = vpop.f32.mrb[0].mxu0
  %v2451 = vadd.f32 0.0, %v2450
  %v2452 = vpop.f32.mrb[0].mxu0
  %v2453 = vadd.f32 0.0, %v2452
  %2454 = vmatprep.mubr.bf16.mxu0 0
  %2455 = vmatmul.mubr.bf16.gmra.mrb[0].mxu0 %v2355
  %v2456 = vpop.f32.mrb[0].mxu0
  %v2457 = vadd.f32 0.0, %v2456
  %v2458 = vpop.f32.mrb[0].mxu0
  %v2459 = vadd.f32 0.0, %v2458
  %v2460 = vpop.f32.mrb[0].mxu0
  %v2461 = vadd.f32 0.0, %v2460
  %v2462 = vpop.f32.mrb[0].mxu0
  %v2463 = vadd.f32 0.0, %v2462
  %2464 = vmatprep.mubr.bf16.mxu0 0
  %2465 = vmatmul.mubr.bf16.gmra.mrb[0].mxu0 %v2358
  %v2466 = vpop.f32.mrb[0].mxu0
  %v2467 = vadd.f32 0.0, %v2466
  %v2468 = vpop.f32.mrb[0].mxu0
  %v2469 = vadd.f32 0.0, %v2468
  %v2470 = vpop.f32.mrb[0].mxu0
  %v2471 = vadd.f32 0.0, %v2470
  %v2472 = vpop.f32.mrb[0].mxu0
  %v2473 = vadd.f32 0.0, %v2472
  %2474 = vmatprep.mubr.bf16.mxu0 0
  %2475 = vmatmul.mubr.bf16.gmra.mrb[0].mxu0 %v2361
  %v2476 = vpop.f32.mrb[0].mxu0
  %v2477 = vadd.f32 0.0, %v2476
  %v2478 = vpop.f32.mrb[0].mxu0
  %v2479 = vadd.f32 0.0, %v2478
  %v2480 = vpop.f32.mrb[0].mxu0
  %v2481 = vadd.f32 0.0, %v2480
  %v2482 = vpop.f32.mrb[0].mxu0
  %v2483 = vadd.f32 0.0, %v2482
  %2484 = vmatprep.mubr.bf16.mxu0 0
  %2485 = vmatmul.mubr.bf16.gmra.mrb[0].mxu0 %v2364
  %v2486 = vpop.f32.mrb[0].mxu0
  %v2487 = vadd.f32 0.0, %v2486
  %v2488 = vpop.f32.mrb[0].mxu0
  %v2489 = vadd.f32 0.0, %v2488
  %v2490 = vpop.f32.mrb[0].mxu0
  %v2491 = vadd.f32 0.0, %v2490
  %v2492 = vpop.f32.mrb[0].mxu0
  %v2493 = vadd.f32 0.0, %v2492
  %2494 = vmatprep.mubr.bf16.mxu0 0
  %2495 = vmatmul.mubr.bf16.gmra.mrb[0].mxu0 %v2367
  %v2496 = vpop.f32.mrb[0].mxu0
  %v2497 = vadd.f32 0.0, %v2496
  %v2498 = vpop.f32.mrb[0].mxu0
  %v2499 = vadd.f32 0.0, %v2498
  %v2500 = vpop.f32.mrb[0].mxu0
  %v2501 = vadd.f32 0.0, %v2500
  %v2502 = vpop.f32.mrb[0].mxu0
  %v2503 = vadd.f32 0.0, %v2502
  %2504 = vmatprep.mubr.bf16.mxu0 0
  %2505 = vmatmul.mubr.bf16.gmra.mrb[0].mxu0 %v2370
  %v2506 = vpop.f32.mrb[0].mxu0
  %v2507 = vadd.f32 0.0, %v2506
  %v2508 = vpop.f32.mrb[0].mxu0
  %v2509 = vadd.f32 0.0, %v2508
  %v2510 = vpop.f32.mrb[0].mxu0
  %v2511 = vadd.f32 0.0, %v2510
  %v2512 = vpop.f32.mrb[0].mxu0
  %v2513 = vadd.f32 0.0, %v2512
  %2514 = vmatprep.mubr.bf16.mxu0 0
  %2515 = vmatmul.mubr.bf16.gmra.mrb[0].mxu0 %v2373
  %v2516 = vpop.f32.mrb[0].mxu0
  %v2517 = vadd.f32 0.0, %v2516
  %v2518 = vpop.f32.mrb[0].mxu0
  %v2519 = vadd.f32 0.0, %v2518
  %v2520 = vpop.f32.mrb[0].mxu0
  %v2521 = vadd.f32 0.0, %v2520
  %v2522 = vpop.f32.mrb[0].mxu0
  %v2523 = vadd.f32 0.0, %v2522
  %2524 = vmatprep.mubr.bf16.mxu0 0
  %2525 = vmatmul.mubr.bf16.gmra.mrb[0].mxu0 %v2376
  %v2526 = vpop.f32.mrb[0].mxu0
  %v2527 = vadd.f32 0.0, %v2526
  %v2528 = vpop.f32.mrb[0].mxu0
  %v2529 = vadd.f32 0.0, %v2528
  %v2530 = vpop.f32.mrb[0].mxu0
  %v2531 = vadd.f32 0.0, %v2530
  %v2532 = vpop.f32.mrb[0].mxu0
  %v2533 = vadd.f32 0.0, %v2532
  %2534 = vmatprep.mubr.bf16.mxu0 0
  %2535 = vmatmul.mubr.bf16.gmra.mrb[0].mxu0 %v2379
  %v2536 = vpop.f32.mrb[0].mxu0
  %v2537 = vadd.f32 0.0, %v2536
  %v2538 = vpop.f32.mrb[0].mxu0
  %v2539 = vadd.f32 0.0, %v2538
  %v2540 = vpop.f32.mrb[0].mxu0
  %v2541 = vadd.f32 0.0, %v2540
  %v2542 = vpop.f32.mrb[0].mxu0
  %v2543 = vadd.f32 0.0, %v2542
  %2544 = vmatprep.mubr.bf16.mxu0 0
  %2545 = vmatmul.mubr.bf16.gmra.mrb[0].mxu0 %v2382
  %v2546 = vpop.f32.mrb[0].mxu0
  %v2547 = vadd.f32 0.0, %v2546
  %v2548 = vpop.f32.mrb[0].mxu0
  %v2549 = vadd.f32 0.0, %v2548
  %v2550 = vpop.f32.mrb[0].mxu0
  %v2551 = vadd.f32 0.0, %v2550
  %v2552 = vpop.f32.mrb[0].mxu0
  %v2553 = vadd.f32 0.0, %v2552
  %2554 = vmatprep.mubr.bf16.mxu0 0
  %2555 = vmatmul.mubr.bf16.gmra.mrb[0].mxu0 %v2385
  %v2556 = vpop.f32.mrb[0].mxu0
  %v2557 = vadd.f32 0.0, %v2556
  %v2558 = vpop.f32.mrb[0].mxu0
  %v2559 = vadd.f32 0.0, %v2558
  %v2560 = vpop.f32.mrb[0].mxu0
  %v2561 = vadd.f32 0.0, %v2560
  %v2562 = vpop.f32.mrb[0].mxu0
  %v2563 = vadd.f32 0.0, %v2562
  %2564 = vmatprep.mubr.bf16.mxu0 0
  %2565 = vmatmul.mubr.bf16.gmra.mrb[0].mxu0 %v2388
  %v2566 = vpop.f32.mrb[0].mxu0
  %v2567 = vadd.f32 0.0, %v2566
  %v2568 = vpop.f32.mrb[0].mxu0
  %v2569 = vadd.f32 0.0, %v2568
  %v2570 = vpop.f32.mrb[0].mxu0
  %v2571 = vadd.f32 0.0, %v2570
  %v2572 = vpop.f32.mrb[0].mxu0
  %v2573 = vadd.f32 0.0, %v2572
  %2574 = vmatprep.mubr.bf16.mxu0 0
  %2575 = vmatmul.mubr.bf16.gmra.mrb[0].mxu0 %v2391
  %v2576 = vpop.f32.mrb[0].mxu0
  %v2577 = vadd.f32 0.0, %v2576
  %v2578 = vpop.f32.mrb[0].mxu0
  %v2579 = vadd.f32 0.0, %v2578
  %v2580 = vpop.f32.mrb[0].mxu0
  %v2581 = vadd.f32 0.0, %v2580
  %v2582 = vpop.f32.mrb[0].mxu0
  %v2583 = vadd.f32 0.0, %v2582
  %2584 = vmatprep.mubr.bf16.mxu0 0
  %2585 = vmatmul.mubr.bf16.gmra.mrb[0].mxu0 %v2394
  %v2586 = vpop.f32.mrb[0].mxu0
  %v2587 = vadd.f32 0.0, %v2586
  %v2588 = vpop.f32.mrb[0].mxu0
  %v2589 = vadd.f32 0.0, %v2588
  %v2590 = vpop.f32.mrb[0].mxu0
  %v2591 = vadd.f32 0.0, %v2590
  %v2592 = vpop.f32.mrb[0].mxu0
  %v2593 = vadd.f32 0.0, %v2592
  %2594 = vdwg.mxu0
  %v2595 = vmax.f32 %v2437, %v2439
  %2596 = vmax.xlane.f32.xlu0 %v2595
  %v2597 = vpop.xlane.xlu0 %2596
  %v2598 = vmax.f32 %v2441, %v2443
  %2599 = vmax.xlane.f32.xlu0 %v2598
  %v2600 = vpop.xlane.xlu0 %2599
  %v2601 = vmax.f32 %v2447, %v2449
  %2602 = vmax.xlane.f32.xlu0 %v2601
  %v2603 = vpop.xlane.xlu0 %2602
  %v2604 = vmax.f32 %v2451, %v2453
  %2605 = vmax.xlane.f32.xlu0 %v2604
  %v2606 = vpop.xlane.xlu0 %2605
  %v2607 = vmax.f32 %v2457, %v2459
  %2608 = vmax.xlane.f32.xlu0 %v2607
  %v2609 = vpop.xlane.xlu0 %2608
  %v2610 = vmax.f32 %v2461, %v2463
  %2611 = vmax.xlane.f32.xlu0 %v2610
  %v2612 = vpop.xlane.xlu0 %2611
  %v2613 = vmax.f32 %v2467, %v2469
  %2614 = vmax.xlane.f32.xlu0 %v2613
  %v2615 = vpop.xlane.xlu0 %2614
  %v2616 = vmax.f32 %v2471, %v2473
  %2617 = vmax.xlane.f32.xlu0 %v2616
  %v2618 = vpop.xlane.xlu0 %2617
  %v2619 = vmax.f32 %v2477, %v2479
  %2620 = vmax.xlane.f32.xlu0 %v2619
  %v2621 = vpop.xlane.xlu0 %2620
  %v2622 = vmax.f32 %v2481, %v2483
  %2623 = vmax.xlane.f32.xlu0 %v2622
  %v2624 = vpop.xlane.xlu0 %2623
  %v2625 = vmax.f32 %v2487, %v2489
  %2626 = vmax.xlane.f32.xlu0 %v2625
  %v2627 = vpop.xlane.xlu0 %2626
  %v2628 = vmax.f32 %v2491, %v2493
  %2629 = vmax.xlane.f32.xlu0 %v2628
  %v2630 = vpop.xlane.xlu0 %2629
  %v2631 = vmax.f32 %v2497, %v2499
  %2632 = vmax.xlane.f32.xlu0 %v2631
  %v2633 = vpop.xlane.xlu0 %2632
  %v2634 = vmax.f32 %v2501, %v2503
  %2635 = vmax.xlane.f32.xlu0 %v2634
  %v2636 = vpop.xlane.xlu0 %2635
  %v2637 = vmax.f32 %v2507, %v2509
  %2638 = vmax.xlane.f32.xlu0 %v2637
  %v2639 = vpop.xlane.xlu0 %2638
  %v2640 = vmax.f32 %v2511, %v2513
  %2641 = vmax.xlane.f32.xlu0 %v2640
  %v2642 = vpop.xlane.xlu0 %2641
  %v2643 = vmax.f32 %v2517, %v2519
  %2644 = vmax.xlane.f32.xlu0 %v2643
  %v2645 = vpop.xlane.xlu0 %2644
  %v2646 = vmax.f32 %v2521, %v2523
  %2647 = vmax.xlane.f32.xlu0 %v2646
  %v2648 = vpop.xlane.xlu0 %2647
  %v2649 = vmax.f32 %v2527, %v2529
  %2650 = vmax.xlane.f32.xlu0 %v2649
  %v2651 = vpop.xlane.xlu0 %2650
  %v2652 = vmax.f32 %v2531, %v2533
  %2653 = vmax.xlane.f32.xlu0 %v2652
  %v2654 = vpop.xlane.xlu0 %2653
  %v2655 = vmax.f32 %v2537, %v2539
  %2656 = vmax.xlane.f32.xlu0 %v2655
  %v2657 = vpop.xlane.xlu0 %2656
  %v2658 = vmax.f32 %v2541, %v2543
  %2659 = vmax.xlane.f32.xlu0 %v2658
  %v2660 = vpop.xlane.xlu0 %2659
  %v2661 = vmax.f32 %v2547, %v2549
  %2662 = vmax.xlane.f32.xlu0 %v2661
  %v2663 = vpop.xlane.xlu0 %2662
  %v2664 = vmax.f32 %v2551, %v2553
  %2665 = vmax.xlane.f32.xlu0 %v2664
  %v2666 = vpop.xlane.xlu0 %2665
  %v2667 = vmax.f32 %v2557, %v2559
  %2668 = vmax.xlane.f32.xlu0 %v2667
  %v2669 = vpop.xlane.xlu0 %2668
  %v2670 = vmax.f32 %v2561, %v2563
  %2671 = vmax.xlane.f32.xlu0 %v2670
  %v2672 = vpop.xlane.xlu0 %2671
  %v2673 = vmax.f32 %v2567, %v2569
  %2674 = vmax.xlane.f32.xlu0 %v2673
  %v2675 = vpop.xlane.xlu0 %2674
  %v2676 = vmax.f32 %v2571, %v2573
  %2677 = vmax.xlane.f32.xlu0 %v2676
  %v2678 = vpop.xlane.xlu0 %2677
  %v2679 = vmax.f32 %v2577, %v2579
  %2680 = vmax.xlane.f32.xlu0 %v2679
  %v2681 = vpop.xlane.xlu0 %2680
  %v2682 = vmax.f32 %v2581, %v2583
  %2683 = vmax.xlane.f32.xlu0 %v2682
  %v2684 = vpop.xlane.xlu0 %2683
  %v2685 = vmax.f32 %v2587, %v2589
  %2686 = vmax.xlane.f32.xlu0 %v2685
  %v2687 = vpop.xlane.xlu0 %2686
  %v2688 = vmax.f32 %v2591, %v2593
  %2689 = vmax.xlane.f32.xlu0 %v2688
  %v2690 = vpop.xlane.xlu0 %2689
  %v2691 = vsub.f32 %v2437, %v2597
  %v2692 = vsub.f32 %v2439, %v2597
  %v2693 = vsub.f32 %v2441, %v2600
  %v2694 = vsub.f32 %v2443, %v2600
  %v2695 = vsub.f32 %v2447, %v2603
  %v2696 = vsub.f32 %v2449, %v2603
  %v2697 = vsub.f32 %v2451, %v2606
  %v2698 = vsub.f32 %v2453, %v2606
  %v2699 = vsub.f32 %v2457, %v2609
  %v2700 = vsub.f32 %v2459, %v2609
  %v2701 = vsub.f32 %v2461, %v2612
  %v2702 = vsub.f32 %v2463, %v2612
  %v2703 = vsub.f32 %v2467, %v2615
  %v2704 = vsub.f32 %v2469, %v2615
  %v2705 = vsub.f32 %v2471, %v2618
  %v2706 = vsub.f32 %v2473, %v2618
  %v2707 = vsub.f32 %v2477, %v2621
  %v2708 = vsub.f32 %v2479, %v2621
  %v2709 = vsub.f32 %v2481, %v2624
  %v2710 = vsub.f32 %v2483, %v2624
  %v2711 = vsub.f32 %v2487, %v2627
  %v2712 = vsub.f32 %v2489, %v2627
  %v2713 = vsub.f32 %v2491, %v2630
  %v2714 = vsub.f32 %v2493, %v2630
  %v2715 = vsub.f32 %v2497, %v2633
  %v2716 = vsub.f32 %v2499, %v2633
  %v2717 = vsub.f32 %v2501, %v2636
  %v2718 = vsub.f32 %v2503, %v2636
  %v2719 = vsub.f32 %v2507, %v2639
  %v2720 = vsub.f32 %v2509, %v2639
  %v2721 = vsub.f32 %v2511, %v2642
  %v2722 = vsub.f32 %v2513, %v2642
  %v2723 = vsub.f32 %v2517, %v2645
  %v2724 = vsub.f32 %v2519, %v2645
  %v2725 = vsub.f32 %v2521, %v2648
  %v2726 = vsub.f32 %v2523, %v2648
  %v2727 = vsub.f32 %v2527, %v2651
  %v2728 = vsub.f32 %v2529, %v2651
  %v2729 = vsub.f32 %v2531, %v2654
  %v2730 = vsub.f32 %v2533, %v2654
  %v2731 = vsub.f32 %v2537, %v2657
  %v2732 = vsub.f32 %v2539, %v2657
  %v2733 = vsub.f32 %v2541, %v2660
  %v2734 = vsub.f32 %v2543, %v2660
  %v2735 = vsub.f32 %v2547, %v2663
  %v2736 = vsub.f32 %v2549, %v2663
  %v2737 = vsub.f32 %v2551, %v2666
  %v2738 = vsub.f32 %v2553, %v2666
  %v2739 = vsub.f32 %v2557, %v2669
  %v2740 = vsub.f32 %v2559, %v2669
  %v2741 = vsub.f32 %v2561, %v2672
  %v2742 = vsub.f32 %v2563, %v2672
  %v2743 = vsub.f32 %v2567, %v2675
  %v2744 = vsub.f32 %v2569, %v2675
  %v2745 = vsub.f32 %v2571, %v2678
  %v2746 = vsub.f32 %v2573, %v2678
  %v2747 = vsub.f32 %v2577, %v2681
  %v2748 = vsub.f32 %v2579, %v2681
  %v2749 = vsub.f32 %v2581, %v2684
  %v2750 = vsub.f32 %v2583, %v2684
  %v2751 = vsub.f32 %v2587, %v2687
  %v2752 = vsub.f32 %v2589, %v2687
  %v2753 = vsub.f32 %v2591, %v2690
  %v2754 = vsub.f32 %v2593, %v2690
  %v2755 = vpack.c.bf16 %v2693, %v2691
  %v2756 = vpack.c.bf16 %v2694, %v2692
  %v2757 = vpack.c.bf16 %v2697, %v2695
  %v2758 = vpack.c.bf16 %v2698, %v2696
  %v2759 = vpack.c.bf16 %v2701, %v2699
  %v2760 = vpack.c.bf16 %v2702, %v2700
  %v2761 = vpack.c.bf16 %v2705, %v2703
  %v2762 = vpack.c.bf16 %v2706, %v2704
  %v2763 = vpack.c.bf16 %v2709, %v2707
  %v2764 = vpack.c.bf16 %v2710, %v2708
  %v2765 = vpack.c.bf16 %v2713, %v2711
  %v2766 = vpack.c.bf16 %v2714, %v2712
  %v2767 = vpack.c.bf16 %v2717, %v2715
  %v2768 = vpack.c.bf16 %v2718, %v2716
  %v2769 = vpack.c.bf16 %v2721, %v2719
  %v2770 = vpack.c.bf16 %v2722, %v2720
  %v2771 = vpack.c.bf16 %v2725, %v2723
  %v2772 = vpack.c.bf16 %v2726, %v2724
  %v2773 = vpack.c.bf16 %v2729, %v2727
  %v2774 = vpack.c.bf16 %v2730, %v2728
  %v2775 = vpack.c.bf16 %v2733, %v2731
  %v2776 = vpack.c.bf16 %v2734, %v2732
  %v2777 = vpack.c.bf16 %v2737, %v2735
  %v2778 = vpack.c.bf16 %v2738, %v2736
  %v2779 = vpack.c.bf16 %v2741, %v2739
  %v2780 = vpack.c.bf16 %v2742, %v2740
  %v2781 = vpack.c.bf16 %v2745, %v2743
  %v2782 = vpack.c.bf16 %v2746, %v2744
  %v2783 = vpack.c.bf16 %v2749, %v2747
  %v2784 = vpack.c.bf16 %v2750, %v2748
  %v2785 = vpack.c.bf16 %v2753, %v2751
  %v2786 = vpack.c.bf16 %v2754, %v2752
  %v2788 = vmul.bf16 %v2755, 1069105081
  %v2789 = vpow.bf16.pop %v2788
  %v2791 = vmul.bf16 %v2756, 1069105081
  %v2792 = vpow.bf16.pop %v2791
  %v2794 = vmul.bf16 %v2757, 1069105081
  %v2795 = vpow.bf16.pop %v2794
  %v2797 = vmul.bf16 %v2758, 1069105081
  %v2798 = vpow.bf16.pop %v2797
  %v2800 = vmul.bf16 %v2759, 1069105081
  %v2801 = vpow.bf16.pop %v2800
  %v2803 = vmul.bf16 %v2760, 1069105081
  %v2804 = vpow.bf16.pop %v2803
  %v2806 = vmul.bf16 %v2761, 1069105081
  %v2807 = vpow.bf16.pop %v2806
  %v2809 = vmul.bf16 %v2762, 1069105081
  %v2810 = vpow.bf16.pop %v2809
  %v2812 = vmul.bf16 %v2763, 1069105081
  %v2813 = vpow.bf16.pop %v2812
  %v2815 = vmul.bf16 %v2764, 1069105081
  %v2816 = vpow.bf16.pop %v2815
  %v2818 = vmul.bf16 %v2765, 1069105081
  %v2819 = vpow.bf16.pop %v2818
  %v2821 = vmul.bf16 %v2766, 1069105081
  %v2822 = vpow.bf16.pop %v2821
  %v2824 = vmul.bf16 %v2767, 1069105081
  %v2825 = vpow.bf16.pop %v2824
  %v2827 = vmul.bf16 %v2768, 1069105081
  %v2828 = vpow.bf16.pop %v2827
  %v2830 = vmul.bf16 %v2769, 1069105081
  %v2831 = vpow.bf16.pop %v2830
  %v2833 = vmul.bf16 %v2770, 1069105081
  %v2834 = vpow.bf16.pop %v2833
  %v2836 = vmul.bf16 %v2771, 1069105081
  %v2837 = vpow.bf16.pop %v2836
  %v2839 = vmul.bf16 %v2772, 1069105081
  %v2840 = vpow.bf16.pop %v2839
  %v2842 = vmul.bf16 %v2773, 1069105081
  %v2843 = vpow.bf16.pop %v2842
  %v2845 = vmul.bf16 %v2774, 1069105081
  %v2846 = vpow.bf16.pop %v2845
  %v2848 = vmul.bf16 %v2775, 1069105081
  %v2849 = vpow.bf16.pop %v2848
  %v2851 = vmul.bf16 %v2776, 1069105081
  %v2852 = vpow.bf16.pop %v2851
  %v2854 = vmul.bf16 %v2777, 1069105081
  %v2855 = vpow.bf16.pop %v2854
  %v2857 = vmul.bf16 %v2778, 1069105081
  %v2858 = vpow.bf16.pop %v2857
  %v2860 = vmul.bf16 %v2779, 1069105081
  %v2861 = vpow.bf16.pop %v2860
  %v2863 = vmul.bf16 %v2780, 1069105081
  %v2864 = vpow.bf16.pop %v2863
  %v2866 = vmul.bf16 %v2781, 1069105081
  %v2867 = vpow.bf16.pop %v2866
  %v2869 = vmul.bf16 %v2782, 1069105081
  %v2870 = vpow.bf16.pop %v2869
  %v2872 = vmul.bf16 %v2783, 1069105081
  %v2873 = vpow.bf16.pop %v2872
  %v2875 = vmul.bf16 %v2784, 1069105081
  %v2876 = vpow.bf16.pop %v2875
  %v2878 = vmul.bf16 %v2785, 1069105081
  %v2879 = vpow.bf16.pop %v2878
  %v2881 = vmul.bf16 %v2786, 1069105081
  %v2882 = vpow.bf16.pop %v2881
  %v2883 = vunpack.c.l.bf16 %v2789
  %v2884 = vunpack.c.l.bf16 %v2792
  %v2885 = vunpack.c.h.bf16 %v2789
  %v2886 = vunpack.c.h.bf16 %v2792
  %v2887 = vunpack.c.l.bf16 %v2795
  %v2888 = vunpack.c.l.bf16 %v2798
  %v2889 = vunpack.c.h.bf16 %v2795
  %v2890 = vunpack.c.h.bf16 %v2798
  %v2891 = vunpack.c.l.bf16 %v2801
  %v2892 = vunpack.c.l.bf16 %v2804
  %v2893 = vunpack.c.h.bf16 %v2801
  %v2894 = vunpack.c.h.bf16 %v2804
  %v2895 = vunpack.c.l.bf16 %v2807
  %v2896 = vunpack.c.l.bf16 %v2810
  %v2897 = vunpack.c.h.bf16 %v2807
  %v2898 = vunpack.c.h.bf16 %v2810
  %v2899 = vunpack.c.l.bf16 %v2813
  %v2900 = vunpack.c.l.bf16 %v2816
  %v2901 = vunpack.c.h.bf16 %v2813
  %v2902 = vunpack.c.h.bf16 %v2816
  %v2903 = vunpack.c.l.bf16 %v2819
  %v2904 = vunpack.c.l.bf16 %v2822
  %v2905 = vunpack.c.h.bf16 %v2819
  %v2906 = vunpack.c.h.bf16 %v2822
  %v2907 = vunpack.c.l.bf16 %v2825
  %v2908 = vunpack.c.l.bf16 %v2828
  %v2909 = vunpack.c.h.bf16 %v2825
  %v2910 = vunpack.c.h.bf16 %v2828
  %v2911 = vunpack.c.l.bf16 %v2831
  %v2912 = vunpack.c.l.bf16 %v2834
  %v2913 = vunpack.c.h.bf16 %v2831
  %v2914 = vunpack.c.h.bf16 %v2834
  %v2915 = vunpack.c.l.bf16 %v2837
  %v2916 = vunpack.c.l.bf16 %v2840
  %v2917 = vunpack.c.h.bf16 %v2837
  %v2918 = vunpack.c.h.bf16 %v2840
  %v2919 = vunpack.c.l.bf16 %v2843
  %v2920 = vunpack.c.l.bf16 %v2846
  %v2921 = vunpack.c.h.bf16 %v2843
  %v2922 = vunpack.c.h.bf16 %v2846
  %v2923 = vunpack.c.l.bf16 %v2849
  %v2924 = vunpack.c.l.bf16 %v2852
  %v2925 = vunpack.c.h.bf16 %v2849
  %v2926 = vunpack.c.h.bf16 %v2852
  %v2927 = vunpack.c.l.bf16 %v2855
  %v2928 = vunpack.c.l.bf16 %v2858
  %v2929 = vunpack.c.h.bf16 %v2855
  %v2930 = vunpack.c.h.bf16 %v2858
  %v2931 = vunpack.c.l.bf16 %v2861
  %v2932 = vunpack.c.l.bf16 %v2864
  %v2933 = vunpack.c.h.bf16 %v2861
  %v2934 = vunpack.c.h.bf16 %v2864
  %v2935 = vunpack.c.l.bf16 %v2867
  %v2936 = vunpack.c.l.bf16 %v2870
  %v2937 = vunpack.c.h.bf16 %v2867
  %v2938 = vunpack.c.h.bf16 %v2870
  %v2939 = vunpack.c.l.bf16 %v2873
  %v2940 = vunpack.c.l.bf16 %v2876
  %v2941 = vunpack.c.h.bf16 %v2873
  %v2942 = vunpack.c.h.bf16 %v2876
  %v2943 = vunpack.c.l.bf16 %v2879
  %v2944 = vunpack.c.l.bf16 %v2882
  %v2945 = vunpack.c.h.bf16 %v2879
  %v2946 = vunpack.c.h.bf16 %v2882
  %v2947 = vadd.f32 %v2883, %v2884
  %2948 = vadd.xlane.f32.xlu0 %v2947
  %v2949 = vpop.xlane.xlu0 %2948
  %v2950 = vadd.f32 %v2885, %v2886
  %2951 = vadd.xlane.f32.xlu0 %v2950
  %v2952 = vpop.xlane.xlu0 %2951
  %v2953 = vadd.f32 %v2887, %v2888
  %2954 = vadd.xlane.f32.xlu0 %v2953
  %v2955 = vpop.xlane.xlu0 %2954
  %v2956 = vadd.f32 %v2889, %v2890
  %2957 = vadd.xlane.f32.xlu0 %v2956
  %v2958 = vpop.xlane.xlu0 %2957
  %v2959 = vadd.f32 %v2891, %v2892
  %2960 = vadd.xlane.f32.xlu0 %v2959
  %v2961 = vpop.xlane.xlu0 %2960
  %v2962 = vadd.f32 %v2893, %v2894
  %2963 = vadd.xlane.f32.xlu0 %v2962
  %v2964 = vpop.xlane.xlu0 %2963
  %v2965 = vadd.f32 %v2895, %v2896
  %2966 = vadd.xlane.f32.xlu0 %v2965
  %v2967 = vpop.xlane.xlu0 %2966
  %v2968 = vadd.f32 %v2897, %v2898
  %2969 = vadd.xlane.f32.xlu0 %v2968
  %v2970 = vpop.xlane.xlu0 %2969
  %v2971 = vadd.f32 %v2899, %v2900
  %2972 = vadd.xlane.f32.xlu0 %v2971
  %v2973 = vpop.xlane.xlu0 %2972
  %v2974 = vadd.f32 %v2901, %v2902
  %2975 = vadd.xlane.f32.xlu0 %v2974
  %v2976 = vpop.xlane.xlu0 %2975
  %v2977 = vadd.f32 %v2903, %v2904
  %2978 = vadd.xlane.f32.xlu0 %v2977
  %v2979 = vpop.xlane.xlu0 %2978
  %v2980 = vadd.f32 %v2905, %v2906
  %2981 = vadd.xlane.f32.xlu0 %v2980
  %v2982 = vpop.xlane.xlu0 %2981
  %v2983 = vadd.f32 %v2907, %v2908
  %2984 = vadd.xlane.f32.xlu0 %v2983
  %v2985 = vpop.xlane.xlu0 %2984
  %v2986 = vadd.f32 %v2909, %v2910
  %2987 = vadd.xlane.f32.xlu0 %v2986
  %v2988 = vpop.xlane.xlu0 %2987
  %v2989 = vadd.f32 %v2911, %v2912
  %2990 = vadd.xlane.f32.xlu0 %v2989
  %v2991 = vpop.xlane.xlu0 %2990
  %v2992 = vadd.f32 %v2913, %v2914
  %2993 = vadd.xlane.f32.xlu0 %v2992
  %v2994 = vpop.xlane.xlu0 %2993
  %v2995 = vadd.f32 %v2915, %v2916
  %2996 = vadd.xlane.f32.xlu0 %v2995
  %v2997 = vpop.xlane.xlu0 %2996
  %v2998 = vadd.f32 %v2917, %v2918
  %2999 = vadd.xlane.f32.xlu0 %v2998
  %v3000 = vpop.xlane.xlu0 %2999
  %v3001 = vadd.f32 %v2919, %v2920
  %3002 = vadd.xlane.f32.xlu0 %v3001
  %v3003 = vpop.xlane.xlu0 %3002
  %v3004 = vadd.f32 %v2921, %v2922
  %3005 = vadd.xlane.f32.xlu0 %v3004
  %v3006 = vpop.xlane.xlu0 %3005
  %v3007 = vadd.f32 %v2923, %v2924
  %3008 = vadd.xlane.f32.xlu0 %v3007
  %v3009 = vpop.xlane.xlu0 %3008
  %v3010 = vadd.f32 %v2925, %v2926
  %3011 = vadd.xlane.f32.xlu0 %v3010
  %v3012 = vpop.xlane.xlu0 %3011
  %v3013 = vadd.f32 %v2927, %v2928
  %3014 = vadd.xlane.f32.xlu0 %v3013
  %v3015 = vpop.xlane.xlu0 %3014
  %v3016 = vadd.f32 %v2929, %v2930
  %3017 = vadd.xlane.f32.xlu0 %v3016
  %v3018 = vpop.xlane.xlu0 %3017
  %v3019 = vadd.f32 %v2931, %v2932
  %3020 = vadd.xlane.f32.xlu0 %v3019
  %v3021 = vpop.xlane.xlu0 %3020
  %v3022 = vadd.f32 %v2933, %v2934
  %3023 = vadd.xlane.f32.xlu0 %v3022
  %v3024 = vpop.xlane.xlu0 %3023
  %v3025 = vadd.f32 %v2935, %v2936
  %3026 = vadd.xlane.f32.xlu0 %v3025
  %v3027 = vpop.xlane.xlu0 %3026
  %v3028 = vadd.f32 %v2937, %v2938
  %3029 = vadd.xlane.f32.xlu0 %v3028
  %v3030 = vpop.xlane.xlu0 %3029
  %v3031 = vadd.f32 %v2939, %v2940
  %3032 = vadd.xlane.f32.xlu0 %v3031
  %v3033 = vpop.xlane.xlu0 %3032
  %v3034 = vadd.f32 %v2941, %v2942
  %3035 = vadd.xlane.f32.xlu0 %v3034
  %v3036 = vpop.xlane.xlu0 %3035
  %v3037 = vadd.f32 %v2943, %v2944
  %3038 = vadd.xlane.f32.xlu0 %v3037
  %v3039 = vpop.xlane.xlu0 %3038
  %v3040 = vadd.f32 %v2945, %v2946
  %3041 = vadd.xlane.f32.xlu0 %v3040
  %v3042 = vpop.xlane.xlu0 %3041
  %v3043 = vrcp.pop %v2949
  %v3044 = vrcp.pop %v2952
  %v3045 = vrcp.pop %v2955
  %v3046 = vrcp.pop %v2958
  %v3047 = vrcp.pop %v2961
  %v3048 = vrcp.pop %v2964
  %v3049 = vrcp.pop %v2967
  %v3050 = vrcp.pop %v2970
  %v3051 = vrcp.pop %v2973
  %v3052 = vrcp.pop %v2976
  %v3053 = vrcp.pop %v2979
  %v3054 = vrcp.pop %v2982
  %v3055 = vrcp.pop %v2985
  %v3056 = vrcp.pop %v2988
  %v3057 = vrcp.pop %v2991
  %v3058 = vrcp.pop %v2994
  %v3059 = vrcp.pop %v2997
  %v3060 = vrcp.pop %v3000
  %v3061 = vrcp.pop %v3003
  %v3062 = vrcp.pop %v3006
  %v3063 = vrcp.pop %v3009
  %v3064 = vrcp.pop %v3012
  %v3065 = vrcp.pop %v3015
  %v3066 = vrcp.pop %v3018
  %v3067 = vrcp.pop %v3021
  %v3068 = vrcp.pop %v3024
  %v3069 = vrcp.pop %v3027
  %v3070 = vrcp.pop %v3030
  %v3071 = vrcp.pop %v3033
  %v3072 = vrcp.pop %v3036
  %v3073 = vrcp.pop %v3039
  %v3074 = vrcp.pop %v3042
  %v3075 = vpack.c.bf16 %v3044, %v3043
  %v3076 = vpack.c.bf16 %v3046, %v3045
  %v3077 = vpack.c.bf16 %v3048, %v3047
  %v3078 = vpack.c.bf16 %v3050, %v3049
  %v3079 = vpack.c.bf16 %v3052, %v3051
  %v3080 = vpack.c.bf16 %v3054, %v3053
  %v3081 = vpack.c.bf16 %v3056, %v3055
  %v3082 = vpack.c.bf16 %v3058, %v3057
  %v3083 = vpack.c.bf16 %v3060, %v3059
  %v3084 = vpack.c.bf16 %v3062, %v3061
  %v3085 = vpack.c.bf16 %v3064, %v3063
  %v3086 = vpack.c.bf16 %v3066, %v3065
  %v3087 = vpack.c.bf16 %v3068, %v3067
  %v3088 = vpack.c.bf16 %v3070, %v3069
  %v3089 = vpack.c.bf16 %v3072, %v3071
  %v3090 = vpack.c.bf16 %v3074, %v3073
  %v3091 = vmul.bf16 %v2789, %v3075
  %v3092 = vmul.bf16 %v2792, %v3075
  %v3093 = vmul.bf16 %v2795, %v3076
  %v3094 = vmul.bf16 %v2798, %v3076
  %v3095 = vmul.bf16 %v2801, %v3077
  %v3096 = vmul.bf16 %v2804, %v3077
  %v3097 = vmul.bf16 %v2807, %v3078
  %v3098 = vmul.bf16 %v2810, %v3078
  %v3099 = vmul.bf16 %v2813, %v3079
  %v3100 = vmul.bf16 %v2816, %v3079
  %v3101 = vmul.bf16 %v2819, %v3080
  %v3102 = vmul.bf16 %v2822, %v3080
  %v3103 = vmul.bf16 %v2825, %v3081
  %v3104 = vmul.bf16 %v2828, %v3081
  %v3105 = vmul.bf16 %v2831, %v3082
  %v3106 = vmul.bf16 %v2834, %v3082
  %v3107 = vmul.bf16 %v2837, %v3083
  %v3108 = vmul.bf16 %v2840, %v3083
  %v3109 = vmul.bf16 %v2843, %v3084
  %v3110 = vmul.bf16 %v2846, %v3084
  %v3111 = vmul.bf16 %v2849, %v3085
  %v3112 = vmul.bf16 %v2852, %v3085
  %v3113 = vmul.bf16 %v2855, %v3086
  %v3114 = vmul.bf16 %v2858, %v3086
  %v3115 = vmul.bf16 %v2861, %v3087
  %v3116 = vmul.bf16 %v2864, %v3087
  %v3117 = vmul.bf16 %v2867, %v3088
  %v3118 = vmul.bf16 %v2870, %v3088
  %v3119 = vmul.bf16 %v2873, %v3089
  %v3120 = vmul.bf16 %v2876, %v3089
  %v3121 = vmul.bf16 %v2879, %v3090
  %v3122 = vmul.bf16 %v2882, %v3090
  %v3123 = vrot.slane %v582, 4
  %v3124 = vrot.slane %v583, 4
  %3127 = vmatprep.subr.bf16.mxu0 %v3092
  %3128 = vmatpush1.bf16.xpose.msra.mxu0 %v3091
  %3129 = vmatprep.subr.bf16.mxu0 %v3094
  %3130 = vmatpush1.bf16.xpose.msra.mxu0 %v3093
  %3131 = vmatprep.subr.bf16.mxu0 %v3096
  %3132 = vmatpush1.bf16.xpose.msra.mxu0 %v3095
  %3133 = vmatprep.subr.bf16.mxu0 %v3098
  %3134 = vmatpush1.bf16.xpose.msra.mxu0 %v3097
  %3135 = vmatprep.subr.bf16.mxu0 %v3100
  %3136 = vmatpush1.bf16.xpose.msra.mxu0 %v3099
  %3137 = vmatprep.subr.bf16.mxu0 %v3102
  %3138 = vmatpush1.bf16.xpose.msra.mxu0 %v3101
  %3139 = vmatprep.subr.bf16.mxu0 %v3104
  %3140 = vmatpush1.bf16.xpose.msra.mxu0 %v3103
  %3141 = vmatprep.subr.bf16.mxu0 %v3106
  %3142 = vmatpush1.bf16.xpose.msra.mxu0 %v3105
  %3143 = vmatprep.subr.bf16.mxu0 %v3108
  %3144 = vmatpush1.bf16.xpose.msra.mxu0 %v3107
  %3145 = vmatprep.subr.bf16.mxu0 %v3110
  %3146 = vmatpush1.bf16.xpose.msra.mxu0 %v3109
  %3147 = vmatprep.subr.bf16.mxu0 %v3112
  %3148 = vmatpush1.bf16.xpose.msra.mxu0 %v3111
  %3149 = vmatprep.subr.bf16.mxu0 %v3114
  %3150 = vmatpush1.bf16.xpose.msra.mxu0 %v3113
  %3151 = vmatprep.subr.bf16.mxu0 %v3116
  %3152 = vmatpush1.bf16.xpose.msra.mxu0 %v3115
  %3153 = vmatprep.subr.bf16.mxu0 %v3118
  %3154 = vmatpush1.bf16.xpose.msra.mxu0 %v3117
  %3155 = vmatprep.subr.bf16.mxu0 %v3120
  %3156 = vmatpush1.bf16.xpose.msra.mxu0 %v3119
  %3157 = vmatprep.subr.bf16.mxu0 %v3122
  %3158 = vmatpush1.bf16.xpose.msra.mxu0 %v3121
  %3159 = vmatprep.mubr.bf16.mxu0 %v3124
  %3160 = vmatmul.mubr.bf16.gmra.mrb[0].mxu0 %v3123
  %v3161 = vpop.f32.mrb[0].mxu0
  %v3162 = vadd.f32 0.0, %v3161
  %v3163 = vpop.f32.mrb[0].mxu0
  %v3164 = vadd.f32 0.0, %v3163
  %v3165 = vpop.f32.mrb[0].mxu0
  %v3166 = vpop.f32.mrb[0].mxu0
  %3167 = vdwg.mxu0
  %3168 = vst [vmem:[#allocation2 + $0x20] sm:$0xf] %v3162
  %3169 = vst [vmem:[#allocation2 + $0x28] sm:$0xf] %v3164
  %v3170 = vrot.slane %v574, 6
  %v3171 = vrot.slane %v575, 6
  %3174 = vxpose.xlu0.c.b16.start [1/8] %v3170, 128
  %3175 = vxpose.xlu0.c.b16.cont [2/8] 0, 128
  %3176 = vxpose.xlu0.c.b16.cont [3/8] 0, 128
  %3177 = vxpose.xlu0.c.b16.cont [4/8] 0, 128
  %3178 = vxpose.xlu0.c.b16.cont [5/8] 0, 128
  %3179 = vxpose.xlu0.c.b16.cont [6/8] 0, 128
  %3180 = vxpose.xlu0.c.b16.cont [7/8] 0, 128
  %3181 = vxpose.xlu0.c.b16.end [8/8] 0, 128
  %v3182 = vpop.trf.xlu0
  %v3183 = vpop.trf.xlu0
  %v3184 = vpop.trf.xlu0
  %v3185 = vpop.trf.xlu0
  %v3186 = vpop.trf.xlu0
  %v3187 = vpop.trf.xlu0
  %v3188 = vpop.trf.xlu0
  %v3189 = vpop.trf.xlu0
  %3190 = vxpose.xlu0.c.b16.start [1/8] %v3171, 128
  %3191 = vxpose.xlu0.c.b16.cont [2/8] 0, 128
  %3192 = vxpose.xlu0.c.b16.cont [3/8] 0, 128
  %3193 = vxpose.xlu0.c.b16.cont [4/8] 0, 128
  %3194 = vxpose.xlu0.c.b16.cont [5/8] 0, 128
  %3195 = vxpose.xlu0.c.b16.cont [6/8] 0, 128
  %3196 = vxpose.xlu0.c.b16.cont [7/8] 0, 128
  %3197 = vxpose.xlu0.c.b16.end [8/8] 0, 128
  %v3198 = vpop.trf.xlu0
  %v3199 = vpop.trf.xlu0
  %v3200 = vpop.trf.xlu0
  %v3201 = vpop.trf.xlu0
  %v3202 = vpop.trf.xlu0
  %v3203 = vpop.trf.xlu0
  %v3204 = vpop.trf.xlu0
  %v3205 = vpop.trf.xlu0
  %v3206 = vrot.slane %v578, 6
  %v3207 = vrot.slane %v579, 6
  %v3209 = vsel %vm618, %v3182, 0
  %v3212 = vsel %vm618, %v3183, 0
  %v3215 = vsel %vm618, %v3184, 0
  %v3218 = vsel %vm618, %v3185, 0
  %v3221 = vsel %vm618, %v3186, 0
  %v3224 = vsel %vm618, %v3187, 0
  %v3227 = vsel %vm618, %v3188, 0
  %v3230 = vsel %vm618, %v3189, 0
  %v3233 = vsel %vm618, %v3198, 0
  %v3236 = vsel %vm618, %v3199, 0
  %v3239 = vsel %vm618, %v3200, 0
  %v3242 = vsel %vm618, %v3201, 0
  %v3245 = vsel %vm618, %v3202, 0
  %v3248 = vsel %vm618, %v3203, 0
  %v3251 = vsel %vm618, %v3204, 0
  %v3254 = vsel %vm618, %v3205, 0
  %v3257 = vsel %vm667, %v3206, 0
  %v3260 = vsel %vm667, %v3207, 0
  %3262 = vmatprep.subr.bf16.mxu0 %v3260
  %3263 = vmatpush1.bf16.msra.mxu0 %v3257
  %3264 = vmatprep.subr.bf16.mxu0 0
  %3265 = vmatpush1.bf16.msra.mxu0 0
  %3266 = vmatprep.subr.bf16.mxu0 0
  %3267 = vmatpush1.bf16.msra.mxu0 0
  %3268 = vmatprep.subr.bf16.mxu0 0
  %3269 = vmatpush1.bf16.msra.mxu0 0
  %3270 = vmatprep.subr.bf16.mxu0 0
  %3271 = vmatpush1.bf16.msra.mxu0 0
  %3272 = vmatprep.subr.bf16.mxu0 0
  %3273 = vmatpush1.bf16.msra.mxu0 0
  %3274 = vmatprep.subr.bf16.mxu0 0
  %3275 = vmatpush1.bf16.msra.mxu0 0
  %3276 = vmatprep.subr.bf16.mxu0 0
  %3277 = vmatpush1.bf16.msra.mxu0 0
  %3278 = vmatprep.subr.bf16.mxu0 0
  %3279 = vmatpush1.bf16.msra.mxu0 0
  %3280 = vmatprep.subr.bf16.mxu0 0
  %3281 = vmatpush1.bf16.msra.mxu0 0
  %3282 = vmatprep.subr.bf16.mxu0 0
  %3283 = vmatpush1.bf16.msra.mxu0 0
  %3284 = vmatprep.subr.bf16.mxu0 0
  %3285 = vmatpush1.bf16.msra.mxu0 0
  %3286 = vmatprep.subr.bf16.mxu0 0
  %3287 = vmatpush1.bf16.msra.mxu0 0
  %3288 = vmatprep.subr.bf16.mxu0 0
  %3289 = vmatpush1.bf16.msra.mxu0 0
  %3290 = vmatprep.subr.bf16.mxu0 0
  %3291 = vmatpush1.bf16.msra.mxu0 0
  %3292 = vmatprep.subr.bf16.mxu0 0
  %3293 = vmatpush1.bf16.msra.mxu0 0
  %3294 = vmatprep.mubr.bf16.mxu0 0
  %3295 = vmatmul.mubr.bf16.gmra.mrb[0].mxu0 %v3209
  %v3296 = vpop.f32.mrb[0].mxu0
  %v3297 = vadd.f32 0.0, %v3296
  %v3298 = vpop.f32.mrb[0].mxu0
  %v3299 = vadd.f32 0.0, %v3298
  %v3300 = vpop.f32.mrb[0].mxu0
  %v3301 = vadd.f32 0.0, %v3300
  %v3302 = vpop.f32.mrb[0].mxu0
  %v3303 = vadd.f32 0.0, %v3302
  %3304 = vmatprep.mubr.bf16.mxu0 0
  %3305 = vmatmul.mubr.bf16.gmra.mrb[0].mxu0 %v3212
  %v3306 = vpop.f32.mrb[0].mxu0
  %v3307 = vadd.f32 0.0, %v3306
  %v3308 = vpop.f32.mrb[0].mxu0
  %v3309 = vadd.f32 0.0, %v3308
  %v3310 = vpop.f32.mrb[0].mxu0
  %v3311 = vadd.f32 0.0, %v3310
  %v3312 = vpop.f32.mrb[0].mxu0
  %v3313 = vadd.f32 0.0, %v3312
  %3314 = vmatprep.mubr.bf16.mxu0 0
  %3315 = vmatmul.mubr.bf16.gmra.mrb[0].mxu0 %v3215
  %v3316 = vpop.f32.mrb[0].mxu0
  %v3317 = vadd.f32 0.0, %v3316
  %v3318 = vpop.f32.mrb[0].mxu0
  %v3319 = vadd.f32 0.0, %v3318
  %v3320 = vpop.f32.mrb[0].mxu0
  %v3321 = vadd.f32 0.0, %v3320
  %v3322 = vpop.f32.mrb[0].mxu0
  %v3323 = vadd.f32 0.0, %v3322
  %3324 = vmatprep.mubr.bf16.mxu0 0
  %3325 = vmatmul.mubr.bf16.gmra.mrb[0].mxu0 %v3218
  %v3326 = vpop.f32.mrb[0].mxu0
  %v3327 = vadd.f32 0.0, %v3326
  %v3328 = vpop.f32.mrb[0].mxu0
  %v3329 = vadd.f32 0.0, %v3328
  %v3330 = vpop.f32.mrb[0].mxu0
  %v3331 = vadd.f32 0.0, %v3330
  %v3332 = vpop.f32.mrb[0].mxu0
  %v3333 = vadd.f32 0.0, %v3332
  %3334 = vmatprep.mubr.bf16.mxu0 0
  %3335 = vmatmul.mubr.bf16.gmra.mrb[0].mxu0 %v3221
  %v3336 = vpop.f32.mrb[0].mxu0
  %v3337 = vadd.f32 0.0, %v3336
  %v3338 = vpop.f32.mrb[0].mxu0
  %v3339 = vadd.f32 0.0, %v3338
  %v3340 = vpop.f32.mrb[0].mxu0
  %v3341 = vadd.f32 0.0, %v3340
  %v3342 = vpop.f32.mrb[0].mxu0
  %v3343 = vadd.f32 0.0, %v3342
  %3344 = vmatprep.mubr.bf16.mxu0 0
  %3345 = vmatmul.mubr.bf16.gmra.mrb[0].mxu0 %v3224
  %v3346 = vpop.f32.mrb[0].mxu0
  %v3347 = vadd.f32 0.0, %v3346
  %v3348 = vpop.f32.mrb[0].mxu0
  %v3349 = vadd.f32 0.0, %v3348
  %v3350 = vpop.f32.mrb[0].mxu0
  %v3351 = vadd.f32 0.0, %v3350
  %v3352 = vpop.f32.mrb[0].mxu0
  %v3353 = vadd.f32 0.0, %v3352
  %3354 = vmatprep.mubr.bf16.mxu0 0
  %3355 = vmatmul.mubr.bf16.gmra.mrb[0].mxu0 %v3227
  %v3356 = vpop.f32.mrb[0].mxu0
  %v3357 = vadd.f32 0.0, %v3356
  %v3358 = vpop.f32.mrb[0].mxu0
  %v3359 = vadd.f32 0.0, %v3358
  %v3360 = vpop.f32.mrb[0].mxu0
  %v3361 = vadd.f32 0.0, %v3360
  %v3362 = vpop.f32.mrb[0].mxu0
  %v3363 = vadd.f32 0.0, %v3362
  %3364 = vmatprep.mubr.bf16.mxu0 0
  %3365 = vmatmul.mubr.bf16.gmra.mrb[0].mxu0 %v3230
  %v3366 = vpop.f32.mrb[0].mxu0
  %v3367 = vadd.f32 0.0, %v3366
  %v3368 = vpop.f32.mrb[0].mxu0
  %v3369 = vadd.f32 0.0, %v3368
  %v3370 = vpop.f32.mrb[0].mxu0
  %v3371 = vadd.f32 0.0, %v3370
  %v3372 = vpop.f32.mrb[0].mxu0
  %v3373 = vadd.f32 0.0, %v3372
  %3374 = vmatprep.mubr.bf16.mxu0 0
  %3375 = vmatmul.mubr.bf16.gmra.mrb[0].mxu0 %v3233
  %v3376 = vpop.f32.mrb[0].mxu0
  %v3377 = vadd.f32 0.0, %v3376
  %v3378 = vpop.f32.mrb[0].mxu0
  %v3379 = vadd.f32 0.0, %v3378
  %v3380 = vpop.f32.mrb[0].mxu0
  %v3381 = vadd.f32 0.0, %v3380
  %v3382 = vpop.f32.mrb[0].mxu0
  %v3383 = vadd.f32 0.0, %v3382
  %3384 = vmatprep.mubr.bf16.mxu0 0
  %3385 = vmatmul.mubr.bf16.gmra.mrb[0].mxu0 %v3236
  %v3386 = vpop.f32.mrb[0].mxu0
  %v3387 = vadd.f32 0.0, %v3386
  %v3388 = vpop.f32.mrb[0].mxu0
  %v3389 = vadd.f32 0.0, %v3388
  %v3390 = vpop.f32.mrb[0].mxu0
  %v3391 = vadd.f32 0.0, %v3390
  %v3392 = vpop.f32.mrb[0].mxu0
  %v3393 = vadd.f32 0.0, %v3392
  %3394 = vmatprep.mubr.bf16.mxu0 0
  %3395 = vmatmul.mubr.bf16.gmra.mrb[0].mxu0 %v3239
  %v3396 = vpop.f32.mrb[0].mxu0
  %v3397 = vadd.f32 0.0, %v3396
  %v3398 = vpop.f32.mrb[0].mxu0
  %v3399 = vadd.f32 0.0, %v3398
  %v3400 = vpop.f32.mrb[0].mxu0
  %v3401 = vadd.f32 0.0, %v3400
  %v3402 = vpop.f32.mrb[0].mxu0
  %v3403 = vadd.f32 0.0, %v3402
  %3404 = vmatprep.mubr.bf16.mxu0 0
  %3405 = vmatmul.mubr.bf16.gmra.mrb[0].mxu0 %v3242
  %v3406 = vpop.f32.mrb[0].mxu0
  %v3407 = vadd.f32 0.0, %v3406
  %v3408 = vpop.f32.mrb[0].mxu0
  %v3409 = vadd.f32 0.0, %v3408
  %v3410 = vpop.f32.mrb[0].mxu0
  %v3411 = vadd.f32 0.0, %v3410
  %v3412 = vpop.f32.mrb[0].mxu0
  %v3413 = vadd.f32 0.0, %v3412
  %3414 = vmatprep.mubr.bf16.mxu0 0
  %3415 = vmatmul.mubr.bf16.gmra.mrb[0].mxu0 %v3245
  %v3416 = vpop.f32.mrb[0].mxu0
  %v3417 = vadd.f32 0.0, %v3416
  %v3418 = vpop.f32.mrb[0].mxu0
  %v3419 = vadd.f32 0.0, %v3418
  %v3420 = vpop.f32.mrb[0].mxu0
  %v3421 = vadd.f32 0.0, %v3420
  %v3422 = vpop.f32.mrb[0].mxu0
  %v3423 = vadd.f32 0.0, %v3422
  %3424 = vmatprep.mubr.bf16.mxu0 0
  %3425 = vmatmul.mubr.bf16.gmra.mrb[0].mxu0 %v3248
  %v3426 = vpop.f32.mrb[0].mxu0
  %v3427 = vadd.f32 0.0, %v3426
  %v3428 = vpop.f32.mrb[0].mxu0
  %v3429 = vadd.f32 0.0, %v3428
  %v3430 = vpop.f32.mrb[0].mxu0
  %v3431 = vadd.f32 0.0, %v3430
  %v3432 = vpop.f32.mrb[0].mxu0
  %v3433 = vadd.f32 0.0, %v3432
  %3434 = vmatprep.mubr.bf16.mxu0 0
  %3435 = vmatmul.mubr.bf16.gmra.mrb[0].mxu0 %v3251
  %v3436 = vpop.f32.mrb[0].mxu0
  %v3437 = vadd.f32 0.0, %v3436
  %v3438 = vpop.f32.mrb[0].mxu0
  %v3439 = vadd.f32 0.0, %v3438
  %v3440 = vpop.f32.mrb[0].mxu0
  %v3441 = vadd.f32 0.0, %v3440
  %v3442 = vpop.f32.mrb[0].mxu0
  %v3443 = vadd.f32 0.0, %v3442
  %3444 = vmatprep.mubr.bf16.mxu0 0
  %3445 = vmatmul.mubr.bf16.gmra.mrb[0].mxu0 %v3254
  %v3446 = vpop.f32.mrb[0].mxu0
  %v3447 = vadd.f32 0.0, %v3446
  %v3448 = vpop.f32.mrb[0].mxu0
  %v3449 = vadd.f32 0.0, %v3448
  %v3450 = vpop.f32.mrb[0].mxu0
  %v3451 = vadd.f32 0.0, %v3450
  %v3452 = vpop.f32.mrb[0].mxu0
  %v3453 = vadd.f32 0.0, %v3452
  %3454 = vdwg.mxu0
  %v3455 = vmax.f32 %v3297, %v3299
  %3456 = vmax.xlane.f32.xlu0 %v3455
  %v3457 = vpop.xlane.xlu0 %3456
  %v3458 = vmax.f32 %v3301, %v3303
  %3459 = vmax.xlane.f32.xlu0 %v3458
  %v3460 = vpop.xlane.xlu0 %3459
  %v3461 = vmax.f32 %v3307, %v3309
  %3462 = vmax.xlane.f32.xlu0 %v3461
  %v3463 = vpop.xlane.xlu0 %3462
  %v3464 = vmax.f32 %v3311, %v3313
  %3465 = vmax.xlane.f32.xlu0 %v3464
  %v3466 = vpop.xlane.xlu0 %3465
  %v3467 = vmax.f32 %v3317, %v3319
  %3468 = vmax.xlane.f32.xlu0 %v3467
  %v3469 = vpop.xlane.xlu0 %3468
  %v3470 = vmax.f32 %v3321, %v3323
  %3471 = vmax.xlane.f32.xlu0 %v3470
  %v3472 = vpop.xlane.xlu0 %3471
  %v3473 = vmax.f32 %v3327, %v3329
  %3474 = vmax.xlane.f32.xlu0 %v3473
  %v3475 = vpop.xlane.xlu0 %3474
  %v3476 = vmax.f32 %v3331, %v3333
  %3477 = vmax.xlane.f32.xlu0 %v3476
  %v3478 = vpop.xlane.xlu0 %3477
  %v3479 = vmax.f32 %v3337, %v3339
  %3480 = vmax.xlane.f32.xlu0 %v3479
  %v3481 = vpop.xlane.xlu0 %3480
  %v3482 = vmax.f32 %v3341, %v3343
  %3483 = vmax.xlane.f32.xlu0 %v3482
  %v3484 = vpop.xlane.xlu0 %3483
  %v3485 = vmax.f32 %v3347, %v3349
  %3486 = vmax.xlane.f32.xlu0 %v3485
  %v3487 = vpop.xlane.xlu0 %3486
  %v3488 = vmax.f32 %v3351, %v3353
  %3489 = vmax.xlane.f32.xlu0 %v3488
  %v3490 = vpop.xlane.xlu0 %3489
  %v3491 = vmax.f32 %v3357, %v3359
  %3492 = vmax.xlane.f32.xlu0 %v3491
  %v3493 = vpop.xlane.xlu0 %3492
  %v3494 = vmax.f32 %v3361, %v3363
  %3495 = vmax.xlane.f32.xlu0 %v3494
  %v3496 = vpop.xlane.xlu0 %3495
  %v3497 = vmax.f32 %v3367, %v3369
  %3498 = vmax.xlane.f32.xlu0 %v3497
  %v3499 = vpop.xlane.xlu0 %3498
  %v3500 = vmax.f32 %v3371, %v3373
  %3501 = vmax.xlane.f32.xlu0 %v3500
  %v3502 = vpop.xlane.xlu0 %3501
  %v3503 = vmax.f32 %v3377, %v3379
  %3504 = vmax.xlane.f32.xlu0 %v3503
  %v3505 = vpop.xlane.xlu0 %3504
  %v3506 = vmax.f32 %v3381, %v3383
  %3507 = vmax.xlane.f32.xlu0 %v3506
  %v3508 = vpop.xlane.xlu0 %3507
  %v3509 = vmax.f32 %v3387, %v3389
  %3510 = vmax.xlane.f32.xlu0 %v3509
  %v3511 = vpop.xlane.xlu0 %3510
  %v3512 = vmax.f32 %v3391, %v3393
  %3513 = vmax.xlane.f32.xlu0 %v3512
  %v3514 = vpop.xlane.xlu0 %3513
  %v3515 = vmax.f32 %v3397, %v3399
  %3516 = vmax.xlane.f32.xlu0 %v3515
  %v3517 = vpop.xlane.xlu0 %3516
  %v3518 = vmax.f32 %v3401, %v3403
  %3519 = vmax.xlane.f32.xlu0 %v3518
  %v3520 = vpop.xlane.xlu0 %3519
  %v3521 = vmax.f32 %v3407, %v3409
  %3522 = vmax.xlane.f32.xlu0 %v3521
  %v3523 = vpop.xlane.xlu0 %3522
  %v3524 = vmax.f32 %v3411, %v3413
  %3525 = vmax.xlane.f32.xlu0 %v3524
  %v3526 = vpop.xlane.xlu0 %3525
  %v3527 = vmax.f32 %v3417, %v3419
  %3528 = vmax.xlane.f32.xlu0 %v3527
  %v3529 = vpop.xlane.xlu0 %3528
  %v3530 = vmax.f32 %v3421, %v3423
  %3531 = vmax.xlane.f32.xlu0 %v3530
  %v3532 = vpop.xlane.xlu0 %3531
  %v3533 = vmax.f32 %v3427, %v3429
  %3534 = vmax.xlane.f32.xlu0 %v3533
  %v3535 = vpop.xlane.xlu0 %3534
  %v3536 = vmax.f32 %v3431, %v3433
  %3537 = vmax.xlane.f32.xlu0 %v3536
  %v3538 = vpop.xlane.xlu0 %3537
  %v3539 = vmax.f32 %v3437, %v3439
  %3540 = vmax.xlane.f32.xlu0 %v3539
  %v3541 = vpop.xlane.xlu0 %3540
  %v3542 = vmax.f32 %v3441, %v3443
  %3543 = vmax.xlane.f32.xlu0 %v3542
  %v3544 = vpop.xlane.xlu0 %3543
  %v3545 = vmax.f32 %v3447, %v3449
  %3546 = vmax.xlane.f32.xlu0 %v3545
  %v3547 = vpop.xlane.xlu0 %3546
  %v3548 = vmax.f32 %v3451, %v3453
  %3549 = vmax.xlane.f32.xlu0 %v3548
  %v3550 = vpop.xlane.xlu0 %3549
  %v3551 = vsub.f32 %v3297, %v3457
  %v3552 = vsub.f32 %v3299, %v3457
  %v3553 = vsub.f32 %v3301, %v3460
  %v3554 = vsub.f32 %v3303, %v3460
  %v3555 = vsub.f32 %v3307, %v3463
  %v3556 = vsub.f32 %v3309, %v3463
  %v3557 = vsub.f32 %v3311, %v3466
  %v3558 = vsub.f32 %v3313, %v3466
  %v3559 = vsub.f32 %v3317, %v3469
  %v3560 = vsub.f32 %v3319, %v3469
  %v3561 = vsub.f32 %v3321, %v3472
  %v3562 = vsub.f32 %v3323, %v3472
  %v3563 = vsub.f32 %v3327, %v3475
  %v3564 = vsub.f32 %v3329, %v3475
  %v3565 = vsub.f32 %v3331, %v3478
  %v3566 = vsub.f32 %v3333, %v3478
  %v3567 = vsub.f32 %v3337, %v3481
  %v3568 = vsub.f32 %v3339, %v3481
  %v3569 = vsub.f32 %v3341, %v3484
  %v3570 = vsub.f32 %v3343, %v3484
  %v3571 = vsub.f32 %v3347, %v3487
  %v3572 = vsub.f32 %v3349, %v3487
  %v3573 = vsub.f32 %v3351, %v3490
  %v3574 = vsub.f32 %v3353, %v3490
  %v3575 = vsub.f32 %v3357, %v3493
  %v3576 = vsub.f32 %v3359, %v3493
  %v3577 = vsub.f32 %v3361, %v3496
  %v3578 = vsub.f32 %v3363, %v3496
  %v3579 = vsub.f32 %v3367, %v3499
  %v3580 = vsub.f32 %v3369, %v3499
  %v3581 = vsub.f32 %v3371, %v3502
  %v3582 = vsub.f32 %v3373, %v3502
  %v3583 = vsub.f32 %v3377, %v3505
  %v3584 = vsub.f32 %v3379, %v3505
  %v3585 = vsub.f32 %v3381, %v3508
  %v3586 = vsub.f32 %v3383, %v3508
  %v3587 = vsub.f32 %v3387, %v3511
  %v3588 = vsub.f32 %v3389, %v3511
  %v3589 = vsub.f32 %v3391, %v3514
  %v3590 = vsub.f32 %v3393, %v3514
  %v3591 = vsub.f32 %v3397, %v3517
  %v3592 = vsub.f32 %v3399, %v3517
  %v3593 = vsub.f32 %v3401, %v3520
  %v3594 = vsub.f32 %v3403, %v3520
  %v3595 = vsub.f32 %v3407, %v3523
  %v3596 = vsub.f32 %v3409, %v3523
  %v3597 = vsub.f32 %v3411, %v3526
  %v3598 = vsub.f32 %v3413, %v3526
  %v3599 = vsub.f32 %v3417, %v3529
  %v3600 = vsub.f32 %v3419, %v3529
  %v3601 = vsub.f32 %v3421, %v3532
  %v3602 = vsub.f32 %v3423, %v3532
  %v3603 = vsub.f32 %v3427, %v3535
  %v3604 = vsub.f32 %v3429, %v3535
  %v3605 = vsub.f32 %v3431, %v3538
  %v3606 = vsub.f32 %v3433, %v3538
  %v3607 = vsub.f32 %v3437, %v3541
  %v3608 = vsub.f32 %v3439, %v3541
  %v3609 = vsub.f32 %v3441, %v3544
  %v3610 = vsub.f32 %v3443, %v3544
  %v3611 = vsub.f32 %v3447, %v3547
  %v3612 = vsub.f32 %v3449, %v3547
  %v3613 = vsub.f32 %v3451, %v3550
  %v3614 = vsub.f32 %v3453, %v3550
  %v3615 = vpack.c.bf16 %v3553, %v3551
  %v3616 = vpack.c.bf16 %v3554, %v3552
  %v3617 = vpack.c.bf16 %v3557, %v3555
  %v3618 = vpack.c.bf16 %v3558, %v3556
  %v3619 = vpack.c.bf16 %v3561, %v3559
  %v3620 = vpack.c.bf16 %v3562, %v3560
  %v3621 = vpack.c.bf16 %v3565, %v3563
  %v3622 = vpack.c.bf16 %v3566, %v3564
  %v3623 = vpack.c.bf16 %v3569, %v3567
  %v3624 = vpack.c.bf16 %v3570, %v3568
  %v3625 = vpack.c.bf16 %v3573, %v3571
  %v3626 = vpack.c.bf16 %v3574, %v3572
  %v3627 = vpack.c.bf16 %v3577, %v3575
  %v3628 = vpack.c.bf16 %v3578, %v3576
  %v3629 = vpack.c.bf16 %v3581, %v3579
  %v3630 = vpack.c.bf16 %v3582, %v3580
  %v3631 = vpack.c.bf16 %v3585, %v3583
  %v3632 = vpack.c.bf16 %v3586, %v3584
  %v3633 = vpack.c.bf16 %v3589, %v3587
  %v3634 = vpack.c.bf16 %v3590, %v3588
  %v3635 = vpack.c.bf16 %v3593, %v3591
  %v3636 = vpack.c.bf16 %v3594, %v3592
  %v3637 = vpack.c.bf16 %v3597, %v3595
  %v3638 = vpack.c.bf16 %v3598, %v3596
  %v3639 = vpack.c.bf16 %v3601, %v3599
  %v3640 = vpack.c.bf16 %v3602, %v3600
  %v3641 = vpack.c.bf16 %v3605, %v3603
  %v3642 = vpack.c.bf16 %v3606, %v3604
  %v3643 = vpack.c.bf16 %v3609, %v3607
  %v3644 = vpack.c.bf16 %v3610, %v3608
  %v3645 = vpack.c.bf16 %v3613, %v3611
  %v3646 = vpack.c.bf16 %v3614, %v3612
  %v3648 = vmul.bf16 %v3615, 1069105081
  %v3649 = vpow.bf16.pop %v3648
  %v3651 = vmul.bf16 %v3616, 1069105081
  %v3652 = vpow.bf16.pop %v3651
  %v3654 = vmul.bf16 %v3617, 1069105081
  %v3655 = vpow.bf16.pop %v3654
  %v3657 = vmul.bf16 %v3618, 1069105081
  %v3658 = vpow.bf16.pop %v3657
  %v3660 = vmul.bf16 %v3619, 1069105081
  %v3661 = vpow.bf16.pop %v3660
  %v3663 = vmul.bf16 %v3620, 1069105081
  %v3664 = vpow.bf16.pop %v3663
  %v3666 = vmul.bf16 %v3621, 1069105081
  %v3667 = vpow.bf16.pop %v3666
  %v3669 = vmul.bf16 %v3622, 1069105081
  %v3670 = vpow.bf16.pop %v3669
  %v3672 = vmul.bf16 %v3623, 1069105081
  %v3673 = vpow.bf16.pop %v3672
  %v3675 = vmul.bf16 %v3624, 1069105081
  %v3676 = vpow.bf16.pop %v3675
  %v3678 = vmul.bf16 %v3625, 1069105081
  %v3679 = vpow.bf16.pop %v3678
  %v3681 = vmul.bf16 %v3626, 1069105081
  %v3682 = vpow.bf16.pop %v3681
  %v3684 = vmul.bf16 %v3627, 1069105081
  %v3685 = vpow.bf16.pop %v3684
  %v3687 = vmul.bf16 %v3628, 1069105081
  %v3688 = vpow.bf16.pop %v3687
  %v3690 = vmul.bf16 %v3629, 1069105081
  %v3691 = vpow.bf16.pop %v3690
  %v3693 = vmul.bf16 %v3630, 1069105081
  %v3694 = vpow.bf16.pop %v3693
  %v3696 = vmul.bf16 %v3631, 1069105081
  %v3697 = vpow.bf16.pop %v3696
  %v3699 = vmul.bf16 %v3632, 1069105081
  %v3700 = vpow.bf16.pop %v3699
  %v3702 = vmul.bf16 %v3633, 1069105081
  %v3703 = vpow.bf16.pop %v3702
  %v3705 = vmul.bf16 %v3634, 1069105081
  %v3706 = vpow.bf16.pop %v3705
  %v3708 = vmul.bf16 %v3635, 1069105081
  %v3709 = vpow.bf16.pop %v3708
  %v3711 = vmul.bf16 %v3636, 1069105081
  %v3712 = vpow.bf16.pop %v3711
  %v3714 = vmul.bf16 %v3637, 1069105081
  %v3715 = vpow.bf16.pop %v3714
  %v3717 = vmul.bf16 %v3638, 1069105081
  %v3718 = vpow.bf16.pop %v3717
  %v3720 = vmul.bf16 %v3639, 1069105081
  %v3721 = vpow.bf16.pop %v3720
  %v3723 = vmul.bf16 %v3640, 1069105081
  %v3724 = vpow.bf16.pop %v3723
  %v3726 = vmul.bf16 %v3641, 1069105081
  %v3727 = vpow.bf16.pop %v3726
  %v3729 = vmul.bf16 %v3642, 1069105081
  %v3730 = vpow.bf16.pop %v3729
  %v3732 = vmul.bf16 %v3643, 1069105081
  %v3733 = vpow.bf16.pop %v3732
  %v3735 = vmul.bf16 %v3644, 1069105081
  %v3736 = vpow.bf16.pop %v3735
  %v3738 = vmul.bf16 %v3645, 1069105081
  %v3739 = vpow.bf16.pop %v3738
  %v3741 = vmul.bf16 %v3646, 1069105081
  %v3742 = vpow.bf16.pop %v3741
  %v3743 = vunpack.c.l.bf16 %v3649
  %v3744 = vunpack.c.l.bf16 %v3652
  %v3745 = vunpack.c.h.bf16 %v3649
  %v3746 = vunpack.c.h.bf16 %v3652
  %v3747 = vunpack.c.l.bf16 %v3655
  %v3748 = vunpack.c.l.bf16 %v3658
  %v3749 = vunpack.c.h.bf16 %v3655
  %v3750 = vunpack.c.h.bf16 %v3658
  %v3751 = vunpack.c.l.bf16 %v3661
  %v3752 = vunpack.c.l.bf16 %v3664
  %v3753 = vunpack.c.h.bf16 %v3661
  %v3754 = vunpack.c.h.bf16 %v3664
  %v3755 = vunpack.c.l.bf16 %v3667
  %v3756 = vunpack.c.l.bf16 %v3670
  %v3757 = vunpack.c.h.bf16 %v3667
  %v3758 = vunpack.c.h.bf16 %v3670
  %v3759 = vunpack.c.l.bf16 %v3673
  %v3760 = vunpack.c.l.bf16 %v3676
  %v3761 = vunpack.c.h.bf16 %v3673
  %v3762 = vunpack.c.h.bf16 %v3676
  %v3763 = vunpack.c.l.bf16 %v3679
  %v3764 = vunpack.c.l.bf16 %v3682
  %v3765 = vunpack.c.h.bf16 %v3679
  %v3766 = vunpack.c.h.bf16 %v3682
  %v3767 = vunpack.c.l.bf16 %v3685
  %v3768 = vunpack.c.l.bf16 %v3688
  %v3769 = vunpack.c.h.bf16 %v3685
  %v3770 = vunpack.c.h.bf16 %v3688
  %v3771 = vunpack.c.l.bf16 %v3691
  %v3772 = vunpack.c.l.bf16 %v3694
  %v3773 = vunpack.c.h.bf16 %v3691
  %v3774 = vunpack.c.h.bf16 %v3694
  %v3775 = vunpack.c.l.bf16 %v3697
  %v3776 = vunpack.c.l.bf16 %v3700
  %v3777 = vunpack.c.h.bf16 %v3697
  %v3778 = vunpack.c.h.bf16 %v3700
  %v3779 = vunpack.c.l.bf16 %v3703
  %v3780 = vunpack.c.l.bf16 %v3706
  %v3781 = vunpack.c.h.bf16 %v3703
  %v3782 = vunpack.c.h.bf16 %v3706
  %v3783 = vunpack.c.l.bf16 %v3709
  %v3784 = vunpack.c.l.bf16 %v3712
  %v3785 = vunpack.c.h.bf16 %v3709
  %v3786 = vunpack.c.h.bf16 %v3712
  %v3787 = vunpack.c.l.bf16 %v3715
  %v3788 = vunpack.c.l.bf16 %v3718
  %v3789 = vunpack.c.h.bf16 %v3715
  %v3790 = vunpack.c.h.bf16 %v3718
  %v3791 = vunpack.c.l.bf16 %v3721
  %v3792 = vunpack.c.l.bf16 %v3724
  %v3793 = vunpack.c.h.bf16 %v3721
  %v3794 = vunpack.c.h.bf16 %v3724
  %v3795 = vunpack.c.l.bf16 %v3727
  %v3796 = vunpack.c.l.bf16 %v3730
  %v3797 = vunpack.c.h.bf16 %v3727
  %v3798 = vunpack.c.h.bf16 %v3730
  %v3799 = vunpack.c.l.bf16 %v3733
  %v3800 = vunpack.c.l.bf16 %v3736
  %v3801 = vunpack.c.h.bf16 %v3733
  %v3802 = vunpack.c.h.bf16 %v3736
  %v3803 = vunpack.c.l.bf16 %v3739
  %v3804 = vunpack.c.l.bf16 %v3742
  %v3805 = vunpack.c.h.bf16 %v3739
  %v3806 = vunpack.c.h.bf16 %v3742
  %v3807 = vadd.f32 %v3743, %v3744
  %3808 = vadd.xlane.f32.xlu0 %v3807
  %v3809 = vpop.xlane.xlu0 %3808
  %v3810 = vadd.f32 %v3745, %v3746
  %3811 = vadd.xlane.f32.xlu0 %v3810
  %v3812 = vpop.xlane.xlu0 %3811
  %v3813 = vadd.f32 %v3747, %v3748
  %3814 = vadd.xlane.f32.xlu0 %v3813
  %v3815 = vpop.xlane.xlu0 %3814
  %v3816 = vadd.f32 %v3749, %v3750
  %3817 = vadd.xlane.f32.xlu0 %v3816
  %v3818 = vpop.xlane.xlu0 %3817
  %v3819 = vadd.f32 %v3751, %v3752
  %3820 = vadd.xlane.f32.xlu0 %v3819
  %v3821 = vpop.xlane.xlu0 %3820
  %v3822 = vadd.f32 %v3753, %v3754
  %3823 = vadd.xlane.f32.xlu0 %v3822
  %v3824 = vpop.xlane.xlu0 %3823
  %v3825 = vadd.f32 %v3755, %v3756
  %3826 = vadd.xlane.f32.xlu0 %v3825
  %v3827 = vpop.xlane.xlu0 %3826
  %v3828 = vadd.f32 %v3757, %v3758
  %3829 = vadd.xlane.f32.xlu0 %v3828
  %v3830 = vpop.xlane.xlu0 %3829
  %v3831 = vadd.f32 %v3759, %v3760
  %3832 = vadd.xlane.f32.xlu0 %v3831
  %v3833 = vpop.xlane.xlu0 %3832
  %v3834 = vadd.f32 %v3761, %v3762
  %3835 = vadd.xlane.f32.xlu0 %v3834
  %v3836 = vpop.xlane.xlu0 %3835
  %v3837 = vadd.f32 %v3763, %v3764
  %3838 = vadd.xlane.f32.xlu0 %v3837
  %v3839 = vpop.xlane.xlu0 %3838
  %v3840 = vadd.f32 %v3765, %v3766
  %3841 = vadd.xlane.f32.xlu0 %v3840
  %v3842 = vpop.xlane.xlu0 %3841
  %v3843 = vadd.f32 %v3767, %v3768
  %3844 = vadd.xlane.f32.xlu0 %v3843
  %v3845 = vpop.xlane.xlu0 %3844
  %v3846 = vadd.f32 %v3769, %v3770
  %3847 = vadd.xlane.f32.xlu0 %v3846
  %v3848 = vpop.xlane.xlu0 %3847
  %v3849 = vadd.f32 %v3771, %v3772
  %3850 = vadd.xlane.f32.xlu0 %v3849
  %v3851 = vpop.xlane.xlu0 %3850
  %v3852 = vadd.f32 %v3773, %v3774
  %3853 = vadd.xlane.f32.xlu0 %v3852
  %v3854 = vpop.xlane.xlu0 %3853
  %v3855 = vadd.f32 %v3775, %v3776
  %3856 = vadd.xlane.f32.xlu0 %v3855
  %v3857 = vpop.xlane.xlu0 %3856
  %v3858 = vadd.f32 %v3777, %v3778
  %3859 = vadd.xlane.f32.xlu0 %v3858
  %v3860 = vpop.xlane.xlu0 %3859
  %v3861 = vadd.f32 %v3779, %v3780
  %3862 = vadd.xlane.f32.xlu0 %v3861
  %v3863 = vpop.xlane.xlu0 %3862
  %v3864 = vadd.f32 %v3781, %v3782
  %3865 = vadd.xlane.f32.xlu0 %v3864
  %v3866 = vpop.xlane.xlu0 %3865
  %v3867 = vadd.f32 %v3783, %v3784
  %3868 = vadd.xlane.f32.xlu0 %v3867
  %v3869 = vpop.xlane.xlu0 %3868
  %v3870 = vadd.f32 %v3785, %v3786
  %3871 = vadd.xlane.f32.xlu0 %v3870
  %v3872 = vpop.xlane.xlu0 %3871
  %v3873 = vadd.f32 %v3787, %v3788
  %3874 = vadd.xlane.f32.xlu0 %v3873
  %v3875 = vpop.xlane.xlu0 %3874
  %v3876 = vadd.f32 %v3789, %v3790
  %3877 = vadd.xlane.f32.xlu0 %v3876
  %v3878 = vpop.xlane.xlu0 %3877
  %v3879 = vadd.f32 %v3791, %v3792
  %3880 = vadd.xlane.f32.xlu0 %v3879
  %v3881 = vpop.xlane.xlu0 %3880
  %v3882 = vadd.f32 %v3793, %v3794
  %3883 = vadd.xlane.f32.xlu0 %v3882
  %v3884 = vpop.xlane.xlu0 %3883
  %v3885 = vadd.f32 %v3795, %v3796
  %3886 = vadd.xlane.f32.xlu0 %v3885
  %v3887 = vpop.xlane.xlu0 %3886
  %v3888 = vadd.f32 %v3797, %v3798
  %3889 = vadd.xlane.f32.xlu0 %v3888
  %v3890 = vpop.xlane.xlu0 %3889
  %v3891 = vadd.f32 %v3799, %v3800
  %3892 = vadd.xlane.f32.xlu0 %v3891
  %v3893 = vpop.xlane.xlu0 %3892
  %v3894 = vadd.f32 %v3801, %v3802
  %3895 = vadd.xlane.f32.xlu0 %v3894
  %v3896 = vpop.xlane.xlu0 %3895
  %v3897 = vadd.f32 %v3803, %v3804
  %3898 = vadd.xlane.f32.xlu0 %v3897
  %v3899 = vpop.xlane.xlu0 %3898
  %v3900 = vadd.f32 %v3805, %v3806
  %3901 = vadd.xlane.f32.xlu0 %v3900
  %v3902 = vpop.xlane.xlu0 %3901
  %v3903 = vrcp.pop %v3809
  %v3904 = vrcp.pop %v3812
  %v3905 = vrcp.pop %v3815
  %v3906 = vrcp.pop %v3818
  %v3907 = vrcp.pop %v3821
  %v3908 = vrcp.pop %v3824
  %v3909 = vrcp.pop %v3827
  %v3910 = vrcp.pop %v3830
  %v3911 = vrcp.pop %v3833
  %v3912 = vrcp.pop %v3836
  %v3913 = vrcp.pop %v3839
  %v3914 = vrcp.pop %v3842
  %v3915 = vrcp.pop %v3845
  %v3916 = vrcp.pop %v3848
  %v3917 = vrcp.pop %v3851
  %v3918 = vrcp.pop %v3854
  %v3919 = vrcp.pop %v3857
  %v3920 = vrcp.pop %v3860
  %v3921 = vrcp.pop %v3863
  %v3922 = vrcp.pop %v3866
  %v3923 = vrcp.pop %v3869
  %v3924 = vrcp.pop %v3872
  %v3925 = vrcp.pop %v3875
  %v3926 = vrcp.pop %v3878
  %v3927 = vrcp.pop %v3881
  %v3928 = vrcp.pop %v3884
  %v3929 = vrcp.pop %v3887
  %v3930 = vrcp.pop %v3890
  %v3931 = vrcp.pop %v3893
  %v3932 = vrcp.pop %v3896
  %v3933 = vrcp.pop %v3899
  %v3934 = vrcp.pop %v3902
  %v3935 = vpack.c.bf16 %v3904, %v3903
  %v3936 = vpack.c.bf16 %v3906, %v3905
  %v3937 = vpack.c.bf16 %v3908, %v3907
  %v3938 = vpack.c.bf16 %v3910, %v3909
  %v3939 = vpack.c.bf16 %v3912, %v3911
  %v3940 = vpack.c.bf16 %v3914, %v3913
  %v3941 = vpack.c.bf16 %v3916, %v3915
  %v3942 = vpack.c.bf16 %v3918, %v3917
  %v3943 = vpack.c.bf16 %v3920, %v3919
  %v3944 = vpack.c.bf16 %v3922, %v3921
  %v3945 = vpack.c.bf16 %v3924, %v3923
  %v3946 = vpack.c.bf16 %v3926, %v3925
  %v3947 = vpack.c.bf16 %v3928, %v3927
  %v3948 = vpack.c.bf16 %v3930, %v3929
  %v3949 = vpack.c.bf16 %v3932, %v3931
  %v3950 = vpack.c.bf16 %v3934, %v3933
  %v3951 = vmul.bf16 %v3649, %v3935
  %v3952 = vmul.bf16 %v3652, %v3935
  %v3953 = vmul.bf16 %v3655, %v3936
  %v3954 = vmul.bf16 %v3658, %v3936
  %v3955 = vmul.bf16 %v3661, %v3937
  %v3956 = vmul.bf16 %v3664, %v3937
  %v3957 = vmul.bf16 %v3667, %v3938
  %v3958 = vmul.bf16 %v3670, %v3938
  %v3959 = vmul.bf16 %v3673, %v3939
  %v3960 = vmul.bf16 %v3676, %v3939
  %v3961 = vmul.bf16 %v3679, %v3940
  %v3962 = vmul.bf16 %v3682, %v3940
  %v3963 = vmul.bf16 %v3685, %v3941
  %v3964 = vmul.bf16 %v3688, %v3941
  %v3965 = vmul.bf16 %v3691, %v3942
  %v3966 = vmul.bf16 %v3694, %v3942
  %v3967 = vmul.bf16 %v3697, %v3943
  %v3968 = vmul.bf16 %v3700, %v3943
  %v3969 = vmul.bf16 %v3703, %v3944
  %v3970 = vmul.bf16 %v3706, %v3944
  %v3971 = vmul.bf16 %v3709, %v3945
  %v3972 = vmul.bf16 %v3712, %v3945
  %v3973 = vmul.bf16 %v3715, %v3946
  %v3974 = vmul.bf16 %v3718, %v3946
  %v3975 = vmul.bf16 %v3721, %v3947
  %v3976 = vmul.bf16 %v3724, %v3947
  %v3977 = vmul.bf16 %v3727, %v3948
  %v3978 = vmul.bf16 %v3730, %v3948
  %v3979 = vmul.bf16 %v3733, %v3949
  %v3980 = vmul.bf16 %v3736, %v3949
  %v3981 = vmul.bf16 %v3739, %v3950
  %v3982 = vmul.bf16 %v3742, %v3950
  %v3983 = vrot.slane %v582, 6
  %v3984 = vrot.slane %v583, 6
  %3987 = vmatprep.subr.bf16.mxu0 %v3952
  %3988 = vmatpush1.bf16.xpose.msra.mxu0 %v3951
  %3989 = vmatprep.subr.bf16.mxu0 %v3954
  %3990 = vmatpush1.bf16.xpose.msra.mxu0 %v3953
  %3991 = vmatprep.subr.bf16.mxu0 %v3956
  %3992 = vmatpush1.bf16.xpose.msra.mxu0 %v3955
  %3993 = vmatprep.subr.bf16.mxu0 %v3958
  %3994 = vmatpush1.bf16.xpose.msra.mxu0 %v3957
  %3995 = vmatprep.subr.bf16.mxu0 %v3960
  %3996 = vmatpush1.bf16.xpose.msra.mxu0 %v3959
  %3997 = vmatprep.subr.bf16.mxu0 %v3962
  %3998 = vmatpush1.bf16.xpose.msra.mxu0 %v3961
  %3999 = vmatprep.subr.bf16.mxu0 %v3964
  %4000 = vmatpush1.bf16.xpose.msra.mxu0 %v3963
  %4001 = vmatprep.subr.bf16.mxu0 %v3966
  %4002 = vmatpush1.bf16.xpose.msra.mxu0 %v3965
  %4003 = vmatprep.subr.bf16.mxu0 %v3968
  %4004 = vmatpush1.bf16.xpose.msra.mxu0 %v3967
  %4005 = vmatprep.subr.bf16.mxu0 %v3970
  %4006 = vmatpush1.bf16.xpose.msra.mxu0 %v3969
  %4007 = vmatprep.subr.bf16.mxu0 %v3972
  %4008 = vmatpush1.bf16.xpose.msra.mxu0 %v3971
  %4009 = vmatprep.subr.bf16.mxu0 %v3974
  %4010 = vmatpush1.bf16.xpose.msra.mxu0 %v3973
  %4011 = vmatprep.subr.bf16.mxu0 %v3976
  %4012 = vmatpush1.bf16.xpose.msra.mxu0 %v3975
  %4013 = vmatprep.subr.bf16.mxu0 %v3978
  %4014 = vmatpush1.bf16.xpose.msra.mxu0 %v3977
  %4015 = vmatprep.subr.bf16.mxu0 %v3980
  %4016 = vmatpush1.bf16.xpose.msra.mxu0 %v3979
  %4017 = vmatprep.subr.bf16.mxu0 %v3982
  %4018 = vmatpush1.bf16.xpose.msra.mxu0 %v3981
  %4019 = vmatprep.mubr.bf16.mxu0 %v3984
  %4020 = vmatmul.mubr.bf16.gmra.mrb[0].mxu0 %v3983
  %v4021 = vpop.f32.mrb[0].mxu0
  %v4022 = vadd.f32 0.0, %v4021
  %v4023 = vpop.f32.mrb[0].mxu0
  %v4024 = vadd.f32 0.0, %v4023
  %v4025 = vpop.f32.mrb[0].mxu0
  %v4026 = vpop.f32.mrb[0].mxu0
  %4027 = vdwg.mxu0
  %v4030 = vrot.slane %v4022, 4
  %v4031 = vrot.slane %v4024, 4
  %4034 = vst [vmem:[#allocation2 + $0x20] sm:$0xf0] %v4030
  %4035 = vst [vmem:[#allocation2 + $0x28] sm:$0xf0] %v4031
  %4036 = vxpose.xlu0.c.b16.start [1/8] %v576, 128
  %4037 = vxpose.xlu0.c.b16.cont [2/8] 0, 128
  %4038 = vxpose.xlu0.c.b16.cont [3/8] 0, 128
  %4039 = vxpose.xlu0.c.b16.cont [4/8] 0, 128
  %4040 = vxpose.xlu0.c.b16.cont [5/8] 0, 128
  %4041 = vxpose.xlu0.c.b16.cont [6/8] 0, 128
  %4042 = vxpose.xlu0.c.b16.cont [7/8] 0, 128
  %4043 = vxpose.xlu0.c.b16.end [8/8] 0, 128
  %v4044 = vpop.trf.xlu0
  %v4045 = vpop.trf.xlu0
  %v4046 = vpop.trf.xlu0
  %v4047 = vpop.trf.xlu0
  %v4048 = vpop.trf.xlu0
  %v4049 = vpop.trf.xlu0
  %v4050 = vpop.trf.xlu0
  %v4051 = vpop.trf.xlu0
  %4052 = vxpose.xlu0.c.b16.start [1/8] %v577, 128
  %4053 = vxpose.xlu0.c.b16.cont [2/8] 0, 128
  %4054 = vxpose.xlu0.c.b16.cont [3/8] 0, 128
  %4055 = vxpose.xlu0.c.b16.cont [4/8] 0, 128
  %4056 = vxpose.xlu0.c.b16.cont [5/8] 0, 128
  %4057 = vxpose.xlu0.c.b16.cont [6/8] 0, 128
  %4058 = vxpose.xlu0.c.b16.cont [7/8] 0, 128
  %4059 = vxpose.xlu0.c.b16.end [8/8] 0, 128
  %v4060 = vpop.trf.xlu0
  %v4061 = vpop.trf.xlu0
  %v4062 = vpop.trf.xlu0
  %v4063 = vpop.trf.xlu0
  %v4064 = vpop.trf.xlu0
  %v4065 = vpop.trf.xlu0
  %v4066 = vpop.trf.xlu0
  %v4067 = vpop.trf.xlu0
  %v4069 = vsel %vm618, %v4044, 0
  %v4072 = vsel %vm618, %v4045, 0
  %v4075 = vsel %vm618, %v4046, 0
  %v4078 = vsel %vm618, %v4047, 0
  %v4081 = vsel %vm618, %v4048, 0
  %v4084 = vsel %vm618, %v4049, 0
  %v4087 = vsel %vm618, %v4050, 0
  %v4090 = vsel %vm618, %v4051, 0
  %v4093 = vsel %vm618, %v4060, 0
  %v4096 = vsel %vm618, %v4061, 0
  %v4099 = vsel %vm618, %v4062, 0
  %v4102 = vsel %vm618, %v4063, 0
  %v4105 = vsel %vm618, %v4064, 0
  %v4108 = vsel %vm618, %v4065, 0
  %v4111 = vsel %vm618, %v4066, 0
  %v4114 = vsel %vm618, %v4067, 0
  %v4117 = vsel %vm667, %v580, 0
  %v4120 = vsel %vm667, %v581, 0
  %4122 = vmatprep.subr.bf16.mxu0 %v4120
  %4123 = vmatpush1.bf16.msra.mxu0 %v4117
  %4124 = vmatprep.subr.bf16.mxu0 0
  %4125 = vmatpush1.bf16.msra.mxu0 0
  %4126 = vmatprep.subr.bf16.mxu0 0
  %4127 = vmatpush1.bf16.msra.mxu0 0
  %4128 = vmatprep.subr.bf16.mxu0 0
  %4129 = vmatpush1.bf16.msra.mxu0 0
  %4130 = vmatprep.subr.bf16.mxu0 0
  %4131 = vmatpush1.bf16.msra.mxu0 0
  %4132 = vmatprep.subr.bf16.mxu0 0
  %4133 = vmatpush1.bf16.msra.mxu0 0
  %4134 = vmatprep.subr.bf16.mxu0 0
  %4135 = vmatpush1.bf16.msra.mxu0 0
  %4136 = vmatprep.subr.bf16.mxu0 0
  %4137 = vmatpush1.bf16.msra.mxu0 0
  %4138 = vmatprep.subr.bf16.mxu0 0
  %4139 = vmatpush1.bf16.msra.mxu0 0
  %4140 = vmatprep.subr.bf16.mxu0 0
  %4141 = vmatpush1.bf16.msra.mxu0 0
  %4142 = vmatprep.subr.bf16.mxu0 0
  %4143 = vmatpush1.bf16.msra.mxu0 0
  %4144 = vmatprep.subr.bf16.mxu0 0
  %4145 = vmatpush1.bf16.msra.mxu0 0
  %4146 = vmatprep.subr.bf16.mxu0 0
  %4147 = vmatpush1.bf16.msra.mxu0 0
  %4148 = vmatprep.subr.bf16.mxu0 0
  %4149 = vmatpush1.bf16.msra.mxu0 0
  %4150 = vmatprep.subr.bf16.mxu0 0
  %4151 = vmatpush1.bf16.msra.mxu0 0
  %4152 = vmatprep.subr.bf16.mxu0 0
  %4153 = vmatpush1.bf16.msra.mxu0 0
  %4154 = vmatprep.mubr.bf16.mxu0 0
  %4155 = vmatmul.mubr.bf16.gmra.mrb[0].mxu0 %v4069
  %v4156 = vpop.f32.mrb[0].mxu0
  %v4157 = vadd.f32 0.0, %v4156
  %v4158 = vpop.f32.mrb[0].mxu0
  %v4159 = vadd.f32 0.0, %v4158
  %v4160 = vpop.f32.mrb[0].mxu0
  %v4161 = vadd.f32 0.0, %v4160
  %v4162 = vpop.f32.mrb[0].mxu0
  %v4163 = vadd.f32 0.0, %v4162
  %4164 = vmatprep.mubr.bf16.mxu0 0
  %4165 = vmatmul.mubr.bf16.gmra.mrb[0].mxu0 %v4072
  %v4166 = vpop.f32.mrb[0].mxu0
  %v4167 = vadd.f32 0.0, %v4166
  %v4168 = vpop.f32.mrb[0].mxu0
  %v4169 = vadd.f32 0.0, %v4168
  %v4170 = vpop.f32.mrb[0].mxu0
  %v4171 = vadd.f32 0.0, %v4170
  %v4172 = vpop.f32.mrb[0].mxu0
  %v4173 = vadd.f32 0.0, %v4172
  %4174 = vmatprep.mubr.bf16.mxu0 0
  %4175 = vmatmul.mubr.bf16.gmra.mrb[0].mxu0 %v4075
  %v4176 = vpop.f32.mrb[0].mxu0
  %v4177 = vadd.f32 0.0, %v4176
  %v4178 = vpop.f32.mrb[0].mxu0
  %v4179 = vadd.f32 0.0, %v4178
  %v4180 = vpop.f32.mrb[0].mxu0
  %v4181 = vadd.f32 0.0, %v4180
  %v4182 = vpop.f32.mrb[0].mxu0
  %v4183 = vadd.f32 0.0, %v4182
  %4184 = vmatprep.mubr.bf16.mxu0 0
  %4185 = vmatmul.mubr.bf16.gmra.mrb[0].mxu0 %v4078
  %v4186 = vpop.f32.mrb[0].mxu0
  %v4187 = vadd.f32 0.0, %v4186
  %v4188 = vpop.f32.mrb[0].mxu0
  %v4189 = vadd.f32 0.0, %v4188
  %v4190 = vpop.f32.mrb[0].mxu0
  %v4191 = vadd.f32 0.0, %v4190
  %v4192 = vpop.f32.mrb[0].mxu0
  %v4193 = vadd.f32 0.0, %v4192
  %4194 = vmatprep.mubr.bf16.mxu0 0
  %4195 = vmatmul.mubr.bf16.gmra.mrb[0].mxu0 %v4081
  %v4196 = vpop.f32.mrb[0].mxu0
  %v4197 = vadd.f32 0.0, %v4196
  %v4198 = vpop.f32.mrb[0].mxu0
  %v4199 = vadd.f32 0.0, %v4198
  %v4200 = vpop.f32.mrb[0].mxu0
  %v4201 = vadd.f32 0.0, %v4200
  %v4202 = vpop.f32.mrb[0].mxu0
  %v4203 = vadd.f32 0.0, %v4202
  %4204 = vmatprep.mubr.bf16.mxu0 0
  %4205 = vmatmul.mubr.bf16.gmra.mrb[0].mxu0 %v4084
  %v4206 = vpop.f32.mrb[0].mxu0
  %v4207 = vadd.f32 0.0, %v4206
  %v4208 = vpop.f32.mrb[0].mxu0
  %v4209 = vadd.f32 0.0, %v4208
  %v4210 = vpop.f32.mrb[0].mxu0
  %v4211 = vadd.f32 0.0, %v4210
  %v4212 = vpop.f32.mrb[0].mxu0
  %v4213 = vadd.f32 0.0, %v4212
  %4214 = vmatprep.mubr.bf16.mxu0 0
  %4215 = vmatmul.mubr.bf16.gmra.mrb[0].mxu0 %v4087
  %v4216 = vpop.f32.mrb[0].mxu0
  %v4217 = vadd.f32 0.0, %v4216
  %v4218 = vpop.f32.mrb[0].mxu0
  %v4219 = vadd.f32 0.0, %v4218
  %v4220 = vpop.f32.mrb[0].mxu0
  %v4221 = vadd.f32 0.0, %v4220
  %v4222 = vpop.f32.mrb[0].mxu0
  %v4223 = vadd.f32 0.0, %v4222
  %4224 = vmatprep.mubr.bf16.mxu0 0
  %4225 = vmatmul.mubr.bf16.gmra.mrb[0].mxu0 %v4090
  %v4226 = vpop.f32.mrb[0].mxu0
  %v4227 = vadd.f32 0.0, %v4226
  %v4228 = vpop.f32.mrb[0].mxu0
  %v4229 = vadd.f32 0.0, %v4228
  %v4230 = vpop.f32.mrb[0].mxu0
  %v4231 = vadd.f32 0.0, %v4230
  %v4232 = vpop.f32.mrb[0].mxu0
  %v4233 = vadd.f32 0.0, %v4232
  %4234 = vmatprep.mubr.bf16.mxu0 0
  %4235 = vmatmul.mubr.bf16.gmra.mrb[0].mxu0 %v4093
  %v4236 = vpop.f32.mrb[0].mxu0
  %v4237 = vadd.f32 0.0, %v4236
  %v4238 = vpop.f32.mrb[0].mxu0
  %v4239 = vadd.f32 0.0, %v4238
  %v4240 = vpop.f32.mrb[0].mxu0
  %v4241 = vadd.f32 0.0, %v4240
  %v4242 = vpop.f32.mrb[0].mxu0
  %v4243 = vadd.f32 0.0, %v4242
  %4244 = vmatprep.mubr.bf16.mxu0 0
  %4245 = vmatmul.mubr.bf16.gmra.mrb[0].mxu0 %v4096
  %v4246 = vpop.f32.mrb[0].mxu0
  %v4247 = vadd.f32 0.0, %v4246
  %v4248 = vpop.f32.mrb[0].mxu0
  %v4249 = vadd.f32 0.0, %v4248
  %v4250 = vpop.f32.mrb[0].mxu0
  %v4251 = vadd.f32 0.0, %v4250
  %v4252 = vpop.f32.mrb[0].mxu0
  %v4253 = vadd.f32 0.0, %v4252
  %4254 = vmatprep.mubr.bf16.mxu0 0
  %4255 = vmatmul.mubr.bf16.gmra.mrb[0].mxu0 %v4099
  %v4256 = vpop.f32.mrb[0].mxu0
  %v4257 = vadd.f32 0.0, %v4256
  %v4258 = vpop.f32.mrb[0].mxu0
  %v4259 = vadd.f32 0.0, %v4258
  %v4260 = vpop.f32.mrb[0].mxu0
  %v4261 = vadd.f32 0.0, %v4260
  %v4262 = vpop.f32.mrb[0].mxu0
  %v4263 = vadd.f32 0.0, %v4262
  %4264 = vmatprep.mubr.bf16.mxu0 0
  %4265 = vmatmul.mubr.bf16.gmra.mrb[0].mxu0 %v4102
  %v4266 = vpop.f32.mrb[0].mxu0
  %v4267 = vadd.f32 0.0, %v4266
  %v4268 = vpop.f32.mrb[0].mxu0
  %v4269 = vadd.f32 0.0, %v4268
  %v4270 = vpop.f32.mrb[0].mxu0
  %v4271 = vadd.f32 0.0, %v4270
  %v4272 = vpop.f32.mrb[0].mxu0
  %v4273 = vadd.f32 0.0, %v4272
  %4274 = vmatprep.mubr.bf16.mxu0 0
  %4275 = vmatmul.mubr.bf16.gmra.mrb[0].mxu0 %v4105
  %v4276 = vpop.f32.mrb[0].mxu0
  %v4277 = vadd.f32 0.0, %v4276
  %v4278 = vpop.f32.mrb[0].mxu0
  %v4279 = vadd.f32 0.0, %v4278
  %v4280 = vpop.f32.mrb[0].mxu0
  %v4281 = vadd.f32 0.0, %v4280
  %v4282 = vpop.f32.mrb[0].mxu0
  %v4283 = vadd.f32 0.0, %v4282
  %4284 = vmatprep.mubr.bf16.mxu0 0
  %4285 = vmatmul.mubr.bf16.gmra.mrb[0].mxu0 %v4108
  %v4286 = vpop.f32.mrb[0].mxu0
  %v4287 = vadd.f32 0.0, %v4286
  %v4288 = vpop.f32.mrb[0].mxu0
  %v4289 = vadd.f32 0.0, %v4288
  %v4290 = vpop.f32.mrb[0].mxu0
  %v4291 = vadd.f32 0.0, %v4290
  %v4292 = vpop.f32.mrb[0].mxu0
  %v4293 = vadd.f32 0.0, %v4292
  %4294 = vmatprep.mubr.bf16.mxu0 0
  %4295 = vmatmul.mubr.bf16.gmra.mrb[0].mxu0 %v4111
  %v4296 = vpop.f32.mrb[0].mxu0
  %v4297 = vadd.f32 0.0, %v4296
  %v4298 = vpop.f32.mrb[0].mxu0
  %v4299 = vadd.f32 0.0, %v4298
  %v4300 = vpop.f32.mrb[0].mxu0
  %v4301 = vadd.f32 0.0, %v4300
  %v4302 = vpop.f32.mrb[0].mxu0
  %v4303 = vadd.f32 0.0, %v4302
  %4304 = vmatprep.mubr.bf16.mxu0 0
  %4305 = vmatmul.mubr.bf16.gmra.mrb[0].mxu0 %v4114
  %v4306 = vpop.f32.mrb[0].mxu0
  %v4307 = vadd.f32 0.0, %v4306
  %v4308 = vpop.f32.mrb[0].mxu0
  %v4309 = vadd.f32 0.0, %v4308
  %v4310 = vpop.f32.mrb[0].mxu0
  %v4311 = vadd.f32 0.0, %v4310
  %v4312 = vpop.f32.mrb[0].mxu0
  %v4313 = vadd.f32 0.0, %v4312
  %4314 = vdwg.mxu0
  %v4315 = vmax.f32 %v4157, %v4159
  %4316 = vmax.xlane.f32.xlu0 %v4315
  %v4317 = vpop.xlane.xlu0 %4316
  %v4318 = vmax.f32 %v4161, %v4163
  %4319 = vmax.xlane.f32.xlu0 %v4318
  %v4320 = vpop.xlane.xlu0 %4319
  %v4321 = vmax.f32 %v4167, %v4169
  %4322 = vmax.xlane.f32.xlu0 %v4321
  %v4323 = vpop.xlane.xlu0 %4322
  %v4324 = vmax.f32 %v4171, %v4173
  %4325 = vmax.xlane.f32.xlu0 %v4324
  %v4326 = vpop.xlane.xlu0 %4325
  %v4327 = vmax.f32 %v4177, %v4179
  %4328 = vmax.xlane.f32.xlu0 %v4327
  %v4329 = vpop.xlane.xlu0 %4328
  %v4330 = vmax.f32 %v4181, %v4183
  %4331 = vmax.xlane.f32.xlu0 %v4330
  %v4332 = vpop.xlane.xlu0 %4331
  %v4333 = vmax.f32 %v4187, %v4189
  %4334 = vmax.xlane.f32.xlu0 %v4333
  %v4335 = vpop.xlane.xlu0 %4334
  %v4336 = vmax.f32 %v4191, %v4193
  %4337 = vmax.xlane.f32.xlu0 %v4336
  %v4338 = vpop.xlane.xlu0 %4337
  %v4339 = vmax.f32 %v4197, %v4199
  %4340 = vmax.xlane.f32.xlu0 %v4339
  %v4341 = vpop.xlane.xlu0 %4340
  %v4342 = vmax.f32 %v4201, %v4203
  %4343 = vmax.xlane.f32.xlu0 %v4342
  %v4344 = vpop.xlane.xlu0 %4343
  %v4345 = vmax.f32 %v4207, %v4209
  %4346 = vmax.xlane.f32.xlu0 %v4345
  %v4347 = vpop.xlane.xlu0 %4346
  %v4348 = vmax.f32 %v4211, %v4213
  %4349 = vmax.xlane.f32.xlu0 %v4348
  %v4350 = vpop.xlane.xlu0 %4349
  %v4351 = vmax.f32 %v4217, %v4219
  %4352 = vmax.xlane.f32.xlu0 %v4351
  %v4353 = vpop.xlane.xlu0 %4352
  %v4354 = vmax.f32 %v4221, %v4223
  %4355 = vmax.xlane.f32.xlu0 %v4354
  %v4356 = vpop.xlane.xlu0 %4355
  %v4357 = vmax.f32 %v4227, %v4229
  %4358 = vmax.xlane.f32.xlu0 %v4357
  %v4359 = vpop.xlane.xlu0 %4358
  %v4360 = vmax.f32 %v4231, %v4233
  %4361 = vmax.xlane.f32.xlu0 %v4360
  %v4362 = vpop.xlane.xlu0 %4361
  %v4363 = vmax.f32 %v4237, %v4239
  %4364 = vmax.xlane.f32.xlu0 %v4363
  %v4365 = vpop.xlane.xlu0 %4364
  %v4366 = vmax.f32 %v4241, %v4243
  %4367 = vmax.xlane.f32.xlu0 %v4366
  %v4368 = vpop.xlane.xlu0 %4367
  %v4369 = vmax.f32 %v4247, %v4249
  %4370 = vmax.xlane.f32.xlu0 %v4369
  %v4371 = vpop.xlane.xlu0 %4370
  %v4372 = vmax.f32 %v4251, %v4253
  %4373 = vmax.xlane.f32.xlu0 %v4372
  %v4374 = vpop.xlane.xlu0 %4373
  %v4375 = vmax.f32 %v4257, %v4259
  %4376 = vmax.xlane.f32.xlu0 %v4375
  %v4377 = vpop.xlane.xlu0 %4376
  %v4378 = vmax.f32 %v4261, %v4263
  %4379 = vmax.xlane.f32.xlu0 %v4378
  %v4380 = vpop.xlane.xlu0 %4379
  %v4381 = vmax.f32 %v4267, %v4269
  %4382 = vmax.xlane.f32.xlu0 %v4381
  %v4383 = vpop.xlane.xlu0 %4382
  %v4384 = vmax.f32 %v4271, %v4273
  %4385 = vmax.xlane.f32.xlu0 %v4384
  %v4386 = vpop.xlane.xlu0 %4385
  %v4387 = vmax.f32 %v4277, %v4279
  %4388 = vmax.xlane.f32.xlu0 %v4387
  %v4389 = vpop.xlane.xlu0 %4388
  %v4390 = vmax.f32 %v4281, %v4283
  %4391 = vmax.xlane.f32.xlu0 %v4390
  %v4392 = vpop.xlane.xlu0 %4391
  %v4393 = vmax.f32 %v4287, %v4289
  %4394 = vmax.xlane.f32.xlu0 %v4393
  %v4395 = vpop.xlane.xlu0 %4394
  %v4396 = vmax.f32 %v4291, %v4293
  %4397 = vmax.xlane.f32.xlu0 %v4396
  %v4398 = vpop.xlane.xlu0 %4397
  %v4399 = vmax.f32 %v4297, %v4299
  %4400 = vmax.xlane.f32.xlu0 %v4399
  %v4401 = vpop.xlane.xlu0 %4400
  %v4402 = vmax.f32 %v4301, %v4303
  %4403 = vmax.xlane.f32.xlu0 %v4402
  %v4404 = vpop.xlane.xlu0 %4403
  %v4405 = vmax.f32 %v4307, %v4309
  %4406 = vmax.xlane.f32.xlu0 %v4405
  %v4407 = vpop.xlane.xlu0 %4406
  %v4408 = vmax.f32 %v4311, %v4313
  %4409 = vmax.xlane.f32.xlu0 %v4408
  %v4410 = vpop.xlane.xlu0 %4409
  %v4411 = vsub.f32 %v4157, %v4317
  %v4412 = vsub.f32 %v4159, %v4317
  %v4413 = vsub.f32 %v4161, %v4320
  %v4414 = vsub.f32 %v4163, %v4320
  %v4415 = vsub.f32 %v4167, %v4323
  %v4416 = vsub.f32 %v4169, %v4323
  %v4417 = vsub.f32 %v4171, %v4326
  %v4418 = vsub.f32 %v4173, %v4326
  %v4419 = vsub.f32 %v4177, %v4329
  %v4420 = vsub.f32 %v4179, %v4329
  %v4421 = vsub.f32 %v4181, %v4332
  %v4422 = vsub.f32 %v4183, %v4332
  %v4423 = vsub.f32 %v4187, %v4335
  %v4424 = vsub.f32 %v4189, %v4335
  %v4425 = vsub.f32 %v4191, %v4338
  %v4426 = vsub.f32 %v4193, %v4338
  %v4427 = vsub.f32 %v4197, %v4341
  %v4428 = vsub.f32 %v4199, %v4341
  %v4429 = vsub.f32 %v4201, %v4344
  %v4430 = vsub.f32 %v4203, %v4344
  %v4431 = vsub.f32 %v4207, %v4347
  %v4432 = vsub.f32 %v4209, %v4347
  %v4433 = vsub.f32 %v4211, %v4350
  %v4434 = vsub.f32 %v4213, %v4350
  %v4435 = vsub.f32 %v4217, %v4353
  %v4436 = vsub.f32 %v4219, %v4353
  %v4437 = vsub.f32 %v4221, %v4356
  %v4438 = vsub.f32 %v4223, %v4356
  %v4439 = vsub.f32 %v4227, %v4359
  %v4440 = vsub.f32 %v4229, %v4359
  %v4441 = vsub.f32 %v4231, %v4362
  %v4442 = vsub.f32 %v4233, %v4362
  %v4443 = vsub.f32 %v4237, %v4365
  %v4444 = vsub.f32 %v4239, %v4365
  %v4445 = vsub.f32 %v4241, %v4368
  %v4446 = vsub.f32 %v4243, %v4368
  %v4447 = vsub.f32 %v4247, %v4371
  %v4448 = vsub.f32 %v4249, %v4371
  %v4449 = vsub.f32 %v4251, %v4374
  %v4450 = vsub.f32 %v4253, %v4374
  %v4451 = vsub.f32 %v4257, %v4377
  %v4452 = vsub.f32 %v4259, %v4377
  %v4453 = vsub.f32 %v4261, %v4380
  %v4454 = vsub.f32 %v4263, %v4380
  %v4455 = vsub.f32 %v4267, %v4383
  %v4456 = vsub.f32 %v4269, %v4383
  %v4457 = vsub.f32 %v4271, %v4386
  %v4458 = vsub.f32 %v4273, %v4386
  %v4459 = vsub.f32 %v4277, %v4389
  %v4460 = vsub.f32 %v4279, %v4389
  %v4461 = vsub.f32 %v4281, %v4392
  %v4462 = vsub.f32 %v4283, %v4392
  %v4463 = vsub.f32 %v4287, %v4395
  %v4464 = vsub.f32 %v4289, %v4395
  %v4465 = vsub.f32 %v4291, %v4398
  %v4466 = vsub.f32 %v4293, %v4398
  %v4467 = vsub.f32 %v4297, %v4401
  %v4468 = vsub.f32 %v4299, %v4401
  %v4469 = vsub.f32 %v4301, %v4404
  %v4470 = vsub.f32 %v4303, %v4404
  %v4471 = vsub.f32 %v4307, %v4407
  %v4472 = vsub.f32 %v4309, %v4407
  %v4473 = vsub.f32 %v4311, %v4410
  %v4474 = vsub.f32 %v4313, %v4410
  %v4475 = vpack.c.bf16 %v4413, %v4411
  %v4476 = vpack.c.bf16 %v4414, %v4412
  %v4477 = vpack.c.bf16 %v4417, %v4415
  %v4478 = vpack.c.bf16 %v4418, %v4416
  %v4479 = vpack.c.bf16 %v4421, %v4419
  %v4480 = vpack.c.bf16 %v4422, %v4420
  %v4481 = vpack.c.bf16 %v4425, %v4423
  %v4482 = vpack.c.bf16 %v4426, %v4424
  %v4483 = vpack.c.bf16 %v4429, %v4427
  %v4484 = vpack.c.bf16 %v4430, %v4428
  %v4485 = vpack.c.bf16 %v4433, %v4431
  %v4486 = vpack.c.bf16 %v4434, %v4432
  %v4487 = vpack.c.bf16 %v4437, %v4435
  %v4488 = vpack.c.bf16 %v4438, %v4436
  %v4489 = vpack.c.bf16 %v4441, %v4439
  %v4490 = vpack.c.bf16 %v4442, %v4440
  %v4491 = vpack.c.bf16 %v4445, %v4443
  %v4492 = vpack.c.bf16 %v4446, %v4444
  %v4493 = vpack.c.bf16 %v4449, %v4447
  %v4494 = vpack.c.bf16 %v4450, %v4448
  %v4495 = vpack.c.bf16 %v4453, %v4451
  %v4496 = vpack.c.bf16 %v4454, %v4452
  %v4497 = vpack.c.bf16 %v4457, %v4455
  %v4498 = vpack.c.bf16 %v4458, %v4456
  %v4499 = vpack.c.bf16 %v4461, %v4459
  %v4500 = vpack.c.bf16 %v4462, %v4460
  %v4501 = vpack.c.bf16 %v4465, %v4463
  %v4502 = vpack.c.bf16 %v4466, %v4464
  %v4503 = vpack.c.bf16 %v4469, %v4467
  %v4504 = vpack.c.bf16 %v4470, %v4468
  %v4505 = vpack.c.bf16 %v4473, %v4471
  %v4506 = vpack.c.bf16 %v4474, %v4472
  %v4508 = vmul.bf16 %v4475, 1069105081
  %v4509 = vpow.bf16.pop %v4508
  %v4511 = vmul.bf16 %v4476, 1069105081
  %v4512 = vpow.bf16.pop %v4511
  %v4514 = vmul.bf16 %v4477, 1069105081
  %v4515 = vpow.bf16.pop %v4514
  %v4517 = vmul.bf16 %v4478, 1069105081
  %v4518 = vpow.bf16.pop %v4517
  %v4520 = vmul.bf16 %v4479, 1069105081
  %v4521 = vpow.bf16.pop %v4520
  %v4523 = vmul.bf16 %v4480, 1069105081
  %v4524 = vpow.bf16.pop %v4523
  %v4526 = vmul.bf16 %v4481, 1069105081
  %v4527 = vpow.bf16.pop %v4526
  %v4529 = vmul.bf16 %v4482, 1069105081
  %v4530 = vpow.bf16.pop %v4529
  %v4532 = vmul.bf16 %v4483, 1069105081
  %v4533 = vpow.bf16.pop %v4532
  %v4535 = vmul.bf16 %v4484, 1069105081
  %v4536 = vpow.bf16.pop %v4535
  %v4538 = vmul.bf16 %v4485, 1069105081
  %v4539 = vpow.bf16.pop %v4538
  %v4541 = vmul.bf16 %v4486, 1069105081
  %v4542 = vpow.bf16.pop %v4541
  %v4544 = vmul.bf16 %v4487, 1069105081
  %v4545 = vpow.bf16.pop %v4544
  %v4547 = vmul.bf16 %v4488, 1069105081
  %v4548 = vpow.bf16.pop %v4547
  %v4550 = vmul.bf16 %v4489, 1069105081
  %v4551 = vpow.bf16.pop %v4550
  %v4553 = vmul.bf16 %v4490, 1069105081
  %v4554 = vpow.bf16.pop %v4553
  %v4556 = vmul.bf16 %v4491, 1069105081
  %v4557 = vpow.bf16.pop %v4556
  %v4559 = vmul.bf16 %v4492, 1069105081
  %v4560 = vpow.bf16.pop %v4559
  %v4562 = vmul.bf16 %v4493, 1069105081
  %v4563 = vpow.bf16.pop %v4562
  %v4565 = vmul.bf16 %v4494, 1069105081
  %v4566 = vpow.bf16.pop %v4565
  %v4568 = vmul.bf16 %v4495, 1069105081
  %v4569 = vpow.bf16.pop %v4568
  %v4571 = vmul.bf16 %v4496, 1069105081
  %v4572 = vpow.bf16.pop %v4571
  %v4574 = vmul.bf16 %v4497, 1069105081
  %v4575 = vpow.bf16.pop %v4574
  %v4577 = vmul.bf16 %v4498, 1069105081
  %v4578 = vpow.bf16.pop %v4577
  %v4580 = vmul.bf16 %v4499, 1069105081
  %v4581 = vpow.bf16.pop %v4580
  %v4583 = vmul.bf16 %v4500, 1069105081
  %v4584 = vpow.bf16.pop %v4583
  %v4586 = vmul.bf16 %v4501, 1069105081
  %v4587 = vpow.bf16.pop %v4586
  %v4589 = vmul.bf16 %v4502, 1069105081
  %v4590 = vpow.bf16.pop %v4589
  %v4592 = vmul.bf16 %v4503, 1069105081
  %v4593 = vpow.bf16.pop %v4592
  %v4595 = vmul.bf16 %v4504, 1069105081
  %v4596 = vpow.bf16.pop %v4595
  %v4598 = vmul.bf16 %v4505, 1069105081
  %v4599 = vpow.bf16.pop %v4598
  %v4601 = vmul.bf16 %v4506, 1069105081
  %v4602 = vpow.bf16.pop %v4601
  %v4603 = vunpack.c.l.bf16 %v4509
  %v4604 = vunpack.c.l.bf16 %v4512
  %v4605 = vunpack.c.h.bf16 %v4509
  %v4606 = vunpack.c.h.bf16 %v4512
  %v4607 = vunpack.c.l.bf16 %v4515
  %v4608 = vunpack.c.l.bf16 %v4518
  %v4609 = vunpack.c.h.bf16 %v4515
  %v4610 = vunpack.c.h.bf16 %v4518
  %v4611 = vunpack.c.l.bf16 %v4521
  %v4612 = vunpack.c.l.bf16 %v4524
  %v4613 = vunpack.c.h.bf16 %v4521
  %v4614 = vunpack.c.h.bf16 %v4524
  %v4615 = vunpack.c.l.bf16 %v4527
  %v4616 = vunpack.c.l.bf16 %v4530
  %v4617 = vunpack.c.h.bf16 %v4527
  %v4618 = vunpack.c.h.bf16 %v4530
  %v4619 = vunpack.c.l.bf16 %v4533
  %v4620 = vunpack.c.l.bf16 %v4536
  %v4621 = vunpack.c.h.bf16 %v4533
  %v4622 = vunpack.c.h.bf16 %v4536
  %v4623 = vunpack.c.l.bf16 %v4539
  %v4624 = vunpack.c.l.bf16 %v4542
  %v4625 = vunpack.c.h.bf16 %v4539
  %v4626 = vunpack.c.h.bf16 %v4542
  %v4627 = vunpack.c.l.bf16 %v4545
  %v4628 = vunpack.c.l.bf16 %v4548
  %v4629 = vunpack.c.h.bf16 %v4545
  %v4630 = vunpack.c.h.bf16 %v4548
  %v4631 = vunpack.c.l.bf16 %v4551
  %v4632 = vunpack.c.l.bf16 %v4554
  %v4633 = vunpack.c.h.bf16 %v4551
  %v4634 = vunpack.c.h.bf16 %v4554
  %v4635 = vunpack.c.l.bf16 %v4557
  %v4636 = vunpack.c.l.bf16 %v4560
  %v4637 = vunpack.c.h.bf16 %v4557
  %v4638 = vunpack.c.h.bf16 %v4560
  %v4639 = vunpack.c.l.bf16 %v4563
  %v4640 = vunpack.c.l.bf16 %v4566
  %v4641 = vunpack.c.h.bf16 %v4563
  %v4642 = vunpack.c.h.bf16 %v4566
  %v4643 = vunpack.c.l.bf16 %v4569
  %v4644 = vunpack.c.l.bf16 %v4572
  %v4645 = vunpack.c.h.bf16 %v4569
  %v4646 = vunpack.c.h.bf16 %v4572
  %v4647 = vunpack.c.l.bf16 %v4575
  %v4648 = vunpack.c.l.bf16 %v4578
  %v4649 = vunpack.c.h.bf16 %v4575
  %v4650 = vunpack.c.h.bf16 %v4578
  %v4651 = vunpack.c.l.bf16 %v4581
  %v4652 = vunpack.c.l.bf16 %v4584
  %v4653 = vunpack.c.h.bf16 %v4581
  %v4654 = vunpack.c.h.bf16 %v4584
  %v4655 = vunpack.c.l.bf16 %v4587
  %v4656 = vunpack.c.l.bf16 %v4590
  %v4657 = vunpack.c.h.bf16 %v4587
  %v4658 = vunpack.c.h.bf16 %v4590
  %v4659 = vunpack.c.l.bf16 %v4593
  %v4660 = vunpack.c.l.bf16 %v4596
  %v4661 = vunpack.c.h.bf16 %v4593
  %v4662 = vunpack.c.h.bf16 %v4596
  %v4663 = vunpack.c.l.bf16 %v4599
  %v4664 = vunpack.c.l.bf16 %v4602
  %v4665 = vunpack.c.h.bf16 %v4599
  %v4666 = vunpack.c.h.bf16 %v4602
  %v4667 = vadd.f32 %v4603, %v4604
  %4668 = vadd.xlane.f32.xlu0 %v4667
  %v4669 = vpop.xlane.xlu0 %4668
  %v4670 = vadd.f32 %v4605, %v4606
  %4671 = vadd.xlane.f32.xlu0 %v4670
  %v4672 = vpop.xlane.xlu0 %4671
  %v4673 = vadd.f32 %v4607, %v4608
  %4674 = vadd.xlane.f32.xlu0 %v4673
  %v4675 = vpop.xlane.xlu0 %4674
  %v4676 = vadd.f32 %v4609, %v4610
  %4677 = vadd.xlane.f32.xlu0 %v4676
  %v4678 = vpop.xlane.xlu0 %4677
  %v4679 = vadd.f32 %v4611, %v4612
  %4680 = vadd.xlane.f32.xlu0 %v4679
  %v4681 = vpop.xlane.xlu0 %4680
  %v4682 = vadd.f32 %v4613, %v4614
  %4683 = vadd.xlane.f32.xlu0 %v4682
  %v4684 = vpop.xlane.xlu0 %4683
  %v4685 = vadd.f32 %v4615, %v4616
  %4686 = vadd.xlane.f32.xlu0 %v4685
  %v4687 = vpop.xlane.xlu0 %4686
  %v4688 = vadd.f32 %v4617, %v4618
  %4689 = vadd.xlane.f32.xlu0 %v4688
  %v4690 = vpop.xlane.xlu0 %4689
  %v4691 = vadd.f32 %v4619, %v4620
  %4692 = vadd.xlane.f32.xlu0 %v4691
  %v4693 = vpop.xlane.xlu0 %4692
  %v4694 = vadd.f32 %v4621, %v4622
  %4695 = vadd.xlane.f32.xlu0 %v4694
  %v4696 = vpop.xlane.xlu0 %4695
  %v4697 = vadd.f32 %v4623, %v4624
  %4698 = vadd.xlane.f32.xlu0 %v4697
  %v4699 = vpop.xlane.xlu0 %4698
  %v4700 = vadd.f32 %v4625, %v4626
  %4701 = vadd.xlane.f32.xlu0 %v4700
  %v4702 = vpop.xlane.xlu0 %4701
  %v4703 = vadd.f32 %v4627, %v4628
  %4704 = vadd.xlane.f32.xlu0 %v4703
  %v4705 = vpop.xlane.xlu0 %4704
  %v4706 = vadd.f32 %v4629, %v4630
  %4707 = vadd.xlane.f32.xlu0 %v4706
  %v4708 = vpop.xlane.xlu0 %4707
  %v4709 = vadd.f32 %v4631, %v4632
  %4710 = vadd.xlane.f32.xlu0 %v4709
  %v4711 = vpop.xlane.xlu0 %4710
  %v4712 = vadd.f32 %v4633, %v4634
  %4713 = vadd.xlane.f32.xlu0 %v4712
  %v4714 = vpop.xlane.xlu0 %4713
  %v4715 = vadd.f32 %v4635, %v4636
  %4716 = vadd.xlane.f32.xlu0 %v4715
  %v4717 = vpop.xlane.xlu0 %4716
  %v4718 = vadd.f32 %v4637, %v4638
  %4719 = vadd.xlane.f32.xlu0 %v4718
  %v4720 = vpop.xlane.xlu0 %4719
  %v4721 = vadd.f32 %v4639, %v4640
  %4722 = vadd.xlane.f32.xlu0 %v4721
  %v4723 = vpop.xlane.xlu0 %4722
  %v4724 = vadd.f32 %v4641, %v4642
  %4725 = vadd.xlane.f32.xlu0 %v4724
  %v4726 = vpop.xlane.xlu0 %4725
  %v4727 = vadd.f32 %v4643, %v4644
  %4728 = vadd.xlane.f32.xlu0 %v4727
  %v4729 = vpop.xlane.xlu0 %4728
  %v4730 = vadd.f32 %v4645, %v4646
  %4731 = vadd.xlane.f32.xlu0 %v4730
  %v4732 = vpop.xlane.xlu0 %4731
  %v4733 = vadd.f32 %v4647, %v4648
  %4734 = vadd.xlane.f32.xlu0 %v4733
  %v4735 = vpop.xlane.xlu0 %4734
  %v4736 = vadd.f32 %v4649, %v4650
  %4737 = vadd.xlane.f32.xlu0 %v4736
  %v4738 = vpop.xlane.xlu0 %4737
  %v4739 = vadd.f32 %v4651, %v4652
  %4740 = vadd.xlane.f32.xlu0 %v4739
  %v4741 = vpop.xlane.xlu0 %4740
  %v4742 = vadd.f32 %v4653, %v4654
  %4743 = vadd.xlane.f32.xlu0 %v4742
  %v4744 = vpop.xlane.xlu0 %4743
  %v4745 = vadd.f32 %v4655, %v4656
  %4746 = vadd.xlane.f32.xlu0 %v4745
  %v4747 = vpop.xlane.xlu0 %4746
  %v4748 = vadd.f32 %v4657, %v4658
  %4749 = vadd.xlane.f32.xlu0 %v4748
  %v4750 = vpop.xlane.xlu0 %4749
  %v4751 = vadd.f32 %v4659, %v4660
  %4752 = vadd.xlane.f32.xlu0 %v4751
  %v4753 = vpop.xlane.xlu0 %4752
  %v4754 = vadd.f32 %v4661, %v4662
  %4755 = vadd.xlane.f32.xlu0 %v4754
  %v4756 = vpop.xlane.xlu0 %4755
  %v4757 = vadd.f32 %v4663, %v4664
  %4758 = vadd.xlane.f32.xlu0 %v4757
  %v4759 = vpop.xlane.xlu0 %4758
  %v4760 = vadd.f32 %v4665, %v4666
  %4761 = vadd.xlane.f32.xlu0 %v4760
  %v4762 = vpop.xlane.xlu0 %4761
  %v4763 = vrcp.pop %v4669
  %v4764 = vrcp.pop %v4672
  %v4765 = vrcp.pop %v4675
  %v4766 = vrcp.pop %v4678
  %v4767 = vrcp.pop %v4681
  %v4768 = vrcp.pop %v4684
  %v4769 = vrcp.pop %v4687
  %v4770 = vrcp.pop %v4690
  %v4771 = vrcp.pop %v4693
  %v4772 = vrcp.pop %v4696
  %v4773 = vrcp.pop %v4699
  %v4774 = vrcp.pop %v4702
  %v4775 = vrcp.pop %v4705
  %v4776 = vrcp.pop %v4708
  %v4777 = vrcp.pop %v4711
  %v4778 = vrcp.pop %v4714
  %v4779 = vrcp.pop %v4717
  %v4780 = vrcp.pop %v4720
  %v4781 = vrcp.pop %v4723
  %v4782 = vrcp.pop %v4726
  %v4783 = vrcp.pop %v4729
  %v4784 = vrcp.pop %v4732
  %v4785 = vrcp.pop %v4735
  %v4786 = vrcp.pop %v4738
  %v4787 = vrcp.pop %v4741
  %v4788 = vrcp.pop %v4744
  %v4789 = vrcp.pop %v4747
  %v4790 = vrcp.pop %v4750
  %v4791 = vrcp.pop %v4753
  %v4792 = vrcp.pop %v4756
  %v4793 = vrcp.pop %v4759
  %v4794 = vrcp.pop %v4762
  %v4795 = vpack.c.bf16 %v4764, %v4763
  %v4796 = vpack.c.bf16 %v4766, %v4765
  %v4797 = vpack.c.bf16 %v4768, %v4767
  %v4798 = vpack.c.bf16 %v4770, %v4769
  %v4799 = vpack.c.bf16 %v4772, %v4771
  %v4800 = vpack.c.bf16 %v4774, %v4773
  %v4801 = vpack.c.bf16 %v4776, %v4775
  %v4802 = vpack.c.bf16 %v4778, %v4777
  %v4803 = vpack.c.bf16 %v4780, %v4779
  %v4804 = vpack.c.bf16 %v4782, %v4781
  %v4805 = vpack.c.bf16 %v4784, %v4783
  %v4806 = vpack.c.bf16 %v4786, %v4785
  %v4807 = vpack.c.bf16 %v4788, %v4787
  %v4808 = vpack.c.bf16 %v4790, %v4789
  %v4809 = vpack.c.bf16 %v4792, %v4791
  %v4810 = vpack.c.bf16 %v4794, %v4793
  %v4811 = vmul.bf16 %v4509, %v4795
  %v4812 = vmul.bf16 %v4512, %v4795
  %v4813 = vmul.bf16 %v4515, %v4796
  %v4814 = vmul.bf16 %v4518, %v4796
  %v4815 = vmul.bf16 %v4521, %v4797
  %v4816 = vmul.bf16 %v4524, %v4797
  %v4817 = vmul.bf16 %v4527, %v4798
  %v4818 = vmul.bf16 %v4530, %v4798
  %v4819 = vmul.bf16 %v4533, %v4799
  %v4820 = vmul.bf16 %v4536, %v4799
  %v4821 = vmul.bf16 %v4539, %v4800
  %v4822 = vmul.bf16 %v4542, %v4800
  %v4823 = vmul.bf16 %v4545, %v4801
  %v4824 = vmul.bf16 %v4548, %v4801
  %v4825 = vmul.bf16 %v4551, %v4802
  %v4826 = vmul.bf16 %v4554, %v4802
  %v4827 = vmul.bf16 %v4557, %v4803
  %v4828 = vmul.bf16 %v4560, %v4803
  %v4829 = vmul.bf16 %v4563, %v4804
  %v4830 = vmul.bf16 %v4566, %v4804
  %v4831 = vmul.bf16 %v4569, %v4805
  %v4832 = vmul.bf16 %v4572, %v4805
  %v4833 = vmul.bf16 %v4575, %v4806
  %v4834 = vmul.bf16 %v4578, %v4806
  %v4835 = vmul.bf16 %v4581, %v4807
  %v4836 = vmul.bf16 %v4584, %v4807
  %v4837 = vmul.bf16 %v4587, %v4808
  %v4838 = vmul.bf16 %v4590, %v4808
  %v4839 = vmul.bf16 %v4593, %v4809
  %v4840 = vmul.bf16 %v4596, %v4809
  %v4841 = vmul.bf16 %v4599, %v4810
  %v4842 = vmul.bf16 %v4602, %v4810
  %4843 = vmatprep.subr.bf16.mxu0 %v4812
  %4844 = vmatpush1.bf16.xpose.msra.mxu0 %v4811
  %4845 = vmatprep.subr.bf16.mxu0 %v4814
  %4846 = vmatpush1.bf16.xpose.msra.mxu0 %v4813
  %4847 = vmatprep.subr.bf16.mxu0 %v4816
  %4848 = vmatpush1.bf16.xpose.msra.mxu0 %v4815
  %4849 = vmatprep.subr.bf16.mxu0 %v4818
  %4850 = vmatpush1.bf16.xpose.msra.mxu0 %v4817
  %4851 = vmatprep.subr.bf16.mxu0 %v4820
  %4852 = vmatpush1.bf16.xpose.msra.mxu0 %v4819
  %4853 = vmatprep.subr.bf16.mxu0 %v4822
  %4854 = vmatpush1.bf16.xpose.msra.mxu0 %v4821
  %4855 = vmatprep.subr.bf16.mxu0 %v4824
  %4856 = vmatpush1.bf16.xpose.msra.mxu0 %v4823
  %4857 = vmatprep.subr.bf16.mxu0 %v4826
  %4858 = vmatpush1.bf16.xpose.msra.mxu0 %v4825
  %4859 = vmatprep.subr.bf16.mxu0 %v4828
  %4860 = vmatpush1.bf16.xpose.msra.mxu0 %v4827
  %4861 = vmatprep.subr.bf16.mxu0 %v4830
  %4862 = vmatpush1.bf16.xpose.msra.mxu0 %v4829
  %4863 = vmatprep.subr.bf16.mxu0 %v4832
  %4864 = vmatpush1.bf16.xpose.msra.mxu0 %v4831
  %4865 = vmatprep.subr.bf16.mxu0 %v4834
  %4866 = vmatpush1.bf16.xpose.msra.mxu0 %v4833
  %4867 = vmatprep.subr.bf16.mxu0 %v4836
  %4868 = vmatpush1.bf16.xpose.msra.mxu0 %v4835
  %4869 = vmatprep.subr.bf16.mxu0 %v4838
  %4870 = vmatpush1.bf16.xpose.msra.mxu0 %v4837
  %4871 = vmatprep.subr.bf16.mxu0 %v4840
  %4872 = vmatpush1.bf16.xpose.msra.mxu0 %v4839
  %4873 = vmatprep.subr.bf16.mxu0 %v4842
  %4874 = vmatpush1.bf16.xpose.msra.mxu0 %v4841
  %4875 = vmatprep.mubr.bf16.mxu0 %v585
  %4876 = vmatmul.mubr.bf16.gmra.mrb[0].mxu0 %v584
  %v4877 = vpop.f32.mrb[0].mxu0
  %v4878 = vadd.f32 0.0, %v4877
  %v4879 = vpop.f32.mrb[0].mxu0
  %v4880 = vadd.f32 0.0, %v4879
  %v4881 = vpop.f32.mrb[0].mxu0
  %v4882 = vpop.f32.mrb[0].mxu0
  %4883 = vdwg.mxu0
  %4884 = vst [vmem:[#allocation2 + $0x10] sm:$0xf] %v4878
  %4885 = vst [vmem:[#allocation2 + $0x18] sm:$0xf] %v4880
  %v4888 = vrot.slane %v576, 2
  %v4889 = vrot.slane %v577, 2
  %4892 = vxpose.xlu0.c.b16.start [1/8] %v4888, 128
  %4893 = vxpose.xlu0.c.b16.cont [2/8] 0, 128
  %4894 = vxpose.xlu0.c.b16.cont [3/8] 0, 128
  %4895 = vxpose.xlu0.c.b16.cont [4/8] 0, 128
  %4896 = vxpose.xlu0.c.b16.cont [5/8] 0, 128
  %4897 = vxpose.xlu0.c.b16.cont [6/8] 0, 128
  %4898 = vxpose.xlu0.c.b16.cont [7/8] 0, 128
  %4899 = vxpose.xlu0.c.b16.end [8/8] 0, 128
  %v4900 = vpop.trf.xlu0
  %v4901 = vpop.trf.xlu0
  %v4902 = vpop.trf.xlu0
  %v4903 = vpop.trf.xlu0
  %v4904 = vpop.trf.xlu0
  %v4905 = vpop.trf.xlu0
  %v4906 = vpop.trf.xlu0
  %v4907 = vpop.trf.xlu0
  %4908 = vxpose.xlu0.c.b16.start [1/8] %v4889, 128
  %4909 = vxpose.xlu0.c.b16.cont [2/8] 0, 128
  %4910 = vxpose.xlu0.c.b16.cont [3/8] 0, 128
  %4911 = vxpose.xlu0.c.b16.cont [4/8] 0, 128
  %4912 = vxpose.xlu0.c.b16.cont [5/8] 0, 128
  %4913 = vxpose.xlu0.c.b16.cont [6/8] 0, 128
  %4914 = vxpose.xlu0.c.b16.cont [7/8] 0, 128
  %4915 = vxpose.xlu0.c.b16.end [8/8] 0, 128
  %v4916 = vpop.trf.xlu0
  %v4917 = vpop.trf.xlu0
  %v4918 = vpop.trf.xlu0
  %v4919 = vpop.trf.xlu0
  %v4920 = vpop.trf.xlu0
  %v4921 = vpop.trf.xlu0
  %v4922 = vpop.trf.xlu0
  %v4923 = vpop.trf.xlu0
  %v4926 = vrot.slane %v580, 2
  %v4927 = vrot.slane %v581, 2
  %v4929 = vsel %vm618, %v4900, 0
  %v4932 = vsel %vm618, %v4901, 0
  %v4935 = vsel %vm618, %v4902, 0
  %v4938 = vsel %vm618, %v4903, 0
  %v4941 = vsel %vm618, %v4904, 0
  %v4944 = vsel %vm618, %v4905, 0
  %v4947 = vsel %vm618, %v4906, 0
  %v4950 = vsel %vm618, %v4907, 0
  %v4953 = vsel %vm618, %v4916, 0
  %v4956 = vsel %vm618, %v4917, 0
  %v4959 = vsel %vm618, %v4918, 0
  %v4962 = vsel %vm618, %v4919, 0
  %v4965 = vsel %vm618, %v4920, 0
  %v4968 = vsel %vm618, %v4921, 0
  %v4971 = vsel %vm618, %v4922, 0
  %v4974 = vsel %vm618, %v4923, 0
  %v4977 = vsel %vm667, %v4926, 0
  %v4980 = vsel %vm667, %v4927, 0
  %4982 = vmatprep.subr.bf16.mxu0 %v4980
  %4983 = vmatpush1.bf16.msra.mxu0 %v4977
  %4984 = vmatprep.subr.bf16.mxu0 0
  %4985 = vmatpush1.bf16.msra.mxu0 0
  %4986 = vmatprep.subr.bf16.mxu0 0
  %4987 = vmatpush1.bf16.msra.mxu0 0
  %4988 = vmatprep.subr.bf16.mxu0 0
  %4989 = vmatpush1.bf16.msra.mxu0 0
  %4990 = vmatprep.subr.bf16.mxu0 0
  %4991 = vmatpush1.bf16.msra.mxu0 0
  %4992 = vmatprep.subr.bf16.mxu0 0
  %4993 = vmatpush1.bf16.msra.mxu0 0
  %4994 = vmatprep.subr.bf16.mxu0 0
  %4995 = vmatpush1.bf16.msra.mxu0 0
  %4996 = vmatprep.subr.bf16.mxu0 0
  %4997 = vmatpush1.bf16.msra.mxu0 0
  %4998 = vmatprep.subr.bf16.mxu0 0
  %4999 = vmatpush1.bf16.msra.mxu0 0
  %5000 = vmatprep.subr.bf16.mxu0 0
  %5001 = vmatpush1.bf16.msra.mxu0 0
  %5002 = vmatprep.subr.bf16.mxu0 0
  %5003 = vmatpush1.bf16.msra.mxu0 0
  %5004 = vmatprep.subr.bf16.mxu0 0
  %5005 = vmatpush1.bf16.msra.mxu0 0
  %5006 = vmatprep.subr.bf16.mxu0 0
  %5007 = vmatpush1.bf16.msra.mxu0 0
  %5008 = vmatprep.subr.bf16.mxu0 0
  %5009 = vmatpush1.bf16.msra.mxu0 0
  %5010 = vmatprep.subr.bf16.mxu0 0
  %5011 = vmatpush1.bf16.msra.mxu0 0
  %5012 = vmatprep.subr.bf16.mxu0 0
  %5013 = vmatpush1.bf16.msra.mxu0 0
  %5014 = vmatprep.mubr.bf16.mxu0 0
  %5015 = vmatmul.mubr.bf16.gmra.mrb[0].mxu0 %v4929
  %v5016 = vpop.f32.mrb[0].mxu0
  %v5017 = vadd.f32 0.0, %v5016
  %v5018 = vpop.f32.mrb[0].mxu0
  %v5019 = vadd.f32 0.0, %v5018
  %v5020 = vpop.f32.mrb[0].mxu0
  %v5021 = vadd.f32 0.0, %v5020
  %v5022 = vpop.f32.mrb[0].mxu0
  %v5023 = vadd.f32 0.0, %v5022
  %5024 = vmatprep.mubr.bf16.mxu0 0
  %5025 = vmatmul.mubr.bf16.gmra.mrb[0].mxu0 %v4932
  %v5026 = vpop.f32.mrb[0].mxu0
  %v5027 = vadd.f32 0.0, %v5026
  %v5028 = vpop.f32.mrb[0].mxu0
  %v5029 = vadd.f32 0.0, %v5028
  %v5030 = vpop.f32.mrb[0].mxu0
  %v5031 = vadd.f32 0.0, %v5030
  %v5032 = vpop.f32.mrb[0].mxu0
  %v5033 = vadd.f32 0.0, %v5032
  %5034 = vmatprep.mubr.bf16.mxu0 0
  %5035 = vmatmul.mubr.bf16.gmra.mrb[0].mxu0 %v4935
  %v5036 = vpop.f32.mrb[0].mxu0
  %v5037 = vadd.f32 0.0, %v5036
  %v5038 = vpop.f32.mrb[0].mxu0
  %v5039 = vadd.f32 0.0, %v5038
  %v5040 = vpop.f32.mrb[0].mxu0
  %v5041 = vadd.f32 0.0, %v5040
  %v5042 = vpop.f32.mrb[0].mxu0
  %v5043 = vadd.f32 0.0, %v5042
  %5044 = vmatprep.mubr.bf16.mxu0 0
  %5045 = vmatmul.mubr.bf16.gmra.mrb[0].mxu0 %v4938
  %v5046 = vpop.f32.mrb[0].mxu0
  %v5047 = vadd.f32 0.0, %v5046
  %v5048 = vpop.f32.mrb[0].mxu0
  %v5049 = vadd.f32 0.0, %v5048
  %v5050 = vpop.f32.mrb[0].mxu0
  %v5051 = vadd.f32 0.0, %v5050
  %v5052 = vpop.f32.mrb[0].mxu0
  %v5053 = vadd.f32 0.0, %v5052
  %5054 = vmatprep.mubr.bf16.mxu0 0
  %5055 = vmatmul.mubr.bf16.gmra.mrb[0].mxu0 %v4941
  %v5056 = vpop.f32.mrb[0].mxu0
  %v5057 = vadd.f32 0.0, %v5056
  %v5058 = vpop.f32.mrb[0].mxu0
  %v5059 = vadd.f32 0.0, %v5058
  %v5060 = vpop.f32.mrb[0].mxu0
  %v5061 = vadd.f32 0.0, %v5060
  %v5062 = vpop.f32.mrb[0].mxu0
  %v5063 = vadd.f32 0.0, %v5062
  %5064 = vmatprep.mubr.bf16.mxu0 0
  %5065 = vmatmul.mubr.bf16.gmra.mrb[0].mxu0 %v4944
  %v5066 = vpop.f32.mrb[0].mxu0
  %v5067 = vadd.f32 0.0, %v5066
  %v5068 = vpop.f32.mrb[0].mxu0
  %v5069 = vadd.f32 0.0, %v5068
  %v5070 = vpop.f32.mrb[0].mxu0
  %v5071 = vadd.f32 0.0, %v5070
  %v5072 = vpop.f32.mrb[0].mxu0
  %v5073 = vadd.f32 0.0, %v5072
  %5074 = vmatprep.mubr.bf16.mxu0 0
  %5075 = vmatmul.mubr.bf16.gmra.mrb[0].mxu0 %v4947
  %v5076 = vpop.f32.mrb[0].mxu0
  %v5077 = vadd.f32 0.0, %v5076
  %v5078 = vpop.f32.mrb[0].mxu0
  %v5079 = vadd.f32 0.0, %v5078
  %v5080 = vpop.f32.mrb[0].mxu0
  %v5081 = vadd.f32 0.0, %v5080
  %v5082 = vpop.f32.mrb[0].mxu0
  %v5083 = vadd.f32 0.0, %v5082
  %5084 = vmatprep.mubr.bf16.mxu0 0
  %5085 = vmatmul.mubr.bf16.gmra.mrb[0].mxu0 %v4950
  %v5086 = vpop.f32.mrb[0].mxu0
  %v5087 = vadd.f32 0.0, %v5086
  %v5088 = vpop.f32.mrb[0].mxu0
  %v5089 = vadd.f32 0.0, %v5088
  %v5090 = vpop.f32.mrb[0].mxu0
  %v5091 = vadd.f32 0.0, %v5090
  %v5092 = vpop.f32.mrb[0].mxu0
  %v5093 = vadd.f32 0.0, %v5092
  %5094 = vmatprep.mubr.bf16.mxu0 0
  %5095 = vmatmul.mubr.bf16.gmra.mrb[0].mxu0 %v4953
  %v5096 = vpop.f32.mrb[0].mxu0
  %v5097 = vadd.f32 0.0, %v5096
  %v5098 = vpop.f32.mrb[0].mxu0
  %v5099 = vadd.f32 0.0, %v5098
  %v5100 = vpop.f32.mrb[0].mxu0
  %v5101 = vadd.f32 0.0, %v5100
  %v5102 = vpop.f32.mrb[0].mxu0
  %v5103 = vadd.f32 0.0, %v5102
  %5104 = vmatprep.mubr.bf16.mxu0 0
  %5105 = vmatmul.mubr.bf16.gmra.mrb[0].mxu0 %v4956
  %v5106 = vpop.f32.mrb[0].mxu0
  %v5107 = vadd.f32 0.0, %v5106
  %v5108 = vpop.f32.mrb[0].mxu0
  %v5109 = vadd.f32 0.0, %v5108
  %v5110 = vpop.f32.mrb[0].mxu0
  %v5111 = vadd.f32 0.0, %v5110
  %v5112 = vpop.f32.mrb[0].mxu0
  %v5113 = vadd.f32 0.0, %v5112
  %5114 = vmatprep.mubr.bf16.mxu0 0
  %5115 = vmatmul.mubr.bf16.gmra.mrb[0].mxu0 %v4959
  %v5116 = vpop.f32.mrb[0].mxu0
  %v5117 = vadd.f32 0.0, %v5116
  %v5118 = vpop.f32.mrb[0].mxu0
  %v5119 = vadd.f32 0.0, %v5118
  %v5120 = vpop.f32.mrb[0].mxu0
  %v5121 = vadd.f32 0.0, %v5120
  %v5122 = vpop.f32.mrb[0].mxu0
  %v5123 = vadd.f32 0.0, %v5122
  %5124 = vmatprep.mubr.bf16.mxu0 0
  %5125 = vmatmul.mubr.bf16.gmra.mrb[0].mxu0 %v4962
  %v5126 = vpop.f32.mrb[0].mxu0
  %v5127 = vadd.f32 0.0, %v5126
  %v5128 = vpop.f32.mrb[0].mxu0
  %v5129 = vadd.f32 0.0, %v5128
  %v5130 = vpop.f32.mrb[0].mxu0
  %v5131 = vadd.f32 0.0, %v5130
  %v5132 = vpop.f32.mrb[0].mxu0
  %v5133 = vadd.f32 0.0, %v5132
  %5134 = vmatprep.mubr.bf16.mxu0 0
  %5135 = vmatmul.mubr.bf16.gmra.mrb[0].mxu0 %v4965
  %v5136 = vpop.f32.mrb[0].mxu0
  %v5137 = vadd.f32 0.0, %v5136
  %v5138 = vpop.f32.mrb[0].mxu0
  %v5139 = vadd.f32 0.0, %v5138
  %v5140 = vpop.f32.mrb[0].mxu0
  %v5141 = vadd.f32 0.0, %v5140
  %v5142 = vpop.f32.mrb[0].mxu0
  %v5143 = vadd.f32 0.0, %v5142
  %5144 = vmatprep.mubr.bf16.mxu0 0
  %5145 = vmatmul.mubr.bf16.gmra.mrb[0].mxu0 %v4968
  %v5146 = vpop.f32.mrb[0].mxu0
  %v5147 = vadd.f32 0.0, %v5146
  %v5148 = vpop.f32.mrb[0].mxu0
  %v5149 = vadd.f32 0.0, %v5148
  %v5150 = vpop.f32.mrb[0].mxu0
  %v5151 = vadd.f32 0.0, %v5150
  %v5152 = vpop.f32.mrb[0].mxu0
  %v5153 = vadd.f32 0.0, %v5152
  %5154 = vmatprep.mubr.bf16.mxu0 0
  %5155 = vmatmul.mubr.bf16.gmra.mrb[0].mxu0 %v4971
  %v5156 = vpop.f32.mrb[0].mxu0
  %v5157 = vadd.f32 0.0, %v5156
  %v5158 = vpop.f32.mrb[0].mxu0
  %v5159 = vadd.f32 0.0, %v5158
  %v5160 = vpop.f32.mrb[0].mxu0
  %v5161 = vadd.f32 0.0, %v5160
  %v5162 = vpop.f32.mrb[0].mxu0
  %v5163 = vadd.f32 0.0, %v5162
  %5164 = vmatprep.mubr.bf16.mxu0 0
  %5165 = vmatmul.mubr.bf16.gmra.mrb[0].mxu0 %v4974
  %v5166 = vpop.f32.mrb[0].mxu0
  %v5167 = vadd.f32 0.0, %v5166
  %v5168 = vpop.f32.mrb[0].mxu0
  %v5169 = vadd.f32 0.0, %v5168
  %v5170 = vpop.f32.mrb[0].mxu0
  %v5171 = vadd.f32 0.0, %v5170
  %v5172 = vpop.f32.mrb[0].mxu0
  %v5173 = vadd.f32 0.0, %v5172
  %5174 = vdwg.mxu0
  %v5175 = vmax.f32 %v5017, %v5019
  %5176 = vmax.xlane.f32.xlu0 %v5175
  %v5177 = vpop.xlane.xlu0 %5176
  %v5178 = vmax.f32 %v5021, %v5023
  %5179 = vmax.xlane.f32.xlu0 %v5178
  %v5180 = vpop.xlane.xlu0 %5179
  %v5181 = vmax.f32 %v5027, %v5029
  %5182 = vmax.xlane.f32.xlu0 %v5181
  %v5183 = vpop.xlane.xlu0 %5182
  %v5184 = vmax.f32 %v5031, %v5033
  %5185 = vmax.xlane.f32.xlu0 %v5184
  %v5186 = vpop.xlane.xlu0 %5185
  %v5187 = vmax.f32 %v5037, %v5039
  %5188 = vmax.xlane.f32.xlu0 %v5187
  %v5189 = vpop.xlane.xlu0 %5188
  %v5190 = vmax.f32 %v5041, %v5043
  %5191 = vmax.xlane.f32.xlu0 %v5190
  %v5192 = vpop.xlane.xlu0 %5191
  %v5193 = vmax.f32 %v5047, %v5049
  %5194 = vmax.xlane.f32.xlu0 %v5193
  %v5195 = vpop.xlane.xlu0 %5194
  %v5196 = vmax.f32 %v5051, %v5053
  %5197 = vmax.xlane.f32.xlu0 %v5196
  %v5198 = vpop.xlane.xlu0 %5197
  %v5199 = vmax.f32 %v5057, %v5059
  %5200 = vmax.xlane.f32.xlu0 %v5199
  %v5201 = vpop.xlane.xlu0 %5200
  %v5202 = vmax.f32 %v5061, %v5063
  %5203 = vmax.xlane.f32.xlu0 %v5202
  %v5204 = vpop.xlane.xlu0 %5203
  %v5205 = vmax.f32 %v5067, %v5069
  %5206 = vmax.xlane.f32.xlu0 %v5205
  %v5207 = vpop.xlane.xlu0 %5206
  %v5208 = vmax.f32 %v5071, %v5073
  %5209 = vmax.xlane.f32.xlu0 %v5208
  %v5210 = vpop.xlane.xlu0 %5209
  %v5211 = vmax.f32 %v5077, %v5079
  %5212 = vmax.xlane.f32.xlu0 %v5211
  %v5213 = vpop.xlane.xlu0 %5212
  %v5214 = vmax.f32 %v5081, %v5083
  %5215 = vmax.xlane.f32.xlu0 %v5214
  %v5216 = vpop.xlane.xlu0 %5215
  %v5217 = vmax.f32 %v5087, %v5089
  %5218 = vmax.xlane.f32.xlu0 %v5217
  %v5219 = vpop.xlane.xlu0 %5218
  %v5220 = vmax.f32 %v5091, %v5093
  %5221 = vmax.xlane.f32.xlu0 %v5220
  %v5222 = vpop.xlane.xlu0 %5221
  %v5223 = vmax.f32 %v5097, %v5099
  %5224 = vmax.xlane.f32.xlu0 %v5223
  %v5225 = vpop.xlane.xlu0 %5224
  %v5226 = vmax.f32 %v5101, %v5103
  %5227 = vmax.xlane.f32.xlu0 %v5226
  %v5228 = vpop.xlane.xlu0 %5227
  %v5229 = vmax.f32 %v5107, %v5109
  %5230 = vmax.xlane.f32.xlu0 %v5229
  %v5231 = vpop.xlane.xlu0 %5230
  %v5232 = vmax.f32 %v5111, %v5113
  %5233 = vmax.xlane.f32.xlu0 %v5232
  %v5234 = vpop.xlane.xlu0 %5233
  %v5235 = vmax.f32 %v5117, %v5119
  %5236 = vmax.xlane.f32.xlu0 %v5235
  %v5237 = vpop.xlane.xlu0 %5236
  %v5238 = vmax.f32 %v5121, %v5123
  %5239 = vmax.xlane.f32.xlu0 %v5238
  %v5240 = vpop.xlane.xlu0 %5239
  %v5241 = vmax.f32 %v5127, %v5129
  %5242 = vmax.xlane.f32.xlu0 %v5241
  %v5243 = vpop.xlane.xlu0 %5242
  %v5244 = vmax.f32 %v5131, %v5133
  %5245 = vmax.xlane.f32.xlu0 %v5244
  %v5246 = vpop.xlane.xlu0 %5245
  %v5247 = vmax.f32 %v5137, %v5139
  %5248 = vmax.xlane.f32.xlu0 %v5247
  %v5249 = vpop.xlane.xlu0 %5248
  %v5250 = vmax.f32 %v5141, %v5143
  %5251 = vmax.xlane.f32.xlu0 %v5250
  %v5252 = vpop.xlane.xlu0 %5251
  %v5253 = vmax.f32 %v5147, %v5149
  %5254 = vmax.xlane.f32.xlu0 %v5253
  %v5255 = vpop.xlane.xlu0 %5254
  %v5256 = vmax.f32 %v5151, %v5153
  %5257 = vmax.xlane.f32.xlu0 %v5256
  %v5258 = vpop.xlane.xlu0 %5257
  %v5259 = vmax.f32 %v5157, %v5159
  %5260 = vmax.xlane.f32.xlu0 %v5259
  %v5261 = vpop.xlane.xlu0 %5260
  %v5262 = vmax.f32 %v5161, %v5163
  %5263 = vmax.xlane.f32.xlu0 %v5262
  %v5264 = vpop.xlane.xlu0 %5263
  %v5265 = vmax.f32 %v5167, %v5169
  %5266 = vmax.xlane.f32.xlu0 %v5265
  %v5267 = vpop.xlane.xlu0 %5266
  %v5268 = vmax.f32 %v5171, %v5173
  %5269 = vmax.xlane.f32.xlu0 %v5268
  %v5270 = vpop.xlane.xlu0 %5269
  %v5271 = vsub.f32 %v5017, %v5177
  %v5272 = vsub.f32 %v5019, %v5177
  %v5273 = vsub.f32 %v5021, %v5180
  %v5274 = vsub.f32 %v5023, %v5180
  %v5275 = vsub.f32 %v5027, %v5183
  %v5276 = vsub.f32 %v5029, %v5183
  %v5277 = vsub.f32 %v5031, %v5186
  %v5278 = vsub.f32 %v5033, %v5186
  %v5279 = vsub.f32 %v5037, %v5189
  %v5280 = vsub.f32 %v5039, %v5189
  %v5281 = vsub.f32 %v5041, %v5192
  %v5282 = vsub.f32 %v5043, %v5192
  %v5283 = vsub.f32 %v5047, %v5195
  %v5284 = vsub.f32 %v5049, %v5195
  %v5285 = vsub.f32 %v5051, %v5198
  %v5286 = vsub.f32 %v5053, %v5198
  %v5287 = vsub.f32 %v5057, %v5201
  %v5288 = vsub.f32 %v5059, %v5201
  %v5289 = vsub.f32 %v5061, %v5204
  %v5290 = vsub.f32 %v5063, %v5204
  %v5291 = vsub.f32 %v5067, %v5207
  %v5292 = vsub.f32 %v5069, %v5207
  %v5293 = vsub.f32 %v5071, %v5210
  %v5294 = vsub.f32 %v5073, %v5210
  %v5295 = vsub.f32 %v5077, %v5213
  %v5296 = vsub.f32 %v5079, %v5213
  %v5297 = vsub.f32 %v5081, %v5216
  %v5298 = vsub.f32 %v5083, %v5216
  %v5299 = vsub.f32 %v5087, %v5219
  %v5300 = vsub.f32 %v5089, %v5219
  %v5301 = vsub.f32 %v5091, %v5222
  %v5302 = vsub.f32 %v5093, %v5222
  %v5303 = vsub.f32 %v5097, %v5225
  %v5304 = vsub.f32 %v5099, %v5225
  %v5305 = vsub.f32 %v5101, %v5228
  %v5306 = vsub.f32 %v5103, %v5228
  %v5307 = vsub.f32 %v5107, %v5231
  %v5308 = vsub.f32 %v5109, %v5231
  %v5309 = vsub.f32 %v5111, %v5234
  %v5310 = vsub.f32 %v5113, %v5234
  %v5311 = vsub.f32 %v5117, %v5237
  %v5312 = vsub.f32 %v5119, %v5237
  %v5313 = vsub.f32 %v5121, %v5240
  %v5314 = vsub.f32 %v5123, %v5240
  %v5315 = vsub.f32 %v5127, %v5243
  %v5316 = vsub.f32 %v5129, %v5243
  %v5317 = vsub.f32 %v5131, %v5246
  %v5318 = vsub.f32 %v5133, %v5246
  %v5319 = vsub.f32 %v5137, %v5249
  %v5320 = vsub.f32 %v5139, %v5249
  %v5321 = vsub.f32 %v5141, %v5252
  %v5322 = vsub.f32 %v5143, %v5252
  %v5323 = vsub.f32 %v5147, %v5255
  %v5324 = vsub.f32 %v5149, %v5255
  %v5325 = vsub.f32 %v5151, %v5258
  %v5326 = vsub.f32 %v5153, %v5258
  %v5327 = vsub.f32 %v5157, %v5261
  %v5328 = vsub.f32 %v5159, %v5261
  %v5329 = vsub.f32 %v5161, %v5264
  %v5330 = vsub.f32 %v5163, %v5264
  %v5331 = vsub.f32 %v5167, %v5267
  %v5332 = vsub.f32 %v5169, %v5267
  %v5333 = vsub.f32 %v5171, %v5270
  %v5334 = vsub.f32 %v5173, %v5270
  %v5335 = vpack.c.bf16 %v5273, %v5271
  %v5336 = vpack.c.bf16 %v5274, %v5272
  %v5337 = vpack.c.bf16 %v5277, %v5275
  %v5338 = vpack.c.bf16 %v5278, %v5276
  %v5339 = vpack.c.bf16 %v5281, %v5279
  %v5340 = vpack.c.bf16 %v5282, %v5280
  %v5341 = vpack.c.bf16 %v5285, %v5283
  %v5342 = vpack.c.bf16 %v5286, %v5284
  %v5343 = vpack.c.bf16 %v5289, %v5287
  %v5344 = vpack.c.bf16 %v5290, %v5288
  %v5345 = vpack.c.bf16 %v5293, %v5291
  %v5346 = vpack.c.bf16 %v5294, %v5292
  %v5347 = vpack.c.bf16 %v5297, %v5295
  %v5348 = vpack.c.bf16 %v5298, %v5296
  %v5349 = vpack.c.bf16 %v5301, %v5299
  %v5350 = vpack.c.bf16 %v5302, %v5300
  %v5351 = vpack.c.bf16 %v5305, %v5303
  %v5352 = vpack.c.bf16 %v5306, %v5304
  %v5353 = vpack.c.bf16 %v5309, %v5307
  %v5354 = vpack.c.bf16 %v5310, %v5308
  %v5355 = vpack.c.bf16 %v5313, %v5311
  %v5356 = vpack.c.bf16 %v5314, %v5312
  %v5357 = vpack.c.bf16 %v5317, %v5315
  %v5358 = vpack.c.bf16 %v5318, %v5316
  %v5359 = vpack.c.bf16 %v5321, %v5319
  %v5360 = vpack.c.bf16 %v5322, %v5320
  %v5361 = vpack.c.bf16 %v5325, %v5323
  %v5362 = vpack.c.bf16 %v5326, %v5324
  %v5363 = vpack.c.bf16 %v5329, %v5327
  %v5364 = vpack.c.bf16 %v5330, %v5328
  %v5365 = vpack.c.bf16 %v5333, %v5331
  %v5366 = vpack.c.bf16 %v5334, %v5332
  %v5368 = vmul.bf16 %v5335, 1069105081
  %v5369 = vpow.bf16.pop %v5368
  %v5371 = vmul.bf16 %v5336, 1069105081
  %v5372 = vpow.bf16.pop %v5371
  %v5374 = vmul.bf16 %v5337, 1069105081
  %v5375 = vpow.bf16.pop %v5374
  %v5377 = vmul.bf16 %v5338, 1069105081
  %v5378 = vpow.bf16.pop %v5377
  %v5380 = vmul.bf16 %v5339, 1069105081
  %v5381 = vpow.bf16.pop %v5380
  %v5383 = vmul.bf16 %v5340, 1069105081
  %v5384 = vpow.bf16.pop %v5383
  %v5386 = vmul.bf16 %v5341, 1069105081
  %v5387 = vpow.bf16.pop %v5386
  %v5389 = vmul.bf16 %v5342, 1069105081
  %v5390 = vpow.bf16.pop %v5389
  %v5392 = vmul.bf16 %v5343, 1069105081
  %v5393 = vpow.bf16.pop %v5392
  %v5395 = vmul.bf16 %v5344, 1069105081
  %v5396 = vpow.bf16.pop %v5395
  %v5398 = vmul.bf16 %v5345, 1069105081
  %v5399 = vpow.bf16.pop %v5398
  %v5401 = vmul.bf16 %v5346, 1069105081
  %v5402 = vpow.bf16.pop %v5401
  %v5404 = vmul.bf16 %v5347, 1069105081
  %v5405 = vpow.bf16.pop %v5404
  %v5407 = vmul.bf16 %v5348, 1069105081
  %v5408 = vpow.bf16.pop %v5407
  %v5410 = vmul.bf16 %v5349, 1069105081
  %v5411 = vpow.bf16.pop %v5410
  %v5413 = vmul.bf16 %v5350, 1069105081
  %v5414 = vpow.bf16.pop %v5413
  %v5416 = vmul.bf16 %v5351, 1069105081
  %v5417 = vpow.bf16.pop %v5416
  %v5419 = vmul.bf16 %v5352, 1069105081
  %v5420 = vpow.bf16.pop %v5419
  %v5422 = vmul.bf16 %v5353, 1069105081
  %v5423 = vpow.bf16.pop %v5422
  %v5425 = vmul.bf16 %v5354, 1069105081
  %v5426 = vpow.bf16.pop %v5425
  %v5428 = vmul.bf16 %v5355, 1069105081
  %v5429 = vpow.bf16.pop %v5428
  %v5431 = vmul.bf16 %v5356, 1069105081
  %v5432 = vpow.bf16.pop %v5431
  %v5434 = vmul.bf16 %v5357, 1069105081
  %v5435 = vpow.bf16.pop %v5434
  %v5437 = vmul.bf16 %v5358, 1069105081
  %v5438 = vpow.bf16.pop %v5437
  %v5440 = vmul.bf16 %v5359, 1069105081
  %v5441 = vpow.bf16.pop %v5440
  %v5443 = vmul.bf16 %v5360, 1069105081
  %v5444 = vpow.bf16.pop %v5443
  %v5446 = vmul.bf16 %v5361, 1069105081
  %v5447 = vpow.bf16.pop %v5446
  %v5449 = vmul.bf16 %v5362, 1069105081
  %v5450 = vpow.bf16.pop %v5449
  %v5452 = vmul.bf16 %v5363, 1069105081
  %v5453 = vpow.bf16.pop %v5452
  %v5455 = vmul.bf16 %v5364, 1069105081
  %v5456 = vpow.bf16.pop %v5455
  %v5458 = vmul.bf16 %v5365, 1069105081
  %v5459 = vpow.bf16.pop %v5458
  %v5461 = vmul.bf16 %v5366, 1069105081
  %v5462 = vpow.bf16.pop %v5461
  %v5463 = vunpack.c.l.bf16 %v5369
  %v5464 = vunpack.c.l.bf16 %v5372
  %v5465 = vunpack.c.h.bf16 %v5369
  %v5466 = vunpack.c.h.bf16 %v5372
  %v5467 = vunpack.c.l.bf16 %v5375
  %v5468 = vunpack.c.l.bf16 %v5378
  %v5469 = vunpack.c.h.bf16 %v5375
  %v5470 = vunpack.c.h.bf16 %v5378
  %v5471 = vunpack.c.l.bf16 %v5381
  %v5472 = vunpack.c.l.bf16 %v5384
  %v5473 = vunpack.c.h.bf16 %v5381
  %v5474 = vunpack.c.h.bf16 %v5384
  %v5475 = vunpack.c.l.bf16 %v5387
  %v5476 = vunpack.c.l.bf16 %v5390
  %v5477 = vunpack.c.h.bf16 %v5387
  %v5478 = vunpack.c.h.bf16 %v5390
  %v5479 = vunpack.c.l.bf16 %v5393
  %v5480 = vunpack.c.l.bf16 %v5396
  %v5481 = vunpack.c.h.bf16 %v5393
  %v5482 = vunpack.c.h.bf16 %v5396
  %v5483 = vunpack.c.l.bf16 %v5399
  %v5484 = vunpack.c.l.bf16 %v5402
  %v5485 = vunpack.c.h.bf16 %v5399
  %v5486 = vunpack.c.h.bf16 %v5402
  %v5487 = vunpack.c.l.bf16 %v5405
  %v5488 = vunpack.c.l.bf16 %v5408
  %v5489 = vunpack.c.h.bf16 %v5405
  %v5490 = vunpack.c.h.bf16 %v5408
  %v5491 = vunpack.c.l.bf16 %v5411
  %v5492 = vunpack.c.l.bf16 %v5414
  %v5493 = vunpack.c.h.bf16 %v5411
  %v5494 = vunpack.c.h.bf16 %v5414
  %v5495 = vunpack.c.l.bf16 %v5417
  %v5496 = vunpack.c.l.bf16 %v5420
  %v5497 = vunpack.c.h.bf16 %v5417
  %v5498 = vunpack.c.h.bf16 %v5420
  %v5499 = vunpack.c.l.bf16 %v5423
  %v5500 = vunpack.c.l.bf16 %v5426
  %v5501 = vunpack.c.h.bf16 %v5423
  %v5502 = vunpack.c.h.bf16 %v5426
  %v5503 = vunpack.c.l.bf16 %v5429
  %v5504 = vunpack.c.l.bf16 %v5432
  %v5505 = vunpack.c.h.bf16 %v5429
  %v5506 = vunpack.c.h.bf16 %v5432
  %v5507 = vunpack.c.l.bf16 %v5435
  %v5508 = vunpack.c.l.bf16 %v5438
  %v5509 = vunpack.c.h.bf16 %v5435
  %v5510 = vunpack.c.h.bf16 %v5438
  %v5511 = vunpack.c.l.bf16 %v5441
  %v5512 = vunpack.c.l.bf16 %v5444
  %v5513 = vunpack.c.h.bf16 %v5441
  %v5514 = vunpack.c.h.bf16 %v5444
  %v5515 = vunpack.c.l.bf16 %v5447
  %v5516 = vunpack.c.l.bf16 %v5450
  %v5517 = vunpack.c.h.bf16 %v5447
  %v5518 = vunpack.c.h.bf16 %v5450
  %v5519 = vunpack.c.l.bf16 %v5453
  %v5520 = vunpack.c.l.bf16 %v5456
  %v5521 = vunpack.c.h.bf16 %v5453
  %v5522 = vunpack.c.h.bf16 %v5456
  %v5523 = vunpack.c.l.bf16 %v5459
  %v5524 = vunpack.c.l.bf16 %v5462
  %v5525 = vunpack.c.h.bf16 %v5459
  %v5526 = vunpack.c.h.bf16 %v5462
  %v5527 = vadd.f32 %v5463, %v5464
  %5528 = vadd.xlane.f32.xlu0 %v5527
  %v5529 = vpop.xlane.xlu0 %5528
  %v5530 = vadd.f32 %v5465, %v5466
  %5531 = vadd.xlane.f32.xlu0 %v5530
  %v5532 = vpop.xlane.xlu0 %5531
  %v5533 = vadd.f32 %v5467, %v5468
  %5534 = vadd.xlane.f32.xlu0 %v5533
  %v5535 = vpop.xlane.xlu0 %5534
  %v5536 = vadd.f32 %v5469, %v5470
  %5537 = vadd.xlane.f32.xlu0 %v5536
  %v5538 = vpop.xlane.xlu0 %5537
  %v5539 = vadd.f32 %v5471, %v5472
  %5540 = vadd.xlane.f32.xlu0 %v5539
  %v5541 = vpop.xlane.xlu0 %5540
  %v5542 = vadd.f32 %v5473, %v5474
  %5543 = vadd.xlane.f32.xlu0 %v5542
  %v5544 = vpop.xlane.xlu0 %5543
  %v5545 = vadd.f32 %v5475, %v5476
  %5546 = vadd.xlane.f32.xlu0 %v5545
  %v5547 = vpop.xlane.xlu0 %5546
  %v5548 = vadd.f32 %v5477, %v5478
  %5549 = vadd.xlane.f32.xlu0 %v5548
  %v5550 = vpop.xlane.xlu0 %5549
  %v5551 = vadd.f32 %v5479, %v5480
  %5552 = vadd.xlane.f32.xlu0 %v5551
  %v5553 = vpop.xlane.xlu0 %5552
  %v5554 = vadd.f32 %v5481, %v5482
  %5555 = vadd.xlane.f32.xlu0 %v5554
  %v5556 = vpop.xlane.xlu0 %5555
  %v5557 = vadd.f32 %v5483, %v5484
  %5558 = vadd.xlane.f32.xlu0 %v5557
  %v5559 = vpop.xlane.xlu0 %5558
  %v5560 = vadd.f32 %v5485, %v5486
  %5561 = vadd.xlane.f32.xlu0 %v5560
  %v5562 = vpop.xlane.xlu0 %5561
  %v5563 = vadd.f32 %v5487, %v5488
  %5564 = vadd.xlane.f32.xlu0 %v5563
  %v5565 = vpop.xlane.xlu0 %5564
  %v5566 = vadd.f32 %v5489, %v5490
  %5567 = vadd.xlane.f32.xlu0 %v5566
  %v5568 = vpop.xlane.xlu0 %5567
  %v5569 = vadd.f32 %v5491, %v5492
  %5570 = vadd.xlane.f32.xlu0 %v5569
  %v5571 = vpop.xlane.xlu0 %5570
  %v5572 = vadd.f32 %v5493, %v5494
  %5573 = vadd.xlane.f32.xlu0 %v5572
  %v5574 = vpop.xlane.xlu0 %5573
  %v5575 = vadd.f32 %v5495, %v5496
  %5576 = vadd.xlane.f32.xlu0 %v5575
  %v5577 = vpop.xlane.xlu0 %5576
  %v5578 = vadd.f32 %v5497, %v5498
  %5579 = vadd.xlane.f32.xlu0 %v5578
  %v5580 = vpop.xlane.xlu0 %5579
  %v5581 = vadd.f32 %v5499, %v5500
  %5582 = vadd.xlane.f32.xlu0 %v5581
  %v5583 = vpop.xlane.xlu0 %5582
  %v5584 = vadd.f32 %v5501, %v5502
  %5585 = vadd.xlane.f32.xlu0 %v5584
  %v5586 = vpop.xlane.xlu0 %5585
  %v5587 = vadd.f32 %v5503, %v5504
  %5588 = vadd.xlane.f32.xlu0 %v5587
  %v5589 = vpop.xlane.xlu0 %5588
  %v5590 = vadd.f32 %v5505, %v5506
  %5591 = vadd.xlane.f32.xlu0 %v5590
  %v5592 = vpop.xlane.xlu0 %5591
  %v5593 = vadd.f32 %v5507, %v5508
  %5594 = vadd.xlane.f32.xlu0 %v5593
  %v5595 = vpop.xlane.xlu0 %5594
  %v5596 = vadd.f32 %v5509, %v5510
  %5597 = vadd.xlane.f32.xlu0 %v5596
  %v5598 = vpop.xlane.xlu0 %5597
  %v5599 = vadd.f32 %v5511, %v5512
  %5600 = vadd.xlane.f32.xlu0 %v5599
  %v5601 = vpop.xlane.xlu0 %5600
  %v5602 = vadd.f32 %v5513, %v5514
  %5603 = vadd.xlane.f32.xlu0 %v5602
  %v5604 = vpop.xlane.xlu0 %5603
  %v5605 = vadd.f32 %v5515, %v5516
  %5606 = vadd.xlane.f32.xlu0 %v5605
  %v5607 = vpop.xlane.xlu0 %5606
  %v5608 = vadd.f32 %v5517, %v5518
  %5609 = vadd.xlane.f32.xlu0 %v5608
  %v5610 = vpop.xlane.xlu0 %5609
  %v5611 = vadd.f32 %v5519, %v5520
  %5612 = vadd.xlane.f32.xlu0 %v5611
  %v5613 = vpop.xlane.xlu0 %5612
  %v5614 = vadd.f32 %v5521, %v5522
  %5615 = vadd.xlane.f32.xlu0 %v5614
  %v5616 = vpop.xlane.xlu0 %5615
  %v5617 = vadd.f32 %v5523, %v5524
  %5618 = vadd.xlane.f32.xlu0 %v5617
  %v5619 = vpop.xlane.xlu0 %5618
  %v5620 = vadd.f32 %v5525, %v5526
  %5621 = vadd.xlane.f32.xlu0 %v5620
  %v5622 = vpop.xlane.xlu0 %5621
  %v5623 = vrcp.pop %v5529
  %v5624 = vrcp.pop %v5532
  %v5625 = vrcp.pop %v5535
  %v5626 = vrcp.pop %v5538
  %v5627 = vrcp.pop %v5541
  %v5628 = vrcp.pop %v5544
  %v5629 = vrcp.pop %v5547
  %v5630 = vrcp.pop %v5550
  %v5631 = vrcp.pop %v5553
  %v5632 = vrcp.pop %v5556
  %v5633 = vrcp.pop %v5559
  %v5634 = vrcp.pop %v5562
  %v5635 = vrcp.pop %v5565
  %v5636 = vrcp.pop %v5568
  %v5637 = vrcp.pop %v5571
  %v5638 = vrcp.pop %v5574
  %v5639 = vrcp.pop %v5577
  %v5640 = vrcp.pop %v5580
  %v5641 = vrcp.pop %v5583
  %v5642 = vrcp.pop %v5586
  %v5643 = vrcp.pop %v5589
  %v5644 = vrcp.pop %v5592
  %v5645 = vrcp.pop %v5595
  %v5646 = vrcp.pop %v5598
  %v5647 = vrcp.pop %v5601
  %v5648 = vrcp.pop %v5604
  %v5649 = vrcp.pop %v5607
  %v5650 = vrcp.pop %v5610
  %v5651 = vrcp.pop %v5613
  %v5652 = vrcp.pop %v5616
  %v5653 = vrcp.pop %v5619
  %v5654 = vrcp.pop %v5622
  %v5655 = vpack.c.bf16 %v5624, %v5623
  %v5656 = vpack.c.bf16 %v5626, %v5625
  %v5657 = vpack.c.bf16 %v5628, %v5627
  %v5658 = vpack.c.bf16 %v5630, %v5629
  %v5659 = vpack.c.bf16 %v5632, %v5631
  %v5660 = vpack.c.bf16 %v5634, %v5633
  %v5661 = vpack.c.bf16 %v5636, %v5635
  %v5662 = vpack.c.bf16 %v5638, %v5637
  %v5663 = vpack.c.bf16 %v5640, %v5639
  %v5664 = vpack.c.bf16 %v5642, %v5641
  %v5665 = vpack.c.bf16 %v5644, %v5643
  %v5666 = vpack.c.bf16 %v5646, %v5645
  %v5667 = vpack.c.bf16 %v5648, %v5647
  %v5668 = vpack.c.bf16 %v5650, %v5649
  %v5669 = vpack.c.bf16 %v5652, %v5651
  %v5670 = vpack.c.bf16 %v5654, %v5653
  %v5671 = vmul.bf16 %v5369, %v5655
  %v5672 = vmul.bf16 %v5372, %v5655
  %v5673 = vmul.bf16 %v5375, %v5656
  %v5674 = vmul.bf16 %v5378, %v5656
  %v5675 = vmul.bf16 %v5381, %v5657
  %v5676 = vmul.bf16 %v5384, %v5657
  %v5677 = vmul.bf16 %v5387, %v5658
  %v5678 = vmul.bf16 %v5390, %v5658
  %v5679 = vmul.bf16 %v5393, %v5659
  %v5680 = vmul.bf16 %v5396, %v5659
  %v5681 = vmul.bf16 %v5399, %v5660
  %v5682 = vmul.bf16 %v5402, %v5660
  %v5683 = vmul.bf16 %v5405, %v5661
  %v5684 = vmul.bf16 %v5408, %v5661
  %v5685 = vmul.bf16 %v5411, %v5662
  %v5686 = vmul.bf16 %v5414, %v5662
  %v5687 = vmul.bf16 %v5417, %v5663
  %v5688 = vmul.bf16 %v5420, %v5663
  %v5689 = vmul.bf16 %v5423, %v5664
  %v5690 = vmul.bf16 %v5426, %v5664
  %v5691 = vmul.bf16 %v5429, %v5665
  %v5692 = vmul.bf16 %v5432, %v5665
  %v5693 = vmul.bf16 %v5435, %v5666
  %v5694 = vmul.bf16 %v5438, %v5666
  %v5695 = vmul.bf16 %v5441, %v5667
  %v5696 = vmul.bf16 %v5444, %v5667
  %v5697 = vmul.bf16 %v5447, %v5668
  %v5698 = vmul.bf16 %v5450, %v5668
  %v5699 = vmul.bf16 %v5453, %v5669
  %v5700 = vmul.bf16 %v5456, %v5669
  %v5701 = vmul.bf16 %v5459, %v5670
  %v5702 = vmul.bf16 %v5462, %v5670
  %v5705 = vrot.slane %v584, 2
  %v5706 = vrot.slane %v585, 2
  %5709 = vmatprep.subr.bf16.mxu0 %v5672
  %5710 = vmatpush1.bf16.xpose.msra.mxu0 %v5671
  %5711 = vmatprep.subr.bf16.mxu0 %v5674
  %5712 = vmatpush1.bf16.xpose.msra.mxu0 %v5673
  %5713 = vmatprep.subr.bf16.mxu0 %v5676
  %5714 = vmatpush1.bf16.xpose.msra.mxu0 %v5675
  %5715 = vmatprep.subr.bf16.mxu0 %v5678
  %5716 = vmatpush1.bf16.xpose.msra.mxu0 %v5677
  %5717 = vmatprep.subr.bf16.mxu0 %v5680
  %5718 = vmatpush1.bf16.xpose.msra.mxu0 %v5679
  %5719 = vmatprep.subr.bf16.mxu0 %v5682
  %5720 = vmatpush1.bf16.xpose.msra.mxu0 %v5681
  %5721 = vmatprep.subr.bf16.mxu0 %v5684
  %5722 = vmatpush1.bf16.xpose.msra.mxu0 %v5683
  %5723 = vmatprep.subr.bf16.mxu0 %v5686
  %5724 = vmatpush1.bf16.xpose.msra.mxu0 %v5685
  %5725 = vmatprep.subr.bf16.mxu0 %v5688
  %5726 = vmatpush1.bf16.xpose.msra.mxu0 %v5687
  %5727 = vmatprep.subr.bf16.mxu0 %v5690
  %5728 = vmatpush1.bf16.xpose.msra.mxu0 %v5689
  %5729 = vmatprep.subr.bf16.mxu0 %v5692
  %5730 = vmatpush1.bf16.xpose.msra.mxu0 %v5691
  %5731 = vmatprep.subr.bf16.mxu0 %v5694
  %5732 = vmatpush1.bf16.xpose.msra.mxu0 %v5693
  %5733 = vmatprep.subr.bf16.mxu0 %v5696
  %5734 = vmatpush1.bf16.xpose.msra.mxu0 %v5695
  %5735 = vmatprep.subr.bf16.mxu0 %v5698
  %5736 = vmatpush1.bf16.xpose.msra.mxu0 %v5697
  %5737 = vmatprep.subr.bf16.mxu0 %v5700
  %5738 = vmatpush1.bf16.xpose.msra.mxu0 %v5699
  %5739 = vmatprep.subr.bf16.mxu0 %v5702
  %5740 = vmatpush1.bf16.xpose.msra.mxu0 %v5701
  %5741 = vmatprep.mubr.bf16.mxu0 %v5706
  %5742 = vmatmul.mubr.bf16.gmra.mrb[0].mxu0 %v5705
  %v5743 = vpop.f32.mrb[0].mxu0
  %v5744 = vadd.f32 0.0, %v5743
  %v5745 = vpop.f32.mrb[0].mxu0
  %v5746 = vadd.f32 0.0, %v5745
  %v5747 = vpop.f32.mrb[0].mxu0
  %v5748 = vpop.f32.mrb[0].mxu0
  %5749 = vdwg.mxu0
  %v5752 = vrot.slane %v5744, 4
  %v5753 = vrot.slane %v5746, 4
  %5756 = vst [vmem:[#allocation2 + $0x10] sm:$0xf0] %v5752
  %5757 = vst [vmem:[#allocation2 + $0x18] sm:$0xf0] %v5753
  %v5758 = vrot.slane %v576, 4
  %v5759 = vrot.slane %v577, 4
  %5762 = vxpose.xlu0.c.b16.start [1/8] %v5758, 128
  %5763 = vxpose.xlu0.c.b16.cont [2/8] 0, 128
  %5764 = vxpose.xlu0.c.b16.cont [3/8] 0, 128
  %5765 = vxpose.xlu0.c.b16.cont [4/8] 0, 128
  %5766 = vxpose.xlu0.c.b16.cont [5/8] 0, 128
  %5767 = vxpose.xlu0.c.b16.cont [6/8] 0, 128
  %5768 = vxpose.xlu0.c.b16.cont [7/8] 0, 128
  %5769 = vxpose.xlu0.c.b16.end [8/8] 0, 128
  %v5770 = vpop.trf.xlu0
  %v5771 = vpop.trf.xlu0
  %v5772 = vpop.trf.xlu0
  %v5773 = vpop.trf.xlu0
  %v5774 = vpop.trf.xlu0
  %v5775 = vpop.trf.xlu0
  %v5776 = vpop.trf.xlu0
  %v5777 = vpop.trf.xlu0
  %5778 = vxpose.xlu0.c.b16.start [1/8] %v5759, 128
  %5779 = vxpose.xlu0.c.b16.cont [2/8] 0, 128
  %5780 = vxpose.xlu0.c.b16.cont [3/8] 0, 128
  %5781 = vxpose.xlu0.c.b16.cont [4/8] 0, 128
  %5782 = vxpose.xlu0.c.b16.cont [5/8] 0, 128
  %5783 = vxpose.xlu0.c.b16.cont [6/8] 0, 128
  %5784 = vxpose.xlu0.c.b16.cont [7/8] 0, 128
  %5785 = vxpose.xlu0.c.b16.end [8/8] 0, 128
  %v5786 = vpop.trf.xlu0
  %v5787 = vpop.trf.xlu0
  %v5788 = vpop.trf.xlu0
  %v5789 = vpop.trf.xlu0
  %v5790 = vpop.trf.xlu0
  %v5791 = vpop.trf.xlu0
  %v5792 = vpop.trf.xlu0
  %v5793 = vpop.trf.xlu0
  %v5794 = vrot.slane %v580, 4
  %v5795 = vrot.slane %v581, 4
  %v5797 = vsel %vm618, %v5770, 0
  %v5800 = vsel %vm618, %v5771, 0
  %v5803 = vsel %vm618, %v5772, 0
  %v5806 = vsel %vm618, %v5773, 0
  %v5809 = vsel %vm618, %v5774, 0
  %v5812 = vsel %vm618, %v5775, 0
  %v5815 = vsel %vm618, %v5776, 0
  %v5818 = vsel %vm618, %v5777, 0
  %v5821 = vsel %vm618, %v5786, 0
  %v5824 = vsel %vm618, %v5787, 0
  %v5827 = vsel %vm618, %v5788, 0
  %v5830 = vsel %vm618, %v5789, 0
  %v5833 = vsel %vm618, %v5790, 0
  %v5836 = vsel %vm618, %v5791, 0
  %v5839 = vsel %vm618, %v5792, 0
  %v5842 = vsel %vm618, %v5793, 0
  %v5845 = vsel %vm667, %v5794, 0
  %v5848 = vsel %vm667, %v5795, 0
  %5850 = vmatprep.subr.bf16.mxu0 %v5848
  %5851 = vmatpush1.bf16.msra.mxu0 %v5845
  %5852 = vmatprep.subr.bf16.mxu0 0
  %5853 = vmatpush1.bf16.msra.mxu0 0
  %5854 = vmatprep.subr.bf16.mxu0 0
  %5855 = vmatpush1.bf16.msra.mxu0 0
  %5856 = vmatprep.subr.bf16.mxu0 0
  %5857 = vmatpush1.bf16.msra.mxu0 0
  %5858 = vmatprep.subr.bf16.mxu0 0
  %5859 = vmatpush1.bf16.msra.mxu0 0
  %5860 = vmatprep.subr.bf16.mxu0 0
  %5861 = vmatpush1.bf16.msra.mxu0 0
  %5862 = vmatprep.subr.bf16.mxu0 0
  %5863 = vmatpush1.bf16.msra.mxu0 0
  %5864 = vmatprep.subr.bf16.mxu0 0
  %5865 = vmatpush1.bf16.msra.mxu0 0
  %5866 = vmatprep.subr.bf16.mxu0 0
  %5867 = vmatpush1.bf16.msra.mxu0 0
  %5868 = vmatprep.subr.bf16.mxu0 0
  %5869 = vmatpush1.bf16.msra.mxu0 0
  %5870 = vmatprep.subr.bf16.mxu0 0
  %5871 = vmatpush1.bf16.msra.mxu0 0
  %5872 = vmatprep.subr.bf16.mxu0 0
  %5873 = vmatpush1.bf16.msra.mxu0 0
  %5874 = vmatprep.subr.bf16.mxu0 0
  %5875 = vmatpush1.bf16.msra.mxu0 0
  %5876 = vmatprep.subr.bf16.mxu0 0
  %5877 = vmatpush1.bf16.msra.mxu0 0
  %5878 = vmatprep.subr.bf16.mxu0 0
  %5879 = vmatpush1.bf16.msra.mxu0 0
  %5880 = vmatprep.subr.bf16.mxu0 0
  %5881 = vmatpush1.bf16.msra.mxu0 0
  %5882 = vmatprep.mubr.bf16.mxu0 0
  %5883 = vmatmul.mubr.bf16.gmra.mrb[0].mxu0 %v5797
  %v5884 = vpop.f32.mrb[0].mxu0
  %v5885 = vadd.f32 0.0, %v5884
  %v5886 = vpop.f32.mrb[0].mxu0
  %v5887 = vadd.f32 0.0, %v5886
  %v5888 = vpop.f32.mrb[0].mxu0
  %v5889 = vadd.f32 0.0, %v5888
  %v5890 = vpop.f32.mrb[0].mxu0
  %v5891 = vadd.f32 0.0, %v5890
  %5892 = vmatprep.mubr.bf16.mxu0 0
  %5893 = vmatmul.mubr.bf16.gmra.mrb[0].mxu0 %v5800
  %v5894 = vpop.f32.mrb[0].mxu0
  %v5895 = vadd.f32 0.0, %v5894
  %v5896 = vpop.f32.mrb[0].mxu0
  %v5897 = vadd.f32 0.0, %v5896
  %v5898 = vpop.f32.mrb[0].mxu0
  %v5899 = vadd.f32 0.0, %v5898
  %v5900 = vpop.f32.mrb[0].mxu0
  %v5901 = vadd.f32 0.0, %v5900
  %5902 = vmatprep.mubr.bf16.mxu0 0
  %5903 = vmatmul.mubr.bf16.gmra.mrb[0].mxu0 %v5803
  %v5904 = vpop.f32.mrb[0].mxu0
  %v5905 = vadd.f32 0.0, %v5904
  %v5906 = vpop.f32.mrb[0].mxu0
  %v5907 = vadd.f32 0.0, %v5906
  %v5908 = vpop.f32.mrb[0].mxu0
  %v5909 = vadd.f32 0.0, %v5908
  %v5910 = vpop.f32.mrb[0].mxu0
  %v5911 = vadd.f32 0.0, %v5910
  %5912 = vmatprep.mubr.bf16.mxu0 0
  %5913 = vmatmul.mubr.bf16.gmra.mrb[0].mxu0 %v5806
  %v5914 = vpop.f32.mrb[0].mxu0
  %v5915 = vadd.f32 0.0, %v5914
  %v5916 = vpop.f32.mrb[0].mxu0
  %v5917 = vadd.f32 0.0, %v5916
  %v5918 = vpop.f32.mrb[0].mxu0
  %v5919 = vadd.f32 0.0, %v5918
  %v5920 = vpop.f32.mrb[0].mxu0
  %v5921 = vadd.f32 0.0, %v5920
  %5922 = vmatprep.mubr.bf16.mxu0 0
  %5923 = vmatmul.mubr.bf16.gmra.mrb[0].mxu0 %v5809
  %v5924 = vpop.f32.mrb[0].mxu0
  %v5925 = vadd.f32 0.0, %v5924
  %v5926 = vpop.f32.mrb[0].mxu0
  %v5927 = vadd.f32 0.0, %v5926
  %v5928 = vpop.f32.mrb[0].mxu0
  %v5929 = vadd.f32 0.0, %v5928
  %v5930 = vpop.f32.mrb[0].mxu0
  %v5931 = vadd.f32 0.0, %v5930
  %5932 = vmatprep.mubr.bf16.mxu0 0
  %5933 = vmatmul.mubr.bf16.gmra.mrb[0].mxu0 %v5812
  %v5934 = vpop.f32.mrb[0].mxu0
  %v5935 = vadd.f32 0.0, %v5934
  %v5936 = vpop.f32.mrb[0].mxu0
  %v5937 = vadd.f32 0.0, %v5936
  %v5938 = vpop.f32.mrb[0].mxu0
  %v5939 = vadd.f32 0.0, %v5938
  %v5940 = vpop.f32.mrb[0].mxu0
  %v5941 = vadd.f32 0.0, %v5940
  %5942 = vmatprep.mubr.bf16.mxu0 0
  %5943 = vmatmul.mubr.bf16.gmra.mrb[0].mxu0 %v5815
  %v5944 = vpop.f32.mrb[0].mxu0
  %v5945 = vadd.f32 0.0, %v5944
  %v5946 = vpop.f32.mrb[0].mxu0
  %v5947 = vadd.f32 0.0, %v5946
  %v5948 = vpop.f32.mrb[0].mxu0
  %v5949 = vadd.f32 0.0, %v5948
  %v5950 = vpop.f32.mrb[0].mxu0
  %v5951 = vadd.f32 0.0, %v5950
  %5952 = vmatprep.mubr.bf16.mxu0 0
  %5953 = vmatmul.mubr.bf16.gmra.mrb[0].mxu0 %v5818
  %v5954 = vpop.f32.mrb[0].mxu0
  %v5955 = vadd.f32 0.0, %v5954
  %v5956 = vpop.f32.mrb[0].mxu0
  %v5957 = vadd.f32 0.0, %v5956
  %v5958 = vpop.f32.mrb[0].mxu0
  %v5959 = vadd.f32 0.0, %v5958
  %v5960 = vpop.f32.mrb[0].mxu0
  %v5961 = vadd.f32 0.0, %v5960
  %5962 = vmatprep.mubr.bf16.mxu0 0
  %5963 = vmatmul.mubr.bf16.gmra.mrb[0].mxu0 %v5821
  %v5964 = vpop.f32.mrb[0].mxu0
  %v5965 = vadd.f32 0.0, %v5964
  %v5966 = vpop.f32.mrb[0].mxu0
  %v5967 = vadd.f32 0.0, %v5966
  %v5968 = vpop.f32.mrb[0].mxu0
  %v5969 = vadd.f32 0.0, %v5968
  %v5970 = vpop.f32.mrb[0].mxu0
  %v5971 = vadd.f32 0.0, %v5970
  %5972 = vmatprep.mubr.bf16.mxu0 0
  %5973 = vmatmul.mubr.bf16.gmra.mrb[0].mxu0 %v5824
  %v5974 = vpop.f32.mrb[0].mxu0
  %v5975 = vadd.f32 0.0, %v5974
  %v5976 = vpop.f32.mrb[0].mxu0
  %v5977 = vadd.f32 0.0, %v5976
  %v5978 = vpop.f32.mrb[0].mxu0
  %v5979 = vadd.f32 0.0, %v5978
  %v5980 = vpop.f32.mrb[0].mxu0
  %v5981 = vadd.f32 0.0, %v5980
  %5982 = vmatprep.mubr.bf16.mxu0 0
  %5983 = vmatmul.mubr.bf16.gmra.mrb[0].mxu0 %v5827
  %v5984 = vpop.f32.mrb[0].mxu0
  %v5985 = vadd.f32 0.0, %v5984
  %v5986 = vpop.f32.mrb[0].mxu0
  %v5987 = vadd.f32 0.0, %v5986
  %v5988 = vpop.f32.mrb[0].mxu0
  %v5989 = vadd.f32 0.0, %v5988
  %v5990 = vpop.f32.mrb[0].mxu0
  %v5991 = vadd.f32 0.0, %v5990
  %5992 = vmatprep.mubr.bf16.mxu0 0
  %5993 = vmatmul.mubr.bf16.gmra.mrb[0].mxu0 %v5830
  %v5994 = vpop.f32.mrb[0].mxu0
  %v5995 = vadd.f32 0.0, %v5994
  %v5996 = vpop.f32.mrb[0].mxu0
  %v5997 = vadd.f32 0.0, %v5996
  %v5998 = vpop.f32.mrb[0].mxu0
  %v5999 = vadd.f32 0.0, %v5998
  %v6000 = vpop.f32.mrb[0].mxu0
  %v6001 = vadd.f32 0.0, %v6000
  %6002 = vmatprep.mubr.bf16.mxu0 0
  %6003 = vmatmul.mubr.bf16.gmra.mrb[0].mxu0 %v5833
  %v6004 = vpop.f32.mrb[0].mxu0
  %v6005 = vadd.f32 0.0, %v6004
  %v6006 = vpop.f32.mrb[0].mxu0
  %v6007 = vadd.f32 0.0, %v6006
  %v6008 = vpop.f32.mrb[0].mxu0
  %v6009 = vadd.f32 0.0, %v6008
  %v6010 = vpop.f32.mrb[0].mxu0
  %v6011 = vadd.f32 0.0, %v6010
  %6012 = vmatprep.mubr.bf16.mxu0 0
  %6013 = vmatmul.mubr.bf16.gmra.mrb[0].mxu0 %v5836
  %v6014 = vpop.f32.mrb[0].mxu0
  %v6015 = vadd.f32 0.0, %v6014
  %v6016 = vpop.f32.mrb[0].mxu0
  %v6017 = vadd.f32 0.0, %v6016
  %v6018 = vpop.f32.mrb[0].mxu0
  %v6019 = vadd.f32 0.0, %v6018
  %v6020 = vpop.f32.mrb[0].mxu0
  %v6021 = vadd.f32 0.0, %v6020
  %6022 = vmatprep.mubr.bf16.mxu0 0
  %6023 = vmatmul.mubr.bf16.gmra.mrb[0].mxu0 %v5839
  %v6024 = vpop.f32.mrb[0].mxu0
  %v6025 = vadd.f32 0.0, %v6024
  %v6026 = vpop.f32.mrb[0].mxu0
  %v6027 = vadd.f32 0.0, %v6026
  %v6028 = vpop.f32.mrb[0].mxu0
  %v6029 = vadd.f32 0.0, %v6028
  %v6030 = vpop.f32.mrb[0].mxu0
  %v6031 = vadd.f32 0.0, %v6030
  %6032 = vmatprep.mubr.bf16.mxu0 0
  %6033 = vmatmul.mubr.bf16.gmra.mrb[0].mxu0 %v5842
  %v6034 = vpop.f32.mrb[0].mxu0
  %v6035 = vadd.f32 0.0, %v6034
  %v6036 = vpop.f32.mrb[0].mxu0
  %v6037 = vadd.f32 0.0, %v6036
  %v6038 = vpop.f32.mrb[0].mxu0
  %v6039 = vadd.f32 0.0, %v6038
  %v6040 = vpop.f32.mrb[0].mxu0
  %v6041 = vadd.f32 0.0, %v6040
  %6042 = vdwg.mxu0
  %v6043 = vmax.f32 %v5885, %v5887
  %6044 = vmax.xlane.f32.xlu0 %v6043
  %v6045 = vpop.xlane.xlu0 %6044
  %v6046 = vmax.f32 %v5889, %v5891
  %6047 = vmax.xlane.f32.xlu0 %v6046
  %v6048 = vpop.xlane.xlu0 %6047
  %v6049 = vmax.f32 %v5895, %v5897
  %6050 = vmax.xlane.f32.xlu0 %v6049
  %v6051 = vpop.xlane.xlu0 %6050
  %v6052 = vmax.f32 %v5899, %v5901
  %6053 = vmax.xlane.f32.xlu0 %v6052
  %v6054 = vpop.xlane.xlu0 %6053
  %v6055 = vmax.f32 %v5905, %v5907
  %6056 = vmax.xlane.f32.xlu0 %v6055
  %v6057 = vpop.xlane.xlu0 %6056
  %v6058 = vmax.f32 %v5909, %v5911
  %6059 = vmax.xlane.f32.xlu0 %v6058
  %v6060 = vpop.xlane.xlu0 %6059
  %v6061 = vmax.f32 %v5915, %v5917
  %6062 = vmax.xlane.f32.xlu0 %v6061
  %v6063 = vpop.xlane.xlu0 %6062
  %v6064 = vmax.f32 %v5919, %v5921
  %6065 = vmax.xlane.f32.xlu0 %v6064
  %v6066 = vpop.xlane.xlu0 %6065
  %v6067 = vmax.f32 %v5925, %v5927
  %6068 = vmax.xlane.f32.xlu0 %v6067
  %v6069 = vpop.xlane.xlu0 %6068
  %v6070 = vmax.f32 %v5929, %v5931
  %6071 = vmax.xlane.f32.xlu0 %v6070
  %v6072 = vpop.xlane.xlu0 %6071
  %v6073 = vmax.f32 %v5935, %v5937
  %6074 = vmax.xlane.f32.xlu0 %v6073
  %v6075 = vpop.xlane.xlu0 %6074
  %v6076 = vmax.f32 %v5939, %v5941
  %6077 = vmax.xlane.f32.xlu0 %v6076
  %v6078 = vpop.xlane.xlu0 %6077
  %v6079 = vmax.f32 %v5945, %v5947
  %6080 = vmax.xlane.f32.xlu0 %v6079
  %v6081 = vpop.xlane.xlu0 %6080
  %v6082 = vmax.f32 %v5949, %v5951
  %6083 = vmax.xlane.f32.xlu0 %v6082
  %v6084 = vpop.xlane.xlu0 %6083
  %v6085 = vmax.f32 %v5955, %v5957
  %6086 = vmax.xlane.f32.xlu0 %v6085
  %v6087 = vpop.xlane.xlu0 %6086
  %v6088 = vmax.f32 %v5959, %v5961
  %6089 = vmax.xlane.f32.xlu0 %v6088
  %v6090 = vpop.xlane.xlu0 %6089
  %v6091 = vmax.f32 %v5965, %v5967
  %6092 = vmax.xlane.f32.xlu0 %v6091
  %v6093 = vpop.xlane.xlu0 %6092
  %v6094 = vmax.f32 %v5969, %v5971
  %6095 = vmax.xlane.f32.xlu0 %v6094
  %v6096 = vpop.xlane.xlu0 %6095
  %v6097 = vmax.f32 %v5975, %v5977
  %6098 = vmax.xlane.f32.xlu0 %v6097
  %v6099 = vpop.xlane.xlu0 %6098
  %v6100 = vmax.f32 %v5979, %v5981
  %6101 = vmax.xlane.f32.xlu0 %v6100
  %v6102 = vpop.xlane.xlu0 %6101
  %v6103 = vmax.f32 %v5985, %v5987
  %6104 = vmax.xlane.f32.xlu0 %v6103
  %v6105 = vpop.xlane.xlu0 %6104
  %v6106 = vmax.f32 %v5989, %v5991
  %6107 = vmax.xlane.f32.xlu0 %v6106
  %v6108 = vpop.xlane.xlu0 %6107
  %v6109 = vmax.f32 %v5995, %v5997
  %6110 = vmax.xlane.f32.xlu0 %v6109
  %v6111 = vpop.xlane.xlu0 %6110
  %v6112 = vmax.f32 %v5999, %v6001
  %6113 = vmax.xlane.f32.xlu0 %v6112
  %v6114 = vpop.xlane.xlu0 %6113
  %v6115 = vmax.f32 %v6005, %v6007
  %6116 = vmax.xlane.f32.xlu0 %v6115
  %v6117 = vpop.xlane.xlu0 %6116
  %v6118 = vmax.f32 %v6009, %v6011
  %6119 = vmax.xlane.f32.xlu0 %v6118
  %v6120 = vpop.xlane.xlu0 %6119
  %v6121 = vmax.f32 %v6015, %v6017
  %6122 = vmax.xlane.f32.xlu0 %v6121
  %v6123 = vpop.xlane.xlu0 %6122
  %v6124 = vmax.f32 %v6019, %v6021
  %6125 = vmax.xlane.f32.xlu0 %v6124
  %v6126 = vpop.xlane.xlu0 %6125
  %v6127 = vmax.f32 %v6025, %v6027
  %6128 = vmax.xlane.f32.xlu0 %v6127
  %v6129 = vpop.xlane.xlu0 %6128
  %v6130 = vmax.f32 %v6029, %v6031
  %6131 = vmax.xlane.f32.xlu0 %v6130
  %v6132 = vpop.xlane.xlu0 %6131
  %v6133 = vmax.f32 %v6035, %v6037
  %6134 = vmax.xlane.f32.xlu0 %v6133
  %v6135 = vpop.xlane.xlu0 %6134
  %v6136 = vmax.f32 %v6039, %v6041
  %6137 = vmax.xlane.f32.xlu0 %v6136
  %v6138 = vpop.xlane.xlu0 %6137
  %v6139 = vsub.f32 %v5885, %v6045
  %v6140 = vsub.f32 %v5887, %v6045
  %v6141 = vsub.f32 %v5889, %v6048
  %v6142 = vsub.f32 %v5891, %v6048
  %v6143 = vsub.f32 %v5895, %v6051
  %v6144 = vsub.f32 %v5897, %v6051
  %v6145 = vsub.f32 %v5899, %v6054
  %v6146 = vsub.f32 %v5901, %v6054
  %v6147 = vsub.f32 %v5905, %v6057
  %v6148 = vsub.f32 %v5907, %v6057
  %v6149 = vsub.f32 %v5909, %v6060
  %v6150 = vsub.f32 %v5911, %v6060
  %v6151 = vsub.f32 %v5915, %v6063
  %v6152 = vsub.f32 %v5917, %v6063
  %v6153 = vsub.f32 %v5919, %v6066
  %v6154 = vsub.f32 %v5921, %v6066
  %v6155 = vsub.f32 %v5925, %v6069
  %v6156 = vsub.f32 %v5927, %v6069
  %v6157 = vsub.f32 %v5929, %v6072
  %v6158 = vsub.f32 %v5931, %v6072
  %v6159 = vsub.f32 %v5935, %v6075
  %v6160 = vsub.f32 %v5937, %v6075
  %v6161 = vsub.f32 %v5939, %v6078
  %v6162 = vsub.f32 %v5941, %v6078
  %v6163 = vsub.f32 %v5945, %v6081
  %v6164 = vsub.f32 %v5947, %v6081
  %v6165 = vsub.f32 %v5949, %v6084
  %v6166 = vsub.f32 %v5951, %v6084
  %v6167 = vsub.f32 %v5955, %v6087
  %v6168 = vsub.f32 %v5957, %v6087
  %v6169 = vsub.f32 %v5959, %v6090
  %v6170 = vsub.f32 %v5961, %v6090
  %v6171 = vsub.f32 %v5965, %v6093
  %v6172 = vsub.f32 %v5967, %v6093
  %v6173 = vsub.f32 %v5969, %v6096
  %v6174 = vsub.f32 %v5971, %v6096
  %v6175 = vsub.f32 %v5975, %v6099
  %v6176 = vsub.f32 %v5977, %v6099
  %v6177 = vsub.f32 %v5979, %v6102
  %v6178 = vsub.f32 %v5981, %v6102
  %v6179 = vsub.f32 %v5985, %v6105
  %v6180 = vsub.f32 %v5987, %v6105
  %v6181 = vsub.f32 %v5989, %v6108
  %v6182 = vsub.f32 %v5991, %v6108
  %v6183 = vsub.f32 %v5995, %v6111
  %v6184 = vsub.f32 %v5997, %v6111
  %v6185 = vsub.f32 %v5999, %v6114
  %v6186 = vsub.f32 %v6001, %v6114
  %v6187 = vsub.f32 %v6005, %v6117
  %v6188 = vsub.f32 %v6007, %v6117
  %v6189 = vsub.f32 %v6009, %v6120
  %v6190 = vsub.f32 %v6011, %v6120
  %v6191 = vsub.f32 %v6015, %v6123
  %v6192 = vsub.f32 %v6017, %v6123
  %v6193 = vsub.f32 %v6019, %v6126
  %v6194 = vsub.f32 %v6021, %v6126
  %v6195 = vsub.f32 %v6025, %v6129
  %v6196 = vsub.f32 %v6027, %v6129
  %v6197 = vsub.f32 %v6029, %v6132
  %v6198 = vsub.f32 %v6031, %v6132
  %v6199 = vsub.f32 %v6035, %v6135
  %v6200 = vsub.f32 %v6037, %v6135
  %v6201 = vsub.f32 %v6039, %v6138
  %v6202 = vsub.f32 %v6041, %v6138
  %v6203 = vpack.c.bf16 %v6141, %v6139
  %v6204 = vpack.c.bf16 %v6142, %v6140
  %v6205 = vpack.c.bf16 %v6145, %v6143
  %v6206 = vpack.c.bf16 %v6146, %v6144
  %v6207 = vpack.c.bf16 %v6149, %v6147
  %v6208 = vpack.c.bf16 %v6150, %v6148
  %v6209 = vpack.c.bf16 %v6153, %v6151
  %v6210 = vpack.c.bf16 %v6154, %v6152
  %v6211 = vpack.c.bf16 %v6157, %v6155
  %v6212 = vpack.c.bf16 %v6158, %v6156
  %v6213 = vpack.c.bf16 %v6161, %v6159
  %v6214 = vpack.c.bf16 %v6162, %v6160
  %v6215 = vpack.c.bf16 %v6165, %v6163
  %v6216 = vpack.c.bf16 %v6166, %v6164
  %v6217 = vpack.c.bf16 %v6169, %v6167
  %v6218 = vpack.c.bf16 %v6170, %v6168
  %v6219 = vpack.c.bf16 %v6173, %v6171
  %v6220 = vpack.c.bf16 %v6174, %v6172
  %v6221 = vpack.c.bf16 %v6177, %v6175
  %v6222 = vpack.c.bf16 %v6178, %v6176
  %v6223 = vpack.c.bf16 %v6181, %v6179
  %v6224 = vpack.c.bf16 %v6182, %v6180
  %v6225 = vpack.c.bf16 %v6185, %v6183
  %v6226 = vpack.c.bf16 %v6186, %v6184
  %v6227 = vpack.c.bf16 %v6189, %v6187
  %v6228 = vpack.c.bf16 %v6190, %v6188
  %v6229 = vpack.c.bf16 %v6193, %v6191
  %v6230 = vpack.c.bf16 %v6194, %v6192
  %v6231 = vpack.c.bf16 %v6197, %v6195
  %v6232 = vpack.c.bf16 %v6198, %v6196
  %v6233 = vpack.c.bf16 %v6201, %v6199
  %v6234 = vpack.c.bf16 %v6202, %v6200
  %v6236 = vmul.bf16 %v6203, 1069105081
  %v6237 = vpow.bf16.pop %v6236
  %v6239 = vmul.bf16 %v6204, 1069105081
  %v6240 = vpow.bf16.pop %v6239
  %v6242 = vmul.bf16 %v6205, 1069105081
  %v6243 = vpow.bf16.pop %v6242
  %v6245 = vmul.bf16 %v6206, 1069105081
  %v6246 = vpow.bf16.pop %v6245
  %v6248 = vmul.bf16 %v6207, 1069105081
  %v6249 = vpow.bf16.pop %v6248
  %v6251 = vmul.bf16 %v6208, 1069105081
  %v6252 = vpow.bf16.pop %v6251
  %v6254 = vmul.bf16 %v6209, 1069105081
  %v6255 = vpow.bf16.pop %v6254
  %v6257 = vmul.bf16 %v6210, 1069105081
  %v6258 = vpow.bf16.pop %v6257
  %v6260 = vmul.bf16 %v6211, 1069105081
  %v6261 = vpow.bf16.pop %v6260
  %v6263 = vmul.bf16 %v6212, 1069105081
  %v6264 = vpow.bf16.pop %v6263
  %v6266 = vmul.bf16 %v6213, 1069105081
  %v6267 = vpow.bf16.pop %v6266
  %v6269 = vmul.bf16 %v6214, 1069105081
  %v6270 = vpow.bf16.pop %v6269
  %v6272 = vmul.bf16 %v6215, 1069105081
  %v6273 = vpow.bf16.pop %v6272
  %v6275 = vmul.bf16 %v6216, 1069105081
  %v6276 = vpow.bf16.pop %v6275
  %v6278 = vmul.bf16 %v6217, 1069105081
  %v6279 = vpow.bf16.pop %v6278
  %v6281 = vmul.bf16 %v6218, 1069105081
  %v6282 = vpow.bf16.pop %v6281
  %v6284 = vmul.bf16 %v6219, 1069105081
  %v6285 = vpow.bf16.pop %v6284
  %v6287 = vmul.bf16 %v6220, 1069105081
  %v6288 = vpow.bf16.pop %v6287
  %v6290 = vmul.bf16 %v6221, 1069105081
  %v6291 = vpow.bf16.pop %v6290
  %v6293 = vmul.bf16 %v6222, 1069105081
  %v6294 = vpow.bf16.pop %v6293
  %v6296 = vmul.bf16 %v6223, 1069105081
  %v6297 = vpow.bf16.pop %v6296
  %v6299 = vmul.bf16 %v6224, 1069105081
  %v6300 = vpow.bf16.pop %v6299
  %v6302 = vmul.bf16 %v6225, 1069105081
  %v6303 = vpow.bf16.pop %v6302
  %v6305 = vmul.bf16 %v6226, 1069105081
  %v6306 = vpow.bf16.pop %v6305
  %v6308 = vmul.bf16 %v6227, 1069105081
  %v6309 = vpow.bf16.pop %v6308
  %v6311 = vmul.bf16 %v6228, 1069105081
  %v6312 = vpow.bf16.pop %v6311
  %v6314 = vmul.bf16 %v6229, 1069105081
  %v6315 = vpow.bf16.pop %v6314
  %v6317 = vmul.bf16 %v6230, 1069105081
  %v6318 = vpow.bf16.pop %v6317
  %v6320 = vmul.bf16 %v6231, 1069105081
  %v6321 = vpow.bf16.pop %v6320
  %v6323 = vmul.bf16 %v6232, 1069105081
  %v6324 = vpow.bf16.pop %v6323
  %v6326 = vmul.bf16 %v6233, 1069105081
  %v6327 = vpow.bf16.pop %v6326
  %v6329 = vmul.bf16 %v6234, 1069105081
  %v6330 = vpow.bf16.pop %v6329
  %v6331 = vunpack.c.l.bf16 %v6237
  %v6332 = vunpack.c.l.bf16 %v6240
  %v6333 = vunpack.c.h.bf16 %v6237
  %v6334 = vunpack.c.h.bf16 %v6240
  %v6335 = vunpack.c.l.bf16 %v6243
  %v6336 = vunpack.c.l.bf16 %v6246
  %v6337 = vunpack.c.h.bf16 %v6243
  %v6338 = vunpack.c.h.bf16 %v6246
  %v6339 = vunpack.c.l.bf16 %v6249
  %v6340 = vunpack.c.l.bf16 %v6252
  %v6341 = vunpack.c.h.bf16 %v6249
  %v6342 = vunpack.c.h.bf16 %v6252
  %v6343 = vunpack.c.l.bf16 %v6255
  %v6344 = vunpack.c.l.bf16 %v6258
  %v6345 = vunpack.c.h.bf16 %v6255
  %v6346 = vunpack.c.h.bf16 %v6258
  %v6347 = vunpack.c.l.bf16 %v6261
  %v6348 = vunpack.c.l.bf16 %v6264
  %v6349 = vunpack.c.h.bf16 %v6261
  %v6350 = vunpack.c.h.bf16 %v6264
  %v6351 = vunpack.c.l.bf16 %v6267
  %v6352 = vunpack.c.l.bf16 %v6270
  %v6353 = vunpack.c.h.bf16 %v6267
  %v6354 = vunpack.c.h.bf16 %v6270
  %v6355 = vunpack.c.l.bf16 %v6273
  %v6356 = vunpack.c.l.bf16 %v6276
  %v6357 = vunpack.c.h.bf16 %v6273
  %v6358 = vunpack.c.h.bf16 %v6276
  %v6359 = vunpack.c.l.bf16 %v6279
  %v6360 = vunpack.c.l.bf16 %v6282
  %v6361 = vunpack.c.h.bf16 %v6279
  %v6362 = vunpack.c.h.bf16 %v6282
  %v6363 = vunpack.c.l.bf16 %v6285
  %v6364 = vunpack.c.l.bf16 %v6288
  %v6365 = vunpack.c.h.bf16 %v6285
  %v6366 = vunpack.c.h.bf16 %v6288
  %v6367 = vunpack.c.l.bf16 %v6291
  %v6368 = vunpack.c.l.bf16 %v6294
  %v6369 = vunpack.c.h.bf16 %v6291
  %v6370 = vunpack.c.h.bf16 %v6294
  %v6371 = vunpack.c.l.bf16 %v6297
  %v6372 = vunpack.c.l.bf16 %v6300
  %v6373 = vunpack.c.h.bf16 %v6297
  %v6374 = vunpack.c.h.bf16 %v6300
  %v6375 = vunpack.c.l.bf16 %v6303
  %v6376 = vunpack.c.l.bf16 %v6306
  %v6377 = vunpack.c.h.bf16 %v6303
  %v6378 = vunpack.c.h.bf16 %v6306
  %v6379 = vunpack.c.l.bf16 %v6309
  %v6380 = vunpack.c.l.bf16 %v6312
  %v6381 = vunpack.c.h.bf16 %v6309
  %v6382 = vunpack.c.h.bf16 %v6312
  %v6383 = vunpack.c.l.bf16 %v6315
  %v6384 = vunpack.c.l.bf16 %v6318
  %v6385 = vunpack.c.h.bf16 %v6315
  %v6386 = vunpack.c.h.bf16 %v6318
  %v6387 = vunpack.c.l.bf16 %v6321
  %v6388 = vunpack.c.l.bf16 %v6324
  %v6389 = vunpack.c.h.bf16 %v6321
  %v6390 = vunpack.c.h.bf16 %v6324
  %v6391 = vunpack.c.l.bf16 %v6327
  %v6392 = vunpack.c.l.bf16 %v6330
  %v6393 = vunpack.c.h.bf16 %v6327
  %v6394 = vunpack.c.h.bf16 %v6330
  %v6395 = vadd.f32 %v6331, %v6332
  %6396 = vadd.xlane.f32.xlu0 %v6395
  %v6397 = vpop.xlane.xlu0 %6396
  %v6398 = vadd.f32 %v6333, %v6334
  %6399 = vadd.xlane.f32.xlu0 %v6398
  %v6400 = vpop.xlane.xlu0 %6399
  %v6401 = vadd.f32 %v6335, %v6336
  %6402 = vadd.xlane.f32.xlu0 %v6401
  %v6403 = vpop.xlane.xlu0 %6402
  %v6404 = vadd.f32 %v6337, %v6338
  %6405 = vadd.xlane.f32.xlu0 %v6404
  %v6406 = vpop.xlane.xlu0 %6405
  %v6407 = vadd.f32 %v6339, %v6340
  %6408 = vadd.xlane.f32.xlu0 %v6407
  %v6409 = vpop.xlane.xlu0 %6408
  %v6410 = vadd.f32 %v6341, %v6342
  %6411 = vadd.xlane.f32.xlu0 %v6410
  %v6412 = vpop.xlane.xlu0 %6411
  %v6413 = vadd.f32 %v6343, %v6344
  %6414 = vadd.xlane.f32.xlu0 %v6413
  %v6415 = vpop.xlane.xlu0 %6414
  %v6416 = vadd.f32 %v6345, %v6346
  %6417 = vadd.xlane.f32.xlu0 %v6416
  %v6418 = vpop.xlane.xlu0 %6417
  %v6419 = vadd.f32 %v6347, %v6348
  %6420 = vadd.xlane.f32.xlu0 %v6419
  %v6421 = vpop.xlane.xlu0 %6420
  %v6422 = vadd.f32 %v6349, %v6350
  %6423 = vadd.xlane.f32.xlu0 %v6422
  %v6424 = vpop.xlane.xlu0 %6423
  %v6425 = vadd.f32 %v6351, %v6352
  %6426 = vadd.xlane.f32.xlu0 %v6425
  %v6427 = vpop.xlane.xlu0 %6426
  %v6428 = vadd.f32 %v6353, %v6354
  %6429 = vadd.xlane.f32.xlu0 %v6428
  %v6430 = vpop.xlane.xlu0 %6429
  %v6431 = vadd.f32 %v6355, %v6356
  %6432 = vadd.xlane.f32.xlu0 %v6431
  %v6433 = vpop.xlane.xlu0 %6432
  %v6434 = vadd.f32 %v6357, %v6358
  %6435 = vadd.xlane.f32.xlu0 %v6434
  %v6436 = vpop.xlane.xlu0 %6435
  %v6437 = vadd.f32 %v6359, %v6360
  %6438 = vadd.xlane.f32.xlu0 %v6437
  %v6439 = vpop.xlane.xlu0 %6438
  %v6440 = vadd.f32 %v6361, %v6362
  %6441 = vadd.xlane.f32.xlu0 %v6440
  %v6442 = vpop.xlane.xlu0 %6441
  %v6443 = vadd.f32 %v6363, %v6364
  %6444 = vadd.xlane.f32.xlu0 %v6443
  %v6445 = vpop.xlane.xlu0 %6444
  %v6446 = vadd.f32 %v6365, %v6366
  %6447 = vadd.xlane.f32.xlu0 %v6446
  %v6448 = vpop.xlane.xlu0 %6447
  %v6449 = vadd.f32 %v6367, %v6368
  %6450 = vadd.xlane.f32.xlu0 %v6449
  %v6451 = vpop.xlane.xlu0 %6450
  %v6452 = vadd.f32 %v6369, %v6370
  %6453 = vadd.xlane.f32.xlu0 %v6452
  %v6454 = vpop.xlane.xlu0 %6453
  %v6455 = vadd.f32 %v6371, %v6372
  %6456 = vadd.xlane.f32.xlu0 %v6455
  %v6457 = vpop.xlane.xlu0 %6456
  %v6458 = vadd.f32 %v6373, %v6374
  %6459 = vadd.xlane.f32.xlu0 %v6458
  %v6460 = vpop.xlane.xlu0 %6459
  %v6461 = vadd.f32 %v6375, %v6376
  %6462 = vadd.xlane.f32.xlu0 %v6461
  %v6463 = vpop.xlane.xlu0 %6462
  %v6464 = vadd.f32 %v6377, %v6378
  %6465 = vadd.xlane.f32.xlu0 %v6464
  %v6466 = vpop.xlane.xlu0 %6465
  %v6467 = vadd.f32 %v6379, %v6380
  %6468 = vadd.xlane.f32.xlu0 %v6467
  %v6469 = vpop.xlane.xlu0 %6468
  %v6470 = vadd.f32 %v6381, %v6382
  %6471 = vadd.xlane.f32.xlu0 %v6470
  %v6472 = vpop.xlane.xlu0 %6471
  %v6473 = vadd.f32 %v6383, %v6384
  %6474 = vadd.xlane.f32.xlu0 %v6473
  %v6475 = vpop.xlane.xlu0 %6474
  %v6476 = vadd.f32 %v6385, %v6386
  %6477 = vadd.xlane.f32.xlu0 %v6476
  %v6478 = vpop.xlane.xlu0 %6477
  %v6479 = vadd.f32 %v6387, %v6388
  %6480 = vadd.xlane.f32.xlu0 %v6479
  %v6481 = vpop.xlane.xlu0 %6480
  %v6482 = vadd.f32 %v6389, %v6390
  %6483 = vadd.xlane.f32.xlu0 %v6482
  %v6484 = vpop.xlane.xlu0 %6483
  %v6485 = vadd.f32 %v6391, %v6392
  %6486 = vadd.xlane.f32.xlu0 %v6485
  %v6487 = vpop.xlane.xlu0 %6486
  %v6488 = vadd.f32 %v6393, %v6394
  %6489 = vadd.xlane.f32.xlu0 %v6488
  %v6490 = vpop.xlane.xlu0 %6489
  %v6491 = vrcp.pop %v6397
  %v6492 = vrcp.pop %v6400
  %v6493 = vrcp.pop %v6403
  %v6494 = vrcp.pop %v6406
  %v6495 = vrcp.pop %v6409
  %v6496 = vrcp.pop %v6412
  %v6497 = vrcp.pop %v6415
  %v6498 = vrcp.pop %v6418
  %v6499 = vrcp.pop %v6421
  %v6500 = vrcp.pop %v6424
  %v6501 = vrcp.pop %v6427
  %v6502 = vrcp.pop %v6430
  %v6503 = vrcp.pop %v6433
  %v6504 = vrcp.pop %v6436
  %v6505 = vrcp.pop %v6439
  %v6506 = vrcp.pop %v6442
  %v6507 = vrcp.pop %v6445
  %v6508 = vrcp.pop %v6448
  %v6509 = vrcp.pop %v6451
  %v6510 = vrcp.pop %v6454
  %v6511 = vrcp.pop %v6457
  %v6512 = vrcp.pop %v6460
  %v6513 = vrcp.pop %v6463
  %v6514 = vrcp.pop %v6466
  %v6515 = vrcp.pop %v6469
  %v6516 = vrcp.pop %v6472
  %v6517 = vrcp.pop %v6475
  %v6518 = vrcp.pop %v6478
  %v6519 = vrcp.pop %v6481
  %v6520 = vrcp.pop %v6484
  %v6521 = vrcp.pop %v6487
  %v6522 = vrcp.pop %v6490
  %v6523 = vpack.c.bf16 %v6492, %v6491
  %v6524 = vpack.c.bf16 %v6494, %v6493
  %v6525 = vpack.c.bf16 %v6496, %v6495
  %v6526 = vpack.c.bf16 %v6498, %v6497
  %v6527 = vpack.c.bf16 %v6500, %v6499
  %v6528 = vpack.c.bf16 %v6502, %v6501
  %v6529 = vpack.c.bf16 %v6504, %v6503
  %v6530 = vpack.c.bf16 %v6506, %v6505
  %v6531 = vpack.c.bf16 %v6508, %v6507
  %v6532 = vpack.c.bf16 %v6510, %v6509
  %v6533 = vpack.c.bf16 %v6512, %v6511
  %v6534 = vpack.c.bf16 %v6514, %v6513
  %v6535 = vpack.c.bf16 %v6516, %v6515
  %v6536 = vpack.c.bf16 %v6518, %v6517
  %v6537 = vpack.c.bf16 %v6520, %v6519
  %v6538 = vpack.c.bf16 %v6522, %v6521
  %v6539 = vmul.bf16 %v6237, %v6523
  %v6540 = vmul.bf16 %v6240, %v6523
  %v6541 = vmul.bf16 %v6243, %v6524
  %v6542 = vmul.bf16 %v6246, %v6524
  %v6543 = vmul.bf16 %v6249, %v6525
  %v6544 = vmul.bf16 %v6252, %v6525
  %v6545 = vmul.bf16 %v6255, %v6526
  %v6546 = vmul.bf16 %v6258, %v6526
  %v6547 = vmul.bf16 %v6261, %v6527
  %v6548 = vmul.bf16 %v6264, %v6527
  %v6549 = vmul.bf16 %v6267, %v6528
  %v6550 = vmul.bf16 %v6270, %v6528
  %v6551 = vmul.bf16 %v6273, %v6529
  %v6552 = vmul.bf16 %v6276, %v6529
  %v6553 = vmul.bf16 %v6279, %v6530
  %v6554 = vmul.bf16 %v6282, %v6530
  %v6555 = vmul.bf16 %v6285, %v6531
  %v6556 = vmul.bf16 %v6288, %v6531
  %v6557 = vmul.bf16 %v6291, %v6532
  %v6558 = vmul.bf16 %v6294, %v6532
  %v6559 = vmul.bf16 %v6297, %v6533
  %v6560 = vmul.bf16 %v6300, %v6533
  %v6561 = vmul.bf16 %v6303, %v6534
  %v6562 = vmul.bf16 %v6306, %v6534
  %v6563 = vmul.bf16 %v6309, %v6535
  %v6564 = vmul.bf16 %v6312, %v6535
  %v6565 = vmul.bf16 %v6315, %v6536
  %v6566 = vmul.bf16 %v6318, %v6536
  %v6567 = vmul.bf16 %v6321, %v6537
  %v6568 = vmul.bf16 %v6324, %v6537
  %v6569 = vmul.bf16 %v6327, %v6538
  %v6570 = vmul.bf16 %v6330, %v6538
  %v6571 = vrot.slane %v584, 4
  %v6572 = vrot.slane %v585, 4
  %6575 = vmatprep.subr.bf16.mxu0 %v6540
  %6576 = vmatpush1.bf16.xpose.msra.mxu0 %v6539
  %6577 = vmatprep.subr.bf16.mxu0 %v6542
  %6578 = vmatpush1.bf16.xpose.msra.mxu0 %v6541
  %6579 = vmatprep.subr.bf16.mxu0 %v6544
  %6580 = vmatpush1.bf16.xpose.msra.mxu0 %v6543
  %6581 = vmatprep.subr.bf16.mxu0 %v6546
  %6582 = vmatpush1.bf16.xpose.msra.mxu0 %v6545
  %6583 = vmatprep.subr.bf16.mxu0 %v6548
  %6584 = vmatpush1.bf16.xpose.msra.mxu0 %v6547
  %6585 = vmatprep.subr.bf16.mxu0 %v6550
  %6586 = vmatpush1.bf16.xpose.msra.mxu0 %v6549
  %6587 = vmatprep.subr.bf16.mxu0 %v6552
  %6588 = vmatpush1.bf16.xpose.msra.mxu0 %v6551
  %6589 = vmatprep.subr.bf16.mxu0 %v6554
  %6590 = vmatpush1.bf16.xpose.msra.mxu0 %v6553
  %6591 = vmatprep.subr.bf16.mxu0 %v6556
  %6592 = vmatpush1.bf16.xpose.msra.mxu0 %v6555
  %6593 = vmatprep.subr.bf16.mxu0 %v6558
  %6594 = vmatpush1.bf16.xpose.msra.mxu0 %v6557
  %6595 = vmatprep.subr.bf16.mxu0 %v6560
  %6596 = vmatpush1.bf16.xpose.msra.mxu0 %v6559
  %6597 = vmatprep.subr.bf16.mxu0 %v6562
  %6598 = vmatpush1.bf16.xpose.msra.mxu0 %v6561
  %6599 = vmatprep.subr.bf16.mxu0 %v6564
  %6600 = vmatpush1.bf16.xpose.msra.mxu0 %v6563
  %6601 = vmatprep.subr.bf16.mxu0 %v6566
  %6602 = vmatpush1.bf16.xpose.msra.mxu0 %v6565
  %6603 = vmatprep.subr.bf16.mxu0 %v6568
  %6604 = vmatpush1.bf16.xpose.msra.mxu0 %v6567
  %6605 = vmatprep.subr.bf16.mxu0 %v6570
  %6606 = vmatpush1.bf16.xpose.msra.mxu0 %v6569
  %6607 = vmatprep.mubr.bf16.mxu0 %v6572
  %6608 = vmatmul.mubr.bf16.gmra.mrb[0].mxu0 %v6571
  %v6609 = vpop.f32.mrb[0].mxu0
  %v6610 = vadd.f32 0.0, %v6609
  %v6611 = vpop.f32.mrb[0].mxu0
  %v6612 = vadd.f32 0.0, %v6611
  %v6613 = vpop.f32.mrb[0].mxu0
  %v6614 = vpop.f32.mrb[0].mxu0
  %6615 = vdwg.mxu0
  %6616 = vst [vmem:[#allocation2 + $0x30] sm:$0xf] %v6610
  %6617 = vst [vmem:[#allocation2 + $0x38] sm:$0xf] %v6612
  %v6618 = vrot.slane %v576, 6
  %v6619 = vrot.slane %v577, 6
  %6622 = vxpose.xlu0.c.b16.start [1/8] %v6618, 128
  %6623 = vxpose.xlu0.c.b16.cont [2/8] 0, 128
  %6624 = vxpose.xlu0.c.b16.cont [3/8] 0, 128
  %6625 = vxpose.xlu0.c.b16.cont [4/8] 0, 128
  %6626 = vxpose.xlu0.c.b16.cont [5/8] 0, 128
  %6627 = vxpose.xlu0.c.b16.cont [6/8] 0, 128
  %6628 = vxpose.xlu0.c.b16.cont [7/8] 0, 128
  %6629 = vxpose.xlu0.c.b16.end [8/8] 0, 128
  %v6630 = vpop.trf.xlu0
  %v6631 = vpop.trf.xlu0
  %v6632 = vpop.trf.xlu0
  %v6633 = vpop.trf.xlu0
  %v6634 = vpop.trf.xlu0
  %v6635 = vpop.trf.xlu0
  %v6636 = vpop.trf.xlu0
  %v6637 = vpop.trf.xlu0
  %6638 = vxpose.xlu0.c.b16.start [1/8] %v6619, 128
  %6639 = vxpose.xlu0.c.b16.cont [2/8] 0, 128
  %6640 = vxpose.xlu0.c.b16.cont [3/8] 0, 128
  %6641 = vxpose.xlu0.c.b16.cont [4/8] 0, 128
  %6642 = vxpose.xlu0.c.b16.cont [5/8] 0, 128
  %6643 = vxpose.xlu0.c.b16.cont [6/8] 0, 128
  %6644 = vxpose.xlu0.c.b16.cont [7/8] 0, 128
  %6645 = vxpose.xlu0.c.b16.end [8/8] 0, 128
  %v6646 = vpop.trf.xlu0
  %v6647 = vpop.trf.xlu0
  %v6648 = vpop.trf.xlu0
  %v6649 = vpop.trf.xlu0
  %v6650 = vpop.trf.xlu0
  %v6651 = vpop.trf.xlu0
  %v6652 = vpop.trf.xlu0
  %v6653 = vpop.trf.xlu0
  %v6654 = vrot.slane %v580, 6
  %v6655 = vrot.slane %v581, 6
  %v6657 = vsel %vm618, %v6630, 0
  %v6660 = vsel %vm618, %v6631, 0
  %v6663 = vsel %vm618, %v6632, 0
  %v6666 = vsel %vm618, %v6633, 0
  %v6669 = vsel %vm618, %v6634, 0
  %v6672 = vsel %vm618, %v6635, 0
  %v6675 = vsel %vm618, %v6636, 0
  %v6678 = vsel %vm618, %v6637, 0
  %v6681 = vsel %vm618, %v6646, 0
  %v6684 = vsel %vm618, %v6647, 0
  %v6687 = vsel %vm618, %v6648, 0
  %v6690 = vsel %vm618, %v6649, 0
  %v6693 = vsel %vm618, %v6650, 0
  %v6696 = vsel %vm618, %v6651, 0
  %v6699 = vsel %vm618, %v6652, 0
  %v6702 = vsel %vm618, %v6653, 0
  %v6705 = vsel %vm667, %v6654, 0
  %v6708 = vsel %vm667, %v6655, 0
  %6710 = vmatprep.subr.bf16.mxu0 %v6708
  %6711 = vmatpush1.bf16.msra.mxu0 %v6705
  %6712 = vmatprep.subr.bf16.mxu0 0
  %6713 = vmatpush1.bf16.msra.mxu0 0
  %6714 = vmatprep.subr.bf16.mxu0 0
  %6715 = vmatpush1.bf16.msra.mxu0 0
  %6716 = vmatprep.subr.bf16.mxu0 0
  %6717 = vmatpush1.bf16.msra.mxu0 0
  %6718 = vmatprep.subr.bf16.mxu0 0
  %6719 = vmatpush1.bf16.msra.mxu0 0
  %6720 = vmatprep.subr.bf16.mxu0 0
  %6721 = vmatpush1.bf16.msra.mxu0 0
  %6722 = vmatprep.subr.bf16.mxu0 0
  %6723 = vmatpush1.bf16.msra.mxu0 0
  %6724 = vmatprep.subr.bf16.mxu0 0
  %6725 = vmatpush1.bf16.msra.mxu0 0
  %6726 = vmatprep.subr.bf16.mxu0 0
  %6727 = vmatpush1.bf16.msra.mxu0 0
  %6728 = vmatprep.subr.bf16.mxu0 0
  %6729 = vmatpush1.bf16.msra.mxu0 0
  %6730 = vmatprep.subr.bf16.mxu0 0
  %6731 = vmatpush1.bf16.msra.mxu0 0
  %6732 = vmatprep.subr.bf16.mxu0 0
  %6733 = vmatpush1.bf16.msra.mxu0 0
  %6734 = vmatprep.subr.bf16.mxu0 0
  %6735 = vmatpush1.bf16.msra.mxu0 0
  %6736 = vmatprep.subr.bf16.mxu0 0
  %6737 = vmatpush1.bf16.msra.mxu0 0
  %6738 = vmatprep.subr.bf16.mxu0 0
  %6739 = vmatpush1.bf16.msra.mxu0 0
  %6740 = vmatprep.subr.bf16.mxu0 0
  %6741 = vmatpush1.bf16.msra.mxu0 0
  %6742 = vmatprep.mubr.bf16.mxu0 0
  %6743 = vmatmul.mubr.bf16.gmra.mrb[0].mxu0 %v6657
  %v6744 = vpop.f32.mrb[0].mxu0
  %v6745 = vadd.f32 0.0, %v6744
  %v6746 = vpop.f32.mrb[0].mxu0
  %v6747 = vadd.f32 0.0, %v6746
  %v6748 = vpop.f32.mrb[0].mxu0
  %v6749 = vadd.f32 0.0, %v6748
  %v6750 = vpop.f32.mrb[0].mxu0
  %v6751 = vadd.f32 0.0, %v6750
  %6752 = vmatprep.mubr.bf16.mxu0 0
  %6753 = vmatmul.mubr.bf16.gmra.mrb[0].mxu0 %v6660
  %v6754 = vpop.f32.mrb[0].mxu0
  %v6755 = vadd.f32 0.0, %v6754
  %v6756 = vpop.f32.mrb[0].mxu0
  %v6757 = vadd.f32 0.0, %v6756
  %v6758 = vpop.f32.mrb[0].mxu0
  %v6759 = vadd.f32 0.0, %v6758
  %v6760 = vpop.f32.mrb[0].mxu0
  %v6761 = vadd.f32 0.0, %v6760
  %6762 = vmatprep.mubr.bf16.mxu0 0
  %6763 = vmatmul.mubr.bf16.gmra.mrb[0].mxu0 %v6663
  %v6764 = vpop.f32.mrb[0].mxu0
  %v6765 = vadd.f32 0.0, %v6764
  %v6766 = vpop.f32.mrb[0].mxu0
  %v6767 = vadd.f32 0.0, %v6766
  %v6768 = vpop.f32.mrb[0].mxu0
  %v6769 = vadd.f32 0.0, %v6768
  %v6770 = vpop.f32.mrb[0].mxu0
  %v6771 = vadd.f32 0.0, %v6770
  %6772 = vmatprep.mubr.bf16.mxu0 0
  %6773 = vmatmul.mubr.bf16.gmra.mrb[0].mxu0 %v6666
  %v6774 = vpop.f32.mrb[0].mxu0
  %v6775 = vadd.f32 0.0, %v6774
  %v6776 = vpop.f32.mrb[0].mxu0
  %v6777 = vadd.f32 0.0, %v6776
  %v6778 = vpop.f32.mrb[0].mxu0
  %v6779 = vadd.f32 0.0, %v6778
  %v6780 = vpop.f32.mrb[0].mxu0
  %v6781 = vadd.f32 0.0, %v6780
  %6782 = vmatprep.mubr.bf16.mxu0 0
  %6783 = vmatmul.mubr.bf16.gmra.mrb[0].mxu0 %v6669
  %v6784 = vpop.f32.mrb[0].mxu0
  %v6785 = vadd.f32 0.0, %v6784
  %v6786 = vpop.f32.mrb[0].mxu0
  %v6787 = vadd.f32 0.0, %v6786
  %v6788 = vpop.f32.mrb[0].mxu0
  %v6789 = vadd.f32 0.0, %v6788
  %v6790 = vpop.f32.mrb[0].mxu0
  %v6791 = vadd.f32 0.0, %v6790
  %6792 = vmatprep.mubr.bf16.mxu0 0
  %6793 = vmatmul.mubr.bf16.gmra.mrb[0].mxu0 %v6672
  %v6794 = vpop.f32.mrb[0].mxu0
  %v6795 = vadd.f32 0.0, %v6794
  %v6796 = vpop.f32.mrb[0].mxu0
  %v6797 = vadd.f32 0.0, %v6796
  %v6798 = vpop.f32.mrb[0].mxu0
  %v6799 = vadd.f32 0.0, %v6798
  %v6800 = vpop.f32.mrb[0].mxu0
  %v6801 = vadd.f32 0.0, %v6800
  %6802 = vmatprep.mubr.bf16.mxu0 0
  %6803 = vmatmul.mubr.bf16.gmra.mrb[0].mxu0 %v6675
  %v6804 = vpop.f32.mrb[0].mxu0
  %v6805 = vadd.f32 0.0, %v6804
  %v6806 = vpop.f32.mrb[0].mxu0
  %v6807 = vadd.f32 0.0, %v6806
  %v6808 = vpop.f32.mrb[0].mxu0
  %v6809 = vadd.f32 0.0, %v6808
  %v6810 = vpop.f32.mrb[0].mxu0
  %v6811 = vadd.f32 0.0, %v6810
  %6812 = vmatprep.mubr.bf16.mxu0 0
  %6813 = vmatmul.mubr.bf16.gmra.mrb[0].mxu0 %v6678
  %v6814 = vpop.f32.mrb[0].mxu0
  %v6815 = vadd.f32 0.0, %v6814
  %v6816 = vpop.f32.mrb[0].mxu0
  %v6817 = vadd.f32 0.0, %v6816
  %v6818 = vpop.f32.mrb[0].mxu0
  %v6819 = vadd.f32 0.0, %v6818
  %v6820 = vpop.f32.mrb[0].mxu0
  %v6821 = vadd.f32 0.0, %v6820
  %6822 = vmatprep.mubr.bf16.mxu0 0
  %6823 = vmatmul.mubr.bf16.gmra.mrb[0].mxu0 %v6681
  %v6824 = vpop.f32.mrb[0].mxu0
  %v6825 = vadd.f32 0.0, %v6824
  %v6826 = vpop.f32.mrb[0].mxu0
  %v6827 = vadd.f32 0.0, %v6826
  %v6828 = vpop.f32.mrb[0].mxu0
  %v6829 = vadd.f32 0.0, %v6828
  %v6830 = vpop.f32.mrb[0].mxu0
  %v6831 = vadd.f32 0.0, %v6830
  %6832 = vmatprep.mubr.bf16.mxu0 0
  %6833 = vmatmul.mubr.bf16.gmra.mrb[0].mxu0 %v6684
  %v6834 = vpop.f32.mrb[0].mxu0
  %v6835 = vadd.f32 0.0, %v6834
  %v6836 = vpop.f32.mrb[0].mxu0
  %v6837 = vadd.f32 0.0, %v6836
  %v6838 = vpop.f32.mrb[0].mxu0
  %v6839 = vadd.f32 0.0, %v6838
  %v6840 = vpop.f32.mrb[0].mxu0
  %v6841 = vadd.f32 0.0, %v6840
  %6842 = vmatprep.mubr.bf16.mxu0 0
  %6843 = vmatmul.mubr.bf16.gmra.mrb[0].mxu0 %v6687
  %v6844 = vpop.f32.mrb[0].mxu0
  %v6845 = vadd.f32 0.0, %v6844
  %v6846 = vpop.f32.mrb[0].mxu0
  %v6847 = vadd.f32 0.0, %v6846
  %v6848 = vpop.f32.mrb[0].mxu0
  %v6849 = vadd.f32 0.0, %v6848
  %v6850 = vpop.f32.mrb[0].mxu0
  %v6851 = vadd.f32 0.0, %v6850
  %6852 = vmatprep.mubr.bf16.mxu0 0
  %6853 = vmatmul.mubr.bf16.gmra.mrb[0].mxu0 %v6690
  %v6854 = vpop.f32.mrb[0].mxu0
  %v6855 = vadd.f32 0.0, %v6854
  %v6856 = vpop.f32.mrb[0].mxu0
  %v6857 = vadd.f32 0.0, %v6856
  %v6858 = vpop.f32.mrb[0].mxu0
  %v6859 = vadd.f32 0.0, %v6858
  %v6860 = vpop.f32.mrb[0].mxu0
  %v6861 = vadd.f32 0.0, %v6860
  %6862 = vmatprep.mubr.bf16.mxu0 0
  %6863 = vmatmul.mubr.bf16.gmra.mrb[0].mxu0 %v6693
  %v6864 = vpop.f32.mrb[0].mxu0
  %v6865 = vadd.f32 0.0, %v6864
  %v6866 = vpop.f32.mrb[0].mxu0
  %v6867 = vadd.f32 0.0, %v6866
  %v6868 = vpop.f32.mrb[0].mxu0
  %v6869 = vadd.f32 0.0, %v6868
  %v6870 = vpop.f32.mrb[0].mxu0
  %v6871 = vadd.f32 0.0, %v6870
  %6872 = vmatprep.mubr.bf16.mxu0 0
  %6873 = vmatmul.mubr.bf16.gmra.mrb[0].mxu0 %v6696
  %v6874 = vpop.f32.mrb[0].mxu0
  %v6875 = vadd.f32 0.0, %v6874
  %v6876 = vpop.f32.mrb[0].mxu0
  %v6877 = vadd.f32 0.0, %v6876
  %v6878 = vpop.f32.mrb[0].mxu0
  %v6879 = vadd.f32 0.0, %v6878
  %v6880 = vpop.f32.mrb[0].mxu0
  %v6881 = vadd.f32 0.0, %v6880
  %6882 = vmatprep.mubr.bf16.mxu0 0
  %6883 = vmatmul.mubr.bf16.gmra.mrb[0].mxu0 %v6699
  %v6884 = vpop.f32.mrb[0].mxu0
  %v6885 = vadd.f32 0.0, %v6884
  %v6886 = vpop.f32.mrb[0].mxu0
  %v6887 = vadd.f32 0.0, %v6886
  %v6888 = vpop.f32.mrb[0].mxu0
  %v6889 = vadd.f32 0.0, %v6888
  %v6890 = vpop.f32.mrb[0].mxu0
  %v6891 = vadd.f32 0.0, %v6890
  %6892 = vmatprep.mubr.bf16.mxu0 0
  %6893 = vmatmul.mubr.bf16.gmra.mrb[0].mxu0 %v6702
  %v6894 = vpop.f32.mrb[0].mxu0
  %v6895 = vadd.f32 0.0, %v6894
  %v6896 = vpop.f32.mrb[0].mxu0
  %v6897 = vadd.f32 0.0, %v6896
  %v6898 = vpop.f32.mrb[0].mxu0
  %v6899 = vadd.f32 0.0, %v6898
  %v6900 = vpop.f32.mrb[0].mxu0
  %v6901 = vadd.f32 0.0, %v6900
  %6902 = vdwg.mxu0
  %v6903 = vmax.f32 %v6745, %v6747
  %6904 = vmax.xlane.f32.xlu0 %v6903
  %v6905 = vpop.xlane.xlu0 %6904
  %v6906 = vmax.f32 %v6749, %v6751
  %6907 = vmax.xlane.f32.xlu0 %v6906
  %v6908 = vpop.xlane.xlu0 %6907
  %v6909 = vmax.f32 %v6755, %v6757
  %6910 = vmax.xlane.f32.xlu0 %v6909
  %v6911 = vpop.xlane.xlu0 %6910
  %v6912 = vmax.f32 %v6759, %v6761
  %6913 = vmax.xlane.f32.xlu0 %v6912
  %v6914 = vpop.xlane.xlu0 %6913
  %v6915 = vmax.f32 %v6765, %v6767
  %6916 = vmax.xlane.f32.xlu0 %v6915
  %v6917 = vpop.xlane.xlu0 %6916
  %v6918 = vmax.f32 %v6769, %v6771
  %6919 = vmax.xlane.f32.xlu0 %v6918
  %v6920 = vpop.xlane.xlu0 %6919
  %v6921 = vmax.f32 %v6775, %v6777
  %6922 = vmax.xlane.f32.xlu0 %v6921
  %v6923 = vpop.xlane.xlu0 %6922
  %v6924 = vmax.f32 %v6779, %v6781
  %6925 = vmax.xlane.f32.xlu0 %v6924
  %v6926 = vpop.xlane.xlu0 %6925
  %v6927 = vmax.f32 %v6785, %v6787
  %6928 = vmax.xlane.f32.xlu0 %v6927
  %v6929 = vpop.xlane.xlu0 %6928
  %v6930 = vmax.f32 %v6789, %v6791
  %6931 = vmax.xlane.f32.xlu0 %v6930
  %v6932 = vpop.xlane.xlu0 %6931
  %v6933 = vmax.f32 %v6795, %v6797
  %6934 = vmax.xlane.f32.xlu0 %v6933
  %v6935 = vpop.xlane.xlu0 %6934
  %v6936 = vmax.f32 %v6799, %v6801
  %6937 = vmax.xlane.f32.xlu0 %v6936
  %v6938 = vpop.xlane.xlu0 %6937
  %v6939 = vmax.f32 %v6805, %v6807
  %6940 = vmax.xlane.f32.xlu0 %v6939
  %v6941 = vpop.xlane.xlu0 %6940
  %v6942 = vmax.f32 %v6809, %v6811
  %6943 = vmax.xlane.f32.xlu0 %v6942
  %v6944 = vpop.xlane.xlu0 %6943
  %v6945 = vmax.f32 %v6815, %v6817
  %6946 = vmax.xlane.f32.xlu0 %v6945
  %v6947 = vpop.xlane.xlu0 %6946
  %v6948 = vmax.f32 %v6819, %v6821
  %6949 = vmax.xlane.f32.xlu0 %v6948
  %v6950 = vpop.xlane.xlu0 %6949
  %v6951 = vmax.f32 %v6825, %v6827
  %6952 = vmax.xlane.f32.xlu0 %v6951
  %v6953 = vpop.xlane.xlu0 %6952
  %v6954 = vmax.f32 %v6829, %v6831
  %6955 = vmax.xlane.f32.xlu0 %v6954
  %v6956 = vpop.xlane.xlu0 %6955
  %v6957 = vmax.f32 %v6835, %v6837
  %6958 = vmax.xlane.f32.xlu0 %v6957
  %v6959 = vpop.xlane.xlu0 %6958
  %v6960 = vmax.f32 %v6839, %v6841
  %6961 = vmax.xlane.f32.xlu0 %v6960
  %v6962 = vpop.xlane.xlu0 %6961
  %v6963 = vmax.f32 %v6845, %v6847
  %6964 = vmax.xlane.f32.xlu0 %v6963
  %v6965 = vpop.xlane.xlu0 %6964
  %v6966 = vmax.f32 %v6849, %v6851
  %6967 = vmax.xlane.f32.xlu0 %v6966
  %v6968 = vpop.xlane.xlu0 %6967
  %v6969 = vmax.f32 %v6855, %v6857
  %6970 = vmax.xlane.f32.xlu0 %v6969
  %v6971 = vpop.xlane.xlu0 %6970
  %v6972 = vmax.f32 %v6859, %v6861
  %6973 = vmax.xlane.f32.xlu0 %v6972
  %v6974 = vpop.xlane.xlu0 %6973
  %v6975 = vmax.f32 %v6865, %v6867
  %6976 = vmax.xlane.f32.xlu0 %v6975
  %v6977 = vpop.xlane.xlu0 %6976
  %v6978 = vmax.f32 %v6869, %v6871
  %6979 = vmax.xlane.f32.xlu0 %v6978
  %v6980 = vpop.xlane.xlu0 %6979
  %v6981 = vmax.f32 %v6875, %v6877
  %6982 = vmax.xlane.f32.xlu0 %v6981
  %v6983 = vpop.xlane.xlu0 %6982
  %v6984 = vmax.f32 %v6879, %v6881
  %6985 = vmax.xlane.f32.xlu0 %v6984
  %v6986 = vpop.xlane.xlu0 %6985
  %v6987 = vmax.f32 %v6885, %v6887
  %6988 = vmax.xlane.f32.xlu0 %v6987
  %v6989 = vpop.xlane.xlu0 %6988
  %v6990 = vmax.f32 %v6889, %v6891
  %6991 = vmax.xlane.f32.xlu0 %v6990
  %v6992 = vpop.xlane.xlu0 %6991
  %v6993 = vmax.f32 %v6895, %v6897
  %6994 = vmax.xlane.f32.xlu0 %v6993
  %v6995 = vpop.xlane.xlu0 %6994
  %v6996 = vmax.f32 %v6899, %v6901
  %6997 = vmax.xlane.f32.xlu0 %v6996
  %v6998 = vpop.xlane.xlu0 %6997
  %v6999 = vsub.f32 %v6745, %v6905
  %v7000 = vsub.f32 %v6747, %v6905
  %v7001 = vsub.f32 %v6749, %v6908
  %v7002 = vsub.f32 %v6751, %v6908
  %v7003 = vsub.f32 %v6755, %v6911
  %v7004 = vsub.f32 %v6757, %v6911
  %v7005 = vsub.f32 %v6759, %v6914
  %v7006 = vsub.f32 %v6761, %v6914
  %v7007 = vsub.f32 %v6765, %v6917
  %v7008 = vsub.f32 %v6767, %v6917
  %v7009 = vsub.f32 %v6769, %v6920
  %v7010 = vsub.f32 %v6771, %v6920
  %v7011 = vsub.f32 %v6775, %v6923
  %v7012 = vsub.f32 %v6777, %v6923
  %v7013 = vsub.f32 %v6779, %v6926
  %v7014 = vsub.f32 %v6781, %v6926
  %v7015 = vsub.f32 %v6785, %v6929
  %v7016 = vsub.f32 %v6787, %v6929
  %v7017 = vsub.f32 %v6789, %v6932
  %v7018 = vsub.f32 %v6791, %v6932
  %v7019 = vsub.f32 %v6795, %v6935
  %v7020 = vsub.f32 %v6797, %v6935
  %v7021 = vsub.f32 %v6799, %v6938
  %v7022 = vsub.f32 %v6801, %v6938
  %v7023 = vsub.f32 %v6805, %v6941
  %v7024 = vsub.f32 %v6807, %v6941
  %v7025 = vsub.f32 %v6809, %v6944
  %v7026 = vsub.f32 %v6811, %v6944
  %v7027 = vsub.f32 %v6815, %v6947
  %v7028 = vsub.f32 %v6817, %v6947
  %v7029 = vsub.f32 %v6819, %v6950
  %v7030 = vsub.f32 %v6821, %v6950
  %v7031 = vsub.f32 %v6825, %v6953
  %v7032 = vsub.f32 %v6827, %v6953
  %v7033 = vsub.f32 %v6829, %v6956
  %v7034 = vsub.f32 %v6831, %v6956
  %v7035 = vsub.f32 %v6835, %v6959
  %v7036 = vsub.f32 %v6837, %v6959
  %v7037 = vsub.f32 %v6839, %v6962
  %v7038 = vsub.f32 %v6841, %v6962
  %v7039 = vsub.f32 %v6845, %v6965
  %v7040 = vsub.f32 %v6847, %v6965
  %v7041 = vsub.f32 %v6849, %v6968
  %v7042 = vsub.f32 %v6851, %v6968
  %v7043 = vsub.f32 %v6855, %v6971
  %v7044 = vsub.f32 %v6857, %v6971
  %v7045 = vsub.f32 %v6859, %v6974
  %v7046 = vsub.f32 %v6861, %v6974
  %v7047 = vsub.f32 %v6865, %v6977
  %v7048 = vsub.f32 %v6867, %v6977
  %v7049 = vsub.f32 %v6869, %v6980
  %v7050 = vsub.f32 %v6871, %v6980
  %v7051 = vsub.f32 %v6875, %v6983
  %v7052 = vsub.f32 %v6877, %v6983
  %v7053 = vsub.f32 %v6879, %v6986
  %v7054 = vsub.f32 %v6881, %v6986
  %v7055 = vsub.f32 %v6885, %v6989
  %v7056 = vsub.f32 %v6887, %v6989
  %v7057 = vsub.f32 %v6889, %v6992
  %v7058 = vsub.f32 %v6891, %v6992
  %v7059 = vsub.f32 %v6895, %v6995
  %v7060 = vsub.f32 %v6897, %v6995
  %v7061 = vsub.f32 %v6899, %v6998
  %v7062 = vsub.f32 %v6901, %v6998
  %v7063 = vpack.c.bf16 %v7001, %v6999
  %v7064 = vpack.c.bf16 %v7002, %v7000
  %v7065 = vpack.c.bf16 %v7005, %v7003
  %v7066 = vpack.c.bf16 %v7006, %v7004
  %v7067 = vpack.c.bf16 %v7009, %v7007
  %v7068 = vpack.c.bf16 %v7010, %v7008
  %v7069 = vpack.c.bf16 %v7013, %v7011
  %v7070 = vpack.c.bf16 %v7014, %v7012
  %v7071 = vpack.c.bf16 %v7017, %v7015
  %v7072 = vpack.c.bf16 %v7018, %v7016
  %v7073 = vpack.c.bf16 %v7021, %v7019
  %v7074 = vpack.c.bf16 %v7022, %v7020
  %v7075 = vpack.c.bf16 %v7025, %v7023
  %v7076 = vpack.c.bf16 %v7026, %v7024
  %v7077 = vpack.c.bf16 %v7029, %v7027
  %v7078 = vpack.c.bf16 %v7030, %v7028
  %v7079 = vpack.c.bf16 %v7033, %v7031
  %v7080 = vpack.c.bf16 %v7034, %v7032
  %v7081 = vpack.c.bf16 %v7037, %v7035
  %v7082 = vpack.c.bf16 %v7038, %v7036
  %v7083 = vpack.c.bf16 %v7041, %v7039
  %v7084 = vpack.c.bf16 %v7042, %v7040
  %v7085 = vpack.c.bf16 %v7045, %v7043
  %v7086 = vpack.c.bf16 %v7046, %v7044
  %v7087 = vpack.c.bf16 %v7049, %v7047
  %v7088 = vpack.c.bf16 %v7050, %v7048
  %v7089 = vpack.c.bf16 %v7053, %v7051
  %v7090 = vpack.c.bf16 %v7054, %v7052
  %v7091 = vpack.c.bf16 %v7057, %v7055
  %v7092 = vpack.c.bf16 %v7058, %v7056
  %v7093 = vpack.c.bf16 %v7061, %v7059
  %v7094 = vpack.c.bf16 %v7062, %v7060
  %v7096 = vmul.bf16 %v7063, 1069105081
  %v7097 = vpow.bf16.pop %v7096
  %v7099 = vmul.bf16 %v7064, 1069105081
  %v7100 = vpow.bf16.pop %v7099
  %v7102 = vmul.bf16 %v7065, 1069105081
  %v7103 = vpow.bf16.pop %v7102
  %v7105 = vmul.bf16 %v7066, 1069105081
  %v7106 = vpow.bf16.pop %v7105
  %v7108 = vmul.bf16 %v7067, 1069105081
  %v7109 = vpow.bf16.pop %v7108
  %v7111 = vmul.bf16 %v7068, 1069105081
  %v7112 = vpow.bf16.pop %v7111
  %v7114 = vmul.bf16 %v7069, 1069105081
  %v7115 = vpow.bf16.pop %v7114
  %v7117 = vmul.bf16 %v7070, 1069105081
  %v7118 = vpow.bf16.pop %v7117
  %v7120 = vmul.bf16 %v7071, 1069105081
  %v7121 = vpow.bf16.pop %v7120
  %v7123 = vmul.bf16 %v7072, 1069105081
  %v7124 = vpow.bf16.pop %v7123
  %v7126 = vmul.bf16 %v7073, 1069105081
  %v7127 = vpow.bf16.pop %v7126
  %v7129 = vmul.bf16 %v7074, 1069105081
  %v7130 = vpow.bf16.pop %v7129
  %v7132 = vmul.bf16 %v7075, 1069105081
  %v7133 = vpow.bf16.pop %v7132
  %v7135 = vmul.bf16 %v7076, 1069105081
  %v7136 = vpow.bf16.pop %v7135
  %v7138 = vmul.bf16 %v7077, 1069105081
  %v7139 = vpow.bf16.pop %v7138
  %v7141 = vmul.bf16 %v7078, 1069105081
  %v7142 = vpow.bf16.pop %v7141
  %v7144 = vmul.bf16 %v7079, 1069105081
  %v7145 = vpow.bf16.pop %v7144
  %v7147 = vmul.bf16 %v7080, 1069105081
  %v7148 = vpow.bf16.pop %v7147
  %v7150 = vmul.bf16 %v7081, 1069105081
  %v7151 = vpow.bf16.pop %v7150
  %v7153 = vmul.bf16 %v7082, 1069105081
  %v7154 = vpow.bf16.pop %v7153
  %v7156 = vmul.bf16 %v7083, 1069105081
  %v7157 = vpow.bf16.pop %v7156
  %v7159 = vmul.bf16 %v7084, 1069105081
  %v7160 = vpow.bf16.pop %v7159
  %v7162 = vmul.bf16 %v7085, 1069105081
  %v7163 = vpow.bf16.pop %v7162
  %v7165 = vmul.bf16 %v7086, 1069105081
  %v7166 = vpow.bf16.pop %v7165
  %v7168 = vmul.bf16 %v7087, 1069105081
  %v7169 = vpow.bf16.pop %v7168
  %v7171 = vmul.bf16 %v7088, 1069105081
  %v7172 = vpow.bf16.pop %v7171
  %v7174 = vmul.bf16 %v7089, 1069105081
  %v7175 = vpow.bf16.pop %v7174
  %v7177 = vmul.bf16 %v7090, 1069105081
  %v7178 = vpow.bf16.pop %v7177
  %v7180 = vmul.bf16 %v7091, 1069105081
  %v7181 = vpow.bf16.pop %v7180
  %v7183 = vmul.bf16 %v7092, 1069105081
  %v7184 = vpow.bf16.pop %v7183
  %v7186 = vmul.bf16 %v7093, 1069105081
  %v7187 = vpow.bf16.pop %v7186
  %v7189 = vmul.bf16 %v7094, 1069105081
  %v7190 = vpow.bf16.pop %v7189
  %v7191 = vunpack.c.l.bf16 %v7097
  %v7192 = vunpack.c.l.bf16 %v7100
  %v7193 = vunpack.c.h.bf16 %v7097
  %v7194 = vunpack.c.h.bf16 %v7100
  %v7195 = vunpack.c.l.bf16 %v7103
  %v7196 = vunpack.c.l.bf16 %v7106
  %v7197 = vunpack.c.h.bf16 %v7103
  %v7198 = vunpack.c.h.bf16 %v7106
  %v7199 = vunpack.c.l.bf16 %v7109
  %v7200 = vunpack.c.l.bf16 %v7112
  %v7201 = vunpack.c.h.bf16 %v7109
  %v7202 = vunpack.c.h.bf16 %v7112
  %v7203 = vunpack.c.l.bf16 %v7115
  %v7204 = vunpack.c.l.bf16 %v7118
  %v7205 = vunpack.c.h.bf16 %v7115
  %v7206 = vunpack.c.h.bf16 %v7118
  %v7207 = vunpack.c.l.bf16 %v7121
  %v7208 = vunpack.c.l.bf16 %v7124
  %v7209 = vunpack.c.h.bf16 %v7121
  %v7210 = vunpack.c.h.bf16 %v7124
  %v7211 = vunpack.c.l.bf16 %v7127
  %v7212 = vunpack.c.l.bf16 %v7130
  %v7213 = vunpack.c.h.bf16 %v7127
  %v7214 = vunpack.c.h.bf16 %v7130
  %v7215 = vunpack.c.l.bf16 %v7133
  %v7216 = vunpack.c.l.bf16 %v7136
  %v7217 = vunpack.c.h.bf16 %v7133
  %v7218 = vunpack.c.h.bf16 %v7136
  %v7219 = vunpack.c.l.bf16 %v7139
  %v7220 = vunpack.c.l.bf16 %v7142
  %v7221 = vunpack.c.h.bf16 %v7139
  %v7222 = vunpack.c.h.bf16 %v7142
  %v7223 = vunpack.c.l.bf16 %v7145
  %v7224 = vunpack.c.l.bf16 %v7148
  %v7225 = vunpack.c.h.bf16 %v7145
  %v7226 = vunpack.c.h.bf16 %v7148
  %v7227 = vunpack.c.l.bf16 %v7151
  %v7228 = vunpack.c.l.bf16 %v7154
  %v7229 = vunpack.c.h.bf16 %v7151
  %v7230 = vunpack.c.h.bf16 %v7154
  %v7231 = vunpack.c.l.bf16 %v7157
  %v7232 = vunpack.c.l.bf16 %v7160
  %v7233 = vunpack.c.h.bf16 %v7157
  %v7234 = vunpack.c.h.bf16 %v7160
  %v7235 = vunpack.c.l.bf16 %v7163
  %v7236 = vunpack.c.l.bf16 %v7166
  %v7237 = vunpack.c.h.bf16 %v7163
  %v7238 = vunpack.c.h.bf16 %v7166
  %v7239 = vunpack.c.l.bf16 %v7169
  %v7240 = vunpack.c.l.bf16 %v7172
  %v7241 = vunpack.c.h.bf16 %v7169
  %v7242 = vunpack.c.h.bf16 %v7172
  %v7243 = vunpack.c.l.bf16 %v7175
  %v7244 = vunpack.c.l.bf16 %v7178
  %v7245 = vunpack.c.h.bf16 %v7175
  %v7246 = vunpack.c.h.bf16 %v7178
  %v7247 = vunpack.c.l.bf16 %v7181
  %v7248 = vunpack.c.l.bf16 %v7184
  %v7249 = vunpack.c.h.bf16 %v7181
  %v7250 = vunpack.c.h.bf16 %v7184
  %v7251 = vunpack.c.l.bf16 %v7187
  %v7252 = vunpack.c.l.bf16 %v7190
  %v7253 = vunpack.c.h.bf16 %v7187
  %v7254 = vunpack.c.h.bf16 %v7190
  %v7255 = vadd.f32 %v7191, %v7192
  %7256 = vadd.xlane.f32.xlu0 %v7255
  %v7257 = vpop.xlane.xlu0 %7256
  %v7258 = vadd.f32 %v7193, %v7194
  %7259 = vadd.xlane.f32.xlu0 %v7258
  %v7260 = vpop.xlane.xlu0 %7259
  %v7261 = vadd.f32 %v7195, %v7196
  %7262 = vadd.xlane.f32.xlu0 %v7261
  %v7263 = vpop.xlane.xlu0 %7262
  %v7264 = vadd.f32 %v7197, %v7198
  %7265 = vadd.xlane.f32.xlu0 %v7264
  %v7266 = vpop.xlane.xlu0 %7265
  %v7267 = vadd.f32 %v7199, %v7200
  %7268 = vadd.xlane.f32.xlu0 %v7267
  %v7269 = vpop.xlane.xlu0 %7268
  %v7270 = vadd.f32 %v7201, %v7202
  %7271 = vadd.xlane.f32.xlu0 %v7270
  %v7272 = vpop.xlane.xlu0 %7271
  %v7273 = vadd.f32 %v7203, %v7204
  %7274 = vadd.xlane.f32.xlu0 %v7273
  %v7275 = vpop.xlane.xlu0 %7274
  %v7276 = vadd.f32 %v7205, %v7206
  %7277 = vadd.xlane.f32.xlu0 %v7276
  %v7278 = vpop.xlane.xlu0 %7277
  %v7279 = vadd.f32 %v7207, %v7208
  %7280 = vadd.xlane.f32.xlu0 %v7279
  %v7281 = vpop.xlane.xlu0 %7280
  %v7282 = vadd.f32 %v7209, %v7210
  %7283 = vadd.xlane.f32.xlu0 %v7282
  %v7284 = vpop.xlane.xlu0 %7283
  %v7285 = vadd.f32 %v7211, %v7212
  %7286 = vadd.xlane.f32.xlu0 %v7285
  %v7287 = vpop.xlane.xlu0 %7286
  %v7288 = vadd.f32 %v7213, %v7214
  %7289 = vadd.xlane.f32.xlu0 %v7288
  %v7290 = vpop.xlane.xlu0 %7289
  %v7291 = vadd.f32 %v7215, %v7216
  %7292 = vadd.xlane.f32.xlu0 %v7291
  %v7293 = vpop.xlane.xlu0 %7292
  %v7294 = vadd.f32 %v7217, %v7218
  %7295 = vadd.xlane.f32.xlu0 %v7294
  %v7296 = vpop.xlane.xlu0 %7295
  %v7297 = vadd.f32 %v7219, %v7220
  %7298 = vadd.xlane.f32.xlu0 %v7297
  %v7299 = vpop.xlane.xlu0 %7298
  %v7300 = vadd.f32 %v7221, %v7222
  %7301 = vadd.xlane.f32.xlu0 %v7300
  %v7302 = vpop.xlane.xlu0 %7301
  %v7303 = vadd.f32 %v7223, %v7224
  %7304 = vadd.xlane.f32.xlu0 %v7303
  %v7305 = vpop.xlane.xlu0 %7304
  %v7306 = vadd.f32 %v7225, %v7226
  %7307 = vadd.xlane.f32.xlu0 %v7306
  %v7308 = vpop.xlane.xlu0 %7307
  %v7309 = vadd.f32 %v7227, %v7228
  %7310 = vadd.xlane.f32.xlu0 %v7309
  %v7311 = vpop.xlane.xlu0 %7310
  %v7312 = vadd.f32 %v7229, %v7230
  %7313 = vadd.xlane.f32.xlu0 %v7312
  %v7314 = vpop.xlane.xlu0 %7313
  %v7315 = vadd.f32 %v7231, %v7232
  %7316 = vadd.xlane.f32.xlu0 %v7315
  %v7317 = vpop.xlane.xlu0 %7316
  %v7318 = vadd.f32 %v7233, %v7234
  %7319 = vadd.xlane.f32.xlu0 %v7318
  %v7320 = vpop.xlane.xlu0 %7319
  %v7321 = vadd.f32 %v7235, %v7236
  %7322 = vadd.xlane.f32.xlu0 %v7321
  %v7323 = vpop.xlane.xlu0 %7322
  %v7324 = vadd.f32 %v7237, %v7238
  %7325 = vadd.xlane.f32.xlu0 %v7324
  %v7326 = vpop.xlane.xlu0 %7325
  %v7327 = vadd.f32 %v7239, %v7240
  %7328 = vadd.xlane.f32.xlu0 %v7327
  %v7329 = vpop.xlane.xlu0 %7328
  %v7330 = vadd.f32 %v7241, %v7242
  %7331 = vadd.xlane.f32.xlu0 %v7330
  %v7332 = vpop.xlane.xlu0 %7331
  %v7333 = vadd.f32 %v7243, %v7244
  %7334 = vadd.xlane.f32.xlu0 %v7333
  %v7335 = vpop.xlane.xlu0 %7334
  %v7336 = vadd.f32 %v7245, %v7246
  %7337 = vadd.xlane.f32.xlu0 %v7336
  %v7338 = vpop.xlane.xlu0 %7337
  %v7339 = vadd.f32 %v7247, %v7248
  %7340 = vadd.xlane.f32.xlu0 %v7339
  %v7341 = vpop.xlane.xlu0 %7340
  %v7342 = vadd.f32 %v7249, %v7250
  %7343 = vadd.xlane.f32.xlu0 %v7342
  %v7344 = vpop.xlane.xlu0 %7343
  %v7345 = vadd.f32 %v7251, %v7252
  %7346 = vadd.xlane.f32.xlu0 %v7345
  %v7347 = vpop.xlane.xlu0 %7346
  %v7348 = vadd.f32 %v7253, %v7254
  %7349 = vadd.xlane.f32.xlu0 %v7348
  %v7350 = vpop.xlane.xlu0 %7349
  %v7351 = vrcp.pop %v7257
  %v7352 = vrcp.pop %v7260
  %v7353 = vrcp.pop %v7263
  %v7354 = vrcp.pop %v7266
  %v7355 = vrcp.pop %v7269
  %v7356 = vrcp.pop %v7272
  %v7357 = vrcp.pop %v7275
  %v7358 = vrcp.pop %v7278
  %v7359 = vrcp.pop %v7281
  %v7360 = vrcp.pop %v7284
  %v7361 = vrcp.pop %v7287
  %v7362 = vrcp.pop %v7290
  %v7363 = vrcp.pop %v7293
  %v7364 = vrcp.pop %v7296
  %v7365 = vrcp.pop %v7299
  %v7366 = vrcp.pop %v7302
  %v7367 = vrcp.pop %v7305
  %v7368 = vrcp.pop %v7308
  %v7369 = vrcp.pop %v7311
  %v7370 = vrcp.pop %v7314
  %v7371 = vrcp.pop %v7317
  %v7372 = vrcp.pop %v7320
  %v7373 = vrcp.pop %v7323
  %v7374 = vrcp.pop %v7326
  %v7375 = vrcp.pop %v7329
  %v7376 = vrcp.pop %v7332
  %v7377 = vrcp.pop %v7335
  %v7378 = vrcp.pop %v7338
  %v7379 = vrcp.pop %v7341
  %v7380 = vrcp.pop %v7344
  %v7381 = vrcp.pop %v7347
  %v7382 = vrcp.pop %v7350
  %v7383 = vpack.c.bf16 %v7352, %v7351
  %v7384 = vpack.c.bf16 %v7354, %v7353
  %v7385 = vpack.c.bf16 %v7356, %v7355
  %v7386 = vpack.c.bf16 %v7358, %v7357
  %v7387 = vpack.c.bf16 %v7360, %v7359
  %v7388 = vpack.c.bf16 %v7362, %v7361
  %v7389 = vpack.c.bf16 %v7364, %v7363
  %v7390 = vpack.c.bf16 %v7366, %v7365
  %v7391 = vpack.c.bf16 %v7368, %v7367
  %v7392 = vpack.c.bf16 %v7370, %v7369
  %v7393 = vpack.c.bf16 %v7372, %v7371
  %v7394 = vpack.c.bf16 %v7374, %v7373
  %v7395 = vpack.c.bf16 %v7376, %v7375
  %v7396 = vpack.c.bf16 %v7378, %v7377
  %v7397 = vpack.c.bf16 %v7380, %v7379
  %v7398 = vpack.c.bf16 %v7382, %v7381
  %v7399 = vmul.bf16 %v7097, %v7383
  %v7400 = vmul.bf16 %v7100, %v7383
  %v7401 = vmul.bf16 %v7103, %v7384
  %v7402 = vmul.bf16 %v7106, %v7384
  %v7403 = vmul.bf16 %v7109, %v7385
  %v7404 = vmul.bf16 %v7112, %v7385
  %v7405 = vmul.bf16 %v7115, %v7386
  %v7406 = vmul.bf16 %v7118, %v7386
  %v7407 = vmul.bf16 %v7121, %v7387
  %v7408 = vmul.bf16 %v7124, %v7387
  %v7409 = vmul.bf16 %v7127, %v7388
  %v7410 = vmul.bf16 %v7130, %v7388
  %v7411 = vmul.bf16 %v7133, %v7389
  %v7412 = vmul.bf16 %v7136, %v7389
  %v7413 = vmul.bf16 %v7139, %v7390
  %v7414 = vmul.bf16 %v7142, %v7390
  %v7415 = vmul.bf16 %v7145, %v7391
  %v7416 = vmul.bf16 %v7148, %v7391
  %v7417 = vmul.bf16 %v7151, %v7392
  %v7418 = vmul.bf16 %v7154, %v7392
  %v7419 = vmul.bf16 %v7157, %v7393
  %v7420 = vmul.bf16 %v7160, %v7393
  %v7421 = vmul.bf16 %v7163, %v7394
  %v7422 = vmul.bf16 %v7166, %v7394
  %v7423 = vmul.bf16 %v7169, %v7395
  %v7424 = vmul.bf16 %v7172, %v7395
  %v7425 = vmul.bf16 %v7175, %v7396
  %v7426 = vmul.bf16 %v7178, %v7396
  %v7427 = vmul.bf16 %v7181, %v7397
  %v7428 = vmul.bf16 %v7184, %v7397
  %v7429 = vmul.bf16 %v7187, %v7398
  %v7430 = vmul.bf16 %v7190, %v7398
  %v7431 = vrot.slane %v584, 6
  %v7432 = vrot.slane %v585, 6
  %7435 = vmatprep.subr.bf16.mxu0 %v7400
  %7436 = vmatpush1.bf16.xpose.msra.mxu0 %v7399
  %7437 = vmatprep.subr.bf16.mxu0 %v7402
  %7438 = vmatpush1.bf16.xpose.msra.mxu0 %v7401
  %7439 = vmatprep.subr.bf16.mxu0 %v7404
  %7440 = vmatpush1.bf16.xpose.msra.mxu0 %v7403
  %7441 = vmatprep.subr.bf16.mxu0 %v7406
  %7442 = vmatpush1.bf16.xpose.msra.mxu0 %v7405
  %7443 = vmatprep.subr.bf16.mxu0 %v7408
  %7444 = vmatpush1.bf16.xpose.msra.mxu0 %v7407
  %7445 = vmatprep.subr.bf16.mxu0 %v7410
  %7446 = vmatpush1.bf16.xpose.msra.mxu0 %v7409
  %7447 = vmatprep.subr.bf16.mxu0 %v7412
  %7448 = vmatpush1.bf16.xpose.msra.mxu0 %v7411
  %7449 = vmatprep.subr.bf16.mxu0 %v7414
  %7450 = vmatpush1.bf16.xpose.msra.mxu0 %v7413
  %7451 = vmatprep.subr.bf16.mxu0 %v7416
  %7452 = vmatpush1.bf16.xpose.msra.mxu0 %v7415
  %7453 = vmatprep.subr.bf16.mxu0 %v7418
  %7454 = vmatpush1.bf16.xpose.msra.mxu0 %v7417
  %7455 = vmatprep.subr.bf16.mxu0 %v7420
  %7456 = vmatpush1.bf16.xpose.msra.mxu0 %v7419
  %7457 = vmatprep.subr.bf16.mxu0 %v7422
  %7458 = vmatpush1.bf16.xpose.msra.mxu0 %v7421
  %7459 = vmatprep.subr.bf16.mxu0 %v7424
  %7460 = vmatpush1.bf16.xpose.msra.mxu0 %v7423
  %7461 = vmatprep.subr.bf16.mxu0 %v7426
  %7462 = vmatpush1.bf16.xpose.msra.mxu0 %v7425
  %7463 = vmatprep.subr.bf16.mxu0 %v7428
  %7464 = vmatpush1.bf16.xpose.msra.mxu0 %v7427
  %7465 = vmatprep.subr.bf16.mxu0 %v7430
  %7466 = vmatpush1.bf16.xpose.msra.mxu0 %v7429
  %7467 = vmatprep.mubr.bf16.mxu0 %v7432
  %7468 = vmatmul.mubr.bf16.gmra.mrb[0].mxu0 %v7431
  %v7469 = vpop.f32.mrb[0].mxu0
  %v7470 = vadd.f32 0.0, %v7469
  %v7471 = vpop.f32.mrb[0].mxu0
  %v7472 = vadd.f32 0.0, %v7471
  %v7473 = vpop.f32.mrb[0].mxu0
  %v7474 = vpop.f32.mrb[0].mxu0
  %7475 = vdwg.mxu0
  %v7478 = vrot.slane %v7470, 4
  %v7479 = vrot.slane %v7472, 4
  %7482 = vst [vmem:[#allocation2 + $0x30] sm:$0xf0] %v7478
  %7483 = vst [vmem:[#allocation2 + $0x38] sm:$0xf0] %v7479
  %v7484 = vld [vmem:[%s4] sm:$0xf]
  %v7485 = vld [vmem:[%s4 + $0x4] sm:$0xf]
  %v7486 = vld [vmem:[#allocation2] sm:$0xff]
  %v7487 = vld [vmem:[#allocation2 + $0x8] sm:$0xff]
  %v7488 = vld [vmem:[#allocation2 + $0x10] sm:$0xff]
  %v7489 = vld [vmem:[#allocation2 + $0x18] sm:$0xff]
  %v7490 = vld [vmem:[#allocation2 + $0x20] sm:$0xff]
  %v7491 = vld [vmem:[#allocation2 + $0x28] sm:$0xff]
  %v7492 = vld [vmem:[#allocation2 + $0x30] sm:$0xff]
  %v7493 = vld [vmem:[#allocation2 + $0x38] sm:$0xff]
  %v7494 = vpack.c.bf16 %v7490, %v7486
  %v7495 = vpack.c.bf16 %v7491, %v7487
  %v7496 = vpack.c.bf16 %v7492, %v7488
  %v7497 = vpack.c.bf16 %v7493, %v7489
  %v7500 = vunpack.c.l.b16 %v7484
  %v7501 = vunpack.c.l.b16 %v7485
  %v7502 = vpack.c.b16 %v7501, %v7500
  %v7504 = vsel %vm438, %v7502, 0
  %7506 = vmatprep.subr.bf16.mxu0 %v7495
  %7507 = vmatpush1.bf16.msra.mxu0 %v7494
  %7508 = vmatprep.subr.bf16.mxu0 0
  %7509 = vmatpush1.bf16.msra.mxu0 0
  %7510 = vmatprep.subr.bf16.mxu0 0
  %7511 = vmatpush1.bf16.msra.mxu0 0
  %7512 = vmatprep.subr.bf16.mxu0 0
  %7513 = vmatpush1.bf16.msra.mxu0 0
  %7514 = vmatprep.subr.bf16.mxu0 0
  %7515 = vmatpush1.bf16.msra.mxu0 0
  %7516 = vmatprep.subr.bf16.mxu0 0
  %7517 = vmatpush1.bf16.msra.mxu0 0
  %7518 = vmatprep.subr.bf16.mxu0 0
  %7519 = vmatpush1.bf16.msra.mxu0 0
  %7520 = vmatprep.subr.bf16.mxu0 0
  %7521 = vmatpush1.bf16.msra.mxu0 0
  %7522 = vmatprep.subr.bf16.mxu0 0
  %7523 = vmatpush1.bf16.msra.mxu0 0
  %7524 = vmatprep.subr.bf16.mxu0 0
  %7525 = vmatpush1.bf16.msra.mxu0 0
  %7526 = vmatprep.subr.bf16.mxu0 0
  %7527 = vmatpush1.bf16.msra.mxu0 0
  %7528 = vmatprep.subr.bf16.mxu0 0
  %7529 = vmatpush1.bf16.msra.mxu0 0
  %7530 = vmatprep.subr.bf16.mxu0 0
  %7531 = vmatpush1.bf16.msra.mxu0 0
  %7532 = vmatprep.subr.bf16.mxu0 0
  %7533 = vmatpush1.bf16.msra.mxu0 0
  %7534 = vmatprep.subr.bf16.mxu0 0
  %7535 = vmatpush1.bf16.msra.mxu0 0
  %7536 = vmatprep.subr.bf16.mxu0 0
  %7537 = vmatpush1.bf16.msra.mxu0 0
  %7538 = vmatprep.mubr.bf16.mxu0 0
  %7539 = vmatmul.mubr.bf16.gmra.mrb[0].mxu0 %v7504
  %v7540 = vpop.f32.mrb[0].mxu0
  %v7541 = vadd.f32 0.0, %v7540
  %v7542 = vpop.f32.mrb[0].mxu0
  %v7543 = vadd.f32 0.0, %v7542
  %v7544 = vpop.f32.mrb[0].mxu0
  %v7545 = vadd.f32 0.0, %v7544
  %v7546 = vpop.f32.mrb[0].mxu0
  %v7547 = vadd.f32 0.0, %v7546
  %7548 = vdwg.mxu0
  %7549 = vmatprep.subr.bf16.mxu0 %v7497
  %7550 = vmatpush1.bf16.msra.mxu0 %v7496
  %7551 = vmatprep.subr.bf16.mxu0 0
  %7552 = vmatpush1.bf16.msra.mxu0 0
  %7553 = vmatprep.subr.bf16.mxu0 0
  %7554 = vmatpush1.bf16.msra.mxu0 0
  %7555 = vmatprep.subr.bf16.mxu0 0
  %7556 = vmatpush1.bf16.msra.mxu0 0
  %7557 = vmatprep.subr.bf16.mxu0 0
  %7558 = vmatpush1.bf16.msra.mxu0 0
  %7559 = vmatprep.subr.bf16.mxu0 0
  %7560 = vmatpush1.bf16.msra.mxu0 0
  %7561 = vmatprep.subr.bf16.mxu0 0
  %7562 = vmatpush1.bf16.msra.mxu0 0
  %7563 = vmatprep.subr.bf16.mxu0 0
  %7564 = vmatpush1.bf16.msra.mxu0 0
  %7565 = vmatprep.subr.bf16.mxu0 0
  %7566 = vmatpush1.bf16.msra.mxu0 0
  %7567 = vmatprep.subr.bf16.mxu0 0
  %7568 = vmatpush1.bf16.msra.mxu0 0
  %7569 = vmatprep.subr.bf16.mxu0 0
  %7570 = vmatpush1.bf16.msra.mxu0 0
  %7571 = vmatprep.subr.bf16.mxu0 0
  %7572 = vmatpush1.bf16.msra.mxu0 0
  %7573 = vmatprep.subr.bf16.mxu0 0
  %7574 = vmatpush1.bf16.msra.mxu0 0
  %7575 = vmatprep.subr.bf16.mxu0 0
  %7576 = vmatpush1.bf16.msra.mxu0 0
  %7577 = vmatprep.subr.bf16.mxu0 0
  %7578 = vmatpush1.bf16.msra.mxu0 0
  %7579 = vmatprep.subr.bf16.mxu0 0
  %7580 = vmatpush1.bf16.msra.mxu0 0
  %7581 = vmatprep.mubr.bf16.mxu0 0
  %7582 = vmatmul.mubr.bf16.gmra.mrb[0].mxu0 %v7504
  %v7583 = vpop.f32.mrb[0].mxu0
  %v7584 = vadd.f32 0.0, %v7583
  %v7585 = vpop.f32.mrb[0].mxu0
  %v7586 = vadd.f32 0.0, %v7585
  %v7587 = vpop.f32.mrb[0].mxu0
  %v7588 = vadd.f32 0.0, %v7587
  %v7589 = vpop.f32.mrb[0].mxu0
  %v7590 = vadd.f32 0.0, %v7589
  %7591 = vdwg.mxu0
  %v7592 = vadd.f32 %v405, %v7541
  %v7593 = vadd.f32 %v406, %v7543
  %v7594 = vadd.f32 %v407, %v7584
  %v7595 = vadd.f32 %v408, %v7586
  %v7596 = vadd.f32 %v409, %v7545
  %v7597 = vadd.f32 %v410, %v7547
  %v7598 = vadd.f32 %v411, %v7588
  %v7599 = vadd.f32 %v412, %v7590
  %v7600 = vadd.f32 %v7592, %v397
  %v7601 = vadd.f32 %v7593, %v398
  %v7602 = vadd.f32 %v7594, %v399
  %v7603 = vadd.f32 %v7595, %v400
  %v7604 = vadd.f32 %v7596, %v401
  %v7605 = vadd.f32 %v7597, %v402
  %v7606 = vadd.f32 %v7598, %v403
  %v7607 = vadd.f32 %v7599, %v404
  %7608 = vst [vmem:[%s5] sm:$0xff] %v7600
  %7609 = vst [vmem:[%s5 + $0x8] sm:$0xff] %v7601
  %7610 = vst [vmem:[%s5 + $0x10] sm:$0xff] %v7604
  %7611 = vst [vmem:[%s5 + $0x18] sm:$0xff] %v7605
  %s7612 = scalar_lea.vmem %s5, 32
  %7613 = vst [vmem:[%s7612] sm:$0xff] %v7602
  %7614 = vst [vmem:[%s7612 + $0x8] sm:$0xff] %v7603
  %7615 = vst [vmem:[%s7612 + $0x10] sm:$0xff] %v7606
  %7616 = vst [vmem:[%s7612 + $0x18] sm:$0xff] %v7607
  // Predicated region
  $region22: #{conv_attn_block.1} parent=0 // pred_check
    _
  $region23: #{conv_attn_block.1} parent=0 // pred_check_branch
    %7618 = sbr.rel (0) target = $region25
  $region24: #{conv_attn_block.1} parent=0 // pred_region
    _
  $region25: #{conv_attn_block.1} parent=0 // pred_fallthru
    _
  // Predicated region
  $region26: #{conv_attn_block.1} parent=0 // pred_check
    _
  $region27: #{conv_attn_block.1} parent=0 // pred_check_branch
    %7620 = sbr.rel (0) target = $region29
  $region28: #{conv_attn_block.1} parent=0 // pred_region
    _
  $region29: #{conv_attn_block.1} parent=0 // pred_fallthru
    _

</llo_original>
